<compile_context>
chip_gen: v5e
topology: v5e:2x2
jax: 0.10.0
libtpu: 0.0.40
codegen_flags: <defaults>
</compile_context>

<pallas_src>
import math
from functools import partial

import jax
import jax.numpy as jnp
from jax.experimental import pallas as pl
from jax.experimental.pallas import tpu as pltpu

NEG_SLOPE = 0.2
LN_EPS = 1e-5
H_PAD = 128                      # lane-dense padded hidden width
VMEM_LIMIT = 48 * 1024 * 1024    # > v5e 16MiB default, < v7x 64MiB physical


# ------------------------------ small helpers ------------------------------

def _pad_lanes(x, h_pad):
    pad = h_pad - x.shape[-1]
    if pad <= 0:
        return x
    return jnp.pad(x, [(0, 0)] * (x.ndim - 1) + [(0, pad)])


def _pad_mat(w, h_pad):
    return jnp.pad(w, ((0, h_pad - w.shape[0]), (0, h_pad - w.shape[1])))


def _masked_ln(y, gamma, beta, lane_mask, inv_valid):
    """LayerNorm over the first `valid` lanes; padded lanes stay exactly 0
    (gamma/beta are zero-padded)."""
    mu = jnp.sum(jnp.where(lane_mask, y, 0.0), axis=-1, keepdims=True) * inv_valid
    diff = jnp.where(lane_mask, y - mu, 0.0)
    var = jnp.sum(diff * diff, axis=-1, keepdims=True) * inv_valid
    return diff * jax.lax.rsqrt(var + LN_EPS) * gamma + beta


# ------------------------------ Pallas kernels ------------------------------

def _matmul_kernel(x_ref, w_ref, o_ref):
    o_ref[...] = jnp.dot(x_ref[...], w_ref[...],
                         preferred_element_type=jnp.float32).astype(o_ref.dtype)


def pallas_matmul(x, w, *, block_rows=None):
    """x @ w on the MXU (bf16 in, f32 accumulate) -> bf16, row-tiled."""
    n, k = x.shape
    m = w.shape[1]
    br = n if block_rows is None else block_rows
    assert n % br == 0
    return pl.pallas_call(
        _matmul_kernel,
        out_shape=jax.ShapeDtypeStruct((n, m), jnp.bfloat16),
        grid_spec=pltpu.PrefetchScalarGridSpec(
            num_scalar_prefetch=0,
            grid=(n // br,),
            in_specs=[pl.BlockSpec((br, k), lambda r: (r, 0)),
                      pl.BlockSpec((k, m), lambda r: (0, 0))],
            out_specs=pl.BlockSpec((br, m), lambda r: (r, 0)),
        ),
        compiler_params=pltpu.CompilerParams(
            dimension_semantics=("parallel",),
            vmem_limit_bytes=VMEM_LIMIT),
    )(x.astype(jnp.bfloat16), w.astype(jnp.bfloat16))


def _type_gat_kernel(*refs, use_ln, valid):
    """One (edge_type, dst_block, src_block) grid step of the fused GAT:
    masked online softmax over sources (skipped for empty tiles), then
    (optional masked per-type LayerNorm) -> leaky_relu -> w_bt epilogue."""
    if use_ln:
        (cnt_ref, xd_ref, xs_ref, a_ref, mask_ref, ln_g_ref, ln_b_ref,
         w_ref, out_ref, li_sc, m_sc, l_sc, acc_sc) = refs
    else:
        (cnt_ref, xd_ref, xs_ref, a_ref, mask_ref,
         w_ref, out_ref, li_sc, m_sc, l_sc, acc_sc) = refs
        ln_g_ref = ln_b_ref = None

    t = pl.program_id(0)
    d = pl.program_id(1)
    s = pl.program_id(2)
    n_s = pl.num_programs(2)

    @pl.when(s == 0)
    def _init():
        m_sc[...] = jnp.full(m_sc.shape, -1e30, jnp.float32)
        l_sc[...] = jnp.zeros(l_sc.shape, jnp.float32)
        acc_sc[...] = jnp.zeros(acc_sc.shape, jnp.float32)
        # li depends only on (t, d): compute once per dst block, not per src tile.
        xd = xd_ref[...].astype(jnp.float32)                           # (TD, H)
        li_sc[...] = jnp.sum(xd * a_ref[0, 0:1, :], axis=-1, keepdims=True)

    # Skip tiles with zero type-t edges (per-tile counts prefetched into SMEM).
    flat = (t * pl.num_programs(1) + d) * n_s + s

    @pl.when(cnt_ref[flat] > 0)
    def _accumulate():
        xs = xs_ref[...]                                               # (TS, H) bf16
        m = mask_ref[0] != 0                                           # (TD, TS) bool
        a_j = a_ref[0, 1:2, :].astype(jnp.bfloat16)                    # (1, H)
        lj = jax.lax.dot_general(a_j, xs, (((1,), (1,)), ((), ())),
                                 preferred_element_type=jnp.float32)   # (1, TS)
        logits = li_sc[...] + lj                                       # (TD, TS)
        masked = jnp.where(m, logits, jnp.float32(-1e30))

        # online (flash-style) softmax over the source axis
        m_prev = m_sc[...]
        m_new = jnp.maximum(m_prev, jnp.max(masked, axis=-1, keepdims=True))
        corr = jnp.exp(m_prev - m_new)
        e = jnp.where(m, jnp.exp(masked - m_new), 0.0)
        l_sc[...] = corr * l_sc[...] + jnp.sum(e, axis=-1, keepdims=True)
        acc_sc[...] = corr * acc_sc[...] + jnp.dot(
            e.astype(jnp.bfloat16), xs, preferred_element_type=jnp.float32)
        m_sc[...] = m_new

    @pl.when(s == n_s - 1)
    def _finalize():
        # +1e-16 matches PyG's segment-softmax denominator; approx recip ~2^-12.
        inv_l = pl.reciprocal(l_sc[...] + 1e-16, approx=True)
        agg = acc_sc[...] * inv_l                                      # (TD, H) f32
        if use_ln:                                                     # DGATConv
            lane = jax.lax.broadcasted_iota(jnp.int32, (1, agg.shape[-1]), 1) < valid
            agg = _masked_ln(agg, ln_g_ref[0], ln_b_ref[0], lane, 1.0 / valid)
        hn = jnp.where(agg > 0, agg, NEG_SLOPE * agg)                  # leaky_relu
        out_ref[0] = jnp.dot(hn.astype(jnp.bfloat16), w_ref[...],
                             preferred_element_type=jnp.float32).astype(out_ref.dtype)


def fused_type_gat(x_dst, x_src, a_att, masks, w_bt, *, use_ln, valid,
                   ln_g=None, ln_b=None, block_dst=None, block_src=None):
    """All edge types in ONE gridded pallas_call. Returns (T, Nd, H_PAD) bf16."""
    num_types, nd, ns = masks.shape
    h = x_dst.shape[1]
    td = nd if block_dst is None else block_dst
    ts = ns if block_src is None else block_src
    # TODO(synk): pad Nd/Ns to tile multiples for real (non-divisible) graphs;
    # for production pick e.g. td=256, ts=1024 and keep the double-buffered
    # footprint well under v7x's 64 MiB VMEM.
    assert nd % td == 0 and ns % ts == 0
    ndb, nsb = nd // td, ns // ts

    # per-(type, dst_block, src_block) edge counts -> 1-D int32 scalar prefetch
    counts = jnp.sum((masks != 0).reshape(num_types, ndb, td, nsb, ts),
                     axis=(2, 4), dtype=jnp.int32).reshape(-1)

    in_specs = [
        pl.BlockSpec((td, h), lambda t, d, s, c: (d, 0)),            # x_dst
        pl.BlockSpec((ts, h), lambda t, d, s, c: (s, 0)),            # x_src
        pl.BlockSpec((1, 2, h), lambda t, d, s, c: (t, 0, 0)),       # [a_i; a_j] per type
        pl.BlockSpec((1, td, ts), lambda t, d, s, c: (t, d, s)),     # int8 adjacency
    ]
    args = [x_dst.astype(jnp.bfloat16), x_src.astype(jnp.bfloat16),
            a_att.astype(jnp.float32), masks]
    if use_ln:
        in_specs += [pl.BlockSpec((1, 1, h), lambda t, d, s, c: (t, 0, 0)),
                     pl.BlockSpec((1, 1, h), lambda t, d, s, c: (t, 0, 0))]
        args += [ln_g, ln_b]
    in_specs += [pl.BlockSpec((h, h), lambda t, d, s, c: (0, 0))]    # w_bt
    args += [w_bt.astype(jnp.bfloat16)]

    return pl.pallas_call(
        partial(_type_gat_kernel, use_ln=use_ln, valid=valid),
        out_shape=jax.ShapeDtypeStruct((num_types, nd, h), jnp.bfloat16),
        grid_spec=pltpu.PrefetchScalarGridSpec(
            num_scalar_prefetch=1,
            grid=(num_types, ndb, nsb),
            in_specs=in_specs,
            out_specs=pl.BlockSpec((1, td, h), lambda t, d, s, c: (t, d, 0)),
            scratch_shapes=[
                pltpu.VMEM((td, 1), jnp.float32),   # li  (dst-side logit)
                pltpu.VMEM((td, 1), jnp.float32),   # running max
                pltpu.VMEM((td, 1), jnp.float32),   # running denom
                pltpu.VMEM((td, h), jnp.float32),   # running numerator (lane dense)
            ],
        ),
        compiler_params=pltpu.CompilerParams(
            dimension_semantics=("parallel", "parallel", "arbitrary"),
            vmem_limit_bytes=VMEM_LIMIT),
    )(counts, *args)


def _combine_kernel(*refs, num_types, valid, extra_ln):
    """Dual attention over edge types + GELU/skip/masked-LayerNorm tail
    (optionally followed by the fused trailing HRGAT LayerNorm)."""
    if extra_ln:
        (outs_ref, x_ref, bt_ref, gw_ref, sc_ref,
         g1_ref, b1_ref, g2_ref, b2_ref, o_ref) = refs
    else:
        (outs_ref, x_ref, bt_ref, gw_ref, sc_ref, g1_ref, b1_ref, o_ref) = refs
        g2_ref = b2_ref = None

    h = x_ref.shape[-1]
    lane = jax.lax.broadcasted_iota(jnp.int32, (1, h), 1) < valid
    inv_valid = 1.0 / valid

    x = x_ref[...].astype(jnp.float32)                          # (R, H)
    bt_x = bt_ref[0:1, :]
    bt_o = bt_ref[1:2, :]
    base = jnp.sum(x * bt_x, axis=-1, keepdims=True)            # (R, 1)

    outs = [outs_ref[t].astype(jnp.float32) for t in range(num_types)]
    rs = [base + jnp.sum(o * bt_o, axis=-1, keepdims=True) for o in outs]
    mx = rs[0]
    for t in range(1, num_types):
        mx = jnp.maximum(mx, rs[t])
    es = [jnp.exp(r - mx) for r in rs]
    denom = es[0]
    for t in range(1, num_types):
        denom = denom + es[t]
    inv = pl.reciprocal(denom, approx=True)     # ~2^-12 rel err vs exact division

    beta_scale = sc_ref[0]      # (1 - sigmoid(beta_weight)) for DGAT, 1.0 for HetGAT
    fw = sc_ref[1]              # sigmoid(skip)
    res = jnp.zeros_like(x)
    for t in range(num_types):
        res = res + outs[t] * (beta_scale * (es[t] * inv) + gw_ref[t])

    # TODO(synk): tanh-approx GELU (EUP) vs torch's erf GELU: tiny numerical diff.
    c = jnp.float32(0.7978845608028654)
    gel = 0.5 * res * (1.0 + jnp.tanh(c * (res + 0.044715 * res * res * res)))
    y = gel * fw + x * (1.0 - fw)
    y = _masked_ln(y, g1_ref[...], b1_ref[...], lane, inv_valid)
    if extra_ln:                # fused trailing HRGAT LayerNorm (saves a launch)
        y = _masked_ln(y, g2_ref[...], b2_ref[...], lane, inv_valid)
    o_ref[...] = y.astype(o_ref.dtype)


def pallas_combine(outs, x, bt2, gw, sc, ln_g, ln_b, *, valid,
                   extra_ln=None, block_rows=None):
    num_types, nd, h = outs.shape
    br = nd if block_rows is None else block_rows
    assert nd % br == 0
    in_specs = [
        pl.BlockSpec((num_types, br, h), lambda r: (0, r, 0)),   # per-type outs (bf16)
        pl.BlockSpec((br, h), lambda r: (r, 0)),                 # x (bf16)
        pl.BlockSpec((2, h), lambda r: (0, 0)),                  # [bt_x; bt_o]
        pl.BlockSpec(memory_space=pltpu.MemorySpace.SMEM),       # gw (T,)
        pl.BlockSpec(memory_space=pltpu.MemorySpace.SMEM),       # sc (2,)
        pl.BlockSpec((1, h), lambda r: (0, 0)),                  # ln gamma
        pl.BlockSpec((1, h), lambda r: (0, 0)),                  # ln beta
    ]
    args = [outs, x.astype(jnp.bfloat16), bt2.astype(jnp.float32),
            gw.astype(jnp.float32), sc.astype(jnp.float32), ln_g, ln_b]
    if extra_ln is not None:
        in_specs += [pl.BlockSpec((1, h), lambda r: (0, 0)),
                     pl.BlockSpec((1, h), lambda r: (0, 0))]
        args += [extra_ln[0], extra_ln[1]]
    out_dtype = jnp.float32 if extra_ln is not None else jnp.bfloat16
    return pl.pallas_call(
        partial(_combine_kernel, num_types=num_types, valid=valid,
                extra_ln=extra_ln is not None),
        out_shape=jax.ShapeDtypeStruct((nd, h), out_dtype),
        grid_spec=pltpu.PrefetchScalarGridSpec(
            num_scalar_prefetch=0,
            grid=(nd // br,),
            in_specs=in_specs,
            out_specs=pl.BlockSpec((br, h), lambda r: (r, 0)),
        ),
        compiler_params=pltpu.CompilerParams(
            dimension_semantics=("parallel",),
            vmem_limit_bytes=VMEM_LIMIT),
    )(*args)


# --------------------------------- glue -----------------------------------

def dgat_conv(p, x, masks, out_hid):
    """DGATConv.forward (mask=None, global_weight=True, all edge types present)."""
    x = pallas_matmul(x, p["w_wi"])                                   # (N, H) bf16
    outs = fused_type_gat(x, x, p["a_att"], masks, p["w_bt"],
                          use_ln=True, valid=out_hid,
                          ln_g=p["ln_list_g"], ln_b=p["ln_list_b"])   # (T, N, H)
    bw = jax.nn.sigmoid(p["beta_weight"])[0]
    gw = bw * jax.nn.softmax(p["overall_beta"])                       # (T,)
    fw = jax.nn.sigmoid(p["skip"])[0]
    sc = jnp.stack([1.0 - bw, fw])
    return pallas_combine(outs, x, p["bt2"], gw, sc, p["ln_g"], p["ln_b"],
                          valid=out_hid)


def hetgat_conv(p, src_hid, dst_hid, masks, out_hid, extra_ln=None):
    """HetGATConv.forward: aggregation onto destinations (no per-type LN)."""
    outs = fused_type_gat(dst_hid, src_hid, p["a_att"], masks, p["w_bt"],
                          use_ln=False, valid=out_hid)
    gw = jnp.zeros((2,), jnp.float32)                   # no global_weight mixing
    sc = jnp.concatenate([jnp.ones((1,), jnp.float32), jax.nn.sigmoid(p["skip"])])
    return pallas_combine(outs, dst_hid, p["bt2"], gw, sc, p["ln_g"], p["ln_b"],
                          valid=out_hid, extra_ln=extra_ln)


def hrgat_forward(params, h_p, h_a, paper_masks, author_masks, het_masks, *, out_hid):
    """HRGATConv.forward with conv_name='dgat' (inference; dropout = identity)."""
    h_p = _pad_lanes(h_p, H_PAD)
    h_a = _pad_lanes(h_a, H_PAD)
    hgt = params["hgt"]
    for hl in range(len(hgt) // 2):
        h_p = dgat_conv(hgt[2 * hl], h_p, paper_masks, out_hid)
        h_a = dgat_conv(hgt[2 * hl + 1], h_a, author_masks, out_hid)
    # TODO(synk): rel_graph() is not defined in the reference; the author<->paper
    # cross edges are supplied by the caller directly as dense per-type masks.
    het_masks_t = jnp.transpose(het_masks, (0, 2, 1))   # edge_indx swapped
    hetgat = params["hetgat"]
    n_het = len(hetgat) // 2
    final_ln = (params["ln_g"], params["ln_b"])
    for ly in range(n_het):
        extra = final_ln if ly == n_het - 1 else None   # trailing LN fused here
        p_hid = hetgat_conv(hetgat[2 * ly], h_a, h_p, het_masks, out_hid,
                            extra_ln=extra)
        a_hid = hetgat_conv(hetgat[2 * ly + 1], h_p, h_a, het_masks_t, out_hid,
                            extra_ln=extra)
        h_a, h_p = a_hid, p_hid
    return h_a[:, :out_hid], h_p[:, :out_hid]


# ------------------------ deterministic parameter init ---------------------

def _glorot(key, shape):
    a = math.sqrt(6.0 / (shape[-2] + shape[-1]))
    return jax.random.uniform(key, shape, jnp.float32, -a, a)


def _linear(key, fin, fout):
    a = math.sqrt(6.0 / (fin + fout))
    return jax.random.uniform(key, (fin, fout), jnp.float32, -a, a)


def init_dgat(key, in_hid, out_hid, num_types):
    k = jax.random.split(key, 5)
    rel_wi = _glorot(k[0], (num_types, 2 * out_hid, 1))
    rel_bt = _glorot(k[1], (2 * out_hid, 1))
    return dict(
        a_att=_pad_lanes(rel_wi[..., 0].reshape(num_types, 2, out_hid), H_PAD),
        bt2=_pad_lanes(rel_bt[:, 0].reshape(2, out_hid), H_PAD),
        w_wi=_pad_mat(_linear(k[2], in_hid, out_hid), H_PAD).astype(jnp.bfloat16),
        w_bt=_pad_mat(_linear(k[3], out_hid, out_hid), H_PAD).astype(jnp.bfloat16),
        ln_g=_pad_lanes(jnp.ones((1, out_hid), jnp.float32), H_PAD),
        ln_b=jnp.zeros((1, H_PAD), jnp.float32),
        ln_list_g=_pad_lanes(jnp.ones((num_types, 1, out_hid), jnp.float32), H_PAD),
        ln_list_b=jnp.zeros((num_types, 1, H_PAD), jnp.float32),
        skip=jnp.ones((1,), jnp.float32),
        beta_weight=jnp.ones((1,), jnp.float32),
        overall_beta=jax.random.normal(k[4], (num_types,), jnp.float32),
    )


def init_hetgat(key, out_hid):
    k = jax.random.split(key, 3)
    rel_wi = _glorot(k[0], (2, 2 * out_hid, 1))
    rel_bt = _glorot(k[1], (2 * out_hid, 1))
    return dict(
        a_att=_pad_lanes(rel_wi[..., 0].reshape(2, 2, out_hid), H_PAD),
        bt2=_pad_lanes(rel_bt[:, 0].reshape(2, out_hid), H_PAD),
        w_bt=_pad_mat(_linear(k[2], out_hid, out_hid), H_PAD).astype(jnp.bfloat16),
        ln_g=_pad_lanes(jnp.ones((1, out_hid), jnp.float32), H_PAD),
        ln_b=jnp.zeros((1, H_PAD), jnp.float32),
        skip=jnp.ones((1,), jnp.float32),
    )


def init_hrgat(key, in_hid, out_hid, num_m1, num_m2, n_layers=2, hgt_layer=2):
    keys = jax.random.split(key, 2 * hgt_layer + 2 * n_layers)
    hgt, hetgat, ki = [], [], 0
    for hl in range(hgt_layer):
        cur_in = in_hid if hl == 0 else out_hid
        hgt.append(init_dgat(keys[ki], cur_in, out_hid, num_m1)); ki += 1
        hgt.append(init_dgat(keys[ki], cur_in, out_hid, num_m2)); ki += 1
    for _ in range(2 * n_layers):
        hetgat.append(init_hetgat(keys[ki], out_hid)); ki += 1
    # proj_a / proj_p / w_out / q_trans are never used in forward -> omitted.
    return dict(hgt=hgt, hetgat=hetgat,
                ln_g=_pad_lanes(jnp.ones((1, out_hid), jnp.float32), H_PAD),
                ln_b=jnp.zeros((1, H_PAD), jnp.float32))


# --------------------------- synthetic graph data --------------------------

def make_edges(key, n_src, n_dst, n_edges, num_types):
    flat = jax.random.choice(key, n_src * n_dst, (n_edges,), replace=False)
    src = (flat % n_src).astype(jnp.int32)
    dst = (flat // n_src).astype(jnp.int32)
    edge_idx = jnp.stack([src, dst])                 # [0]=source, [1]=destination
    edge_type = (jnp.arange(n_edges) % num_types).astype(jnp.int32)  # all types present
    return edge_idx, edge_type


def edges_to_masks(edge_idx, edge_type, num_types, n_dst, n_src):
    masks = jnp.zeros((num_types, n_dst, n_src), jnp.int8)
    return masks.at[edge_type, edge_idx[1], edge_idx[0]].set(1)   # compact int8 stream


if __name__ == "__main__":
    key = jax.random.PRNGKey(0)
    in_hid, out_hid = 16, 32
    n_paper, n_author = 16, 12
    num_m1, num_m2 = 3, 2
    n_layers, hgt_layer = 2, 2

    kp, ka, kpe, kae, khe, kparam = jax.random.split(key, 6)
    h_p0 = jax.random.normal(kp, (n_paper, in_hid), jnp.float32)   # paper_gh[0]
    h_a0 = jax.random.normal(ka, (n_author, in_hid), jnp.float32)  # author_gh[0]

    paper_eidx, paper_etype = make_edges(kpe, n_paper, n_paper, 40, num_m1)
    author_eidx, author_etype = make_edges(kae, n_author, n_author, 24, num_m2)
    het_eidx, het_etype = make_edges(khe, n_author, n_paper, 30, 2)  # [0]=author, [1]=paper

    paper_masks = edges_to_masks(paper_eidx, paper_etype, num_m1, n_paper, n_paper)
    author_masks = edges_to_masks(author_eidx, author_etype, num_m2, n_author, n_author)
    het_masks = edges_to_masks(het_eidx, het_etype, 2, n_paper, n_author)

    params = init_hrgat(kparam, in_hid, out_hid, num_m1, num_m2, n_layers, hgt_layer)

    fwd = jax.jit(partial(hrgat_forward, out_hid=out_hid))
    h_a, h_p = fwd(params, h_p0, h_a0, paper_masks, author_masks, het_masks)
    jax.block_until_ready((h_a, h_p))
    assert h_a.shape == (n_author, out_hid) and h_p.shape == (n_paper, out_hid)
    assert bool(jnp.isfinite(h_a).all()) and bool(jnp.isfinite(h_p).all())
    print("KERNEL_OK")
</pallas_src>

<mosaic_0001>
module attributes {stable_mosaic.version = 11 : i64} {
  func.func @_matmul_kernel(%arg0: i32, %arg1: memref<16x128xbf16, #tpu.memory_space<vmem>>, %arg2: memref<128x128xbf16, #tpu.memory_space<vmem>>, %arg3: memref<16x128xbf16, #tpu.memory_space<vmem>>) attributes {dimension_semantics = [#tpu.dimension_semantics<parallel>], iteration_bounds = array<i64: 1>, scalar_prefetch = 0 : i64, scratch_operands = 0 : i64, tpu.core_type = #tpu.core_type<tc>, window_params = [{transform_indices = @transform_0, window_bounds = array<i64: 16, 128>}, {pipeline_mode = #tpu.pipeline_mode<synchronous>, transform_indices = @transform_1, window_bounds = array<i64: 128, 128>}, {transform_indices = @transform_2, window_bounds = array<i64: 16, 128>}]} {
    %c0 = arith.constant 0 : index
    %c0_0 = arith.constant 0 : index
    %0 = vector.load %arg1[%c0, %c0_0] : memref<16x128xbf16, #tpu.memory_space<vmem>>, vector<16x128xbf16>
    %c0_1 = arith.constant 0 : index
    %c0_2 = arith.constant 0 : index
    %1 = vector.load %arg2[%c0_1, %c0_2] : memref<128x128xbf16, #tpu.memory_space<vmem>>, vector<128x128xbf16>
    %cst = arith.constant dense<0.000000e+00> : vector<16x128xf32>
    %2 = tpu.matmul %0, %1, %cst {dimension_numbers = #tpu.dot_dimension_numbers<[1], [0], [0], [1], [0, 0, 1, 1], [], []>} : vector<16x128xbf16>, vector<128x128xbf16>, vector<16x128xf32> -> vector<16x128xf32>
    %3 = arith.truncf %2 : vector<16x128xf32> to vector<16x128xbf16>
    %c0_3 = arith.constant 0 : index
    %c0_4 = arith.constant 0 : index
    %4 = vector.load %arg3[%c0_3, %c0_4] : memref<16x128xbf16, #tpu.memory_space<vmem>>, vector<16x128xbf16>
    tpu.vector_store %arg3[%c0_3, %c0_4], %3 {strides = array<i32>} : memref<16x128xbf16, #tpu.memory_space<vmem>>, vector<16x128xbf16>,
    return
  }
  func.func @transform_0(%arg0: i32) -> (i32, i32) {
    %c0_i32 = arith.constant 0 : i32
    %c0_i32_0 = arith.constant 0 : i32
    return %arg0, %c0_i32 : i32, i32
  }
  func.func @transform_1(%arg0: i32) -> (i32, i32) {
    %c0_i32 = arith.constant 0 : i32
    %c0_i32_0 = arith.constant 0 : i32
    %c0_i32_1 = arith.constant 0 : i32
    return %c0_i32, %c0_i32_0 : i32, i32
  }
  func.func @transform_2(%arg0: i32) -> (i32, i32) {
    %c0_i32 = arith.constant 0 : i32
    %c0_i32_0 = arith.constant 0 : i32
    return %arg0, %c0_i32 : i32, i32
  }
}

module attributes {stable_mosaic.version = 11 : i64} {
  func.func @_type_gat_kernel(%arg0: i32, %arg1: i32, %arg2: i32, %arg3: memref<3xi32, #tpu.memory_space<smem>>, %arg4: memref<16x128xbf16, #tpu.memory_space<vmem>>, %arg5: memref<16x128xbf16, #tpu.memory_space<vmem>>, %arg6: memref<1x2x128xf32, #tpu.memory_space<vmem>>, %arg7: memref<1x16x16xi8, #tpu.memory_space<vmem>>, %arg8: memref<1x1x128xf32, #tpu.memory_space<vmem>>, %arg9: memref<1x1x128xf32, #tpu.memory_space<vmem>>, %arg10: memref<128x128xbf16, #tpu.memory_space<vmem>>, %arg11: memref<1x16x128xbf16, #tpu.memory_space<vmem>>, %arg12: memref<16x1xf32, #tpu.memory_space<vmem>>, %arg13: memref<16x1xf32, #tpu.memory_space<vmem>>, %arg14: memref<16x1xf32, #tpu.memory_space<vmem>>, %arg15: memref<16x128xf32, #tpu.memory_space<vmem>>) attributes {dimension_semantics = [#tpu.dimension_semantics<parallel>, #tpu.dimension_semantics<parallel>, #tpu.dimension_semantics<arbitrary>], iteration_bounds = array<i64: 3, 1, 1>, scalar_prefetch = 1 : i64, scratch_operands = 4 : i64, tpu.core_type = #tpu.core_type<tc>, window_params = [{transform_indices = @transform_0, window_bounds = array<i64: 16, 128>}, {transform_indices = @transform_1, window_bounds = array<i64: 16, 128>}, {transform_indices = @transform_2, window_bounds = array<i64: 1, 2, 128>}, {transform_indices = @transform_3, window_bounds = array<i64: 1, 16, 16>}, {transform_indices = @transform_4, window_bounds = array<i64: 1, 1, 128>}, {transform_indices = @transform_5, window_bounds = array<i64: 1, 1, 128>}, {pipeline_mode = #tpu.pipeline_mode<synchronous>, transform_indices = @transform_6, window_bounds = array<i64: 128, 128>}, {transform_indices = @transform_7, window_bounds = array<i64: 1, 16, 128>}]} {
    %c0_i32 = arith.constant 0 : i32
    %0 = arith.cmpi eq, %arg2, %c0_i32 : i32
    %1 = arith.extui %0 : i1 to i32
    %c0_i32_0 = arith.constant 0 : i32
    %2 = arith.cmpi ne, %1, %c0_i32_0 : i32
    scf.if %2 {
      %cst = arith.constant -1.000000e+30 : f32
      %15 = vector.broadcast %cst : f32 to vector<16x1xf32>
      %c0 = arith.constant 0 : index
      %c0_6 = arith.constant 0 : index
      %16 = vector.load %arg13[%c0, %c0_6] : memref<16x1xf32, #tpu.memory_space<vmem>>, vector<16x1xf32>
      tpu.vector_store %arg13[%c0, %c0_6], %15 {strides = array<i32>} : memref<16x1xf32, #tpu.memory_space<vmem>>, vector<16x1xf32>,
      %cst_7 = arith.constant 0.000000e+00 : f32
      %17 = vector.broadcast %cst_7 : f32 to vector<16x1xf32>
      %c0_8 = arith.constant 0 : index
      %c0_9 = arith.constant 0 : index
      %18 = vector.load %arg14[%c0_8, %c0_9] : memref<16x1xf32, #tpu.memory_space<vmem>>, vector<16x1xf32>
      tpu.vector_store %arg14[%c0_8, %c0_9], %17 {strides = array<i32>} : memref<16x1xf32, #tpu.memory_space<vmem>>, vector<16x1xf32>,
      %cst_10 = arith.constant 0.000000e+00 : f32
      %19 = vector.broadcast %cst_10 : f32 to vector<16x128xf32>
      %c0_11 = arith.constant 0 : index
      %c0_12 = arith.constant 0 : index
      %20 = vector.load %arg15[%c0_11, %c0_12] : memref<16x128xf32, #tpu.memory_space<vmem>>, vector<16x128xf32>
      tpu.vector_store %arg15[%c0_11, %c0_12], %19 {strides = array<i32>} : memref<16x128xf32, #tpu.memory_space<vmem>>, vector<16x128xf32>,
      %c0_13 = arith.constant 0 : index
      %c0_14 = arith.constant 0 : index
      %21 = vector.load %arg4[%c0_13, %c0_14] : memref<16x128xbf16, #tpu.memory_space<vmem>>, vector<16x128xbf16>
      %22 = arith.extf %21 : vector<16x128xbf16> to vector<16x128xf32>
      %c0_15 = arith.constant 0 : index
      %c0_16 = arith.constant 0 : index
      %c0_17 = arith.constant 0 : index
      %23 = vector.load %arg6[%c0_15, %c0_16, %c0_17] : memref<1x2x128xf32, #tpu.memory_space<vmem>>, vector<1x1x128xf32>
      %24 = vector.shape_cast %23 : vector<1x1x128xf32> to vector<1x128xf32>
      %25 = vector.broadcast %24 : vector<1x128xf32> to vector<16x128xf32>
      %26 = arith.mulf %22, %25 : vector<16x128xf32>
      %cst_18 = arith.constant dense<0.000000e+00> : vector<16xf32>
      %27 = vector.multi_reduction <add>, %26, %cst_18 [1] : vector<16x128xf32> to vector<16xf32>
      %28 = vector.shape_cast %27 : vector<16xf32> to vector<16x1xf32>
      %c0_19 = arith.constant 0 : index
      %c0_20 = arith.constant 0 : index
      %29 = vector.load %arg12[%c0_19, %c0_20] : memref<16x1xf32, #tpu.memory_space<vmem>>, vector<16x1xf32>
      tpu.vector_store %arg12[%c0_19, %c0_20], %28 {strides = array<i32>} : memref<16x1xf32, #tpu.memory_space<vmem>>, vector<16x1xf32>,
    } else {
    }
    %c1_i32 = arith.constant 1 : i32
    %3 = arith.muli %arg0, %c1_i32 : i32
    %4 = arith.addi %3, %arg1 : i32
    %c1_i32_1 = arith.constant 1 : i32
    %5 = arith.muli %4, %c1_i32_1 : i32
    %6 = arith.addi %5, %arg2 : i32
    %7 = arith.index_cast %6 : i32 to index
    %8 = memref.load %arg3[%7] : memref<3xi32, #tpu.memory_space<smem>>
    %c0_i32_2 = arith.constant 0 : i32
    %9 = arith.cmpi sgt, %8, %c0_i32_2 : i32
    %10 = arith.extui %9 : i1 to i32
    %c0_i32_3 = arith.constant 0 : i32
    %11 = arith.cmpi ne, %10, %c0_i32_3 : i32
    scf.if %11 {
      %c0 = arith.constant 0 : index
      %c0_6 = arith.constant 0 : index
      %15 = vector.load %arg5[%c0, %c0_6] : memref<16x128xbf16, #tpu.memory_space<vmem>>, vector<16x128xbf16>
      %c0_7 = arith.constant 0 : index
      %c0_8 = arith.constant 0 : index
      %c0_9 = arith.constant 0 : index
      %16 = vector.load %arg7[%c0_7, %c0_8, %c0_9] : memref<1x16x16xi8, #tpu.memory_space<vmem>>, vector<1x16x16xi8>
      %17 = vector.shape_cast %16 : vector<1x16x16xi8> to vector<16x16xi8>
      %c0_i8 = arith.constant 0 : i8
      %18 = vector.broadcast %c0_i8 : i8 to vector<16x16xi8>
      %19 = arith.cmpi ne, %17, %18 : vector<16x16xi8>
      %c0_10 = arith.constant 0 : index
      %c1 = arith.constant 1 : index
      %c0_11 = arith.constant 0 : index
      %20 = vector.load %arg6[%c0_10, %c1, %c0_11] : memref<1x2x128xf32, #tpu.memory_space<vmem>>, vector<1x1x128xf32>
      %21 = vector.shape_cast %20 : vector<1x1x128xf32> to vector<1x128xf32>
      %22 = arith.truncf %21 : vector<1x128xf32> to vector<1x128xbf16>
      %cst = arith.constant dense<0.000000e+00> : vector<1x16xf32>
      %23 = tpu.matmul %22, %15, %cst {dimension_numbers = #tpu.dot_dimension_numbers<[1], [1], [0], [0], [0, 0, 1, 0], [], []>} : vector<1x128xbf16>, vector<16x128xbf16>, vector<1x16xf32> -> vector<1x16xf32>
      %c0_12 = arith.constant 0 : index
      %c0_13 = arith.constant 0 : index
      %24 = vector.load %arg12[%c0_12, %c0_13] : memref<16x1xf32, #tpu.memory_space<vmem>>, vector<16x1xf32>
      %25 = vector.broadcast %24 : vector<16x1xf32> to vector<16x16xf32>
      %26 = vector.broadcast %23 : vector<1x16xf32> to vector<16x16xf32>
      %27 = arith.addf %25, %26 : vector<16x16xf32>
      %cst_14 = arith.constant -1.000000e+30 : f32
      %28 = vector.broadcast %cst_14 : f32 to vector<16x16xf32>
      %29 = arith.select %19, %27, %28 : vector<16x16xi1>, vector<16x16xf32>
      %c0_15 = arith.constant 0 : index
      %c0_16 = arith.constant 0 : index
      %30 = vector.load %arg13[%c0_15, %c0_16] : memref<16x1xf32, #tpu.memory_space<vmem>>, vector<16x1xf32>
      %cst_17 = arith.constant dense<0xFF800000> : vector<16xf32>
      %31 = vector.multi_reduction <maximumf>, %29, %cst_17 [1] : vector<16x16xf32> to vector<16xf32>
      %32 = vector.shape_cast %31 : vector<16xf32> to vector<16x1xf32>
      %33 = arith.maximumf %30, %32 : vector<16x1xf32>
      %34 = arith.subf %30, %33 : vector<16x1xf32>
      %35 = math.exp %34 : vector<16x1xf32>
      %36 = vector.broadcast %33 : vector<16x1xf32> to vector<16x16xf32>
      %37 = arith.subf %29, %36 : vector<16x16xf32>
      %38 = math.exp %37 : vector<16x16xf32>
      %cst_18 = arith.constant 0.000000e+00 : f32
      %39 = vector.broadcast %cst_18 : f32 to vector<16x16xf32>
      %40 = arith.select %19, %38, %39 : vector<16x16xi1>, vector<16x16xf32>
      %c0_19 = arith.constant 0 : index
      %c0_20 = arith.constant 0 : index
      %41 = vector.load %arg14[%c0_19, %c0_20] : memref<16x1xf32, #tpu.memory_space<vmem>>, vector<16x1xf32>
      %42 = arith.mulf %35, %41 : vector<16x1xf32>
      %cst_21 = arith.constant dense<0.000000e+00> : vector<16xf32>
      %43 = vector.multi_reduction <add>, %40, %cst_21 [1] : vector<16x16xf32> to vector<16xf32>
      %44 = vector.shape_cast %43 : vector<16xf32> to vector<16x1xf32>
      %45 = arith.addf %42, %44 : vector<16x1xf32>
      %c0_22 = arith.constant 0 : index
      %c0_23 = arith.constant 0 : index
      %46 = vector.load %arg14[%c0_22, %c0_23] : memref<16x1xf32, #tpu.memory_space<vmem>>, vector<16x1xf32>
      tpu.vector_store %arg14[%c0_22, %c0_23], %45 {strides = array<i32>} : memref<16x1xf32, #tpu.memory_space<vmem>>, vector<16x1xf32>,
      %c0_24 = arith.constant 0 : index
      %c0_25 = arith.constant 0 : index
      %47 = vector.load %arg15[%c0_24, %c0_25] : memref<16x128xf32, #tpu.memory_space<vmem>>, vector<16x128xf32>
      %48 = vector.broadcast %35 : vector<16x1xf32> to vector<16x128xf32>
      %49 = arith.mulf %48, %47 : vector<16x128xf32>
      %50 = arith.truncf %40 : vector<16x16xf32> to vector<16x16xbf16>
      %cst_26 = arith.constant dense<0.000000e+00> : vector<16x128xf32>
      %51 = tpu.matmul %50, %15, %cst_26 {dimension_numbers = #tpu.dot_dimension_numbers<[1], [0], [0], [1], [0, 0, 1, 1], [], []>} : vector<16x16xbf16>, vector<16x128xbf16>, vector<16x128xf32> -> vector<16x128xf32>
      %52 = arith.addf %49, %51 : vector<16x128xf32>
      %c0_27 = arith.constant 0 : index
      %c0_28 = arith.constant 0 : index
      %53 = vector.load %arg15[%c0_27, %c0_28] : memref<16x128xf32, #tpu.memory_space<vmem>>, vector<16x128xf32>
      tpu.vector_store %arg15[%c0_27, %c0_28], %52 {strides = array<i32>} : memref<16x128xf32, #tpu.memory_space<vmem>>, vector<16x128xf32>,
      %c0_29 = arith.constant 0 : index
      %c0_30 = arith.constant 0 : index
      %54 = vector.load %arg13[%c0_29, %c0_30] : memref<16x1xf32, #tpu.memory_space<vmem>>, vector<16x1xf32>
      tpu.vector_store %arg13[%c0_29, %c0_30], %33 {strides = array<i32>} : memref<16x1xf32, #tpu.memory_space<vmem>>, vector<16x1xf32>,
    } else {
    }
    %c0_i32_4 = arith.constant 0 : i32
    %12 = arith.cmpi eq, %arg2, %c0_i32_4 : i32
    %13 = arith.extui %12 : i1 to i32
    %c0_i32_5 = arith.constant 0 : i32
    %14 = arith.cmpi ne, %13, %c0_i32_5 : i32
    scf.if %14 {
      %c0 = arith.constant 0 : index
      %c0_6 = arith.constant 0 : index
      %15 = vector.load %arg14[%c0, %c0_6] : memref<16x1xf32, #tpu.memory_space<vmem>>, vector<16x1xf32>
      %cst = arith.constant 1.000000e-16 : f32
      %16 = vector.broadcast %cst : f32 to vector<16x1xf32>
      %17 = arith.addf %15, %16 : vector<16x1xf32>
      %18 = tpu.reciprocal %17 {approx = true} : vector<16x1xf32> -> vector<16x1xf32>
      %c0_7 = arith.constant 0 : index
      %c0_8 = arith.constant 0 : index
      %19 = vector.load %arg15[%c0_7, %c0_8] : memref<16x128xf32, #tpu.memory_space<vmem>>, vector<16x128xf32>
      %20 = vector.broadcast %18 : vector<16x1xf32> to vector<16x128xf32>
      %21 = arith.mulf %19, %20 : vector<16x128xf32>
      %22 = tpu.iota {dimensions = array<i32: 1>} : vector<1x128xi32>
      %c32_i32 = arith.constant 32 : i32
      %23 = vector.broadcast %c32_i32 : i32 to vector<1x128xi32>
      %24 = arith.cmpi slt, %22, %23 : vector<1x128xi32>
      %c0_9 = arith.constant 0 : index
      %c0_10 = arith.constant 0 : index
      %c0_11 = arith.constant 0 : index
      %25 = vector.load %arg8[%c0_9, %c0_10, %c0_11] : memref<1x1x128xf32, #tpu.memory_space<vmem>>, vector<1x1x128xf32>
      %26 = vector.shape_cast %25 : vector<1x1x128xf32> to vector<1x128xf32>
      %c0_12 = arith.constant 0 : index
      %c0_13 = arith.constant 0 : index
      %c0_14 = arith.constant 0 : index
      %27 = vector.load %arg9[%c0_12, %c0_13, %c0_14] : memref<1x1x128xf32, #tpu.memory_space<vmem>>, vector<1x1x128xf32>
      %28 = vector.shape_cast %27 : vector<1x1x128xf32> to vector<1x128xf32>
      %cst_15 = arith.constant 0.000000e+00 : f32
      %29 = vector.shape_cast %24 : vector<1x128xi1> to vector<1x128xi1>
      %30 = vector.broadcast %29 : vector<1x128xi1> to vector<16x128xi1>
      %31 = vector.broadcast %cst_15 : f32 to vector<16x128xf32>
      %32 = arith.select %30, %21, %31 : vector<16x128xi1>, vector<16x128xf32>
      %cst_16 = arith.constant dense<0.000000e+00> : vector<16xf32>
      %33 = vector.multi_reduction <add>, %32, %cst_16 [1] : vector<16x128xf32> to vector<16xf32>
      %34 = vector.shape_cast %33 : vector<16xf32> to vector<16x1xf32>
      %cst_17 = arith.constant 3.125000e-02 : f32
      %35 = vector.broadcast %cst_17 : f32 to vector<16x1xf32>
      %36 = arith.mulf %34, %35 : vector<16x1xf32>
      %37 = vector.broadcast %36 : vector<16x1xf32> to vector<16x128xf32>
      %38 = arith.subf %21, %37 : vector<16x128xf32>
      %cst_18 = arith.constant 0.000000e+00 : f32
      %39 = vector.shape_cast %24 : vector<1x128xi1> to vector<1x128xi1>
      %40 = vector.broadcast %39 : vector<1x128xi1> to vector<16x128xi1>
      %41 = vector.broadcast %cst_18 : f32 to vector<16x128xf32>
      %42 = arith.select %40, %38, %41 : vector<16x128xi1>, vector<16x128xf32>
      %43 = arith.mulf %42, %42 : vector<16x128xf32>
      %cst_19 = arith.constant dense<0.000000e+00> : vector<16xf32>
      %44 = vector.multi_reduction <add>, %43, %cst_19 [1] : vector<16x128xf32> to vector<16xf32>
      %45 = vector.shape_cast %44 : vector<16xf32> to vector<16x1xf32>
      %cst_20 = arith.constant 3.125000e-02 : f32
      %46 = vector.broadcast %cst_20 : f32 to vector<16x1xf32>
      %47 = arith.mulf %45, %46 : vector<16x1xf32>
      %cst_21 = arith.constant 9.99999974E-6 : f32
      %48 = vector.broadcast %cst_21 : f32 to vector<16x1xf32>
      %49 = arith.addf %47, %48 : vector<16x1xf32>
      %50 = math.rsqrt %49 : vector<16x1xf32>
      %51 = vector.broadcast %50 : vector<16x1xf32> to vector<16x128xf32>
      %52 = arith.mulf %42, %51 : vector<16x128xf32>
      %53 = vector.broadcast %26 : vector<1x128xf32> to vector<16x128xf32>
      %54 = arith.mulf %52, %53 : vector<16x128xf32>
      %55 = vector.broadcast %28 : vector<1x128xf32> to vector<16x128xf32>
      %56 = arith.addf %54, %55 : vector<16x128xf32>
      %cst_22 = arith.constant 0.000000e+00 : f32
      %57 = vector.broadcast %cst_22 : f32 to vector<16x128xf32>
      %58 = arith.cmpf ogt, %56, %57 : vector<16x128xf32>
      %cst_23 = arith.constant 2.000000e-01 : f32
      %59 = vector.broadcast %cst_23 : f32 to vector<16x128xf32>
      %60 = arith.mulf %59, %56 : vector<16x128xf32>
      %61 = arith.select %58, %56, %60 : vector<16x128xi1>, vector<16x128xf32>
      %62 = arith.truncf %61 : vector<16x128xf32> to vector<16x128xbf16>
      %c0_24 = arith.constant 0 : index
      %c0_25 = arith.constant 0 : index
      %63 = vector.load %arg10[%c0_24, %c0_25] : memref<128x128xbf16, #tpu.memory_space<vmem>>, vector<128x128xbf16>
      %cst_26 = arith.constant dense<0.000000e+00> : vector<16x128xf32>
      %64 = tpu.matmul %62, %63, %cst_26 {dimension_numbers = #tpu.dot_dimension_numbers<[1], [0], [0], [1], [0, 0, 1, 1], [], []>} : vector<16x128xbf16>, vector<128x128xbf16>, vector<16x128xf32> -> vector<16x128xf32>
      %65 = arith.truncf %64 : vector<16x128xf32> to vector<16x128xbf16>
      %c0_27 = arith.constant 0 : index
      %c0_28 = arith.constant 0 : index
      %c0_29 = arith.constant 0 : index
      %66 = vector.load %arg11[%c0_27, %c0_28, %c0_29] : memref<1x16x128xbf16, #tpu.memory_space<vmem>>, vector<1x16x128xbf16>
      %67 = vector.shape_cast %66 : vector<1x16x128xbf16> to vector<16x128xbf16>
      %68 = vector.shape_cast %65 : vector<16x128xbf16> to vector<1x16x128xbf16>
      tpu.vector_store %arg11[%c0_27, %c0_28, %c0_29], %68 {strides = array<i32>} : memref<1x16x128xbf16, #tpu.memory_space<vmem>>, vector<1x16x128xbf16>,
    } else {
    }
    return
  }
  func.func @transform_0(%arg0: i32, %arg1: i32, %arg2: i32, %arg3: memref<3xi32, #tpu.memory_space<smem>>) -> (i32, i32) {
    %c0_i32 = arith.constant 0 : i32
    %c0_i32_0 = arith.constant 0 : i32
    return %arg1, %c0_i32 : i32, i32
  }
  func.func @transform_1(%arg0: i32, %arg1: i32, %arg2: i32, %arg3: memref<3xi32, #tpu.memory_space<smem>>) -> (i32, i32) {
    %c0_i32 = arith.constant 0 : i32
    %c0_i32_0 = arith.constant 0 : i32
    return %arg2, %c0_i32 : i32, i32
  }
  func.func @transform_2(%arg0: i32, %arg1: i32, %arg2: i32, %arg3: memref<3xi32, #tpu.memory_space<smem>>) -> (i32, i32, i32) {
    %c0_i32 = arith.constant 0 : i32
    %c0_i32_0 = arith.constant 0 : i32
    %c0_i32_1 = arith.constant 0 : i32
    return %arg0, %c0_i32, %c0_i32_0 : i32, i32, i32
  }
  func.func @transform_3(%arg0: i32, %arg1: i32, %arg2: i32, %arg3: memref<3xi32, #tpu.memory_space<smem>>) -> (i32, i32, i32) {
    %c0_i32 = arith.constant 0 : i32
    return %arg0, %arg1, %arg2 : i32, i32, i32
  }
  func.func @transform_4(%arg0: i32, %arg1: i32, %arg2: i32, %arg3: memref<3xi32, #tpu.memory_space<smem>>) -> (i32, i32, i32) {
    %c0_i32 = arith.constant 0 : i32
    %c0_i32_0 = arith.constant 0 : i32
    %c0_i32_1 = arith.constant 0 : i32
    return %arg0, %c0_i32, %c0_i32_0 : i32, i32, i32
  }
  func.func @transform_5(%arg0: i32, %arg1: i32, %arg2: i32, %arg3: memref<3xi32, #tpu.memory_space<smem>>) -> (i32, i32, i32) {
    %c0_i32 = arith.constant 0 : i32
    %c0_i32_0 = arith.constant 0 : i32
    %c0_i32_1 = arith.constant 0 : i32
    return %arg0, %c0_i32, %c0_i32_0 : i32, i32, i32
  }
  func.func @transform_6(%arg0: i32, %arg1: i32, %arg2: i32, %arg3: memref<3xi32, #tpu.memory_space<smem>>) -> (i32, i32) {
    %c0_i32 = arith.constant 0 : i32
    %c0_i32_0 = arith.constant 0 : i32
    %c0_i32_1 = arith.constant 0 : i32
    return %c0_i32, %c0_i32_0 : i32, i32
  }
  func.func @transform_7(%arg0: i32, %arg1: i32, %arg2: i32, %arg3: memref<3xi32, #tpu.memory_space<smem>>) -> (i32, i32, i32) {
    %c0_i32 = arith.constant 0 : i32
    %c0_i32_0 = arith.constant 0 : i32
    return %arg0, %arg1, %c0_i32 : i32, i32, i32
  }
}

module attributes {stable_mosaic.version = 11 : i64} {
  func.func @_matmul_kernel(%arg0: i32, %arg1: memref<16x128xbf16, #tpu.memory_space<vmem>>, %arg2: memref<128x128xbf16, #tpu.memory_space<vmem>>, %arg3: memref<16x128xbf16, #tpu.memory_space<vmem>>) attributes {dimension_semantics = [#tpu.dimension_semantics<parallel>], iteration_bounds = array<i64: 1>, scalar_prefetch = 0 : i64, scratch_operands = 0 : i64, tpu.core_type = #tpu.core_type<tc>, window_params = [{transform_indices = @transform_0, window_bounds = array<i64: 16, 128>}, {pipeline_mode = #tpu.pipeline_mode<synchronous>, transform_indices = @transform_1, window_bounds = array<i64: 128, 128>}, {transform_indices = @transform_2, window_bounds = array<i64: 16, 128>}]} {
    %c0 = arith.constant 0 : index
    %c0_0 = arith.constant 0 : index
    %0 = vector.load %arg1[%c0, %c0_0] : memref<16x128xbf16, #tpu.memory_space<vmem>>, vector<16x128xbf16>
    %c0_1 = arith.constant 0 : index
    %c0_2 = arith.constant 0 : index
    %1 = vector.load %arg2[%c0_1, %c0_2] : memref<128x128xbf16, #tpu.memory_space<vmem>>, vector<128x128xbf16>
    %cst = arith.constant dense<0.000000e+00> : vector<16x128xf32>
    %2 = tpu.matmul %0, %1, %cst {dimension_numbers = #tpu.dot_dimension_numbers<[1], [0], [0], [1], [0, 0, 1, 1], [], []>} : vector<16x128xbf16>, vector<128x128xbf16>, vector<16x128xf32> -> vector<16x128xf32>
    %3 = arith.truncf %2 : vector<16x128xf32> to vector<16x128xbf16>
    %c0_3 = arith.constant 0 : index
    %c0_4 = arith.constant 0 : index
    %4 = vector.load %arg3[%c0_3, %c0_4] : memref<16x128xbf16, #tpu.memory_space<vmem>>, vector<16x128xbf16>
    tpu.vector_store %arg3[%c0_3, %c0_4], %3 {strides = array<i32>} : memref<16x128xbf16, #tpu.memory_space<vmem>>, vector<16x128xbf16>,
    return
  }
  func.func @transform_0(%arg0: i32) -> (i32, i32) {
    %c0_i32 = arith.constant 0 : i32
    %c0_i32_0 = arith.constant 0 : i32
    return %arg0, %c0_i32 : i32, i32
  }
  func.func @transform_1(%arg0: i32) -> (i32, i32) {
    %c0_i32 = arith.constant 0 : i32
    %c0_i32_0 = arith.constant 0 : i32
    %c0_i32_1 = arith.constant 0 : i32
    return %c0_i32, %c0_i32_0 : i32, i32
  }
  func.func @transform_2(%arg0: i32) -> (i32, i32) {
    %c0_i32 = arith.constant 0 : i32
    %c0_i32_0 = arith.constant 0 : i32
    return %arg0, %c0_i32 : i32, i32
  }
}

module attributes {stable_mosaic.version = 11 : i64} {
  func.func @_combine_kernel(%arg0: i32, %arg1: memref<3x16x128xbf16, #tpu.memory_space<vmem>>, %arg2: memref<16x128xbf16, #tpu.memory_space<vmem>>, %arg3: memref<2x128xf32, #tpu.memory_space<vmem>>, %arg4: memref<3xf32, #tpu.memory_space<smem>>, %arg5: memref<2xf32, #tpu.memory_space<smem>>, %arg6: memref<1x128xf32, #tpu.memory_space<vmem>>, %arg7: memref<1x128xf32, #tpu.memory_space<vmem>>, %arg8: memref<16x128xbf16, #tpu.memory_space<vmem>>) attributes {dimension_semantics = [#tpu.dimension_semantics<parallel>], iteration_bounds = array<i64: 1>, scalar_prefetch = 0 : i64, scratch_operands = 0 : i64, tpu.core_type = #tpu.core_type<tc>, window_params = [{transform_indices = @transform_0, window_bounds = array<i64: 3, 16, 128>}, {transform_indices = @transform_1, window_bounds = array<i64: 16, 128>}, {pipeline_mode = #tpu.pipeline_mode<synchronous>, transform_indices = @transform_2, window_bounds = array<i64: 2, 128>}, {transform_indices = @transform_3, window_bounds = array<i64: 3>}, {transform_indices = @transform_4, window_bounds = array<i64: 2>}, {pipeline_mode = #tpu.pipeline_mode<synchronous>, transform_indices = @transform_5, window_bounds = array<i64: 1, 128>}, {pipeline_mode = #tpu.pipeline_mode<synchronous>, transform_indices = @transform_6, window_bounds = array<i64: 1, 128>}, {transform_indices = @transform_7, window_bounds = array<i64: 16, 128>}]} {
    %0 = tpu.iota {dimensions = array<i32: 1>} : vector<1x128xi32>
    %c32_i32 = arith.constant 32 : i32
    %1 = vector.broadcast %c32_i32 : i32 to vector<1x128xi32>
    %2 = arith.cmpi slt, %0, %1 : vector<1x128xi32>
    %c0 = arith.constant 0 : index
    %c0_0 = arith.constant 0 : index
    %3 = vector.load %arg2[%c0, %c0_0] : memref<16x128xbf16, #tpu.memory_space<vmem>>, vector<16x128xbf16>
    %4 = arith.extf %3 : vector<16x128xbf16> to vector<16x128xf32>
    %c0_1 = arith.constant 0 : index
    %c0_2 = arith.constant 0 : index
    %5 = vector.load %arg3[%c0_1, %c0_2] : memref<2x128xf32, #tpu.memory_space<vmem>>, vector<1x128xf32>
    %c1 = arith.constant 1 : index
    %c0_3 = arith.constant 0 : index
    %6 = vector.load %arg3[%c1, %c0_3] : memref<2x128xf32, #tpu.memory_space<vmem>>, vector<1x128xf32>
    %7 = vector.broadcast %5 : vector<1x128xf32> to vector<16x128xf32>
    %8 = arith.mulf %4, %7 : vector<16x128xf32>
    %cst = arith.constant dense<0.000000e+00> : vector<16xf32>
    %9 = vector.multi_reduction <add>, %8, %cst [1] : vector<16x128xf32> to vector<16xf32>
    %10 = vector.shape_cast %9 : vector<16xf32> to vector<16x1xf32>
    %c0_4 = arith.constant 0 : index
    %c0_5 = arith.constant 0 : index
    %c0_6 = arith.constant 0 : index
    %11 = vector.load %arg1[%c0_4, %c0_5, %c0_6] : memref<3x16x128xbf16, #tpu.memory_space<vmem>>, vector<1x16x128xbf16>
    %12 = vector.shape_cast %11 : vector<1x16x128xbf16> to vector<16x128xbf16>
    %13 = arith.extf %12 : vector<16x128xbf16> to vector<16x128xf32>
    %c1_7 = arith.constant 1 : index
    %c0_8 = arith.constant 0 : index
    %c0_9 = arith.constant 0 : index
    %14 = vector.load %arg1[%c1_7, %c0_8, %c0_9] : memref<3x16x128xbf16, #tpu.memory_space<vmem>>, vector<1x16x128xbf16>
    %15 = vector.shape_cast %14 : vector<1x16x128xbf16> to vector<16x128xbf16>
    %16 = arith.extf %15 : vector<16x128xbf16> to vector<16x128xf32>
    %c2 = arith.constant 2 : index
    %c0_10 = arith.constant 0 : index
    %c0_11 = arith.constant 0 : index
    %17 = vector.load %arg1[%c2, %c0_10, %c0_11] : memref<3x16x128xbf16, #tpu.memory_space<vmem>>, vector<1x16x128xbf16>
    %18 = vector.shape_cast %17 : vector<1x16x128xbf16> to vector<16x128xbf16>
    %19 = arith.extf %18 : vector<16x128xbf16> to vector<16x128xf32>
    %20 = vector.broadcast %6 : vector<1x128xf32> to vector<16x128xf32>
    %21 = arith.mulf %13, %20 : vector<16x128xf32>
    %cst_12 = arith.constant dense<0.000000e+00> : vector<16xf32>
    %22 = vector.multi_reduction <add>, %21, %cst_12 [1] : vector<16x128xf32> to vector<16xf32>
    %23 = vector.shape_cast %22 : vector<16xf32> to vector<16x1xf32>
    %24 = arith.addf %10, %23 : vector<16x1xf32>
    %25 = vector.broadcast %6 : vector<1x128xf32> to vector<16x128xf32>
    %26 = arith.mulf %16, %25 : vector<16x128xf32>
    %cst_13 = arith.constant dense<0.000000e+00> : vector<16xf32>
    %27 = vector.multi_reduction <add>, %26, %cst_13 [1] : vector<16x128xf32> to vector<16xf32>
    %28 = vector.shape_cast %27 : vector<16xf32> to vector<16x1xf32>
    %29 = arith.addf %10, %28 : vector<16x1xf32>
    %30 = vector.broadcast %6 : vector<1x128xf32> to vector<16x128xf32>
    %31 = arith.mulf %19, %30 : vector<16x128xf32>
    %cst_14 = arith.constant dense<0.000000e+00> : vector<16xf32>
    %32 = vector.multi_reduction <add>, %31, %cst_14 [1] : vector<16x128xf32> to vector<16xf32>
    %33 = vector.shape_cast %32 : vector<16xf32> to vector<16x1xf32>
    %34 = arith.addf %10, %33 : vector<16x1xf32>
    %35 = arith.maximumf %24, %29 : vector<16x1xf32>
    %36 = arith.maximumf %35, %34 : vector<16x1xf32>
    %37 = arith.subf %24, %36 : vector<16x1xf32>
    %38 = math.exp %37 : vector<16x1xf32>
    %39 = arith.subf %29, %36 : vector<16x1xf32>
    %40 = math.exp %39 : vector<16x1xf32>
    %41 = arith.subf %34, %36 : vector<16x1xf32>
    %42 = math.exp %41 : vector<16x1xf32>
    %43 = arith.addf %38, %40 : vector<16x1xf32>
    %44 = arith.addf %43, %42 : vector<16x1xf32>
    %45 = tpu.reciprocal %44 {approx = true} : vector<16x1xf32> -> vector<16x1xf32>
    %c0_15 = arith.constant 0 : index
    %46 = memref.load %arg5[%c0_15] : memref<2xf32, #tpu.memory_space<smem>>
    %c1_16 = arith.constant 1 : index
    %47 = memref.load %arg5[%c1_16] : memref<2xf32, #tpu.memory_space<smem>>
    %cst_17 = arith.constant 0.000000e+00 : f32
    %48 = vector.broadcast %cst_17 : f32 to vector<16x128xf32>
    %49 = arith.mulf %38, %45 : vector<16x1xf32>
    %50 = vector.broadcast %46 : f32 to vector<16x1xf32>
    %51 = arith.mulf %50, %49 : vector<16x1xf32>
    %c0_18 = arith.constant 0 : index
    %52 = memref.load %arg4[%c0_18] : memref<3xf32, #tpu.memory_space<smem>>
    %53 = vector.broadcast %52 : f32 to vector<16x1xf32>
    %54 = arith.addf %51, %53 : vector<16x1xf32>
    %55 = vector.broadcast %54 : vector<16x1xf32> to vector<16x128xf32>
    %56 = arith.mulf %13, %55 : vector<16x128xf32>
    %57 = arith.addf %48, %56 : vector<16x128xf32>
    %58 = arith.mulf %40, %45 : vector<16x1xf32>
    %59 = vector.broadcast %46 : f32 to vector<16x1xf32>
    %60 = arith.mulf %59, %58 : vector<16x1xf32>
    %c1_19 = arith.constant 1 : index
    %61 = memref.load %arg4[%c1_19] : memref<3xf32, #tpu.memory_space<smem>>
    %62 = vector.broadcast %61 : f32 to vector<16x1xf32>
    %63 = arith.addf %60, %62 : vector<16x1xf32>
    %64 = vector.broadcast %63 : vector<16x1xf32> to vector<16x128xf32>
    %65 = arith.mulf %16, %64 : vector<16x128xf32>
    %66 = arith.addf %57, %65 : vector<16x128xf32>
    %67 = arith.mulf %42, %45 : vector<16x1xf32>
    %68 = vector.broadcast %46 : f32 to vector<16x1xf32>
    %69 = arith.mulf %68, %67 : vector<16x1xf32>
    %c2_20 = arith.constant 2 : index
    %70 = memref.load %arg4[%c2_20] : memref<3xf32, #tpu.memory_space<smem>>
    %71 = vector.broadcast %70 : f32 to vector<16x1xf32>
    %72 = arith.addf %69, %71 : vector<16x1xf32>
    %73 = vector.broadcast %72 : vector<16x1xf32> to vector<16x128xf32>
    %74 = arith.mulf %19, %73 : vector<16x128xf32>
    %75 = arith.addf %66, %74 : vector<16x128xf32>
    %cst_21 = arith.constant 5.000000e-01 : f32
    %76 = vector.broadcast %cst_21 : f32 to vector<16x128xf32>
    %77 = arith.mulf %76, %75 : vector<16x128xf32>
    %cst_22 = arith.constant 4.471500e-02 : f32
    %78 = vector.broadcast %cst_22 : f32 to vector<16x128xf32>
    %79 = arith.mulf %78, %75 : vector<16x128xf32>
    %80 = arith.mulf %79, %75 : vector<16x128xf32>
    %81 = arith.mulf %80, %75 : vector<16x128xf32>
    %82 = arith.addf %75, %81 : vector<16x128xf32>
    %cst_23 = arith.constant 0.797884583 : f32
    %83 = vector.broadcast %cst_23 : f32 to vector<16x128xf32>
    %84 = arith.mulf %83, %82 : vector<16x128xf32>
    %85 = math.tanh %84 : vector<16x128xf32>
    %cst_24 = arith.constant 1.000000e+00 : f32
    %86 = vector.broadcast %cst_24 : f32 to vector<16x128xf32>
    %87 = arith.addf %86, %85 : vector<16x128xf32>
    %88 = arith.mulf %77, %87 : vector<16x128xf32>
    %89 = vector.broadcast %47 : f32 to vector<16x128xf32>
    %90 = arith.mulf %88, %89 : vector<16x128xf32>
    %cst_25 = arith.constant 1.000000e+00 : f32
    %91 = arith.subf %cst_25, %47 : f32
    %92 = vector.broadcast %91 : f32 to vector<16x128xf32>
    %93 = arith.mulf %4, %92 : vector<16x128xf32>
    %94 = arith.addf %90, %93 : vector<16x128xf32>
    %c0_26 = arith.constant 0 : index
    %c0_27 = arith.constant 0 : index
    %95 = vector.load %arg6[%c0_26, %c0_27] : memref<1x128xf32, #tpu.memory_space<vmem>>, vector<1x128xf32>
    %c0_28 = arith.constant 0 : index
    %c0_29 = arith.constant 0 : index
    %96 = vector.load %arg7[%c0_28, %c0_29] : memref<1x128xf32, #tpu.memory_space<vmem>>, vector<1x128xf32>
    %cst_30 = arith.constant 0.000000e+00 : f32
    %97 = vector.shape_cast %2 : vector<1x128xi1> to vector<1x128xi1>
    %98 = vector.broadcast %97 : vector<1x128xi1> to vector<16x128xi1>
    %99 = vector.broadcast %cst_30 : f32 to vector<16x128xf32>
    %100 = arith.select %98, %94, %99 : vector<16x128xi1>, vector<16x128xf32>
    %cst_31 = arith.constant dense<0.000000e+00> : vector<16xf32>
    %101 = vector.multi_reduction <add>, %100, %cst_31 [1] : vector<16x128xf32> to vector<16xf32>
    %102 = vector.shape_cast %101 : vector<16xf32> to vector<16x1xf32>
    %cst_32 = arith.constant 3.125000e-02 : f32
    %103 = vector.broadcast %cst_32 : f32 to vector<16x1xf32>
    %104 = arith.mulf %102, %103 : vector<16x1xf32>
    %105 = vector.broadcast %104 : vector<16x1xf32> to vector<16x128xf32>
    %106 = arith.subf %94, %105 : vector<16x128xf32>
    %cst_33 = arith.constant 0.000000e+00 : f32
    %107 = vector.shape_cast %2 : vector<1x128xi1> to vector<1x128xi1>
    %108 = vector.broadcast %107 : vector<1x128xi1> to vector<16x128xi1>
    %109 = vector.broadcast %cst_33 : f32 to vector<16x128xf32>
    %110 = arith.select %108, %106, %109 : vector<16x128xi1>, vector<16x128xf32>
    %111 = arith.mulf %110, %110 : vector<16x128xf32>
    %cst_34 = arith.constant dense<0.000000e+00> : vector<16xf32>
    %112 = vector.multi_reduction <add>, %111, %cst_34 [1] : vector<16x128xf32> to vector<16xf32>
    %113 = vector.shape_cast %112 : vector<16xf32> to vector<16x1xf32>
    %cst_35 = arith.constant 3.125000e-02 : f32
    %114 = vector.broadcast %cst_35 : f32 to vector<16x1xf32>
    %115 = arith.mulf %113, %114 : vector<16x1xf32>
    %cst_36 = arith.constant 9.99999974E-6 : f32
    %116 = vector.broadcast %cst_36 : f32 to vector<16x1xf32>
    %117 = arith.addf %115, %116 : vector<16x1xf32>
    %118 = math.rsqrt %117 : vector<16x1xf32>
    %119 = vector.broadcast %118 : vector<16x1xf32> to vector<16x128xf32>
    %120 = arith.mulf %110, %119 : vector<16x128xf32>
    %121 = vector.broadcast %95 : vector<1x128xf32> to vector<16x128xf32>
    %122 = arith.mulf %120, %121 : vector<16x128xf32>
    %123 = vector.broadcast %96 : vector<1x128xf32> to vector<16x128xf32>
    %124 = arith.addf %122, %123 : vector<16x128xf32>
    %125 = arith.truncf %124 : vector<16x128xf32> to vector<16x128xbf16>
    %c0_37 = arith.constant 0 : index
    %c0_38 = arith.constant 0 : index
    %126 = vector.load %arg8[%c0_37, %c0_38] : memref<16x128xbf16, #tpu.memory_space<vmem>>, vector<16x128xbf16>
    tpu.vector_store %arg8[%c0_37, %c0_38], %125 {strides = array<i32>} : memref<16x128xbf16, #tpu.memory_space<vmem>>, vector<16x128xbf16>,
    return
  }
  func.func @transform_0(%arg0: i32) -> (i32, i32, i32) {
    %c0_i32 = arith.constant 0 : i32
    %c0_i32_0 = arith.constant 0 : i32
    %c0_i32_1 = arith.constant 0 : i32
    return %c0_i32, %arg0, %c0_i32_0 : i32, i32, i32
  }
  func.func @transform_1(%arg0: i32) -> (i32, i32) {
    %c0_i32 = arith.constant 0 : i32
    %c0_i32_0 = arith.constant 0 : i32
    return %arg0, %c0_i32 : i32, i32
  }
  func.func @transform_2(%arg0: i32) -> (i32, i32) {
    %c0_i32 = arith.constant 0 : i32
    %c0_i32_0 = arith.constant 0 : i32
    %c0_i32_1 = arith.constant 0 : i32
    return %c0_i32, %c0_i32_0 : i32, i32
  }
  func.func @transform_3(%arg0: i32) -> i32 {
    %c0_i32 = arith.constant 0 : i32
    %c0_i32_0 = arith.constant 0 : i32
    return %c0_i32 : i32
  }
  func.func @transform_4(%arg0: i32) -> i32 {
    %c0_i32 = arith.constant 0 : i32
    %c0_i32_0 = arith.constant 0 : i32
    return %c0_i32 : i32
  }
  func.func @transform_5(%arg0: i32) -> (i32, i32) {
    %c0_i32 = arith.constant 0 : i32
    %c0_i32_0 = arith.constant 0 : i32
    %c0_i32_1 = arith.constant 0 : i32
    return %c0_i32, %c0_i32_0 : i32, i32
  }
  func.func @transform_6(%arg0: i32) -> (i32, i32) {
    %c0_i32 = arith.constant 0 : i32
    %c0_i32_0 = arith.constant 0 : i32
    %c0_i32_1 = arith.constant 0 : i32
    return %c0_i32, %c0_i32_0 : i32, i32
  }
  func.func @transform_7(%arg0: i32) -> (i32, i32) {
    %c0_i32 = arith.constant 0 : i32
    %c0_i32_0 = arith.constant 0 : i32
    return %arg0, %c0_i32 : i32, i32
  }
}

module attributes {stable_mosaic.version = 11 : i64} {
  func.func @_matmul_kernel(%arg0: i32, %arg1: memref<12x128xbf16, #tpu.memory_space<vmem>>, %arg2: memref<128x128xbf16, #tpu.memory_space<vmem>>, %arg3: memref<12x128xbf16, #tpu.memory_space<vmem>>) attributes {dimension_semantics = [#tpu.dimension_semantics<parallel>], iteration_bounds = array<i64: 1>, scalar_prefetch = 0 : i64, scratch_operands = 0 : i64, tpu.core_type = #tpu.core_type<tc>, window_params = [{transform_indices = @transform_0, window_bounds = array<i64: 12, 128>}, {pipeline_mode = #tpu.pipeline_mode<synchronous>, transform_indices = @transform_1, window_bounds = array<i64: 128, 128>}, {transform_indices = @transform_2, window_bounds = array<i64: 12, 128>}]} {
    %c0 = arith.constant 0 : index
    %c0_0 = arith.constant 0 : index
    %0 = vector.load %arg1[%c0, %c0_0] : memref<12x128xbf16, #tpu.memory_space<vmem>>, vector<12x128xbf16>
    %c0_1 = arith.constant 0 : index
    %c0_2 = arith.constant 0 : index
    %1 = vector.load %arg2[%c0_1, %c0_2] : memref<128x128xbf16, #tpu.memory_space<vmem>>, vector<128x128xbf16>
    %cst = arith.constant dense<0.000000e+00> : vector<12x128xf32>
    %2 = tpu.matmul %0, %1, %cst {dimension_numbers = #tpu.dot_dimension_numbers<[1], [0], [0], [1], [0, 0, 1, 1], [], []>} : vector<12x128xbf16>, vector<128x128xbf16>, vector<12x128xf32> -> vector<12x128xf32>
    %3 = arith.truncf %2 : vector<12x128xf32> to vector<12x128xbf16>
    %c0_3 = arith.constant 0 : index
    %c0_4 = arith.constant 0 : index
    %4 = vector.load %arg3[%c0_3, %c0_4] : memref<12x128xbf16, #tpu.memory_space<vmem>>, vector<12x128xbf16>
    tpu.vector_store %arg3[%c0_3, %c0_4], %3 {strides = array<i32>} : memref<12x128xbf16, #tpu.memory_space<vmem>>, vector<12x128xbf16>,
    return
  }
  func.func @transform_0(%arg0: i32) -> (i32, i32) {
    %c0_i32 = arith.constant 0 : i32
    %c0_i32_0 = arith.constant 0 : i32
    return %arg0, %c0_i32 : i32, i32
  }
  func.func @transform_1(%arg0: i32) -> (i32, i32) {
    %c0_i32 = arith.constant 0 : i32
    %c0_i32_0 = arith.constant 0 : i32
    %c0_i32_1 = arith.constant 0 : i32
    return %c0_i32, %c0_i32_0 : i32, i32
  }
  func.func @transform_2(%arg0: i32) -> (i32, i32) {
    %c0_i32 = arith.constant 0 : i32
    %c0_i32_0 = arith.constant 0 : i32
    return %arg0, %c0_i32 : i32, i32
  }
}

module attributes {stable_mosaic.version = 11 : i64} {
  func.func @_type_gat_kernel(%arg0: i32, %arg1: i32, %arg2: i32, %arg3: memref<2xi32, #tpu.memory_space<smem>>, %arg4: memref<12x128xbf16, #tpu.memory_space<vmem>>, %arg5: memref<12x128xbf16, #tpu.memory_space<vmem>>, %arg6: memref<1x2x128xf32, #tpu.memory_space<vmem>>, %arg7: memref<1x12x12xi8, #tpu.memory_space<vmem>>, %arg8: memref<1x1x128xf32, #tpu.memory_space<vmem>>, %arg9: memref<1x1x128xf32, #tpu.memory_space<vmem>>, %arg10: memref<128x128xbf16, #tpu.memory_space<vmem>>, %arg11: memref<1x12x128xbf16, #tpu.memory_space<vmem>>, %arg12: memref<12x1xf32, #tpu.memory_space<vmem>>, %arg13: memref<12x1xf32, #tpu.memory_space<vmem>>, %arg14: memref<12x1xf32, #tpu.memory_space<vmem>>, %arg15: memref<12x128xf32, #tpu.memory_space<vmem>>) attributes {dimension_semantics = [#tpu.dimension_semantics<parallel>, #tpu.dimension_semantics<parallel>, #tpu.dimension_semantics<arbitrary>], iteration_bounds = array<i64: 2, 1, 1>, scalar_prefetch = 1 : i64, scratch_operands = 4 : i64, tpu.core_type = #tpu.core_type<tc>, window_params = [{transform_indices = @transform_0, window_bounds = array<i64: 12, 128>}, {transform_indices = @transform_1, window_bounds = array<i64: 12, 128>}, {transform_indices = @transform_2, window_bounds = array<i64: 1, 2, 128>}, {transform_indices = @transform_3, window_bounds = array<i64: 1, 12, 12>}, {transform_indices = @transform_4, window_bounds = array<i64: 1, 1, 128>}, {transform_indices = @transform_5, window_bounds = array<i64: 1, 1, 128>}, {pipeline_mode = #tpu.pipeline_mode<synchronous>, transform_indices = @transform_6, window_bounds = array<i64: 128, 128>}, {transform_indices = @transform_7, window_bounds = array<i64: 1, 12, 128>}]} {
    %c0_i32 = arith.constant 0 : i32
    %0 = arith.cmpi eq, %arg2, %c0_i32 : i32
    %1 = arith.extui %0 : i1 to i32
    %c0_i32_0 = arith.constant 0 : i32
    %2 = arith.cmpi ne, %1, %c0_i32_0 : i32
    scf.if %2 {
      %cst = arith.constant -1.000000e+30 : f32
      %15 = vector.broadcast %cst : f32 to vector<12x1xf32>
      %c0 = arith.constant 0 : index
      %c0_6 = arith.constant 0 : index
      %16 = vector.load %arg13[%c0, %c0_6] : memref<12x1xf32, #tpu.memory_space<vmem>>, vector<12x1xf32>
      tpu.vector_store %arg13[%c0, %c0_6], %15 {strides = array<i32>} : memref<12x1xf32, #tpu.memory_space<vmem>>, vector<12x1xf32>,
      %cst_7 = arith.constant 0.000000e+00 : f32
      %17 = vector.broadcast %cst_7 : f32 to vector<12x1xf32>
      %c0_8 = arith.constant 0 : index
      %c0_9 = arith.constant 0 : index
      %18 = vector.load %arg14[%c0_8, %c0_9] : memref<12x1xf32, #tpu.memory_space<vmem>>, vector<12x1xf32>
      tpu.vector_store %arg14[%c0_8, %c0_9], %17 {strides = array<i32>} : memref<12x1xf32, #tpu.memory_space<vmem>>, vector<12x1xf32>,
      %cst_10 = arith.constant 0.000000e+00 : f32
      %19 = vector.broadcast %cst_10 : f32 to vector<12x128xf32>
      %c0_11 = arith.constant 0 : index
      %c0_12 = arith.constant 0 : index
      %20 = vector.load %arg15[%c0_11, %c0_12] : memref<12x128xf32, #tpu.memory_space<vmem>>, vector<12x128xf32>
      tpu.vector_store %arg15[%c0_11, %c0_12], %19 {strides = array<i32>} : memref<12x128xf32, #tpu.memory_space<vmem>>, vector<12x128xf32>,
      %c0_13 = arith.constant 0 : index
      %c0_14 = arith.constant 0 : index
      %21 = vector.load %arg4[%c0_13, %c0_14] : memref<12x128xbf16, #tpu.memory_space<vmem>>, vector<12x128xbf16>
      %22 = arith.extf %21 : vector<12x128xbf16> to vector<12x128xf32>
      %c0_15 = arith.constant 0 : index
      %c0_16 = arith.constant 0 : index
      %c0_17 = arith.constant 0 : index
      %23 = vector.load %arg6[%c0_15, %c0_16, %c0_17] : memref<1x2x128xf32, #tpu.memory_space<vmem>>, vector<1x1x128xf32>
      %24 = vector.shape_cast %23 : vector<1x1x128xf32> to vector<1x128xf32>
      %25 = vector.broadcast %24 : vector<1x128xf32> to vector<12x128xf32>
      %26 = arith.mulf %22, %25 : vector<12x128xf32>
      %cst_18 = arith.constant dense<0.000000e+00> : vector<12xf32>
      %27 = vector.multi_reduction <add>, %26, %cst_18 [1] : vector<12x128xf32> to vector<12xf32>
      %28 = vector.shape_cast %27 : vector<12xf32> to vector<12x1xf32>
      %c0_19 = arith.constant 0 : index
      %c0_20 = arith.constant 0 : index
      %29 = vector.load %arg12[%c0_19, %c0_20] : memref<12x1xf32, #tpu.memory_space<vmem>>, vector<12x1xf32>
      tpu.vector_store %arg12[%c0_19, %c0_20], %28 {strides = array<i32>} : memref<12x1xf32, #tpu.memory_space<vmem>>, vector<12x1xf32>,
    } else {
    }
    %c1_i32 = arith.constant 1 : i32
    %3 = arith.muli %arg0, %c1_i32 : i32
    %4 = arith.addi %3, %arg1 : i32
    %c1_i32_1 = arith.constant 1 : i32
    %5 = arith.muli %4, %c1_i32_1 : i32
    %6 = arith.addi %5, %arg2 : i32
    %7 = arith.index_cast %6 : i32 to index
    %8 = memref.load %arg3[%7] : memref<2xi32, #tpu.memory_space<smem>>
    %c0_i32_2 = arith.constant 0 : i32
    %9 = arith.cmpi sgt, %8, %c0_i32_2 : i32
    %10 = arith.extui %9 : i1 to i32
    %c0_i32_3 = arith.constant 0 : i32
    %11 = arith.cmpi ne, %10, %c0_i32_3 : i32
    scf.if %11 {
      %c0 = arith.constant 0 : index
      %c0_6 = arith.constant 0 : index
      %15 = vector.load %arg5[%c0, %c0_6] : memref<12x128xbf16, #tpu.memory_space<vmem>>, vector<12x128xbf16>
      %c0_7 = arith.constant 0 : index
      %c0_8 = arith.constant 0 : index
      %c0_9 = arith.constant 0 : index
      %16 = vector.load %arg7[%c0_7, %c0_8, %c0_9] : memref<1x12x12xi8, #tpu.memory_space<vmem>>, vector<1x12x12xi8>
      %17 = vector.shape_cast %16 : vector<1x12x12xi8> to vector<12x12xi8>
      %c0_i8 = arith.constant 0 : i8
      %18 = vector.broadcast %c0_i8 : i8 to vector<12x12xi8>
      %19 = arith.cmpi ne, %17, %18 : vector<12x12xi8>
      %c0_10 = arith.constant 0 : index
      %c1 = arith.constant 1 : index
      %c0_11 = arith.constant 0 : index
      %20 = vector.load %arg6[%c0_10, %c1, %c0_11] : memref<1x2x128xf32, #tpu.memory_space<vmem>>, vector<1x1x128xf32>
      %21 = vector.shape_cast %20 : vector<1x1x128xf32> to vector<1x128xf32>
      %22 = arith.truncf %21 : vector<1x128xf32> to vector<1x128xbf16>
      %cst = arith.constant dense<0.000000e+00> : vector<1x12xf32>
      %23 = tpu.matmul %22, %15, %cst {dimension_numbers = #tpu.dot_dimension_numbers<[1], [1], [0], [0], [0, 0, 1, 0], [], []>} : vector<1x128xbf16>, vector<12x128xbf16>, vector<1x12xf32> -> vector<1x12xf32>
      %c0_12 = arith.constant 0 : index
      %c0_13 = arith.constant 0 : index
      %24 = vector.load %arg12[%c0_12, %c0_13] : memref<12x1xf32, #tpu.memory_space<vmem>>, vector<12x1xf32>
      %25 = vector.broadcast %24 : vector<12x1xf32> to vector<12x12xf32>
      %26 = vector.broadcast %23 : vector<1x12xf32> to vector<12x12xf32>
      %27 = arith.addf %25, %26 : vector<12x12xf32>
      %cst_14 = arith.constant -1.000000e+30 : f32
      %28 = vector.broadcast %cst_14 : f32 to vector<12x12xf32>
      %29 = arith.select %19, %27, %28 : vector<12x12xi1>, vector<12x12xf32>
      %c0_15 = arith.constant 0 : index
      %c0_16 = arith.constant 0 : index
      %30 = vector.load %arg13[%c0_15, %c0_16] : memref<12x1xf32, #tpu.memory_space<vmem>>, vector<12x1xf32>
      %cst_17 = arith.constant dense<0xFF800000> : vector<12xf32>
      %31 = vector.multi_reduction <maximumf>, %29, %cst_17 [1] : vector<12x12xf32> to vector<12xf32>
      %32 = vector.shape_cast %31 : vector<12xf32> to vector<12x1xf32>
      %33 = arith.maximumf %30, %32 : vector<12x1xf32>
      %34 = arith.subf %30, %33 : vector<12x1xf32>
      %35 = math.exp %34 : vector<12x1xf32>
      %36 = vector.broadcast %33 : vector<12x1xf32> to vector<12x12xf32>
      %37 = arith.subf %29, %36 : vector<12x12xf32>
      %38 = math.exp %37 : vector<12x12xf32>
      %cst_18 = arith.constant 0.000000e+00 : f32
      %39 = vector.broadcast %cst_18 : f32 to vector<12x12xf32>
      %40 = arith.select %19, %38, %39 : vector<12x12xi1>, vector<12x12xf32>
      %c0_19 = arith.constant 0 : index
      %c0_20 = arith.constant 0 : index
      %41 = vector.load %arg14[%c0_19, %c0_20] : memref<12x1xf32, #tpu.memory_space<vmem>>, vector<12x1xf32>
      %42 = arith.mulf %35, %41 : vector<12x1xf32>
      %cst_21 = arith.constant dense<0.000000e+00> : vector<12xf32>
      %43 = vector.multi_reduction <add>, %40, %cst_21 [1] : vector<12x12xf32> to vector<12xf32>
      %44 = vector.shape_cast %43 : vector<12xf32> to vector<12x1xf32>
      %45 = arith.addf %42, %44 : vector<12x1xf32>
      %c0_22 = arith.constant 0 : index
      %c0_23 = arith.constant 0 : index
      %46 = vector.load %arg14[%c0_22, %c0_23] : memref<12x1xf32, #tpu.memory_space<vmem>>, vector<12x1xf32>
      tpu.vector_store %arg14[%c0_22, %c0_23], %45 {strides = array<i32>} : memref<12x1xf32, #tpu.memory_space<vmem>>, vector<12x1xf32>,
      %c0_24 = arith.constant 0 : index
      %c0_25 = arith.constant 0 : index
      %47 = vector.load %arg15[%c0_24, %c0_25] : memref<12x128xf32, #tpu.memory_space<vmem>>, vector<12x128xf32>
      %48 = vector.broadcast %35 : vector<12x1xf32> to vector<12x128xf32>
      %49 = arith.mulf %48, %47 : vector<12x128xf32>
      %50 = arith.truncf %40 : vector<12x12xf32> to vector<12x12xbf16>
      %cst_26 = arith.constant dense<0.000000e+00> : vector<12x128xf32>
      %51 = tpu.matmul %50, %15, %cst_26 {dimension_numbers = #tpu.dot_dimension_numbers<[1], [0], [0], [1], [0, 0, 1, 1], [], []>} : vector<12x12xbf16>, vector<12x128xbf16>, vector<12x128xf32> -> vector<12x128xf32>
      %52 = arith.addf %49, %51 : vector<12x128xf32>
      %c0_27 = arith.constant 0 : index
      %c0_28 = arith.constant 0 : index
      %53 = vector.load %arg15[%c0_27, %c0_28] : memref<12x128xf32, #tpu.memory_space<vmem>>, vector<12x128xf32>
      tpu.vector_store %arg15[%c0_27, %c0_28], %52 {strides = array<i32>} : memref<12x128xf32, #tpu.memory_space<vmem>>, vector<12x128xf32>,
      %c0_29 = arith.constant 0 : index
      %c0_30 = arith.constant 0 : index
      %54 = vector.load %arg13[%c0_29, %c0_30] : memref<12x1xf32, #tpu.memory_space<vmem>>, vector<12x1xf32>
      tpu.vector_store %arg13[%c0_29, %c0_30], %33 {strides = array<i32>} : memref<12x1xf32, #tpu.memory_space<vmem>>, vector<12x1xf32>,
    } else {
    }
    %c0_i32_4 = arith.constant 0 : i32
    %12 = arith.cmpi eq, %arg2, %c0_i32_4 : i32
    %13 = arith.extui %12 : i1 to i32
    %c0_i32_5 = arith.constant 0 : i32
    %14 = arith.cmpi ne, %13, %c0_i32_5 : i32
    scf.if %14 {
      %c0 = arith.constant 0 : index
      %c0_6 = arith.constant 0 : index
      %15 = vector.load %arg14[%c0, %c0_6] : memref<12x1xf32, #tpu.memory_space<vmem>>, vector<12x1xf32>
      %cst = arith.constant 1.000000e-16 : f32
      %16 = vector.broadcast %cst : f32 to vector<12x1xf32>
      %17 = arith.addf %15, %16 : vector<12x1xf32>
      %18 = tpu.reciprocal %17 {approx = true} : vector<12x1xf32> -> vector<12x1xf32>
      %c0_7 = arith.constant 0 : index
      %c0_8 = arith.constant 0 : index
      %19 = vector.load %arg15[%c0_7, %c0_8] : memref<12x128xf32, #tpu.memory_space<vmem>>, vector<12x128xf32>
      %20 = vector.broadcast %18 : vector<12x1xf32> to vector<12x128xf32>
      %21 = arith.mulf %19, %20 : vector<12x128xf32>
      %22 = tpu.iota {dimensions = array<i32: 1>} : vector<1x128xi32>
      %c32_i32 = arith.constant 32 : i32
      %23 = vector.broadcast %c32_i32 : i32 to vector<1x128xi32>
      %24 = arith.cmpi slt, %22, %23 : vector<1x128xi32>
      %c0_9 = arith.constant 0 : index
      %c0_10 = arith.constant 0 : index
      %c0_11 = arith.constant 0 : index
      %25 = vector.load %arg8[%c0_9, %c0_10, %c0_11] : memref<1x1x128xf32, #tpu.memory_space<vmem>>, vector<1x1x128xf32>
      %26 = vector.shape_cast %25 : vector<1x1x128xf32> to vector<1x128xf32>
      %c0_12 = arith.constant 0 : index
      %c0_13 = arith.constant 0 : index
      %c0_14 = arith.constant 0 : index
      %27 = vector.load %arg9[%c0_12, %c0_13, %c0_14] : memref<1x1x128xf32, #tpu.memory_space<vmem>>, vector<1x1x128xf32>
      %28 = vector.shape_cast %27 : vector<1x1x128xf32> to vector<1x128xf32>
      %cst_15 = arith.constant 0.000000e+00 : f32
      %29 = vector.shape_cast %24 : vector<1x128xi1> to vector<1x128xi1>
      %30 = vector.broadcast %29 : vector<1x128xi1> to vector<12x128xi1>
      %31 = vector.broadcast %cst_15 : f32 to vector<12x128xf32>
      %32 = arith.select %30, %21, %31 : vector<12x128xi1>, vector<12x128xf32>
      %cst_16 = arith.constant dense<0.000000e+00> : vector<12xf32>
      %33 = vector.multi_reduction <add>, %32, %cst_16 [1] : vector<12x128xf32> to vector<12xf32>
      %34 = vector.shape_cast %33 : vector<12xf32> to vector<12x1xf32>
      %cst_17 = arith.constant 3.125000e-02 : f32
      %35 = vector.broadcast %cst_17 : f32 to vector<12x1xf32>
      %36 = arith.mulf %34, %35 : vector<12x1xf32>
      %37 = vector.broadcast %36 : vector<12x1xf32> to vector<12x128xf32>
      %38 = arith.subf %21, %37 : vector<12x128xf32>
      %cst_18 = arith.constant 0.000000e+00 : f32
      %39 = vector.shape_cast %24 : vector<1x128xi1> to vector<1x128xi1>
      %40 = vector.broadcast %39 : vector<1x128xi1> to vector<12x128xi1>
      %41 = vector.broadcast %cst_18 : f32 to vector<12x128xf32>
      %42 = arith.select %40, %38, %41 : vector<12x128xi1>, vector<12x128xf32>
      %43 = arith.mulf %42, %42 : vector<12x128xf32>
      %cst_19 = arith.constant dense<0.000000e+00> : vector<12xf32>
      %44 = vector.multi_reduction <add>, %43, %cst_19 [1] : vector<12x128xf32> to vector<12xf32>
      %45 = vector.shape_cast %44 : vector<12xf32> to vector<12x1xf32>
      %cst_20 = arith.constant 3.125000e-02 : f32
      %46 = vector.broadcast %cst_20 : f32 to vector<12x1xf32>
      %47 = arith.mulf %45, %46 : vector<12x1xf32>
      %cst_21 = arith.constant 9.99999974E-6 : f32
      %48 = vector.broadcast %cst_21 : f32 to vector<12x1xf32>
      %49 = arith.addf %47, %48 : vector<12x1xf32>
      %50 = math.rsqrt %49 : vector<12x1xf32>
      %51 = vector.broadcast %50 : vector<12x1xf32> to vector<12x128xf32>
      %52 = arith.mulf %42, %51 : vector<12x128xf32>
      %53 = vector.broadcast %26 : vector<1x128xf32> to vector<12x128xf32>
      %54 = arith.mulf %52, %53 : vector<12x128xf32>
      %55 = vector.broadcast %28 : vector<1x128xf32> to vector<12x128xf32>
      %56 = arith.addf %54, %55 : vector<12x128xf32>
      %cst_22 = arith.constant 0.000000e+00 : f32
      %57 = vector.broadcast %cst_22 : f32 to vector<12x128xf32>
      %58 = arith.cmpf ogt, %56, %57 : vector<12x128xf32>
      %cst_23 = arith.constant 2.000000e-01 : f32
      %59 = vector.broadcast %cst_23 : f32 to vector<12x128xf32>
      %60 = arith.mulf %59, %56 : vector<12x128xf32>
      %61 = arith.select %58, %56, %60 : vector<12x128xi1>, vector<12x128xf32>
      %62 = arith.truncf %61 : vector<12x128xf32> to vector<12x128xbf16>
      %c0_24 = arith.constant 0 : index
      %c0_25 = arith.constant 0 : index
      %63 = vector.load %arg10[%c0_24, %c0_25] : memref<128x128xbf16, #tpu.memory_space<vmem>>, vector<128x128xbf16>
      %cst_26 = arith.constant dense<0.000000e+00> : vector<12x128xf32>
      %64 = tpu.matmul %62, %63, %cst_26 {dimension_numbers = #tpu.dot_dimension_numbers<[1], [0], [0], [1], [0, 0, 1, 1], [], []>} : vector<12x128xbf16>, vector<128x128xbf16>, vector<12x128xf32> -> vector<12x128xf32>
      %65 = arith.truncf %64 : vector<12x128xf32> to vector<12x128xbf16>
      %c0_27 = arith.constant 0 : index
      %c0_28 = arith.constant 0 : index
      %c0_29 = arith.constant 0 : index
      %66 = vector.load %arg11[%c0_27, %c0_28, %c0_29] : memref<1x12x128xbf16, #tpu.memory_space<vmem>>, vector<1x12x128xbf16>
      %67 = vector.shape_cast %66 : vector<1x12x128xbf16> to vector<12x128xbf16>
      %68 = vector.shape_cast %65 : vector<12x128xbf16> to vector<1x12x128xbf16>
      tpu.vector_store %arg11[%c0_27, %c0_28, %c0_29], %68 {strides = array<i32>} : memref<1x12x128xbf16, #tpu.memory_space<vmem>>, vector<1x12x128xbf16>,
    } else {
    }
    return
  }
  func.func @transform_0(%arg0: i32, %arg1: i32, %arg2: i32, %arg3: memref<2xi32, #tpu.memory_space<smem>>) -> (i32, i32) {
    %c0_i32 = arith.constant 0 : i32
    %c0_i32_0 = arith.constant 0 : i32
    return %arg1, %c0_i32 : i32, i32
  }
  func.func @transform_1(%arg0: i32, %arg1: i32, %arg2: i32, %arg3: memref<2xi32, #tpu.memory_space<smem>>) -> (i32, i32) {
    %c0_i32 = arith.constant 0 : i32
    %c0_i32_0 = arith.constant 0 : i32
    return %arg2, %c0_i32 : i32, i32
  }
  func.func @transform_2(%arg0: i32, %arg1: i32, %arg2: i32, %arg3: memref<2xi32, #tpu.memory_space<smem>>) -> (i32, i32, i32) {
    %c0_i32 = arith.constant 0 : i32
    %c0_i32_0 = arith.constant 0 : i32
    %c0_i32_1 = arith.constant 0 : i32
    return %arg0, %c0_i32, %c0_i32_0 : i32, i32, i32
  }
  func.func @transform_3(%arg0: i32, %arg1: i32, %arg2: i32, %arg3: memref<2xi32, #tpu.memory_space<smem>>) -> (i32, i32, i32) {
    %c0_i32 = arith.constant 0 : i32
    return %arg0, %arg1, %arg2 : i32, i32, i32
  }
  func.func @transform_4(%arg0: i32, %arg1: i32, %arg2: i32, %arg3: memref<2xi32, #tpu.memory_space<smem>>) -> (i32, i32, i32) {
    %c0_i32 = arith.constant 0 : i32
    %c0_i32_0 = arith.constant 0 : i32
    %c0_i32_1 = arith.constant 0 : i32
    return %arg0, %c0_i32, %c0_i32_0 : i32, i32, i32
  }
  func.func @transform_5(%arg0: i32, %arg1: i32, %arg2: i32, %arg3: memref<2xi32, #tpu.memory_space<smem>>) -> (i32, i32, i32) {
    %c0_i32 = arith.constant 0 : i32
    %c0_i32_0 = arith.constant 0 : i32
    %c0_i32_1 = arith.constant 0 : i32
    return %arg0, %c0_i32, %c0_i32_0 : i32, i32, i32
  }
  func.func @transform_6(%arg0: i32, %arg1: i32, %arg2: i32, %arg3: memref<2xi32, #tpu.memory_space<smem>>) -> (i32, i32) {
    %c0_i32 = arith.constant 0 : i32
    %c0_i32_0 = arith.constant 0 : i32
    %c0_i32_1 = arith.constant 0 : i32
    return %c0_i32, %c0_i32_0 : i32, i32
  }
  func.func @transform_7(%arg0: i32, %arg1: i32, %arg2: i32, %arg3: memref<2xi32, #tpu.memory_space<smem>>) -> (i32, i32, i32) {
    %c0_i32 = arith.constant 0 : i32
    %c0_i32_0 = arith.constant 0 : i32
    return %arg0, %arg1, %c0_i32 : i32, i32, i32
  }
}

module attributes {stable_mosaic.version = 11 : i64} {
  func.func @_combine_kernel(%arg0: i32, %arg1: memref<2x12x128xbf16, #tpu.memory_space<vmem>>, %arg2: memref<12x128xbf16, #tpu.memory_space<vmem>>, %arg3: memref<2x128xf32, #tpu.memory_space<vmem>>, %arg4: memref<2xf32, #tpu.memory_space<smem>>, %arg5: memref<2xf32, #tpu.memory_space<smem>>, %arg6: memref<1x128xf32, #tpu.memory_space<vmem>>, %arg7: memref<1x128xf32, #tpu.memory_space<vmem>>, %arg8: memref<12x128xbf16, #tpu.memory_space<vmem>>) attributes {dimension_semantics = [#tpu.dimension_semantics<parallel>], iteration_bounds = array<i64: 1>, scalar_prefetch = 0 : i64, scratch_operands = 0 : i64, tpu.core_type = #tpu.core_type<tc>, window_params = [{transform_indices = @transform_0, window_bounds = array<i64: 2, 12, 128>}, {transform_indices = @transform_1, window_bounds = array<i64: 12, 128>}, {pipeline_mode = #tpu.pipeline_mode<synchronous>, transform_indices = @transform_2, window_bounds = array<i64: 2, 128>}, {transform_indices = @transform_3, window_bounds = array<i64: 2>}, {transform_indices = @transform_4, window_bounds = array<i64: 2>}, {pipeline_mode = #tpu.pipeline_mode<synchronous>, transform_indices = @transform_5, window_bounds = array<i64: 1, 128>}, {pipeline_mode = #tpu.pipeline_mode<synchronous>, transform_indices = @transform_6, window_bounds = array<i64: 1, 128>}, {transform_indices = @transform_7, window_bounds = array<i64: 12, 128>}]} {
    %0 = tpu.iota {dimensions = array<i32: 1>} : vector<1x128xi32>
    %c32_i32 = arith.constant 32 : i32
    %1 = vector.broadcast %c32_i32 : i32 to vector<1x128xi32>
    %2 = arith.cmpi slt, %0, %1 : vector<1x128xi32>
    %c0 = arith.constant 0 : index
    %c0_0 = arith.constant 0 : index
    %3 = vector.load %arg2[%c0, %c0_0] : memref<12x128xbf16, #tpu.memory_space<vmem>>, vector<12x128xbf16>
    %4 = arith.extf %3 : vector<12x128xbf16> to vector<12x128xf32>
    %c0_1 = arith.constant 0 : index
    %c0_2 = arith.constant 0 : index
    %5 = vector.load %arg3[%c0_1, %c0_2] : memref<2x128xf32, #tpu.memory_space<vmem>>, vector<1x128xf32>
    %c1 = arith.constant 1 : index
    %c0_3 = arith.constant 0 : index
    %6 = vector.load %arg3[%c1, %c0_3] : memref<2x128xf32, #tpu.memory_space<vmem>>, vector<1x128xf32>
    %7 = vector.broadcast %5 : vector<1x128xf32> to vector<12x128xf32>
    %8 = arith.mulf %4, %7 : vector<12x128xf32>
    %cst = arith.constant dense<0.000000e+00> : vector<12xf32>
    %9 = vector.multi_reduction <add>, %8, %cst [1] : vector<12x128xf32> to vector<12xf32>
    %10 = vector.shape_cast %9 : vector<12xf32> to vector<12x1xf32>
    %c0_4 = arith.constant 0 : index
    %c0_5 = arith.constant 0 : index
    %c0_6 = arith.constant 0 : index
    %11 = vector.load %arg1[%c0_4, %c0_5, %c0_6] : memref<2x12x128xbf16, #tpu.memory_space<vmem>>, vector<1x12x128xbf16>
    %12 = vector.shape_cast %11 : vector<1x12x128xbf16> to vector<12x128xbf16>
    %13 = arith.extf %12 : vector<12x128xbf16> to vector<12x128xf32>
    %c1_7 = arith.constant 1 : index
    %c0_8 = arith.constant 0 : index
    %c0_9 = arith.constant 0 : index
    %14 = vector.load %arg1[%c1_7, %c0_8, %c0_9] : memref<2x12x128xbf16, #tpu.memory_space<vmem>>, vector<1x12x128xbf16>
    %15 = vector.shape_cast %14 : vector<1x12x128xbf16> to vector<12x128xbf16>
    %16 = arith.extf %15 : vector<12x128xbf16> to vector<12x128xf32>
    %17 = vector.broadcast %6 : vector<1x128xf32> to vector<12x128xf32>
    %18 = arith.mulf %13, %17 : vector<12x128xf32>
    %cst_10 = arith.constant dense<0.000000e+00> : vector<12xf32>
    %19 = vector.multi_reduction <add>, %18, %cst_10 [1] : vector<12x128xf32> to vector<12xf32>
    %20 = vector.shape_cast %19 : vector<12xf32> to vector<12x1xf32>
    %21 = arith.addf %10, %20 : vector<12x1xf32>
    %22 = vector.broadcast %6 : vector<1x128xf32> to vector<12x128xf32>
    %23 = arith.mulf %16, %22 : vector<12x128xf32>
    %cst_11 = arith.constant dense<0.000000e+00> : vector<12xf32>
    %24 = vector.multi_reduction <add>, %23, %cst_11 [1] : vector<12x128xf32> to vector<12xf32>
    %25 = vector.shape_cast %24 : vector<12xf32> to vector<12x1xf32>
    %26 = arith.addf %10, %25 : vector<12x1xf32>
    %27 = arith.maximumf %21, %26 : vector<12x1xf32>
    %28 = arith.subf %21, %27 : vector<12x1xf32>
    %29 = math.exp %28 : vector<12x1xf32>
    %30 = arith.subf %26, %27 : vector<12x1xf32>
    %31 = math.exp %30 : vector<12x1xf32>
    %32 = arith.addf %29, %31 : vector<12x1xf32>
    %33 = tpu.reciprocal %32 {approx = true} : vector<12x1xf32> -> vector<12x1xf32>
    %c0_12 = arith.constant 0 : index
    %34 = memref.load %arg5[%c0_12] : memref<2xf32, #tpu.memory_space<smem>>
    %c1_13 = arith.constant 1 : index
    %35 = memref.load %arg5[%c1_13] : memref<2xf32, #tpu.memory_space<smem>>
    %cst_14 = arith.constant 0.000000e+00 : f32
    %36 = vector.broadcast %cst_14 : f32 to vector<12x128xf32>
    %37 = arith.mulf %29, %33 : vector<12x1xf32>
    %38 = vector.broadcast %34 : f32 to vector<12x1xf32>
    %39 = arith.mulf %38, %37 : vector<12x1xf32>
    %c0_15 = arith.constant 0 : index
    %40 = memref.load %arg4[%c0_15] : memref<2xf32, #tpu.memory_space<smem>>
    %41 = vector.broadcast %40 : f32 to vector<12x1xf32>
    %42 = arith.addf %39, %41 : vector<12x1xf32>
    %43 = vector.broadcast %42 : vector<12x1xf32> to vector<12x128xf32>
    %44 = arith.mulf %13, %43 : vector<12x128xf32>
    %45 = arith.addf %36, %44 : vector<12x128xf32>
    %46 = arith.mulf %31, %33 : vector<12x1xf32>
    %47 = vector.broadcast %34 : f32 to vector<12x1xf32>
    %48 = arith.mulf %47, %46 : vector<12x1xf32>
    %c1_16 = arith.constant 1 : index
    %49 = memref.load %arg4[%c1_16] : memref<2xf32, #tpu.memory_space<smem>>
    %50 = vector.broadcast %49 : f32 to vector<12x1xf32>
    %51 = arith.addf %48, %50 : vector<12x1xf32>
    %52 = vector.broadcast %51 : vector<12x1xf32> to vector<12x128xf32>
    %53 = arith.mulf %16, %52 : vector<12x128xf32>
    %54 = arith.addf %45, %53 : vector<12x128xf32>
    %cst_17 = arith.constant 5.000000e-01 : f32
    %55 = vector.broadcast %cst_17 : f32 to vector<12x128xf32>
    %56 = arith.mulf %55, %54 : vector<12x128xf32>
    %cst_18 = arith.constant 4.471500e-02 : f32
    %57 = vector.broadcast %cst_18 : f32 to vector<12x128xf32>
    %58 = arith.mulf %57, %54 : vector<12x128xf32>
    %59 = arith.mulf %58, %54 : vector<12x128xf32>
    %60 = arith.mulf %59, %54 : vector<12x128xf32>
    %61 = arith.addf %54, %60 : vector<12x128xf32>
    %cst_19 = arith.constant 0.797884583 : f32
    %62 = vector.broadcast %cst_19 : f32 to vector<12x128xf32>
    %63 = arith.mulf %62, %61 : vector<12x128xf32>
    %64 = math.tanh %63 : vector<12x128xf32>
    %cst_20 = arith.constant 1.000000e+00 : f32
    %65 = vector.broadcast %cst_20 : f32 to vector<12x128xf32>
    %66 = arith.addf %65, %64 : vector<12x128xf32>
    %67 = arith.mulf %56, %66 : vector<12x128xf32>
    %68 = vector.broadcast %35 : f32 to vector<12x128xf32>
    %69 = arith.mulf %67, %68 : vector<12x128xf32>
    %cst_21 = arith.constant 1.000000e+00 : f32
    %70 = arith.subf %cst_21, %35 : f32
    %71 = vector.broadcast %70 : f32 to vector<12x128xf32>
    %72 = arith.mulf %4, %71 : vector<12x128xf32>
    %73 = arith.addf %69, %72 : vector<12x128xf32>
    %c0_22 = arith.constant 0 : index
    %c0_23 = arith.constant 0 : index
    %74 = vector.load %arg6[%c0_22, %c0_23] : memref<1x128xf32, #tpu.memory_space<vmem>>, vector<1x128xf32>
    %c0_24 = arith.constant 0 : index
    %c0_25 = arith.constant 0 : index
    %75 = vector.load %arg7[%c0_24, %c0_25] : memref<1x128xf32, #tpu.memory_space<vmem>>, vector<1x128xf32>
    %cst_26 = arith.constant 0.000000e+00 : f32
    %76 = vector.shape_cast %2 : vector<1x128xi1> to vector<1x128xi1>
    %77 = vector.broadcast %76 : vector<1x128xi1> to vector<12x128xi1>
    %78 = vector.broadcast %cst_26 : f32 to vector<12x128xf32>
    %79 = arith.select %77, %73, %78 : vector<12x128xi1>, vector<12x128xf32>
    %cst_27 = arith.constant dense<0.000000e+00> : vector<12xf32>
    %80 = vector.multi_reduction <add>, %79, %cst_27 [1] : vector<12x128xf32> to vector<12xf32>
    %81 = vector.shape_cast %80 : vector<12xf32> to vector<12x1xf32>
    %cst_28 = arith.constant 3.125000e-02 : f32
    %82 = vector.broadcast %cst_28 : f32 to vector<12x1xf32>
    %83 = arith.mulf %81, %82 : vector<12x1xf32>
    %84 = vector.broadcast %83 : vector<12x1xf32> to vector<12x128xf32>
    %85 = arith.subf %73, %84 : vector<12x128xf32>
    %cst_29 = arith.constant 0.000000e+00 : f32
    %86 = vector.shape_cast %2 : vector<1x128xi1> to vector<1x128xi1>
    %87 = vector.broadcast %86 : vector<1x128xi1> to vector<12x128xi1>
    %88 = vector.broadcast %cst_29 : f32 to vector<12x128xf32>
    %89 = arith.select %87, %85, %88 : vector<12x128xi1>, vector<12x128xf32>
    %90 = arith.mulf %89, %89 : vector<12x128xf32>
    %cst_30 = arith.constant dense<0.000000e+00> : vector<12xf32>
    %91 = vector.multi_reduction <add>, %90, %cst_30 [1] : vector<12x128xf32> to vector<12xf32>
    %92 = vector.shape_cast %91 : vector<12xf32> to vector<12x1xf32>
    %cst_31 = arith.constant 3.125000e-02 : f32
    %93 = vector.broadcast %cst_31 : f32 to vector<12x1xf32>
    %94 = arith.mulf %92, %93 : vector<12x1xf32>
    %cst_32 = arith.constant 9.99999974E-6 : f32
    %95 = vector.broadcast %cst_32 : f32 to vector<12x1xf32>
    %96 = arith.addf %94, %95 : vector<12x1xf32>
    %97 = math.rsqrt %96 : vector<12x1xf32>
    %98 = vector.broadcast %97 : vector<12x1xf32> to vector<12x128xf32>
    %99 = arith.mulf %89, %98 : vector<12x128xf32>
    %100 = vector.broadcast %74 : vector<1x128xf32> to vector<12x128xf32>
    %101 = arith.mulf %99, %100 : vector<12x128xf32>
    %102 = vector.broadcast %75 : vector<1x128xf32> to vector<12x128xf32>
    %103 = arith.addf %101, %102 : vector<12x128xf32>
    %104 = arith.truncf %103 : vector<12x128xf32> to vector<12x128xbf16>
    %c0_33 = arith.constant 0 : index
    %c0_34 = arith.constant 0 : index
    %105 = vector.load %arg8[%c0_33, %c0_34] : memref<12x128xbf16, #tpu.memory_space<vmem>>, vector<12x128xbf16>
    tpu.vector_store %arg8[%c0_33, %c0_34], %104 {strides = array<i32>} : memref<12x128xbf16, #tpu.memory_space<vmem>>, vector<12x128xbf16>,
    return
  }
  func.func @transform_0(%arg0: i32) -> (i32, i32, i32) {
    %c0_i32 = arith.constant 0 : i32
    %c0_i32_0 = arith.constant 0 : i32
    %c0_i32_1 = arith.constant 0 : i32
    return %c0_i32, %arg0, %c0_i32_0 : i32, i32, i32
  }
  func.func @transform_1(%arg0: i32) -> (i32, i32) {
    %c0_i32 = arith.constant 0 : i32
    %c0_i32_0 = arith.constant 0 : i32
    return %arg0, %c0_i32 : i32, i32
  }
  func.func @transform_2(%arg0: i32) -> (i32, i32) {
    %c0_i32 = arith.constant 0 : i32
    %c0_i32_0 = arith.constant 0 : i32
    %c0_i32_1 = arith.constant 0 : i32
    return %c0_i32, %c0_i32_0 : i32, i32
  }
  func.func @transform_3(%arg0: i32) -> i32 {
    %c0_i32 = arith.constant 0 : i32
    %c0_i32_0 = arith.constant 0 : i32
    return %c0_i32 : i32
  }
  func.func @transform_4(%arg0: i32) -> i32 {
    %c0_i32 = arith.constant 0 : i32
    %c0_i32_0 = arith.constant 0 : i32
    return %c0_i32 : i32
  }
  func.func @transform_5(%arg0: i32) -> (i32, i32) {
    %c0_i32 = arith.constant 0 : i32
    %c0_i32_0 = arith.constant 0 : i32
    %c0_i32_1 = arith.constant 0 : i32
    return %c0_i32, %c0_i32_0 : i32, i32
  }
  func.func @transform_6(%arg0: i32) -> (i32, i32) {
    %c0_i32 = arith.constant 0 : i32
    %c0_i32_0 = arith.constant 0 : i32
    %c0_i32_1 = arith.constant 0 : i32
    return %c0_i32, %c0_i32_0 : i32, i32
  }
  func.func @transform_7(%arg0: i32) -> (i32, i32) {
    %c0_i32 = arith.constant 0 : i32
    %c0_i32_0 = arith.constant 0 : i32
    return %arg0, %c0_i32 : i32, i32
  }
}

module attributes {stable_mosaic.version = 11 : i64} {
  func.func @_type_gat_kernel(%arg0: i32, %arg1: i32, %arg2: i32, %arg3: memref<2xi32, #tpu.memory_space<smem>>, %arg4: memref<12x128xbf16, #tpu.memory_space<vmem>>, %arg5: memref<16x128xbf16, #tpu.memory_space<vmem>>, %arg6: memref<1x2x128xf32, #tpu.memory_space<vmem>>, %arg7: memref<1x12x16xi8, #tpu.memory_space<vmem>>, %arg8: memref<128x128xbf16, #tpu.memory_space<vmem>>, %arg9: memref<1x12x128xbf16, #tpu.memory_space<vmem>>, %arg10: memref<12x1xf32, #tpu.memory_space<vmem>>, %arg11: memref<12x1xf32, #tpu.memory_space<vmem>>, %arg12: memref<12x1xf32, #tpu.memory_space<vmem>>, %arg13: memref<12x128xf32, #tpu.memory_space<vmem>>) attributes {dimension_semantics = [#tpu.dimension_semantics<parallel>, #tpu.dimension_semantics<parallel>, #tpu.dimension_semantics<arbitrary>], iteration_bounds = array<i64: 2, 1, 1>, scalar_prefetch = 1 : i64, scratch_operands = 4 : i64, tpu.core_type = #tpu.core_type<tc>, window_params = [{transform_indices = @transform_0, window_bounds = array<i64: 12, 128>}, {transform_indices = @transform_1, window_bounds = array<i64: 16, 128>}, {transform_indices = @transform_2, window_bounds = array<i64: 1, 2, 128>}, {transform_indices = @transform_3, window_bounds = array<i64: 1, 12, 16>}, {pipeline_mode = #tpu.pipeline_mode<synchronous>, transform_indices = @transform_4, window_bounds = array<i64: 128, 128>}, {transform_indices = @transform_5, window_bounds = array<i64: 1, 12, 128>}]} {
    %c0_i32 = arith.constant 0 : i32
    %0 = arith.cmpi eq, %arg2, %c0_i32 : i32
    %1 = arith.extui %0 : i1 to i32
    %c0_i32_0 = arith.constant 0 : i32
    %2 = arith.cmpi ne, %1, %c0_i32_0 : i32
    scf.if %2 {
      %cst = arith.constant -1.000000e+30 : f32
      %15 = vector.broadcast %cst : f32 to vector<12x1xf32>
      %c0 = arith.constant 0 : index
      %c0_6 = arith.constant 0 : index
      %16 = vector.load %arg11[%c0, %c0_6] : memref<12x1xf32, #tpu.memory_space<vmem>>, vector<12x1xf32>
      tpu.vector_store %arg11[%c0, %c0_6], %15 {strides = array<i32>} : memref<12x1xf32, #tpu.memory_space<vmem>>, vector<12x1xf32>,
      %cst_7 = arith.constant 0.000000e+00 : f32
      %17 = vector.broadcast %cst_7 : f32 to vector<12x1xf32>
      %c0_8 = arith.constant 0 : index
      %c0_9 = arith.constant 0 : index
      %18 = vector.load %arg12[%c0_8, %c0_9] : memref<12x1xf32, #tpu.memory_space<vmem>>, vector<12x1xf32>
      tpu.vector_store %arg12[%c0_8, %c0_9], %17 {strides = array<i32>} : memref<12x1xf32, #tpu.memory_space<vmem>>, vector<12x1xf32>,
      %cst_10 = arith.constant 0.000000e+00 : f32
      %19 = vector.broadcast %cst_10 : f32 to vector<12x128xf32>
      %c0_11 = arith.constant 0 : index
      %c0_12 = arith.constant 0 : index
      %20 = vector.load %arg13[%c0_11, %c0_12] : memref<12x128xf32, #tpu.memory_space<vmem>>, vector<12x128xf32>
      tpu.vector_store %arg13[%c0_11, %c0_12], %19 {strides = array<i32>} : memref<12x128xf32, #tpu.memory_space<vmem>>, vector<12x128xf32>,
      %c0_13 = arith.constant 0 : index
      %c0_14 = arith.constant 0 : index
      %21 = vector.load %arg4[%c0_13, %c0_14] : memref<12x128xbf16, #tpu.memory_space<vmem>>, vector<12x128xbf16>
      %22 = arith.extf %21 : vector<12x128xbf16> to vector<12x128xf32>
      %c0_15 = arith.constant 0 : index
      %c0_16 = arith.constant 0 : index
      %c0_17 = arith.constant 0 : index
      %23 = vector.load %arg6[%c0_15, %c0_16, %c0_17] : memref<1x2x128xf32, #tpu.memory_space<vmem>>, vector<1x1x128xf32>
      %24 = vector.shape_cast %23 : vector<1x1x128xf32> to vector<1x128xf32>
      %25 = vector.broadcast %24 : vector<1x128xf32> to vector<12x128xf32>
      %26 = arith.mulf %22, %25 : vector<12x128xf32>
      %cst_18 = arith.constant dense<0.000000e+00> : vector<12xf32>
      %27 = vector.multi_reduction <add>, %26, %cst_18 [1] : vector<12x128xf32> to vector<12xf32>
      %28 = vector.shape_cast %27 : vector<12xf32> to vector<12x1xf32>
      %c0_19 = arith.constant 0 : index
      %c0_20 = arith.constant 0 : index
      %29 = vector.load %arg10[%c0_19, %c0_20] : memref<12x1xf32, #tpu.memory_space<vmem>>, vector<12x1xf32>
      tpu.vector_store %arg10[%c0_19, %c0_20], %28 {strides = array<i32>} : memref<12x1xf32, #tpu.memory_space<vmem>>, vector<12x1xf32>,
    } else {
    }
    %c1_i32 = arith.constant 1 : i32
    %3 = arith.muli %arg0, %c1_i32 : i32
    %4 = arith.addi %3, %arg1 : i32
    %c1_i32_1 = arith.constant 1 : i32
    %5 = arith.muli %4, %c1_i32_1 : i32
    %6 = arith.addi %5, %arg2 : i32
    %7 = arith.index_cast %6 : i32 to index
    %8 = memref.load %arg3[%7] : memref<2xi32, #tpu.memory_space<smem>>
    %c0_i32_2 = arith.constant 0 : i32
    %9 = arith.cmpi sgt, %8, %c0_i32_2 : i32
    %10 = arith.extui %9 : i1 to i32
    %c0_i32_3 = arith.constant 0 : i32
    %11 = arith.cmpi ne, %10, %c0_i32_3 : i32
    scf.if %11 {
      %c0 = arith.constant 0 : index
      %c0_6 = arith.constant 0 : index
      %15 = vector.load %arg5[%c0, %c0_6] : memref<16x128xbf16, #tpu.memory_space<vmem>>, vector<16x128xbf16>
      %c0_7 = arith.constant 0 : index
      %c0_8 = arith.constant 0 : index
      %c0_9 = arith.constant 0 : index
      %16 = vector.load %arg7[%c0_7, %c0_8, %c0_9] : memref<1x12x16xi8, #tpu.memory_space<vmem>>, vector<1x12x16xi8>
      %17 = vector.shape_cast %16 : vector<1x12x16xi8> to vector<12x16xi8>
      %c0_i8 = arith.constant 0 : i8
      %18 = vector.broadcast %c0_i8 : i8 to vector<12x16xi8>
      %19 = arith.cmpi ne, %17, %18 : vector<12x16xi8>
      %c0_10 = arith.constant 0 : index
      %c1 = arith.constant 1 : index
      %c0_11 = arith.constant 0 : index
      %20 = vector.load %arg6[%c0_10, %c1, %c0_11] : memref<1x2x128xf32, #tpu.memory_space<vmem>>, vector<1x1x128xf32>
      %21 = vector.shape_cast %20 : vector<1x1x128xf32> to vector<1x128xf32>
      %22 = arith.truncf %21 : vector<1x128xf32> to vector<1x128xbf16>
      %cst = arith.constant dense<0.000000e+00> : vector<1x16xf32>
      %23 = tpu.matmul %22, %15, %cst {dimension_numbers = #tpu.dot_dimension_numbers<[1], [1], [0], [0], [0, 0, 1, 0], [], []>} : vector<1x128xbf16>, vector<16x128xbf16>, vector<1x16xf32> -> vector<1x16xf32>
      %c0_12 = arith.constant 0 : index
      %c0_13 = arith.constant 0 : index
      %24 = vector.load %arg10[%c0_12, %c0_13] : memref<12x1xf32, #tpu.memory_space<vmem>>, vector<12x1xf32>
      %25 = vector.broadcast %24 : vector<12x1xf32> to vector<12x16xf32>
      %26 = vector.broadcast %23 : vector<1x16xf32> to vector<12x16xf32>
      %27 = arith.addf %25, %26 : vector<12x16xf32>
      %cst_14 = arith.constant -1.000000e+30 : f32
      %28 = vector.broadcast %cst_14 : f32 to vector<12x16xf32>
      %29 = arith.select %19, %27, %28 : vector<12x16xi1>, vector<12x16xf32>
      %c0_15 = arith.constant 0 : index
      %c0_16 = arith.constant 0 : index
      %30 = vector.load %arg11[%c0_15, %c0_16] : memref<12x1xf32, #tpu.memory_space<vmem>>, vector<12x1xf32>
      %cst_17 = arith.constant dense<0xFF800000> : vector<12xf32>
      %31 = vector.multi_reduction <maximumf>, %29, %cst_17 [1] : vector<12x16xf32> to vector<12xf32>
      %32 = vector.shape_cast %31 : vector<12xf32> to vector<12x1xf32>
      %33 = arith.maximumf %30, %32 : vector<12x1xf32>
      %34 = arith.subf %30, %33 : vector<12x1xf32>
      %35 = math.exp %34 : vector<12x1xf32>
      %36 = vector.broadcast %33 : vector<12x1xf32> to vector<12x16xf32>
      %37 = arith.subf %29, %36 : vector<12x16xf32>
      %38 = math.exp %37 : vector<12x16xf32>
      %cst_18 = arith.constant 0.000000e+00 : f32
      %39 = vector.broadcast %cst_18 : f32 to vector<12x16xf32>
      %40 = arith.select %19, %38, %39 : vector<12x16xi1>, vector<12x16xf32>
      %c0_19 = arith.constant 0 : index
      %c0_20 = arith.constant 0 : index
      %41 = vector.load %arg12[%c0_19, %c0_20] : memref<12x1xf32, #tpu.memory_space<vmem>>, vector<12x1xf32>
      %42 = arith.mulf %35, %41 : vector<12x1xf32>
      %cst_21 = arith.constant dense<0.000000e+00> : vector<12xf32>
      %43 = vector.multi_reduction <add>, %40, %cst_21 [1] : vector<12x16xf32> to vector<12xf32>
      %44 = vector.shape_cast %43 : vector<12xf32> to vector<12x1xf32>
      %45 = arith.addf %42, %44 : vector<12x1xf32>
      %c0_22 = arith.constant 0 : index
      %c0_23 = arith.constant 0 : index
      %46 = vector.load %arg12[%c0_22, %c0_23] : memref<12x1xf32, #tpu.memory_space<vmem>>, vector<12x1xf32>
      tpu.vector_store %arg12[%c0_22, %c0_23], %45 {strides = array<i32>} : memref<12x1xf32, #tpu.memory_space<vmem>>, vector<12x1xf32>,
      %c0_24 = arith.constant 0 : index
      %c0_25 = arith.constant 0 : index
      %47 = vector.load %arg13[%c0_24, %c0_25] : memref<12x128xf32, #tpu.memory_space<vmem>>, vector<12x128xf32>
      %48 = vector.broadcast %35 : vector<12x1xf32> to vector<12x128xf32>
      %49 = arith.mulf %48, %47 : vector<12x128xf32>
      %50 = arith.truncf %40 : vector<12x16xf32> to vector<12x16xbf16>
      %cst_26 = arith.constant dense<0.000000e+00> : vector<12x128xf32>
      %51 = tpu.matmul %50, %15, %cst_26 {dimension_numbers = #tpu.dot_dimension_numbers<[1], [0], [0], [1], [0, 0, 1, 1], [], []>} : vector<12x16xbf16>, vector<16x128xbf16>, vector<12x128xf32> -> vector<12x128xf32>
      %52 = arith.addf %49, %51 : vector<12x128xf32>
      %c0_27 = arith.constant 0 : index
      %c0_28 = arith.constant 0 : index
      %53 = vector.load %arg13[%c0_27, %c0_28] : memref<12x128xf32, #tpu.memory_space<vmem>>, vector<12x128xf32>
      tpu.vector_store %arg13[%c0_27, %c0_28], %52 {strides = array<i32>} : memref<12x128xf32, #tpu.memory_space<vmem>>, vector<12x128xf32>,
      %c0_29 = arith.constant 0 : index
      %c0_30 = arith.constant 0 : index
      %54 = vector.load %arg11[%c0_29, %c0_30] : memref<12x1xf32, #tpu.memory_space<vmem>>, vector<12x1xf32>
      tpu.vector_store %arg11[%c0_29, %c0_30], %33 {strides = array<i32>} : memref<12x1xf32, #tpu.memory_space<vmem>>, vector<12x1xf32>,
    } else {
    }
    %c0_i32_4 = arith.constant 0 : i32
    %12 = arith.cmpi eq, %arg2, %c0_i32_4 : i32
    %13 = arith.extui %12 : i1 to i32
    %c0_i32_5 = arith.constant 0 : i32
    %14 = arith.cmpi ne, %13, %c0_i32_5 : i32
    scf.if %14 {
      %c0 = arith.constant 0 : index
      %c0_6 = arith.constant 0 : index
      %15 = vector.load %arg12[%c0, %c0_6] : memref<12x1xf32, #tpu.memory_space<vmem>>, vector<12x1xf32>
      %cst = arith.constant 1.000000e-16 : f32
      %16 = vector.broadcast %cst : f32 to vector<12x1xf32>
      %17 = arith.addf %15, %16 : vector<12x1xf32>
      %18 = tpu.reciprocal %17 {approx = true} : vector<12x1xf32> -> vector<12x1xf32>
      %c0_7 = arith.constant 0 : index
      %c0_8 = arith.constant 0 : index
      %19 = vector.load %arg13[%c0_7, %c0_8] : memref<12x128xf32, #tpu.memory_space<vmem>>, vector<12x128xf32>
      %20 = vector.broadcast %18 : vector<12x1xf32> to vector<12x128xf32>
      %21 = arith.mulf %19, %20 : vector<12x128xf32>
      %cst_9 = arith.constant 0.000000e+00 : f32
      %22 = vector.broadcast %cst_9 : f32 to vector<12x128xf32>
      %23 = arith.cmpf ogt, %21, %22 : vector<12x128xf32>
      %cst_10 = arith.constant 2.000000e-01 : f32
      %24 = vector.broadcast %cst_10 : f32 to vector<12x128xf32>
      %25 = arith.mulf %24, %21 : vector<12x128xf32>
      %26 = arith.select %23, %21, %25 : vector<12x128xi1>, vector<12x128xf32>
      %27 = arith.truncf %26 : vector<12x128xf32> to vector<12x128xbf16>
      %c0_11 = arith.constant 0 : index
      %c0_12 = arith.constant 0 : index
      %28 = vector.load %arg8[%c0_11, %c0_12] : memref<128x128xbf16, #tpu.memory_space<vmem>>, vector<128x128xbf16>
      %cst_13 = arith.constant dense<0.000000e+00> : vector<12x128xf32>
      %29 = tpu.matmul %27, %28, %cst_13 {dimension_numbers = #tpu.dot_dimension_numbers<[1], [0], [0], [1], [0, 0, 1, 1], [], []>} : vector<12x128xbf16>, vector<128x128xbf16>, vector<12x128xf32> -> vector<12x128xf32>
      %30 = arith.truncf %29 : vector<12x128xf32> to vector<12x128xbf16>
      %c0_14 = arith.constant 0 : index
      %c0_15 = arith.constant 0 : index
      %c0_16 = arith.constant 0 : index
      %31 = vector.load %arg9[%c0_14, %c0_15, %c0_16] : memref<1x12x128xbf16, #tpu.memory_space<vmem>>, vector<1x12x128xbf16>
      %32 = vector.shape_cast %31 : vector<1x12x128xbf16> to vector<12x128xbf16>
      %33 = vector.shape_cast %30 : vector<12x128xbf16> to vector<1x12x128xbf16>
      tpu.vector_store %arg9[%c0_14, %c0_15, %c0_16], %33 {strides = array<i32>} : memref<1x12x128xbf16, #tpu.memory_space<vmem>>, vector<1x12x128xbf16>,
    } else {
    }
    return
  }
  func.func @transform_0(%arg0: i32, %arg1: i32, %arg2: i32, %arg3: memref<2xi32, #tpu.memory_space<smem>>) -> (i32, i32) {
    %c0_i32 = arith.constant 0 : i32
    %c0_i32_0 = arith.constant 0 : i32
    return %arg1, %c0_i32 : i32, i32
  }
  func.func @transform_1(%arg0: i32, %arg1: i32, %arg2: i32, %arg3: memref<2xi32, #tpu.memory_space<smem>>) -> (i32, i32) {
    %c0_i32 = arith.constant 0 : i32
    %c0_i32_0 = arith.constant 0 : i32
    return %arg2, %c0_i32 : i32, i32
  }
  func.func @transform_2(%arg0: i32, %arg1: i32, %arg2: i32, %arg3: memref<2xi32, #tpu.memory_space<smem>>) -> (i32, i32, i32) {
    %c0_i32 = arith.constant 0 : i32
    %c0_i32_0 = arith.constant 0 : i32
    %c0_i32_1 = arith.constant 0 : i32
    return %arg0, %c0_i32, %c0_i32_0 : i32, i32, i32
  }
  func.func @transform_3(%arg0: i32, %arg1: i32, %arg2: i32, %arg3: memref<2xi32, #tpu.memory_space<smem>>) -> (i32, i32, i32) {
    %c0_i32 = arith.constant 0 : i32
    return %arg0, %arg1, %arg2 : i32, i32, i32
  }
  func.func @transform_4(%arg0: i32, %arg1: i32, %arg2: i32, %arg3: memref<2xi32, #tpu.memory_space<smem>>) -> (i32, i32) {
    %c0_i32 = arith.constant 0 : i32
    %c0_i32_0 = arith.constant 0 : i32
    %c0_i32_1 = arith.constant 0 : i32
    return %c0_i32, %c0_i32_0 : i32, i32
  }
  func.func @transform_5(%arg0: i32, %arg1: i32, %arg2: i32, %arg3: memref<2xi32, #tpu.memory_space<smem>>) -> (i32, i32, i32) {
    %c0_i32 = arith.constant 0 : i32
    %c0_i32_0 = arith.constant 0 : i32
    return %arg0, %arg1, %c0_i32 : i32, i32, i32
  }
}

module attributes {stable_mosaic.version = 11 : i64} {
  func.func @_type_gat_kernel(%arg0: i32, %arg1: i32, %arg2: i32, %arg3: memref<2xi32, #tpu.memory_space<smem>>, %arg4: memref<16x128xbf16, #tpu.memory_space<vmem>>, %arg5: memref<12x128xbf16, #tpu.memory_space<vmem>>, %arg6: memref<1x2x128xf32, #tpu.memory_space<vmem>>, %arg7: memref<1x16x12xi8, #tpu.memory_space<vmem>>, %arg8: memref<128x128xbf16, #tpu.memory_space<vmem>>, %arg9: memref<1x16x128xbf16, #tpu.memory_space<vmem>>, %arg10: memref<16x1xf32, #tpu.memory_space<vmem>>, %arg11: memref<16x1xf32, #tpu.memory_space<vmem>>, %arg12: memref<16x1xf32, #tpu.memory_space<vmem>>, %arg13: memref<16x128xf32, #tpu.memory_space<vmem>>) attributes {dimension_semantics = [#tpu.dimension_semantics<parallel>, #tpu.dimension_semantics<parallel>, #tpu.dimension_semantics<arbitrary>], iteration_bounds = array<i64: 2, 1, 1>, scalar_prefetch = 1 : i64, scratch_operands = 4 : i64, tpu.core_type = #tpu.core_type<tc>, window_params = [{transform_indices = @transform_0, window_bounds = array<i64: 16, 128>}, {transform_indices = @transform_1, window_bounds = array<i64: 12, 128>}, {transform_indices = @transform_2, window_bounds = array<i64: 1, 2, 128>}, {transform_indices = @transform_3, window_bounds = array<i64: 1, 16, 12>}, {pipeline_mode = #tpu.pipeline_mode<synchronous>, transform_indices = @transform_4, window_bounds = array<i64: 128, 128>}, {transform_indices = @transform_5, window_bounds = array<i64: 1, 16, 128>}]} {
    %c0_i32 = arith.constant 0 : i32
    %0 = arith.cmpi eq, %arg2, %c0_i32 : i32
    %1 = arith.extui %0 : i1 to i32
    %c0_i32_0 = arith.constant 0 : i32
    %2 = arith.cmpi ne, %1, %c0_i32_0 : i32
    scf.if %2 {
      %cst = arith.constant -1.000000e+30 : f32
      %15 = vector.broadcast %cst : f32 to vector<16x1xf32>
      %c0 = arith.constant 0 : index
      %c0_6 = arith.constant 0 : index
      %16 = vector.load %arg11[%c0, %c0_6] : memref<16x1xf32, #tpu.memory_space<vmem>>, vector<16x1xf32>
      tpu.vector_store %arg11[%c0, %c0_6], %15 {strides = array<i32>} : memref<16x1xf32, #tpu.memory_space<vmem>>, vector<16x1xf32>,
      %cst_7 = arith.constant 0.000000e+00 : f32
      %17 = vector.broadcast %cst_7 : f32 to vector<16x1xf32>
      %c0_8 = arith.constant 0 : index
      %c0_9 = arith.constant 0 : index
      %18 = vector.load %arg12[%c0_8, %c0_9] : memref<16x1xf32, #tpu.memory_space<vmem>>, vector<16x1xf32>
      tpu.vector_store %arg12[%c0_8, %c0_9], %17 {strides = array<i32>} : memref<16x1xf32, #tpu.memory_space<vmem>>, vector<16x1xf32>,
      %cst_10 = arith.constant 0.000000e+00 : f32
      %19 = vector.broadcast %cst_10 : f32 to vector<16x128xf32>
      %c0_11 = arith.constant 0 : index
      %c0_12 = arith.constant 0 : index
      %20 = vector.load %arg13[%c0_11, %c0_12] : memref<16x128xf32, #tpu.memory_space<vmem>>, vector<16x128xf32>
      tpu.vector_store %arg13[%c0_11, %c0_12], %19 {strides = array<i32>} : memref<16x128xf32, #tpu.memory_space<vmem>>, vector<16x128xf32>,
      %c0_13 = arith.constant 0 : index
      %c0_14 = arith.constant 0 : index
      %21 = vector.load %arg4[%c0_13, %c0_14] : memref<16x128xbf16, #tpu.memory_space<vmem>>, vector<16x128xbf16>
      %22 = arith.extf %21 : vector<16x128xbf16> to vector<16x128xf32>
      %c0_15 = arith.constant 0 : index
      %c0_16 = arith.constant 0 : index
      %c0_17 = arith.constant 0 : index
      %23 = vector.load %arg6[%c0_15, %c0_16, %c0_17] : memref<1x2x128xf32, #tpu.memory_space<vmem>>, vector<1x1x128xf32>
      %24 = vector.shape_cast %23 : vector<1x1x128xf32> to vector<1x128xf32>
      %25 = vector.broadcast %24 : vector<1x128xf32> to vector<16x128xf32>
      %26 = arith.mulf %22, %25 : vector<16x128xf32>
      %cst_18 = arith.constant dense<0.000000e+00> : vector<16xf32>
      %27 = vector.multi_reduction <add>, %26, %cst_18 [1] : vector<16x128xf32> to vector<16xf32>
      %28 = vector.shape_cast %27 : vector<16xf32> to vector<16x1xf32>
      %c0_19 = arith.constant 0 : index
      %c0_20 = arith.constant 0 : index
      %29 = vector.load %arg10[%c0_19, %c0_20] : memref<16x1xf32, #tpu.memory_space<vmem>>, vector<16x1xf32>
      tpu.vector_store %arg10[%c0_19, %c0_20], %28 {strides = array<i32>} : memref<16x1xf32, #tpu.memory_space<vmem>>, vector<16x1xf32>,
    } else {
    }
    %c1_i32 = arith.constant 1 : i32
    %3 = arith.muli %arg0, %c1_i32 : i32
    %4 = arith.addi %3, %arg1 : i32
    %c1_i32_1 = arith.constant 1 : i32
    %5 = arith.muli %4, %c1_i32_1 : i32
    %6 = arith.addi %5, %arg2 : i32
    %7 = arith.index_cast %6 : i32 to index
    %8 = memref.load %arg3[%7] : memref<2xi32, #tpu.memory_space<smem>>
    %c0_i32_2 = arith.constant 0 : i32
    %9 = arith.cmpi sgt, %8, %c0_i32_2 : i32
    %10 = arith.extui %9 : i1 to i32
    %c0_i32_3 = arith.constant 0 : i32
    %11 = arith.cmpi ne, %10, %c0_i32_3 : i32
    scf.if %11 {
      %c0 = arith.constant 0 : index
      %c0_6 = arith.constant 0 : index
      %15 = vector.load %arg5[%c0, %c0_6] : memref<12x128xbf16, #tpu.memory_space<vmem>>, vector<12x128xbf16>
      %c0_7 = arith.constant 0 : index
      %c0_8 = arith.constant 0 : index
      %c0_9 = arith.constant 0 : index
      %16 = vector.load %arg7[%c0_7, %c0_8, %c0_9] : memref<1x16x12xi8, #tpu.memory_space<vmem>>, vector<1x16x12xi8>
      %17 = vector.shape_cast %16 : vector<1x16x12xi8> to vector<16x12xi8>
      %c0_i8 = arith.constant 0 : i8
      %18 = vector.broadcast %c0_i8 : i8 to vector<16x12xi8>
      %19 = arith.cmpi ne, %17, %18 : vector<16x12xi8>
      %c0_10 = arith.constant 0 : index
      %c1 = arith.constant 1 : index
      %c0_11 = arith.constant 0 : index
      %20 = vector.load %arg6[%c0_10, %c1, %c0_11] : memref<1x2x128xf32, #tpu.memory_space<vmem>>, vector<1x1x128xf32>
      %21 = vector.shape_cast %20 : vector<1x1x128xf32> to vector<1x128xf32>
      %22 = arith.truncf %21 : vector<1x128xf32> to vector<1x128xbf16>
      %cst = arith.constant dense<0.000000e+00> : vector<1x12xf32>
      %23 = tpu.matmul %22, %15, %cst {dimension_numbers = #tpu.dot_dimension_numbers<[1], [1], [0], [0], [0, 0, 1, 0], [], []>} : vector<1x128xbf16>, vector<12x128xbf16>, vector<1x12xf32> -> vector<1x12xf32>
      %c0_12 = arith.constant 0 : index
      %c0_13 = arith.constant 0 : index
      %24 = vector.load %arg10[%c0_12, %c0_13] : memref<16x1xf32, #tpu.memory_space<vmem>>, vector<16x1xf32>
      %25 = vector.broadcast %24 : vector<16x1xf32> to vector<16x12xf32>
      %26 = vector.broadcast %23 : vector<1x12xf32> to vector<16x12xf32>
      %27 = arith.addf %25, %26 : vector<16x12xf32>
      %cst_14 = arith.constant -1.000000e+30 : f32
      %28 = vector.broadcast %cst_14 : f32 to vector<16x12xf32>
      %29 = arith.select %19, %27, %28 : vector<16x12xi1>, vector<16x12xf32>
      %c0_15 = arith.constant 0 : index
      %c0_16 = arith.constant 0 : index
      %30 = vector.load %arg11[%c0_15, %c0_16] : memref<16x1xf32, #tpu.memory_space<vmem>>, vector<16x1xf32>
      %cst_17 = arith.constant dense<0xFF800000> : vector<16xf32>
      %31 = vector.multi_reduction <maximumf>, %29, %cst_17 [1] : vector<16x12xf32> to vector<16xf32>
      %32 = vector.shape_cast %31 : vector<16xf32> to vector<16x1xf32>
      %33 = arith.maximumf %30, %32 : vector<16x1xf32>
      %34 = arith.subf %30, %33 : vector<16x1xf32>
      %35 = math.exp %34 : vector<16x1xf32>
      %36 = vector.broadcast %33 : vector<16x1xf32> to vector<16x12xf32>
      %37 = arith.subf %29, %36 : vector<16x12xf32>
      %38 = math.exp %37 : vector<16x12xf32>
      %cst_18 = arith.constant 0.000000e+00 : f32
      %39 = vector.broadcast %cst_18 : f32 to vector<16x12xf32>
      %40 = arith.select %19, %38, %39 : vector<16x12xi1>, vector<16x12xf32>
      %c0_19 = arith.constant 0 : index
      %c0_20 = arith.constant 0 : index
      %41 = vector.load %arg12[%c0_19, %c0_20] : memref<16x1xf32, #tpu.memory_space<vmem>>, vector<16x1xf32>
      %42 = arith.mulf %35, %41 : vector<16x1xf32>
      %cst_21 = arith.constant dense<0.000000e+00> : vector<16xf32>
      %43 = vector.multi_reduction <add>, %40, %cst_21 [1] : vector<16x12xf32> to vector<16xf32>
      %44 = vector.shape_cast %43 : vector<16xf32> to vector<16x1xf32>
      %45 = arith.addf %42, %44 : vector<16x1xf32>
      %c0_22 = arith.constant 0 : index
      %c0_23 = arith.constant 0 : index
      %46 = vector.load %arg12[%c0_22, %c0_23] : memref<16x1xf32, #tpu.memory_space<vmem>>, vector<16x1xf32>
      tpu.vector_store %arg12[%c0_22, %c0_23], %45 {strides = array<i32>} : memref<16x1xf32, #tpu.memory_space<vmem>>, vector<16x1xf32>,
      %c0_24 = arith.constant 0 : index
      %c0_25 = arith.constant 0 : index
      %47 = vector.load %arg13[%c0_24, %c0_25] : memref<16x128xf32, #tpu.memory_space<vmem>>, vector<16x128xf32>
      %48 = vector.broadcast %35 : vector<16x1xf32> to vector<16x128xf32>
      %49 = arith.mulf %48, %47 : vector<16x128xf32>
      %50 = arith.truncf %40 : vector<16x12xf32> to vector<16x12xbf16>
      %cst_26 = arith.constant dense<0.000000e+00> : vector<16x128xf32>
      %51 = tpu.matmul %50, %15, %cst_26 {dimension_numbers = #tpu.dot_dimension_numbers<[1], [0], [0], [1], [0, 0, 1, 1], [], []>} : vector<16x12xbf16>, vector<12x128xbf16>, vector<16x128xf32> -> vector<16x128xf32>
      %52 = arith.addf %49, %51 : vector<16x128xf32>
      %c0_27 = arith.constant 0 : index
      %c0_28 = arith.constant 0 : index
      %53 = vector.load %arg13[%c0_27, %c0_28] : memref<16x128xf32, #tpu.memory_space<vmem>>, vector<16x128xf32>
      tpu.vector_store %arg13[%c0_27, %c0_28], %52 {strides = array<i32>} : memref<16x128xf32, #tpu.memory_space<vmem>>, vector<16x128xf32>,
      %c0_29 = arith.constant 0 : index
      %c0_30 = arith.constant 0 : index
      %54 = vector.load %arg11[%c0_29, %c0_30] : memref<16x1xf32, #tpu.memory_space<vmem>>, vector<16x1xf32>
      tpu.vector_store %arg11[%c0_29, %c0_30], %33 {strides = array<i32>} : memref<16x1xf32, #tpu.memory_space<vmem>>, vector<16x1xf32>,
    } else {
    }
    %c0_i32_4 = arith.constant 0 : i32
    %12 = arith.cmpi eq, %arg2, %c0_i32_4 : i32
    %13 = arith.extui %12 : i1 to i32
    %c0_i32_5 = arith.constant 0 : i32
    %14 = arith.cmpi ne, %13, %c0_i32_5 : i32
    scf.if %14 {
      %c0 = arith.constant 0 : index
      %c0_6 = arith.constant 0 : index
      %15 = vector.load %arg12[%c0, %c0_6] : memref<16x1xf32, #tpu.memory_space<vmem>>, vector<16x1xf32>
      %cst = arith.constant 1.000000e-16 : f32
      %16 = vector.broadcast %cst : f32 to vector<16x1xf32>
      %17 = arith.addf %15, %16 : vector<16x1xf32>
      %18 = tpu.reciprocal %17 {approx = true} : vector<16x1xf32> -> vector<16x1xf32>
      %c0_7 = arith.constant 0 : index
      %c0_8 = arith.constant 0 : index
      %19 = vector.load %arg13[%c0_7, %c0_8] : memref<16x128xf32, #tpu.memory_space<vmem>>, vector<16x128xf32>
      %20 = vector.broadcast %18 : vector<16x1xf32> to vector<16x128xf32>
      %21 = arith.mulf %19, %20 : vector<16x128xf32>
      %cst_9 = arith.constant 0.000000e+00 : f32
      %22 = vector.broadcast %cst_9 : f32 to vector<16x128xf32>
      %23 = arith.cmpf ogt, %21, %22 : vector<16x128xf32>
      %cst_10 = arith.constant 2.000000e-01 : f32
      %24 = vector.broadcast %cst_10 : f32 to vector<16x128xf32>
      %25 = arith.mulf %24, %21 : vector<16x128xf32>
      %26 = arith.select %23, %21, %25 : vector<16x128xi1>, vector<16x128xf32>
      %27 = arith.truncf %26 : vector<16x128xf32> to vector<16x128xbf16>
      %c0_11 = arith.constant 0 : index
      %c0_12 = arith.constant 0 : index
      %28 = vector.load %arg8[%c0_11, %c0_12] : memref<128x128xbf16, #tpu.memory_space<vmem>>, vector<128x128xbf16>
      %cst_13 = arith.constant dense<0.000000e+00> : vector<16x128xf32>
      %29 = tpu.matmul %27, %28, %cst_13 {dimension_numbers = #tpu.dot_dimension_numbers<[1], [0], [0], [1], [0, 0, 1, 1], [], []>} : vector<16x128xbf16>, vector<128x128xbf16>, vector<16x128xf32> -> vector<16x128xf32>
      %30 = arith.truncf %29 : vector<16x128xf32> to vector<16x128xbf16>
      %c0_14 = arith.constant 0 : index
      %c0_15 = arith.constant 0 : index
      %c0_16 = arith.constant 0 : index
      %31 = vector.load %arg9[%c0_14, %c0_15, %c0_16] : memref<1x16x128xbf16, #tpu.memory_space<vmem>>, vector<1x16x128xbf16>
      %32 = vector.shape_cast %31 : vector<1x16x128xbf16> to vector<16x128xbf16>
      %33 = vector.shape_cast %30 : vector<16x128xbf16> to vector<1x16x128xbf16>
      tpu.vector_store %arg9[%c0_14, %c0_15, %c0_16], %33 {strides = array<i32>} : memref<1x16x128xbf16, #tpu.memory_space<vmem>>, vector<1x16x128xbf16>,
    } else {
    }
    return
  }
  func.func @transform_0(%arg0: i32, %arg1: i32, %arg2: i32, %arg3: memref<2xi32, #tpu.memory_space<smem>>) -> (i32, i32) {
    %c0_i32 = arith.constant 0 : i32
    %c0_i32_0 = arith.constant 0 : i32
    return %arg1, %c0_i32 : i32, i32
  }
  func.func @transform_1(%arg0: i32, %arg1: i32, %arg2: i32, %arg3: memref<2xi32, #tpu.memory_space<smem>>) -> (i32, i32) {
    %c0_i32 = arith.constant 0 : i32
    %c0_i32_0 = arith.constant 0 : i32
    return %arg2, %c0_i32 : i32, i32
  }
  func.func @transform_2(%arg0: i32, %arg1: i32, %arg2: i32, %arg3: memref<2xi32, #tpu.memory_space<smem>>) -> (i32, i32, i32) {
    %c0_i32 = arith.constant 0 : i32
    %c0_i32_0 = arith.constant 0 : i32
    %c0_i32_1 = arith.constant 0 : i32
    return %arg0, %c0_i32, %c0_i32_0 : i32, i32, i32
  }
  func.func @transform_3(%arg0: i32, %arg1: i32, %arg2: i32, %arg3: memref<2xi32, #tpu.memory_space<smem>>) -> (i32, i32, i32) {
    %c0_i32 = arith.constant 0 : i32
    return %arg0, %arg1, %arg2 : i32, i32, i32
  }
  func.func @transform_4(%arg0: i32, %arg1: i32, %arg2: i32, %arg3: memref<2xi32, #tpu.memory_space<smem>>) -> (i32, i32) {
    %c0_i32 = arith.constant 0 : i32
    %c0_i32_0 = arith.constant 0 : i32
    %c0_i32_1 = arith.constant 0 : i32
    return %c0_i32, %c0_i32_0 : i32, i32
  }
  func.func @transform_5(%arg0: i32, %arg1: i32, %arg2: i32, %arg3: memref<2xi32, #tpu.memory_space<smem>>) -> (i32, i32, i32) {
    %c0_i32 = arith.constant 0 : i32
    %c0_i32_0 = arith.constant 0 : i32
    return %arg0, %arg1, %c0_i32 : i32, i32, i32
  }
}

module attributes {stable_mosaic.version = 11 : i64} {
  func.func @_combine_kernel(%arg0: i32, %arg1: memref<2x16x128xbf16, #tpu.memory_space<vmem>>, %arg2: memref<16x128xbf16, #tpu.memory_space<vmem>>, %arg3: memref<2x128xf32, #tpu.memory_space<vmem>>, %arg4: memref<2xf32, #tpu.memory_space<smem>>, %arg5: memref<2xf32, #tpu.memory_space<smem>>, %arg6: memref<1x128xf32, #tpu.memory_space<vmem>>, %arg7: memref<1x128xf32, #tpu.memory_space<vmem>>, %arg8: memref<16x128xbf16, #tpu.memory_space<vmem>>) attributes {dimension_semantics = [#tpu.dimension_semantics<parallel>], iteration_bounds = array<i64: 1>, scalar_prefetch = 0 : i64, scratch_operands = 0 : i64, tpu.core_type = #tpu.core_type<tc>, window_params = [{transform_indices = @transform_0, window_bounds = array<i64: 2, 16, 128>}, {transform_indices = @transform_1, window_bounds = array<i64: 16, 128>}, {pipeline_mode = #tpu.pipeline_mode<synchronous>, transform_indices = @transform_2, window_bounds = array<i64: 2, 128>}, {transform_indices = @transform_3, window_bounds = array<i64: 2>}, {transform_indices = @transform_4, window_bounds = array<i64: 2>}, {pipeline_mode = #tpu.pipeline_mode<synchronous>, transform_indices = @transform_5, window_bounds = array<i64: 1, 128>}, {pipeline_mode = #tpu.pipeline_mode<synchronous>, transform_indices = @transform_6, window_bounds = array<i64: 1, 128>}, {transform_indices = @transform_7, window_bounds = array<i64: 16, 128>}]} {
    %0 = tpu.iota {dimensions = array<i32: 1>} : vector<1x128xi32>
    %c32_i32 = arith.constant 32 : i32
    %1 = vector.broadcast %c32_i32 : i32 to vector<1x128xi32>
    %2 = arith.cmpi slt, %0, %1 : vector<1x128xi32>
    %c0 = arith.constant 0 : index
    %c0_0 = arith.constant 0 : index
    %3 = vector.load %arg2[%c0, %c0_0] : memref<16x128xbf16, #tpu.memory_space<vmem>>, vector<16x128xbf16>
    %4 = arith.extf %3 : vector<16x128xbf16> to vector<16x128xf32>
    %c0_1 = arith.constant 0 : index
    %c0_2 = arith.constant 0 : index
    %5 = vector.load %arg3[%c0_1, %c0_2] : memref<2x128xf32, #tpu.memory_space<vmem>>, vector<1x128xf32>
    %c1 = arith.constant 1 : index
    %c0_3 = arith.constant 0 : index
    %6 = vector.load %arg3[%c1, %c0_3] : memref<2x128xf32, #tpu.memory_space<vmem>>, vector<1x128xf32>
    %7 = vector.broadcast %5 : vector<1x128xf32> to vector<16x128xf32>
    %8 = arith.mulf %4, %7 : vector<16x128xf32>
    %cst = arith.constant dense<0.000000e+00> : vector<16xf32>
    %9 = vector.multi_reduction <add>, %8, %cst [1] : vector<16x128xf32> to vector<16xf32>
    %10 = vector.shape_cast %9 : vector<16xf32> to vector<16x1xf32>
    %c0_4 = arith.constant 0 : index
    %c0_5 = arith.constant 0 : index
    %c0_6 = arith.constant 0 : index
    %11 = vector.load %arg1[%c0_4, %c0_5, %c0_6] : memref<2x16x128xbf16, #tpu.memory_space<vmem>>, vector<1x16x128xbf16>
    %12 = vector.shape_cast %11 : vector<1x16x128xbf16> to vector<16x128xbf16>
    %13 = arith.extf %12 : vector<16x128xbf16> to vector<16x128xf32>
    %c1_7 = arith.constant 1 : index
    %c0_8 = arith.constant 0 : index
    %c0_9 = arith.constant 0 : index
    %14 = vector.load %arg1[%c1_7, %c0_8, %c0_9] : memref<2x16x128xbf16, #tpu.memory_space<vmem>>, vector<1x16x128xbf16>
    %15 = vector.shape_cast %14 : vector<1x16x128xbf16> to vector<16x128xbf16>
    %16 = arith.extf %15 : vector<16x128xbf16> to vector<16x128xf32>
    %17 = vector.broadcast %6 : vector<1x128xf32> to vector<16x128xf32>
    %18 = arith.mulf %13, %17 : vector<16x128xf32>
    %cst_10 = arith.constant dense<0.000000e+00> : vector<16xf32>
    %19 = vector.multi_reduction <add>, %18, %cst_10 [1] : vector<16x128xf32> to vector<16xf32>
    %20 = vector.shape_cast %19 : vector<16xf32> to vector<16x1xf32>
    %21 = arith.addf %10, %20 : vector<16x1xf32>
    %22 = vector.broadcast %6 : vector<1x128xf32> to vector<16x128xf32>
    %23 = arith.mulf %16, %22 : vector<16x128xf32>
    %cst_11 = arith.constant dense<0.000000e+00> : vector<16xf32>
    %24 = vector.multi_reduction <add>, %23, %cst_11 [1] : vector<16x128xf32> to vector<16xf32>
    %25 = vector.shape_cast %24 : vector<16xf32> to vector<16x1xf32>
    %26 = arith.addf %10, %25 : vector<16x1xf32>
    %27 = arith.maximumf %21, %26 : vector<16x1xf32>
    %28 = arith.subf %21, %27 : vector<16x1xf32>
    %29 = math.exp %28 : vector<16x1xf32>
    %30 = arith.subf %26, %27 : vector<16x1xf32>
    %31 = math.exp %30 : vector<16x1xf32>
    %32 = arith.addf %29, %31 : vector<16x1xf32>
    %33 = tpu.reciprocal %32 {approx = true} : vector<16x1xf32> -> vector<16x1xf32>
    %c0_12 = arith.constant 0 : index
    %34 = memref.load %arg5[%c0_12] : memref<2xf32, #tpu.memory_space<smem>>
    %c1_13 = arith.constant 1 : index
    %35 = memref.load %arg5[%c1_13] : memref<2xf32, #tpu.memory_space<smem>>
    %cst_14 = arith.constant 0.000000e+00 : f32
    %36 = vector.broadcast %cst_14 : f32 to vector<16x128xf32>
    %37 = arith.mulf %29, %33 : vector<16x1xf32>
    %38 = vector.broadcast %34 : f32 to vector<16x1xf32>
    %39 = arith.mulf %38, %37 : vector<16x1xf32>
    %c0_15 = arith.constant 0 : index
    %40 = memref.load %arg4[%c0_15] : memref<2xf32, #tpu.memory_space<smem>>
    %41 = vector.broadcast %40 : f32 to vector<16x1xf32>
    %42 = arith.addf %39, %41 : vector<16x1xf32>
    %43 = vector.broadcast %42 : vector<16x1xf32> to vector<16x128xf32>
    %44 = arith.mulf %13, %43 : vector<16x128xf32>
    %45 = arith.addf %36, %44 : vector<16x128xf32>
    %46 = arith.mulf %31, %33 : vector<16x1xf32>
    %47 = vector.broadcast %34 : f32 to vector<16x1xf32>
    %48 = arith.mulf %47, %46 : vector<16x1xf32>
    %c1_16 = arith.constant 1 : index
    %49 = memref.load %arg4[%c1_16] : memref<2xf32, #tpu.memory_space<smem>>
    %50 = vector.broadcast %49 : f32 to vector<16x1xf32>
    %51 = arith.addf %48, %50 : vector<16x1xf32>
    %52 = vector.broadcast %51 : vector<16x1xf32> to vector<16x128xf32>
    %53 = arith.mulf %16, %52 : vector<16x128xf32>
    %54 = arith.addf %45, %53 : vector<16x128xf32>
    %cst_17 = arith.constant 5.000000e-01 : f32
    %55 = vector.broadcast %cst_17 : f32 to vector<16x128xf32>
    %56 = arith.mulf %55, %54 : vector<16x128xf32>
    %cst_18 = arith.constant 4.471500e-02 : f32
    %57 = vector.broadcast %cst_18 : f32 to vector<16x128xf32>
    %58 = arith.mulf %57, %54 : vector<16x128xf32>
    %59 = arith.mulf %58, %54 : vector<16x128xf32>
    %60 = arith.mulf %59, %54 : vector<16x128xf32>
    %61 = arith.addf %54, %60 : vector<16x128xf32>
    %cst_19 = arith.constant 0.797884583 : f32
    %62 = vector.broadcast %cst_19 : f32 to vector<16x128xf32>
    %63 = arith.mulf %62, %61 : vector<16x128xf32>
    %64 = math.tanh %63 : vector<16x128xf32>
    %cst_20 = arith.constant 1.000000e+00 : f32
    %65 = vector.broadcast %cst_20 : f32 to vector<16x128xf32>
    %66 = arith.addf %65, %64 : vector<16x128xf32>
    %67 = arith.mulf %56, %66 : vector<16x128xf32>
    %68 = vector.broadcast %35 : f32 to vector<16x128xf32>
    %69 = arith.mulf %67, %68 : vector<16x128xf32>
    %cst_21 = arith.constant 1.000000e+00 : f32
    %70 = arith.subf %cst_21, %35 : f32
    %71 = vector.broadcast %70 : f32 to vector<16x128xf32>
    %72 = arith.mulf %4, %71 : vector<16x128xf32>
    %73 = arith.addf %69, %72 : vector<16x128xf32>
    %c0_22 = arith.constant 0 : index
    %c0_23 = arith.constant 0 : index
    %74 = vector.load %arg6[%c0_22, %c0_23] : memref<1x128xf32, #tpu.memory_space<vmem>>, vector<1x128xf32>
    %c0_24 = arith.constant 0 : index
    %c0_25 = arith.constant 0 : index
    %75 = vector.load %arg7[%c0_24, %c0_25] : memref<1x128xf32, #tpu.memory_space<vmem>>, vector<1x128xf32>
    %cst_26 = arith.constant 0.000000e+00 : f32
    %76 = vector.shape_cast %2 : vector<1x128xi1> to vector<1x128xi1>
    %77 = vector.broadcast %76 : vector<1x128xi1> to vector<16x128xi1>
    %78 = vector.broadcast %cst_26 : f32 to vector<16x128xf32>
    %79 = arith.select %77, %73, %78 : vector<16x128xi1>, vector<16x128xf32>
    %cst_27 = arith.constant dense<0.000000e+00> : vector<16xf32>
    %80 = vector.multi_reduction <add>, %79, %cst_27 [1] : vector<16x128xf32> to vector<16xf32>
    %81 = vector.shape_cast %80 : vector<16xf32> to vector<16x1xf32>
    %cst_28 = arith.constant 3.125000e-02 : f32
    %82 = vector.broadcast %cst_28 : f32 to vector<16x1xf32>
    %83 = arith.mulf %81, %82 : vector<16x1xf32>
    %84 = vector.broadcast %83 : vector<16x1xf32> to vector<16x128xf32>
    %85 = arith.subf %73, %84 : vector<16x128xf32>
    %cst_29 = arith.constant 0.000000e+00 : f32
    %86 = vector.shape_cast %2 : vector<1x128xi1> to vector<1x128xi1>
    %87 = vector.broadcast %86 : vector<1x128xi1> to vector<16x128xi1>
    %88 = vector.broadcast %cst_29 : f32 to vector<16x128xf32>
    %89 = arith.select %87, %85, %88 : vector<16x128xi1>, vector<16x128xf32>
    %90 = arith.mulf %89, %89 : vector<16x128xf32>
    %cst_30 = arith.constant dense<0.000000e+00> : vector<16xf32>
    %91 = vector.multi_reduction <add>, %90, %cst_30 [1] : vector<16x128xf32> to vector<16xf32>
    %92 = vector.shape_cast %91 : vector<16xf32> to vector<16x1xf32>
    %cst_31 = arith.constant 3.125000e-02 : f32
    %93 = vector.broadcast %cst_31 : f32 to vector<16x1xf32>
    %94 = arith.mulf %92, %93 : vector<16x1xf32>
    %cst_32 = arith.constant 9.99999974E-6 : f32
    %95 = vector.broadcast %cst_32 : f32 to vector<16x1xf32>
    %96 = arith.addf %94, %95 : vector<16x1xf32>
    %97 = math.rsqrt %96 : vector<16x1xf32>
    %98 = vector.broadcast %97 : vector<16x1xf32> to vector<16x128xf32>
    %99 = arith.mulf %89, %98 : vector<16x128xf32>
    %100 = vector.broadcast %74 : vector<1x128xf32> to vector<16x128xf32>
    %101 = arith.mulf %99, %100 : vector<16x128xf32>
    %102 = vector.broadcast %75 : vector<1x128xf32> to vector<16x128xf32>
    %103 = arith.addf %101, %102 : vector<16x128xf32>
    %104 = arith.truncf %103 : vector<16x128xf32> to vector<16x128xbf16>
    %c0_33 = arith.constant 0 : index
    %c0_34 = arith.constant 0 : index
    %105 = vector.load %arg8[%c0_33, %c0_34] : memref<16x128xbf16, #tpu.memory_space<vmem>>, vector<16x128xbf16>
    tpu.vector_store %arg8[%c0_33, %c0_34], %104 {strides = array<i32>} : memref<16x128xbf16, #tpu.memory_space<vmem>>, vector<16x128xbf16>,
    return
  }
  func.func @transform_0(%arg0: i32) -> (i32, i32, i32) {
    %c0_i32 = arith.constant 0 : i32
    %c0_i32_0 = arith.constant 0 : i32
    %c0_i32_1 = arith.constant 0 : i32
    return %c0_i32, %arg0, %c0_i32_0 : i32, i32, i32
  }
  func.func @transform_1(%arg0: i32) -> (i32, i32) {
    %c0_i32 = arith.constant 0 : i32
    %c0_i32_0 = arith.constant 0 : i32
    return %arg0, %c0_i32 : i32, i32
  }
  func.func @transform_2(%arg0: i32) -> (i32, i32) {
    %c0_i32 = arith.constant 0 : i32
    %c0_i32_0 = arith.constant 0 : i32
    %c0_i32_1 = arith.constant 0 : i32
    return %c0_i32, %c0_i32_0 : i32, i32
  }
  func.func @transform_3(%arg0: i32) -> i32 {
    %c0_i32 = arith.constant 0 : i32
    %c0_i32_0 = arith.constant 0 : i32
    return %c0_i32 : i32
  }
  func.func @transform_4(%arg0: i32) -> i32 {
    %c0_i32 = arith.constant 0 : i32
    %c0_i32_0 = arith.constant 0 : i32
    return %c0_i32 : i32
  }
  func.func @transform_5(%arg0: i32) -> (i32, i32) {
    %c0_i32 = arith.constant 0 : i32
    %c0_i32_0 = arith.constant 0 : i32
    %c0_i32_1 = arith.constant 0 : i32
    return %c0_i32, %c0_i32_0 : i32, i32
  }
  func.func @transform_6(%arg0: i32) -> (i32, i32) {
    %c0_i32 = arith.constant 0 : i32
    %c0_i32_0 = arith.constant 0 : i32
    %c0_i32_1 = arith.constant 0 : i32
    return %c0_i32, %c0_i32_0 : i32, i32
  }
  func.func @transform_7(%arg0: i32) -> (i32, i32) {
    %c0_i32 = arith.constant 0 : i32
    %c0_i32_0 = arith.constant 0 : i32
    return %arg0, %c0_i32 : i32, i32
  }
}

module attributes {stable_mosaic.version = 11 : i64} {
  func.func @_type_gat_kernel(%arg0: i32, %arg1: i32, %arg2: i32, %arg3: memref<2xi32, #tpu.memory_space<smem>>, %arg4: memref<16x128xbf16, #tpu.memory_space<vmem>>, %arg5: memref<12x128xbf16, #tpu.memory_space<vmem>>, %arg6: memref<1x2x128xf32, #tpu.memory_space<vmem>>, %arg7: memref<1x16x12xi8, #tpu.memory_space<vmem>>, %arg8: memref<128x128xbf16, #tpu.memory_space<vmem>>, %arg9: memref<1x16x128xbf16, #tpu.memory_space<vmem>>, %arg10: memref<16x1xf32, #tpu.memory_space<vmem>>, %arg11: memref<16x1xf32, #tpu.memory_space<vmem>>, %arg12: memref<16x1xf32, #tpu.memory_space<vmem>>, %arg13: memref<16x128xf32, #tpu.memory_space<vmem>>) attributes {dimension_semantics = [#tpu.dimension_semantics<parallel>, #tpu.dimension_semantics<parallel>, #tpu.dimension_semantics<arbitrary>], iteration_bounds = array<i64: 2, 1, 1>, scalar_prefetch = 1 : i64, scratch_operands = 4 : i64, tpu.core_type = #tpu.core_type<tc>, window_params = [{transform_indices = @transform_0, window_bounds = array<i64: 16, 128>}, {transform_indices = @transform_1, window_bounds = array<i64: 12, 128>}, {transform_indices = @transform_2, window_bounds = array<i64: 1, 2, 128>}, {transform_indices = @transform_3, window_bounds = array<i64: 1, 16, 12>}, {pipeline_mode = #tpu.pipeline_mode<synchronous>, transform_indices = @transform_4, window_bounds = array<i64: 128, 128>}, {transform_indices = @transform_5, window_bounds = array<i64: 1, 16, 128>}]} {
    %c0_i32 = arith.constant 0 : i32
    %0 = arith.cmpi eq, %arg2, %c0_i32 : i32
    %1 = arith.extui %0 : i1 to i32
    %c0_i32_0 = arith.constant 0 : i32
    %2 = arith.cmpi ne, %1, %c0_i32_0 : i32
    scf.if %2 {
      %cst = arith.constant -1.000000e+30 : f32
      %15 = vector.broadcast %cst : f32 to vector<16x1xf32>
      %c0 = arith.constant 0 : index
      %c0_6 = arith.constant 0 : index
      %16 = vector.load %arg11[%c0, %c0_6] : memref<16x1xf32, #tpu.memory_space<vmem>>, vector<16x1xf32>
      tpu.vector_store %arg11[%c0, %c0_6], %15 {strides = array<i32>} : memref<16x1xf32, #tpu.memory_space<vmem>>, vector<16x1xf32>,
      %cst_7 = arith.constant 0.000000e+00 : f32
      %17 = vector.broadcast %cst_7 : f32 to vector<16x1xf32>
      %c0_8 = arith.constant 0 : index
      %c0_9 = arith.constant 0 : index
      %18 = vector.load %arg12[%c0_8, %c0_9] : memref<16x1xf32, #tpu.memory_space<vmem>>, vector<16x1xf32>
      tpu.vector_store %arg12[%c0_8, %c0_9], %17 {strides = array<i32>} : memref<16x1xf32, #tpu.memory_space<vmem>>, vector<16x1xf32>,
      %cst_10 = arith.constant 0.000000e+00 : f32
      %19 = vector.broadcast %cst_10 : f32 to vector<16x128xf32>
      %c0_11 = arith.constant 0 : index
      %c0_12 = arith.constant 0 : index
      %20 = vector.load %arg13[%c0_11, %c0_12] : memref<16x128xf32, #tpu.memory_space<vmem>>, vector<16x128xf32>
      tpu.vector_store %arg13[%c0_11, %c0_12], %19 {strides = array<i32>} : memref<16x128xf32, #tpu.memory_space<vmem>>, vector<16x128xf32>,
      %c0_13 = arith.constant 0 : index
      %c0_14 = arith.constant 0 : index
      %21 = vector.load %arg4[%c0_13, %c0_14] : memref<16x128xbf16, #tpu.memory_space<vmem>>, vector<16x128xbf16>
      %22 = arith.extf %21 : vector<16x128xbf16> to vector<16x128xf32>
      %c0_15 = arith.constant 0 : index
      %c0_16 = arith.constant 0 : index
      %c0_17 = arith.constant 0 : index
      %23 = vector.load %arg6[%c0_15, %c0_16, %c0_17] : memref<1x2x128xf32, #tpu.memory_space<vmem>>, vector<1x1x128xf32>
      %24 = vector.shape_cast %23 : vector<1x1x128xf32> to vector<1x128xf32>
      %25 = vector.broadcast %24 : vector<1x128xf32> to vector<16x128xf32>
      %26 = arith.mulf %22, %25 : vector<16x128xf32>
      %cst_18 = arith.constant dense<0.000000e+00> : vector<16xf32>
      %27 = vector.multi_reduction <add>, %26, %cst_18 [1] : vector<16x128xf32> to vector<16xf32>
      %28 = vector.shape_cast %27 : vector<16xf32> to vector<16x1xf32>
      %c0_19 = arith.constant 0 : index
      %c0_20 = arith.constant 0 : index
      %29 = vector.load %arg10[%c0_19, %c0_20] : memref<16x1xf32, #tpu.memory_space<vmem>>, vector<16x1xf32>
      tpu.vector_store %arg10[%c0_19, %c0_20], %28 {strides = array<i32>} : memref<16x1xf32, #tpu.memory_space<vmem>>, vector<16x1xf32>,
    } else {
    }
    %c1_i32 = arith.constant 1 : i32
    %3 = arith.muli %arg0, %c1_i32 : i32
    %4 = arith.addi %3, %arg1 : i32
    %c1_i32_1 = arith.constant 1 : i32
    %5 = arith.muli %4, %c1_i32_1 : i32
    %6 = arith.addi %5, %arg2 : i32
    %7 = arith.index_cast %6 : i32 to index
    %8 = memref.load %arg3[%7] : memref<2xi32, #tpu.memory_space<smem>>
    %c0_i32_2 = arith.constant 0 : i32
    %9 = arith.cmpi sgt, %8, %c0_i32_2 : i32
    %10 = arith.extui %9 : i1 to i32
    %c0_i32_3 = arith.constant 0 : i32
    %11 = arith.cmpi ne, %10, %c0_i32_3 : i32
    scf.if %11 {
      %c0 = arith.constant 0 : index
      %c0_6 = arith.constant 0 : index
      %15 = vector.load %arg5[%c0, %c0_6] : memref<12x128xbf16, #tpu.memory_space<vmem>>, vector<12x128xbf16>
      %c0_7 = arith.constant 0 : index
      %c0_8 = arith.constant 0 : index
      %c0_9 = arith.constant 0 : index
      %16 = vector.load %arg7[%c0_7, %c0_8, %c0_9] : memref<1x16x12xi8, #tpu.memory_space<vmem>>, vector<1x16x12xi8>
      %17 = vector.shape_cast %16 : vector<1x16x12xi8> to vector<16x12xi8>
      %c0_i8 = arith.constant 0 : i8
      %18 = vector.broadcast %c0_i8 : i8 to vector<16x12xi8>
      %19 = arith.cmpi ne, %17, %18 : vector<16x12xi8>
      %c0_10 = arith.constant 0 : index
      %c1 = arith.constant 1 : index
      %c0_11 = arith.constant 0 : index
      %20 = vector.load %arg6[%c0_10, %c1, %c0_11] : memref<1x2x128xf32, #tpu.memory_space<vmem>>, vector<1x1x128xf32>
      %21 = vector.shape_cast %20 : vector<1x1x128xf32> to vector<1x128xf32>
      %22 = arith.truncf %21 : vector<1x128xf32> to vector<1x128xbf16>
      %cst = arith.constant dense<0.000000e+00> : vector<1x12xf32>
      %23 = tpu.matmul %22, %15, %cst {dimension_numbers = #tpu.dot_dimension_numbers<[1], [1], [0], [0], [0, 0, 1, 0], [], []>} : vector<1x128xbf16>, vector<12x128xbf16>, vector<1x12xf32> -> vector<1x12xf32>
      %c0_12 = arith.constant 0 : index
      %c0_13 = arith.constant 0 : index
      %24 = vector.load %arg10[%c0_12, %c0_13] : memref<16x1xf32, #tpu.memory_space<vmem>>, vector<16x1xf32>
      %25 = vector.broadcast %24 : vector<16x1xf32> to vector<16x12xf32>
      %26 = vector.broadcast %23 : vector<1x12xf32> to vector<16x12xf32>
      %27 = arith.addf %25, %26 : vector<16x12xf32>
      %cst_14 = arith.constant -1.000000e+30 : f32
      %28 = vector.broadcast %cst_14 : f32 to vector<16x12xf32>
      %29 = arith.select %19, %27, %28 : vector<16x12xi1>, vector<16x12xf32>
      %c0_15 = arith.constant 0 : index
      %c0_16 = arith.constant 0 : index
      %30 = vector.load %arg11[%c0_15, %c0_16] : memref<16x1xf32, #tpu.memory_space<vmem>>, vector<16x1xf32>
      %cst_17 = arith.constant dense<0xFF800000> : vector<16xf32>
      %31 = vector.multi_reduction <maximumf>, %29, %cst_17 [1] : vector<16x12xf32> to vector<16xf32>
      %32 = vector.shape_cast %31 : vector<16xf32> to vector<16x1xf32>
      %33 = arith.maximumf %30, %32 : vector<16x1xf32>
      %34 = arith.subf %30, %33 : vector<16x1xf32>
      %35 = math.exp %34 : vector<16x1xf32>
      %36 = vector.broadcast %33 : vector<16x1xf32> to vector<16x12xf32>
      %37 = arith.subf %29, %36 : vector<16x12xf32>
      %38 = math.exp %37 : vector<16x12xf32>
      %cst_18 = arith.constant 0.000000e+00 : f32
      %39 = vector.broadcast %cst_18 : f32 to vector<16x12xf32>
      %40 = arith.select %19, %38, %39 : vector<16x12xi1>, vector<16x12xf32>
      %c0_19 = arith.constant 0 : index
      %c0_20 = arith.constant 0 : index
      %41 = vector.load %arg12[%c0_19, %c0_20] : memref<16x1xf32, #tpu.memory_space<vmem>>, vector<16x1xf32>
      %42 = arith.mulf %35, %41 : vector<16x1xf32>
      %cst_21 = arith.constant dense<0.000000e+00> : vector<16xf32>
      %43 = vector.multi_reduction <add>, %40, %cst_21 [1] : vector<16x12xf32> to vector<16xf32>
      %44 = vector.shape_cast %43 : vector<16xf32> to vector<16x1xf32>
      %45 = arith.addf %42, %44 : vector<16x1xf32>
      %c0_22 = arith.constant 0 : index
      %c0_23 = arith.constant 0 : index
      %46 = vector.load %arg12[%c0_22, %c0_23] : memref<16x1xf32, #tpu.memory_space<vmem>>, vector<16x1xf32>
      tpu.vector_store %arg12[%c0_22, %c0_23], %45 {strides = array<i32>} : memref<16x1xf32, #tpu.memory_space<vmem>>, vector<16x1xf32>,
      %c0_24 = arith.constant 0 : index
      %c0_25 = arith.constant 0 : index
      %47 = vector.load %arg13[%c0_24, %c0_25] : memref<16x128xf32, #tpu.memory_space<vmem>>, vector<16x128xf32>
      %48 = vector.broadcast %35 : vector<16x1xf32> to vector<16x128xf32>
      %49 = arith.mulf %48, %47 : vector<16x128xf32>
      %50 = arith.truncf %40 : vector<16x12xf32> to vector<16x12xbf16>
      %cst_26 = arith.constant dense<0.000000e+00> : vector<16x128xf32>
      %51 = tpu.matmul %50, %15, %cst_26 {dimension_numbers = #tpu.dot_dimension_numbers<[1], [0], [0], [1], [0, 0, 1, 1], [], []>} : vector<16x12xbf16>, vector<12x128xbf16>, vector<16x128xf32> -> vector<16x128xf32>
      %52 = arith.addf %49, %51 : vector<16x128xf32>
      %c0_27 = arith.constant 0 : index
      %c0_28 = arith.constant 0 : index
      %53 = vector.load %arg13[%c0_27, %c0_28] : memref<16x128xf32, #tpu.memory_space<vmem>>, vector<16x128xf32>
      tpu.vector_store %arg13[%c0_27, %c0_28], %52 {strides = array<i32>} : memref<16x128xf32, #tpu.memory_space<vmem>>, vector<16x128xf32>,
      %c0_29 = arith.constant 0 : index
      %c0_30 = arith.constant 0 : index
      %54 = vector.load %arg11[%c0_29, %c0_30] : memref<16x1xf32, #tpu.memory_space<vmem>>, vector<16x1xf32>
      tpu.vector_store %arg11[%c0_29, %c0_30], %33 {strides = array<i32>} : memref<16x1xf32, #tpu.memory_space<vmem>>, vector<16x1xf32>,
    } else {
    }
    %c0_i32_4 = arith.constant 0 : i32
    %12 = arith.cmpi eq, %arg2, %c0_i32_4 : i32
    %13 = arith.extui %12 : i1 to i32
    %c0_i32_5 = arith.constant 0 : i32
    %14 = arith.cmpi ne, %13, %c0_i32_5 : i32
    scf.if %14 {
      %c0 = arith.constant 0 : index
      %c0_6 = arith.constant 0 : index
      %15 = vector.load %arg12[%c0, %c0_6] : memref<16x1xf32, #tpu.memory_space<vmem>>, vector<16x1xf32>
      %cst = arith.constant 1.000000e-16 : f32
      %16 = vector.broadcast %cst : f32 to vector<16x1xf32>
      %17 = arith.addf %15, %16 : vector<16x1xf32>
      %18 = tpu.reciprocal %17 {approx = true} : vector<16x1xf32> -> vector<16x1xf32>
      %c0_7 = arith.constant 0 : index
      %c0_8 = arith.constant 0 : index
      %19 = vector.load %arg13[%c0_7, %c0_8] : memref<16x128xf32, #tpu.memory_space<vmem>>, vector<16x128xf32>
      %20 = vector.broadcast %18 : vector<16x1xf32> to vector<16x128xf32>
      %21 = arith.mulf %19, %20 : vector<16x128xf32>
      %cst_9 = arith.constant 0.000000e+00 : f32
      %22 = vector.broadcast %cst_9 : f32 to vector<16x128xf32>
      %23 = arith.cmpf ogt, %21, %22 : vector<16x128xf32>
      %cst_10 = arith.constant 2.000000e-01 : f32
      %24 = vector.broadcast %cst_10 : f32 to vector<16x128xf32>
      %25 = arith.mulf %24, %21 : vector<16x128xf32>
      %26 = arith.select %23, %21, %25 : vector<16x128xi1>, vector<16x128xf32>
      %27 = arith.truncf %26 : vector<16x128xf32> to vector<16x128xbf16>
      %c0_11 = arith.constant 0 : index
      %c0_12 = arith.constant 0 : index
      %28 = vector.load %arg8[%c0_11, %c0_12] : memref<128x128xbf16, #tpu.memory_space<vmem>>, vector<128x128xbf16>
      %cst_13 = arith.constant dense<0.000000e+00> : vector<16x128xf32>
      %29 = tpu.matmul %27, %28, %cst_13 {dimension_numbers = #tpu.dot_dimension_numbers<[1], [0], [0], [1], [0, 0, 1, 1], [], []>} : vector<16x128xbf16>, vector<128x128xbf16>, vector<16x128xf32> -> vector<16x128xf32>
      %30 = arith.truncf %29 : vector<16x128xf32> to vector<16x128xbf16>
      %c0_14 = arith.constant 0 : index
      %c0_15 = arith.constant 0 : index
      %c0_16 = arith.constant 0 : index
      %31 = vector.load %arg9[%c0_14, %c0_15, %c0_16] : memref<1x16x128xbf16, #tpu.memory_space<vmem>>, vector<1x16x128xbf16>
      %32 = vector.shape_cast %31 : vector<1x16x128xbf16> to vector<16x128xbf16>
      %33 = vector.shape_cast %30 : vector<16x128xbf16> to vector<1x16x128xbf16>
      tpu.vector_store %arg9[%c0_14, %c0_15, %c0_16], %33 {strides = array<i32>} : memref<1x16x128xbf16, #tpu.memory_space<vmem>>, vector<1x16x128xbf16>,
    } else {
    }
    return
  }
  func.func @transform_0(%arg0: i32, %arg1: i32, %arg2: i32, %arg3: memref<2xi32, #tpu.memory_space<smem>>) -> (i32, i32) {
    %c0_i32 = arith.constant 0 : i32
    %c0_i32_0 = arith.constant 0 : i32
    return %arg1, %c0_i32 : i32, i32
  }
  func.func @transform_1(%arg0: i32, %arg1: i32, %arg2: i32, %arg3: memref<2xi32, #tpu.memory_space<smem>>) -> (i32, i32) {
    %c0_i32 = arith.constant 0 : i32
    %c0_i32_0 = arith.constant 0 : i32
    return %arg2, %c0_i32 : i32, i32
  }
  func.func @transform_2(%arg0: i32, %arg1: i32, %arg2: i32, %arg3: memref<2xi32, #tpu.memory_space<smem>>) -> (i32, i32, i32) {
    %c0_i32 = arith.constant 0 : i32
    %c0_i32_0 = arith.constant 0 : i32
    %c0_i32_1 = arith.constant 0 : i32
    return %arg0, %c0_i32, %c0_i32_0 : i32, i32, i32
  }
  func.func @transform_3(%arg0: i32, %arg1: i32, %arg2: i32, %arg3: memref<2xi32, #tpu.memory_space<smem>>) -> (i32, i32, i32) {
    %c0_i32 = arith.constant 0 : i32
    return %arg0, %arg1, %arg2 : i32, i32, i32
  }
  func.func @transform_4(%arg0: i32, %arg1: i32, %arg2: i32, %arg3: memref<2xi32, #tpu.memory_space<smem>>) -> (i32, i32) {
    %c0_i32 = arith.constant 0 : i32
    %c0_i32_0 = arith.constant 0 : i32
    %c0_i32_1 = arith.constant 0 : i32
    return %c0_i32, %c0_i32_0 : i32, i32
  }
  func.func @transform_5(%arg0: i32, %arg1: i32, %arg2: i32, %arg3: memref<2xi32, #tpu.memory_space<smem>>) -> (i32, i32, i32) {
    %c0_i32 = arith.constant 0 : i32
    %c0_i32_0 = arith.constant 0 : i32
    return %arg0, %arg1, %c0_i32 : i32, i32, i32
  }
}

module attributes {stable_mosaic.version = 11 : i64} {
  func.func @_combine_kernel(%arg0: i32, %arg1: memref<2x16x128xbf16, #tpu.memory_space<vmem>>, %arg2: memref<16x128xbf16, #tpu.memory_space<vmem>>, %arg3: memref<2x128xf32, #tpu.memory_space<vmem>>, %arg4: memref<2xf32, #tpu.memory_space<smem>>, %arg5: memref<2xf32, #tpu.memory_space<smem>>, %arg6: memref<1x128xf32, #tpu.memory_space<vmem>>, %arg7: memref<1x128xf32, #tpu.memory_space<vmem>>, %arg8: memref<1x128xf32, #tpu.memory_space<vmem>>, %arg9: memref<1x128xf32, #tpu.memory_space<vmem>>, %arg10: memref<16x128xf32, #tpu.memory_space<vmem>>) attributes {dimension_semantics = [#tpu.dimension_semantics<parallel>], iteration_bounds = array<i64: 1>, scalar_prefetch = 0 : i64, scratch_operands = 0 : i64, tpu.core_type = #tpu.core_type<tc>, window_params = [{transform_indices = @transform_0, window_bounds = array<i64: 2, 16, 128>}, {transform_indices = @transform_1, window_bounds = array<i64: 16, 128>}, {pipeline_mode = #tpu.pipeline_mode<synchronous>, transform_indices = @transform_2, window_bounds = array<i64: 2, 128>}, {transform_indices = @transform_3, window_bounds = array<i64: 2>}, {transform_indices = @transform_4, window_bounds = array<i64: 2>}, {pipeline_mode = #tpu.pipeline_mode<synchronous>, transform_indices = @transform_5, window_bounds = array<i64: 1, 128>}, {pipeline_mode = #tpu.pipeline_mode<synchronous>, transform_indices = @transform_6, window_bounds = array<i64: 1, 128>}, {pipeline_mode = #tpu.pipeline_mode<synchronous>, transform_indices = @transform_7, window_bounds = array<i64: 1, 128>}, {pipeline_mode = #tpu.pipeline_mode<synchronous>, transform_indices = @transform_8, window_bounds = array<i64: 1, 128>}, {transform_indices = @transform_9, window_bounds = array<i64: 16, 128>}]} {
    %0 = tpu.iota {dimensions = array<i32: 1>} : vector<1x128xi32>
    %c32_i32 = arith.constant 32 : i32
    %1 = vector.broadcast %c32_i32 : i32 to vector<1x128xi32>
    %2 = arith.cmpi slt, %0, %1 : vector<1x128xi32>
    %c0 = arith.constant 0 : index
    %c0_0 = arith.constant 0 : index
    %3 = vector.load %arg2[%c0, %c0_0] : memref<16x128xbf16, #tpu.memory_space<vmem>>, vector<16x128xbf16>
    %4 = arith.extf %3 : vector<16x128xbf16> to vector<16x128xf32>
    %c0_1 = arith.constant 0 : index
    %c0_2 = arith.constant 0 : index
    %5 = vector.load %arg3[%c0_1, %c0_2] : memref<2x128xf32, #tpu.memory_space<vmem>>, vector<1x128xf32>
    %c1 = arith.constant 1 : index
    %c0_3 = arith.constant 0 : index
    %6 = vector.load %arg3[%c1, %c0_3] : memref<2x128xf32, #tpu.memory_space<vmem>>, vector<1x128xf32>
    %7 = vector.broadcast %5 : vector<1x128xf32> to vector<16x128xf32>
    %8 = arith.mulf %4, %7 : vector<16x128xf32>
    %cst = arith.constant dense<0.000000e+00> : vector<16xf32>
    %9 = vector.multi_reduction <add>, %8, %cst [1] : vector<16x128xf32> to vector<16xf32>
    %10 = vector.shape_cast %9 : vector<16xf32> to vector<16x1xf32>
    %c0_4 = arith.constant 0 : index
    %c0_5 = arith.constant 0 : index
    %c0_6 = arith.constant 0 : index
    %11 = vector.load %arg1[%c0_4, %c0_5, %c0_6] : memref<2x16x128xbf16, #tpu.memory_space<vmem>>, vector<1x16x128xbf16>
    %12 = vector.shape_cast %11 : vector<1x16x128xbf16> to vector<16x128xbf16>
    %13 = arith.extf %12 : vector<16x128xbf16> to vector<16x128xf32>
    %c1_7 = arith.constant 1 : index
    %c0_8 = arith.constant 0 : index
    %c0_9 = arith.constant 0 : index
    %14 = vector.load %arg1[%c1_7, %c0_8, %c0_9] : memref<2x16x128xbf16, #tpu.memory_space<vmem>>, vector<1x16x128xbf16>
    %15 = vector.shape_cast %14 : vector<1x16x128xbf16> to vector<16x128xbf16>
    %16 = arith.extf %15 : vector<16x128xbf16> to vector<16x128xf32>
    %17 = vector.broadcast %6 : vector<1x128xf32> to vector<16x128xf32>
    %18 = arith.mulf %13, %17 : vector<16x128xf32>
    %cst_10 = arith.constant dense<0.000000e+00> : vector<16xf32>
    %19 = vector.multi_reduction <add>, %18, %cst_10 [1] : vector<16x128xf32> to vector<16xf32>
    %20 = vector.shape_cast %19 : vector<16xf32> to vector<16x1xf32>
    %21 = arith.addf %10, %20 : vector<16x1xf32>
    %22 = vector.broadcast %6 : vector<1x128xf32> to vector<16x128xf32>
    %23 = arith.mulf %16, %22 : vector<16x128xf32>
    %cst_11 = arith.constant dense<0.000000e+00> : vector<16xf32>
    %24 = vector.multi_reduction <add>, %23, %cst_11 [1] : vector<16x128xf32> to vector<16xf32>
    %25 = vector.shape_cast %24 : vector<16xf32> to vector<16x1xf32>
    %26 = arith.addf %10, %25 : vector<16x1xf32>
    %27 = arith.maximumf %21, %26 : vector<16x1xf32>
    %28 = arith.subf %21, %27 : vector<16x1xf32>
    %29 = math.exp %28 : vector<16x1xf32>
    %30 = arith.subf %26, %27 : vector<16x1xf32>
    %31 = math.exp %30 : vector<16x1xf32>
    %32 = arith.addf %29, %31 : vector<16x1xf32>
    %33 = tpu.reciprocal %32 {approx = true} : vector<16x1xf32> -> vector<16x1xf32>
    %c0_12 = arith.constant 0 : index
    %34 = memref.load %arg5[%c0_12] : memref<2xf32, #tpu.memory_space<smem>>
    %c1_13 = arith.constant 1 : index
    %35 = memref.load %arg5[%c1_13] : memref<2xf32, #tpu.memory_space<smem>>
    %cst_14 = arith.constant 0.000000e+00 : f32
    %36 = vector.broadcast %cst_14 : f32 to vector<16x128xf32>
    %37 = arith.mulf %29, %33 : vector<16x1xf32>
    %38 = vector.broadcast %34 : f32 to vector<16x1xf32>
    %39 = arith.mulf %38, %37 : vector<16x1xf32>
    %c0_15 = arith.constant 0 : index
    %40 = memref.load %arg4[%c0_15] : memref<2xf32, #tpu.memory_space<smem>>
    %41 = vector.broadcast %40 : f32 to vector<16x1xf32>
    %42 = arith.addf %39, %41 : vector<16x1xf32>
    %43 = vector.broadcast %42 : vector<16x1xf32> to vector<16x128xf32>
    %44 = arith.mulf %13, %43 : vector<16x128xf32>
    %45 = arith.addf %36, %44 : vector<16x128xf32>
    %46 = arith.mulf %31, %33 : vector<16x1xf32>
    %47 = vector.broadcast %34 : f32 to vector<16x1xf32>
    %48 = arith.mulf %47, %46 : vector<16x1xf32>
    %c1_16 = arith.constant 1 : index
    %49 = memref.load %arg4[%c1_16] : memref<2xf32, #tpu.memory_space<smem>>
    %50 = vector.broadcast %49 : f32 to vector<16x1xf32>
    %51 = arith.addf %48, %50 : vector<16x1xf32>
    %52 = vector.broadcast %51 : vector<16x1xf32> to vector<16x128xf32>
    %53 = arith.mulf %16, %52 : vector<16x128xf32>
    %54 = arith.addf %45, %53 : vector<16x128xf32>
    %cst_17 = arith.constant 5.000000e-01 : f32
    %55 = vector.broadcast %cst_17 : f32 to vector<16x128xf32>
    %56 = arith.mulf %55, %54 : vector<16x128xf32>
    %cst_18 = arith.constant 4.471500e-02 : f32
    %57 = vector.broadcast %cst_18 : f32 to vector<16x128xf32>
    %58 = arith.mulf %57, %54 : vector<16x128xf32>
    %59 = arith.mulf %58, %54 : vector<16x128xf32>
    %60 = arith.mulf %59, %54 : vector<16x128xf32>
    %61 = arith.addf %54, %60 : vector<16x128xf32>
    %cst_19 = arith.constant 0.797884583 : f32
    %62 = vector.broadcast %cst_19 : f32 to vector<16x128xf32>
    %63 = arith.mulf %62, %61 : vector<16x128xf32>
    %64 = math.tanh %63 : vector<16x128xf32>
    %cst_20 = arith.constant 1.000000e+00 : f32
    %65 = vector.broadcast %cst_20 : f32 to vector<16x128xf32>
    %66 = arith.addf %65, %64 : vector<16x128xf32>
    %67 = arith.mulf %56, %66 : vector<16x128xf32>
    %68 = vector.broadcast %35 : f32 to vector<16x128xf32>
    %69 = arith.mulf %67, %68 : vector<16x128xf32>
    %cst_21 = arith.constant 1.000000e+00 : f32
    %70 = arith.subf %cst_21, %35 : f32
    %71 = vector.broadcast %70 : f32 to vector<16x128xf32>
    %72 = arith.mulf %4, %71 : vector<16x128xf32>
    %73 = arith.addf %69, %72 : vector<16x128xf32>
    %c0_22 = arith.constant 0 : index
    %c0_23 = arith.constant 0 : index
    %74 = vector.load %arg6[%c0_22, %c0_23] : memref<1x128xf32, #tpu.memory_space<vmem>>, vector<1x128xf32>
    %c0_24 = arith.constant 0 : index
    %c0_25 = arith.constant 0 : index
    %75 = vector.load %arg7[%c0_24, %c0_25] : memref<1x128xf32, #tpu.memory_space<vmem>>, vector<1x128xf32>
    %cst_26 = arith.constant 0.000000e+00 : f32
    %76 = vector.shape_cast %2 : vector<1x128xi1> to vector<1x128xi1>
    %77 = vector.broadcast %76 : vector<1x128xi1> to vector<16x128xi1>
    %78 = vector.broadcast %cst_26 : f32 to vector<16x128xf32>
    %79 = arith.select %77, %73, %78 : vector<16x128xi1>, vector<16x128xf32>
    %cst_27 = arith.constant dense<0.000000e+00> : vector<16xf32>
    %80 = vector.multi_reduction <add>, %79, %cst_27 [1] : vector<16x128xf32> to vector<16xf32>
    %81 = vector.shape_cast %80 : vector<16xf32> to vector<16x1xf32>
    %cst_28 = arith.constant 3.125000e-02 : f32
    %82 = vector.broadcast %cst_28 : f32 to vector<16x1xf32>
    %83 = arith.mulf %81, %82 : vector<16x1xf32>
    %84 = vector.broadcast %83 : vector<16x1xf32> to vector<16x128xf32>
    %85 = arith.subf %73, %84 : vector<16x128xf32>
    %cst_29 = arith.constant 0.000000e+00 : f32
    %86 = vector.shape_cast %2 : vector<1x128xi1> to vector<1x128xi1>
    %87 = vector.broadcast %86 : vector<1x128xi1> to vector<16x128xi1>
    %88 = vector.broadcast %cst_29 : f32 to vector<16x128xf32>
    %89 = arith.select %87, %85, %88 : vector<16x128xi1>, vector<16x128xf32>
    %90 = arith.mulf %89, %89 : vector<16x128xf32>
    %cst_30 = arith.constant dense<0.000000e+00> : vector<16xf32>
    %91 = vector.multi_reduction <add>, %90, %cst_30 [1] : vector<16x128xf32> to vector<16xf32>
    %92 = vector.shape_cast %91 : vector<16xf32> to vector<16x1xf32>
    %cst_31 = arith.constant 3.125000e-02 : f32
    %93 = vector.broadcast %cst_31 : f32 to vector<16x1xf32>
    %94 = arith.mulf %92, %93 : vector<16x1xf32>
    %cst_32 = arith.constant 9.99999974E-6 : f32
    %95 = vector.broadcast %cst_32 : f32 to vector<16x1xf32>
    %96 = arith.addf %94, %95 : vector<16x1xf32>
    %97 = math.rsqrt %96 : vector<16x1xf32>
    %98 = vector.broadcast %97 : vector<16x1xf32> to vector<16x128xf32>
    %99 = arith.mulf %89, %98 : vector<16x128xf32>
    %100 = vector.broadcast %74 : vector<1x128xf32> to vector<16x128xf32>
    %101 = arith.mulf %99, %100 : vector<16x128xf32>
    %102 = vector.broadcast %75 : vector<1x128xf32> to vector<16x128xf32>
    %103 = arith.addf %101, %102 : vector<16x128xf32>
    %c0_33 = arith.constant 0 : index
    %c0_34 = arith.constant 0 : index
    %104 = vector.load %arg8[%c0_33, %c0_34] : memref<1x128xf32, #tpu.memory_space<vmem>>, vector<1x128xf32>
    %c0_35 = arith.constant 0 : index
    %c0_36 = arith.constant 0 : index
    %105 = vector.load %arg9[%c0_35, %c0_36] : memref<1x128xf32, #tpu.memory_space<vmem>>, vector<1x128xf32>
    %cst_37 = arith.constant 0.000000e+00 : f32
    %106 = vector.shape_cast %2 : vector<1x128xi1> to vector<1x128xi1>
    %107 = vector.broadcast %106 : vector<1x128xi1> to vector<16x128xi1>
    %108 = vector.broadcast %cst_37 : f32 to vector<16x128xf32>
    %109 = arith.select %107, %103, %108 : vector<16x128xi1>, vector<16x128xf32>
    %cst_38 = arith.constant dense<0.000000e+00> : vector<16xf32>
    %110 = vector.multi_reduction <add>, %109, %cst_38 [1] : vector<16x128xf32> to vector<16xf32>
    %111 = vector.shape_cast %110 : vector<16xf32> to vector<16x1xf32>
    %cst_39 = arith.constant 3.125000e-02 : f32
    %112 = vector.broadcast %cst_39 : f32 to vector<16x1xf32>
    %113 = arith.mulf %111, %112 : vector<16x1xf32>
    %114 = vector.broadcast %113 : vector<16x1xf32> to vector<16x128xf32>
    %115 = arith.subf %103, %114 : vector<16x128xf32>
    %cst_40 = arith.constant 0.000000e+00 : f32
    %116 = vector.shape_cast %2 : vector<1x128xi1> to vector<1x128xi1>
    %117 = vector.broadcast %116 : vector<1x128xi1> to vector<16x128xi1>
    %118 = vector.broadcast %cst_40 : f32 to vector<16x128xf32>
    %119 = arith.select %117, %115, %118 : vector<16x128xi1>, vector<16x128xf32>
    %120 = arith.mulf %119, %119 : vector<16x128xf32>
    %cst_41 = arith.constant dense<0.000000e+00> : vector<16xf32>
    %121 = vector.multi_reduction <add>, %120, %cst_41 [1] : vector<16x128xf32> to vector<16xf32>
    %122 = vector.shape_cast %121 : vector<16xf32> to vector<16x1xf32>
    %cst_42 = arith.constant 3.125000e-02 : f32
    %123 = vector.broadcast %cst_42 : f32 to vector<16x1xf32>
    %124 = arith.mulf %122, %123 : vector<16x1xf32>
    %cst_43 = arith.constant 9.99999974E-6 : f32
    %125 = vector.broadcast %cst_43 : f32 to vector<16x1xf32>
    %126 = arith.addf %124, %125 : vector<16x1xf32>
    %127 = math.rsqrt %126 : vector<16x1xf32>
    %128 = vector.broadcast %127 : vector<16x1xf32> to vector<16x128xf32>
    %129 = arith.mulf %119, %128 : vector<16x128xf32>
    %130 = vector.broadcast %104 : vector<1x128xf32> to vector<16x128xf32>
    %131 = arith.mulf %129, %130 : vector<16x128xf32>
    %132 = vector.broadcast %105 : vector<1x128xf32> to vector<16x128xf32>
    %133 = arith.addf %131, %132 : vector<16x128xf32>
    %c0_44 = arith.constant 0 : index
    %c0_45 = arith.constant 0 : index
    %134 = vector.load %arg10[%c0_44, %c0_45] : memref<16x128xf32, #tpu.memory_space<vmem>>, vector<16x128xf32>
    tpu.vector_store %arg10[%c0_44, %c0_45], %133 {strides = array<i32>} : memref<16x128xf32, #tpu.memory_space<vmem>>, vector<16x128xf32>,
    return
  }
  func.func @transform_0(%arg0: i32) -> (i32, i32, i32) {
    %c0_i32 = arith.constant 0 : i32
    %c0_i32_0 = arith.constant 0 : i32
    %c0_i32_1 = arith.constant 0 : i32
    return %c0_i32, %arg0, %c0_i32_0 : i32, i32, i32
  }
  func.func @transform_1(%arg0: i32) -> (i32, i32) {
    %c0_i32 = arith.constant 0 : i32
    %c0_i32_0 = arith.constant 0 : i32
    return %arg0, %c0_i32 : i32, i32
  }
  func.func @transform_2(%arg0: i32) -> (i32, i32) {
    %c0_i32 = arith.constant 0 : i32
    %c0_i32_0 = arith.constant 0 : i32
    %c0_i32_1 = arith.constant 0 : i32
    return %c0_i32, %c0_i32_0 : i32, i32
  }
  func.func @transform_3(%arg0: i32) -> i32 {
    %c0_i32 = arith.constant 0 : i32
    %c0_i32_0 = arith.constant 0 : i32
    return %c0_i32 : i32
  }
  func.func @transform_4(%arg0: i32) -> i32 {
    %c0_i32 = arith.constant 0 : i32
    %c0_i32_0 = arith.constant 0 : i32
    return %c0_i32 : i32
  }
  func.func @transform_5(%arg0: i32) -> (i32, i32) {
    %c0_i32 = arith.constant 0 : i32
    %c0_i32_0 = arith.constant 0 : i32
    %c0_i32_1 = arith.constant 0 : i32
    return %c0_i32, %c0_i32_0 : i32, i32
  }
  func.func @transform_6(%arg0: i32) -> (i32, i32) {
    %c0_i32 = arith.constant 0 : i32
    %c0_i32_0 = arith.constant 0 : i32
    %c0_i32_1 = arith.constant 0 : i32
    return %c0_i32, %c0_i32_0 : i32, i32
  }
  func.func @transform_7(%arg0: i32) -> (i32, i32) {
    %c0_i32 = arith.constant 0 : i32
    %c0_i32_0 = arith.constant 0 : i32
    %c0_i32_1 = arith.constant 0 : i32
    return %c0_i32, %c0_i32_0 : i32, i32
  }
  func.func @transform_8(%arg0: i32) -> (i32, i32) {
    %c0_i32 = arith.constant 0 : i32
    %c0_i32_0 = arith.constant 0 : i32
    %c0_i32_1 = arith.constant 0 : i32
    return %c0_i32, %c0_i32_0 : i32, i32
  }
  func.func @transform_9(%arg0: i32) -> (i32, i32) {
    %c0_i32 = arith.constant 0 : i32
    %c0_i32_0 = arith.constant 0 : i32
    return %arg0, %c0_i32 : i32, i32
  }
}

module attributes {stable_mosaic.version = 11 : i64} {
  func.func @_combine_kernel(%arg0: i32, %arg1: memref<2x12x128xbf16, #tpu.memory_space<vmem>>, %arg2: memref<12x128xbf16, #tpu.memory_space<vmem>>, %arg3: memref<2x128xf32, #tpu.memory_space<vmem>>, %arg4: memref<2xf32, #tpu.memory_space<smem>>, %arg5: memref<2xf32, #tpu.memory_space<smem>>, %arg6: memref<1x128xf32, #tpu.memory_space<vmem>>, %arg7: memref<1x128xf32, #tpu.memory_space<vmem>>, %arg8: memref<1x128xf32, #tpu.memory_space<vmem>>, %arg9: memref<1x128xf32, #tpu.memory_space<vmem>>, %arg10: memref<12x128xf32, #tpu.memory_space<vmem>>) attributes {dimension_semantics = [#tpu.dimension_semantics<parallel>], iteration_bounds = array<i64: 1>, scalar_prefetch = 0 : i64, scratch_operands = 0 : i64, tpu.core_type = #tpu.core_type<tc>, window_params = [{transform_indices = @transform_0, window_bounds = array<i64: 2, 12, 128>}, {transform_indices = @transform_1, window_bounds = array<i64: 12, 128>}, {pipeline_mode = #tpu.pipeline_mode<synchronous>, transform_indices = @transform_2, window_bounds = array<i64: 2, 128>}, {transform_indices = @transform_3, window_bounds = array<i64: 2>}, {transform_indices = @transform_4, window_bounds = array<i64: 2>}, {pipeline_mode = #tpu.pipeline_mode<synchronous>, transform_indices = @transform_5, window_bounds = array<i64: 1, 128>}, {pipeline_mode = #tpu.pipeline_mode<synchronous>, transform_indices = @transform_6, window_bounds = array<i64: 1, 128>}, {pipeline_mode = #tpu.pipeline_mode<synchronous>, transform_indices = @transform_7, window_bounds = array<i64: 1, 128>}, {pipeline_mode = #tpu.pipeline_mode<synchronous>, transform_indices = @transform_8, window_bounds = array<i64: 1, 128>}, {transform_indices = @transform_9, window_bounds = array<i64: 12, 128>}]} {
    %0 = tpu.iota {dimensions = array<i32: 1>} : vector<1x128xi32>
    %c32_i32 = arith.constant 32 : i32
    %1 = vector.broadcast %c32_i32 : i32 to vector<1x128xi32>
    %2 = arith.cmpi slt, %0, %1 : vector<1x128xi32>
    %c0 = arith.constant 0 : index
    %c0_0 = arith.constant 0 : index
    %3 = vector.load %arg2[%c0, %c0_0] : memref<12x128xbf16, #tpu.memory_space<vmem>>, vector<12x128xbf16>
    %4 = arith.extf %3 : vector<12x128xbf16> to vector<12x128xf32>
    %c0_1 = arith.constant 0 : index
    %c0_2 = arith.constant 0 : index
    %5 = vector.load %arg3[%c0_1, %c0_2] : memref<2x128xf32, #tpu.memory_space<vmem>>, vector<1x128xf32>
    %c1 = arith.constant 1 : index
    %c0_3 = arith.constant 0 : index
    %6 = vector.load %arg3[%c1, %c0_3] : memref<2x128xf32, #tpu.memory_space<vmem>>, vector<1x128xf32>
    %7 = vector.broadcast %5 : vector<1x128xf32> to vector<12x128xf32>
    %8 = arith.mulf %4, %7 : vector<12x128xf32>
    %cst = arith.constant dense<0.000000e+00> : vector<12xf32>
    %9 = vector.multi_reduction <add>, %8, %cst [1] : vector<12x128xf32> to vector<12xf32>
    %10 = vector.shape_cast %9 : vector<12xf32> to vector<12x1xf32>
    %c0_4 = arith.constant 0 : index
    %c0_5 = arith.constant 0 : index
    %c0_6 = arith.constant 0 : index
    %11 = vector.load %arg1[%c0_4, %c0_5, %c0_6] : memref<2x12x128xbf16, #tpu.memory_space<vmem>>, vector<1x12x128xbf16>
    %12 = vector.shape_cast %11 : vector<1x12x128xbf16> to vector<12x128xbf16>
    %13 = arith.extf %12 : vector<12x128xbf16> to vector<12x128xf32>
    %c1_7 = arith.constant 1 : index
    %c0_8 = arith.constant 0 : index
    %c0_9 = arith.constant 0 : index
    %14 = vector.load %arg1[%c1_7, %c0_8, %c0_9] : memref<2x12x128xbf16, #tpu.memory_space<vmem>>, vector<1x12x128xbf16>
    %15 = vector.shape_cast %14 : vector<1x12x128xbf16> to vector<12x128xbf16>
    %16 = arith.extf %15 : vector<12x128xbf16> to vector<12x128xf32>
    %17 = vector.broadcast %6 : vector<1x128xf32> to vector<12x128xf32>
    %18 = arith.mulf %13, %17 : vector<12x128xf32>
    %cst_10 = arith.constant dense<0.000000e+00> : vector<12xf32>
    %19 = vector.multi_reduction <add>, %18, %cst_10 [1] : vector<12x128xf32> to vector<12xf32>
    %20 = vector.shape_cast %19 : vector<12xf32> to vector<12x1xf32>
    %21 = arith.addf %10, %20 : vector<12x1xf32>
    %22 = vector.broadcast %6 : vector<1x128xf32> to vector<12x128xf32>
    %23 = arith.mulf %16, %22 : vector<12x128xf32>
    %cst_11 = arith.constant dense<0.000000e+00> : vector<12xf32>
    %24 = vector.multi_reduction <add>, %23, %cst_11 [1] : vector<12x128xf32> to vector<12xf32>
    %25 = vector.shape_cast %24 : vector<12xf32> to vector<12x1xf32>
    %26 = arith.addf %10, %25 : vector<12x1xf32>
    %27 = arith.maximumf %21, %26 : vector<12x1xf32>
    %28 = arith.subf %21, %27 : vector<12x1xf32>
    %29 = math.exp %28 : vector<12x1xf32>
    %30 = arith.subf %26, %27 : vector<12x1xf32>
    %31 = math.exp %30 : vector<12x1xf32>
    %32 = arith.addf %29, %31 : vector<12x1xf32>
    %33 = tpu.reciprocal %32 {approx = true} : vector<12x1xf32> -> vector<12x1xf32>
    %c0_12 = arith.constant 0 : index
    %34 = memref.load %arg5[%c0_12] : memref<2xf32, #tpu.memory_space<smem>>
    %c1_13 = arith.constant 1 : index
    %35 = memref.load %arg5[%c1_13] : memref<2xf32, #tpu.memory_space<smem>>
    %cst_14 = arith.constant 0.000000e+00 : f32
    %36 = vector.broadcast %cst_14 : f32 to vector<12x128xf32>
    %37 = arith.mulf %29, %33 : vector<12x1xf32>
    %38 = vector.broadcast %34 : f32 to vector<12x1xf32>
    %39 = arith.mulf %38, %37 : vector<12x1xf32>
    %c0_15 = arith.constant 0 : index
    %40 = memref.load %arg4[%c0_15] : memref<2xf32, #tpu.memory_space<smem>>
    %41 = vector.broadcast %40 : f32 to vector<12x1xf32>
    %42 = arith.addf %39, %41 : vector<12x1xf32>
    %43 = vector.broadcast %42 : vector<12x1xf32> to vector<12x128xf32>
    %44 = arith.mulf %13, %43 : vector<12x128xf32>
    %45 = arith.addf %36, %44 : vector<12x128xf32>
    %46 = arith.mulf %31, %33 : vector<12x1xf32>
    %47 = vector.broadcast %34 : f32 to vector<12x1xf32>
    %48 = arith.mulf %47, %46 : vector<12x1xf32>
    %c1_16 = arith.constant 1 : index
    %49 = memref.load %arg4[%c1_16] : memref<2xf32, #tpu.memory_space<smem>>
    %50 = vector.broadcast %49 : f32 to vector<12x1xf32>
    %51 = arith.addf %48, %50 : vector<12x1xf32>
    %52 = vector.broadcast %51 : vector<12x1xf32> to vector<12x128xf32>
    %53 = arith.mulf %16, %52 : vector<12x128xf32>
    %54 = arith.addf %45, %53 : vector<12x128xf32>
    %cst_17 = arith.constant 5.000000e-01 : f32
    %55 = vector.broadcast %cst_17 : f32 to vector<12x128xf32>
    %56 = arith.mulf %55, %54 : vector<12x128xf32>
    %cst_18 = arith.constant 4.471500e-02 : f32
    %57 = vector.broadcast %cst_18 : f32 to vector<12x128xf32>
    %58 = arith.mulf %57, %54 : vector<12x128xf32>
    %59 = arith.mulf %58, %54 : vector<12x128xf32>
    %60 = arith.mulf %59, %54 : vector<12x128xf32>
    %61 = arith.addf %54, %60 : vector<12x128xf32>
    %cst_19 = arith.constant 0.797884583 : f32
    %62 = vector.broadcast %cst_19 : f32 to vector<12x128xf32>
    %63 = arith.mulf %62, %61 : vector<12x128xf32>
    %64 = math.tanh %63 : vector<12x128xf32>
    %cst_20 = arith.constant 1.000000e+00 : f32
    %65 = vector.broadcast %cst_20 : f32 to vector<12x128xf32>
    %66 = arith.addf %65, %64 : vector<12x128xf32>
    %67 = arith.mulf %56, %66 : vector<12x128xf32>
    %68 = vector.broadcast %35 : f32 to vector<12x128xf32>
    %69 = arith.mulf %67, %68 : vector<12x128xf32>
    %cst_21 = arith.constant 1.000000e+00 : f32
    %70 = arith.subf %cst_21, %35 : f32
    %71 = vector.broadcast %70 : f32 to vector<12x128xf32>
    %72 = arith.mulf %4, %71 : vector<12x128xf32>
    %73 = arith.addf %69, %72 : vector<12x128xf32>
    %c0_22 = arith.constant 0 : index
    %c0_23 = arith.constant 0 : index
    %74 = vector.load %arg6[%c0_22, %c0_23] : memref<1x128xf32, #tpu.memory_space<vmem>>, vector<1x128xf32>
    %c0_24 = arith.constant 0 : index
    %c0_25 = arith.constant 0 : index
    %75 = vector.load %arg7[%c0_24, %c0_25] : memref<1x128xf32, #tpu.memory_space<vmem>>, vector<1x128xf32>
    %cst_26 = arith.constant 0.000000e+00 : f32
    %76 = vector.shape_cast %2 : vector<1x128xi1> to vector<1x128xi1>
    %77 = vector.broadcast %76 : vector<1x128xi1> to vector<12x128xi1>
    %78 = vector.broadcast %cst_26 : f32 to vector<12x128xf32>
    %79 = arith.select %77, %73, %78 : vector<12x128xi1>, vector<12x128xf32>
    %cst_27 = arith.constant dense<0.000000e+00> : vector<12xf32>
    %80 = vector.multi_reduction <add>, %79, %cst_27 [1] : vector<12x128xf32> to vector<12xf32>
    %81 = vector.shape_cast %80 : vector<12xf32> to vector<12x1xf32>
    %cst_28 = arith.constant 3.125000e-02 : f32
    %82 = vector.broadcast %cst_28 : f32 to vector<12x1xf32>
    %83 = arith.mulf %81, %82 : vector<12x1xf32>
    %84 = vector.broadcast %83 : vector<12x1xf32> to vector<12x128xf32>
    %85 = arith.subf %73, %84 : vector<12x128xf32>
    %cst_29 = arith.constant 0.000000e+00 : f32
    %86 = vector.shape_cast %2 : vector<1x128xi1> to vector<1x128xi1>
    %87 = vector.broadcast %86 : vector<1x128xi1> to vector<12x128xi1>
    %88 = vector.broadcast %cst_29 : f32 to vector<12x128xf32>
    %89 = arith.select %87, %85, %88 : vector<12x128xi1>, vector<12x128xf32>
    %90 = arith.mulf %89, %89 : vector<12x128xf32>
    %cst_30 = arith.constant dense<0.000000e+00> : vector<12xf32>
    %91 = vector.multi_reduction <add>, %90, %cst_30 [1] : vector<12x128xf32> to vector<12xf32>
    %92 = vector.shape_cast %91 : vector<12xf32> to vector<12x1xf32>
    %cst_31 = arith.constant 3.125000e-02 : f32
    %93 = vector.broadcast %cst_31 : f32 to vector<12x1xf32>
    %94 = arith.mulf %92, %93 : vector<12x1xf32>
    %cst_32 = arith.constant 9.99999974E-6 : f32
    %95 = vector.broadcast %cst_32 : f32 to vector<12x1xf32>
    %96 = arith.addf %94, %95 : vector<12x1xf32>
    %97 = math.rsqrt %96 : vector<12x1xf32>
    %98 = vector.broadcast %97 : vector<12x1xf32> to vector<12x128xf32>
    %99 = arith.mulf %89, %98 : vector<12x128xf32>
    %100 = vector.broadcast %74 : vector<1x128xf32> to vector<12x128xf32>
    %101 = arith.mulf %99, %100 : vector<12x128xf32>
    %102 = vector.broadcast %75 : vector<1x128xf32> to vector<12x128xf32>
    %103 = arith.addf %101, %102 : vector<12x128xf32>
    %c0_33 = arith.constant 0 : index
    %c0_34 = arith.constant 0 : index
    %104 = vector.load %arg8[%c0_33, %c0_34] : memref<1x128xf32, #tpu.memory_space<vmem>>, vector<1x128xf32>
    %c0_35 = arith.constant 0 : index
    %c0_36 = arith.constant 0 : index
    %105 = vector.load %arg9[%c0_35, %c0_36] : memref<1x128xf32, #tpu.memory_space<vmem>>, vector<1x128xf32>
    %cst_37 = arith.constant 0.000000e+00 : f32
    %106 = vector.shape_cast %2 : vector<1x128xi1> to vector<1x128xi1>
    %107 = vector.broadcast %106 : vector<1x128xi1> to vector<12x128xi1>
    %108 = vector.broadcast %cst_37 : f32 to vector<12x128xf32>
    %109 = arith.select %107, %103, %108 : vector<12x128xi1>, vector<12x128xf32>
    %cst_38 = arith.constant dense<0.000000e+00> : vector<12xf32>
    %110 = vector.multi_reduction <add>, %109, %cst_38 [1] : vector<12x128xf32> to vector<12xf32>
    %111 = vector.shape_cast %110 : vector<12xf32> to vector<12x1xf32>
    %cst_39 = arith.constant 3.125000e-02 : f32
    %112 = vector.broadcast %cst_39 : f32 to vector<12x1xf32>
    %113 = arith.mulf %111, %112 : vector<12x1xf32>
    %114 = vector.broadcast %113 : vector<12x1xf32> to vector<12x128xf32>
    %115 = arith.subf %103, %114 : vector<12x128xf32>
    %cst_40 = arith.constant 0.000000e+00 : f32
    %116 = vector.shape_cast %2 : vector<1x128xi1> to vector<1x128xi1>
    %117 = vector.broadcast %116 : vector<1x128xi1> to vector<12x128xi1>
    %118 = vector.broadcast %cst_40 : f32 to vector<12x128xf32>
    %119 = arith.select %117, %115, %118 : vector<12x128xi1>, vector<12x128xf32>
    %120 = arith.mulf %119, %119 : vector<12x128xf32>
    %cst_41 = arith.constant dense<0.000000e+00> : vector<12xf32>
    %121 = vector.multi_reduction <add>, %120, %cst_41 [1] : vector<12x128xf32> to vector<12xf32>
    %122 = vector.shape_cast %121 : vector<12xf32> to vector<12x1xf32>
    %cst_42 = arith.constant 3.125000e-02 : f32
    %123 = vector.broadcast %cst_42 : f32 to vector<12x1xf32>
    %124 = arith.mulf %122, %123 : vector<12x1xf32>
    %cst_43 = arith.constant 9.99999974E-6 : f32
    %125 = vector.broadcast %cst_43 : f32 to vector<12x1xf32>
    %126 = arith.addf %124, %125 : vector<12x1xf32>
    %127 = math.rsqrt %126 : vector<12x1xf32>
    %128 = vector.broadcast %127 : vector<12x1xf32> to vector<12x128xf32>
    %129 = arith.mulf %119, %128 : vector<12x128xf32>
    %130 = vector.broadcast %104 : vector<1x128xf32> to vector<12x128xf32>
    %131 = arith.mulf %129, %130 : vector<12x128xf32>
    %132 = vector.broadcast %105 : vector<1x128xf32> to vector<12x128xf32>
    %133 = arith.addf %131, %132 : vector<12x128xf32>
    %c0_44 = arith.constant 0 : index
    %c0_45 = arith.constant 0 : index
    %134 = vector.load %arg10[%c0_44, %c0_45] : memref<12x128xf32, #tpu.memory_space<vmem>>, vector<12x128xf32>
    tpu.vector_store %arg10[%c0_44, %c0_45], %133 {strides = array<i32>} : memref<12x128xf32, #tpu.memory_space<vmem>>, vector<12x128xf32>,
    return
  }
  func.func @transform_0(%arg0: i32) -> (i32, i32, i32) {
    %c0_i32 = arith.constant 0 : i32
    %c0_i32_0 = arith.constant 0 : i32
    %c0_i32_1 = arith.constant 0 : i32
    return %c0_i32, %arg0, %c0_i32_0 : i32, i32, i32
  }
  func.func @transform_1(%arg0: i32) -> (i32, i32) {
    %c0_i32 = arith.constant 0 : i32
    %c0_i32_0 = arith.constant 0 : i32
    return %arg0, %c0_i32 : i32, i32
  }
  func.func @transform_2(%arg0: i32) -> (i32, i32) {
    %c0_i32 = arith.constant 0 : i32
    %c0_i32_0 = arith.constant 0 : i32
    %c0_i32_1 = arith.constant 0 : i32
    return %c0_i32, %c0_i32_0 : i32, i32
  }
  func.func @transform_3(%arg0: i32) -> i32 {
    %c0_i32 = arith.constant 0 : i32
    %c0_i32_0 = arith.constant 0 : i32
    return %c0_i32 : i32
  }
  func.func @transform_4(%arg0: i32) -> i32 {
    %c0_i32 = arith.constant 0 : i32
    %c0_i32_0 = arith.constant 0 : i32
    return %c0_i32 : i32
  }
  func.func @transform_5(%arg0: i32) -> (i32, i32) {
    %c0_i32 = arith.constant 0 : i32
    %c0_i32_0 = arith.constant 0 : i32
    %c0_i32_1 = arith.constant 0 : i32
    return %c0_i32, %c0_i32_0 : i32, i32
  }
  func.func @transform_6(%arg0: i32) -> (i32, i32) {
    %c0_i32 = arith.constant 0 : i32
    %c0_i32_0 = arith.constant 0 : i32
    %c0_i32_1 = arith.constant 0 : i32
    return %c0_i32, %c0_i32_0 : i32, i32
  }
  func.func @transform_7(%arg0: i32) -> (i32, i32) {
    %c0_i32 = arith.constant 0 : i32
    %c0_i32_0 = arith.constant 0 : i32
    %c0_i32_1 = arith.constant 0 : i32
    return %c0_i32, %c0_i32_0 : i32, i32
  }
  func.func @transform_8(%arg0: i32) -> (i32, i32) {
    %c0_i32 = arith.constant 0 : i32
    %c0_i32_0 = arith.constant 0 : i32
    %c0_i32_1 = arith.constant 0 : i32
    return %c0_i32, %c0_i32_0 : i32, i32
  }
  func.func @transform_9(%arg0: i32) -> (i32, i32) {
    %c0_i32 = arith.constant 0 : i32
    %c0_i32_0 = arith.constant 0 : i32
    return %arg0, %c0_i32 : i32, i32
  }
}

</mosaic_0001>

<llo_original>
// kernel: hrgat_forward.20
$region0: #{hrgat_forward.20}
  #allocation0 [shape = 'u32[]', space=smem, size = 0x4, offset = 0x4, fixed_abs, tag = 'smem constant byte address 0x4 - core index']
  #allocation1 [shape = 'u32[72,128]{1,0:T(1,128)}', space=vmem, size = 0x9000, scoped, tag = 'internal scratch']
  %s0 = inlined_call_operand.vmem [shape: bf16[16,128], index: 0, kind: input, shape index: {}]
  %s1 = inlined_call_operand.vmem [shape: bf16[128,128], index: 1, kind: input, shape index: {}]
  %s2 = inlined_call_operand.vmem [shape: bf16[16,128], index: 2, kind: output, shape index: {}]
  %s3 = sld [smem:[#allocation0]]
  $region18: #{hrgat_forward.20} parent=0
    _
  %s5 = ssub.s32 1, %s3
  %s6 = scalar_select 0, %s5, %s3
  // Predicated region
  $region2: #{hrgat_forward.20} parent=0 // pred_check
    _
  $region3: #{hrgat_forward.20} parent=0 // pred_check_branch
    %8 = sbr.rel (0) target = $region5
  $region4: #{hrgat_forward.20} parent=0 // pred_region
    _
  $region5: #{hrgat_forward.20} parent=0 // pred_fallthru
    _
  // Predicated region
  $region6: #{hrgat_forward.20} parent=0 // pred_check
    _
  $region7: #{hrgat_forward.20} parent=0 // pred_check_branch
    %10 = sbr.rel (0) target = $region9
  $region8: #{hrgat_forward.20} parent=0 // pred_region
    _
  $region9: #{hrgat_forward.20} parent=0 // pred_fallthru
    _
  %v11 = vld [vmem:[%s0] sm:$0xf]
  %v12 = vld [vmem:[%s0 + $0x4] sm:$0xf]
  %v13 = vld [vmem:[%s1] sm:$0xf]
  %v14 = vld [vmem:[%s1 + $0x4] sm:$0xf]
  %v15 = vld [vmem:[%s1 + $0x8] sm:$0xf]
  %v16 = vld [vmem:[%s1 + $0xc] sm:$0xf]
  %v17 = vld [vmem:[%s1 + $0x10] sm:$0xf]
  %v18 = vld [vmem:[%s1 + $0x14] sm:$0xf]
  %v19 = vld [vmem:[%s1 + $0x18] sm:$0xf]
  %v20 = vld [vmem:[%s1 + $0x1c] sm:$0xf]
  %v21 = vld [vmem:[%s1 + $0x20] sm:$0xf]
  %v22 = vld [vmem:[%s1 + $0x24] sm:$0xf]
  %v23 = vld [vmem:[%s1 + $0x28] sm:$0xf]
  %v24 = vld [vmem:[%s1 + $0x2c] sm:$0xf]
  %v25 = vld [vmem:[%s1 + $0x30] sm:$0xf]
  %v26 = vld [vmem:[%s1 + $0x34] sm:$0xf]
  %v27 = vld [vmem:[%s1 + $0x38] sm:$0xf]
  %v28 = vld [vmem:[%s1 + $0x3c] sm:$0xf]
  %v31 = vunpack.c.l.b16 %v11
  %v32 = vunpack.c.l.b16 %v12
  %v33 = vpack.c.b16 %v32, %v31
  %v51 = vunpack.c.l.b16 %v13
  %v52 = vunpack.c.l.b16 %v14
  %v53 = vunpack.c.l.b16 %v15
  %v54 = vunpack.c.l.b16 %v16
  %v55 = vunpack.c.l.b16 %v17
  %v56 = vunpack.c.l.b16 %v18
  %v57 = vunpack.c.l.b16 %v19
  %v58 = vunpack.c.l.b16 %v20
  %v59 = vunpack.c.l.b16 %v21
  %v60 = vunpack.c.l.b16 %v22
  %v61 = vunpack.c.l.b16 %v23
  %v62 = vunpack.c.l.b16 %v24
  %v63 = vunpack.c.l.b16 %v25
  %v64 = vunpack.c.l.b16 %v26
  %v65 = vunpack.c.l.b16 %v27
  %v66 = vunpack.c.l.b16 %v28
  %v67 = vpack.c.b16 %v52, %v51
  %v68 = vpack.c.b16 %v54, %v53
  %v69 = vpack.c.b16 %v56, %v55
  %v70 = vpack.c.b16 %v58, %v57
  %v71 = vpack.c.b16 %v60, %v59
  %v72 = vpack.c.b16 %v62, %v61
  %v73 = vpack.c.b16 %v64, %v63
  %v74 = vpack.c.b16 %v66, %v65
  %83 = vmatpush.bf16.msra.mxu0 %v74
  %84 = vmatpush.bf16.msra.mxu0 %v73
  %85 = vmatpush.bf16.msra.mxu0 %v72
  %86 = vmatpush.bf16.msra.mxu0 %v71
  %87 = vmatpush.bf16.msra.mxu0 %v70
  %88 = vmatpush.bf16.msra.mxu0 %v69
  %89 = vmatpush.bf16.msra.mxu0 %v68
  %90 = vmatpush.bf16.msra.mxu0 %v67
  %91 = vmatmul.bf16.gmra.mxu0 %v33
  %v92 = vpop.f32.mrf.mxu0
  %v93 = vadd.f32 0.0, %v92
  %v94 = vpop.f32.mrf.mxu0
  %v95 = vadd.f32 0.0, %v94
  %96 = vdwg.mxu0
  %v97 = vpack.c.bf16 %v93, %v93
  %v98 = vpack.c.bf16 %v95, %v95
  %99 = vst [vmem:[%s2] sm:$0xf] %v97
  %100 = vst [vmem:[%s2 + $0x4] sm:$0xf] %v98
  // Predicated region
  $region10: #{hrgat_forward.20} parent=0 // pred_check
    _
  $region11: #{hrgat_forward.20} parent=0 // pred_check_branch
    %102 = sbr.rel (0) target = $region13
  $region12: #{hrgat_forward.20} parent=0 // pred_region
    _
  $region13: #{hrgat_forward.20} parent=0 // pred_fallthru
    _
  // Predicated region
  $region14: #{hrgat_forward.20} parent=0 // pred_check
    _
  $region15: #{hrgat_forward.20} parent=0 // pred_check_branch
    %104 = sbr.rel (0) target = $region17
  $region16: #{hrgat_forward.20} parent=0 // pred_region
    _
  $region17: #{hrgat_forward.20} parent=0 // pred_fallthru
    _

// kernel: hrgat_forward.26
$region0: #{hrgat_forward.26}
  #allocation0 [shape = 'u32[]', space=smem, size = 0x4, offset = 0x4, fixed_abs, tag = 'smem constant byte address 0x4 - core index']
  #allocation1 [shape = 'u32[72,128]{1,0:T(1,128)}', space=vmem, size = 0x9000, scoped, tag = 'internal scratch']
  %s0 = inlined_call_operand.vmem [shape: bf16[16,128], index: 0, kind: input, shape index: {}]
  %s1 = inlined_call_operand.hbm [shape: bf16[128,128], index: 1, kind: input, shape index: {}]
  %s2 = inlined_call_operand.vmem [shape: bf16[16,128], index: 2, kind: output, shape index: {}]
  %s3 = sld [smem:[#allocation0]]
  $region22: #{hrgat_forward.26} parent=0
    _
  %s5 = ssub.s32 1, %s3
  %s6 = scalar_select 0, %s5, %s3
  $region1: #{hrgat_forward.26} parent=0
    #allocation2 [shape = 'u8[32768]{0}', space=vmem, size = 0x8000, scoped, tag = 'input window, operand 1, single buffered']
    #allocation3 [shape = 's32[1]{0}', space=sflag, size = 0x4, scoped, tag = 'scoped memory for hrgat_forward.26']
    %7 = vsyncpa [#allocation3], 0
    // Predicated region
    $region2: #{hrgat_forward.26} parent=1 // pred_check
      _
    $region3: #{hrgat_forward.26} parent=1 // pred_check_branch
      %9 = sbr.rel (0) target = $region5
    $region4: #{hrgat_forward.26} parent=1 // pred_region
      _
    $region5: #{hrgat_forward.26} parent=1 // pred_fallthru
      _
    // Predicated region
    $region6: #{hrgat_forward.26} parent=1 // pred_check
      _
    $region7: #{hrgat_forward.26} parent=1 // pred_check_branch
      %11 = sbr.rel (0) target = $region9
    $region8: #{hrgat_forward.26} parent=1 // pred_region
      %13 = vsyncadd [#allocation3], 0
      %s14 = sshll.u32 %s1, 4
      %s15 = int_to_ptr.hbm [resolvable:$true] %s14
      %s16 = sshll.u32 [#allocation2], 4
      %s17 = int_to_ptr.vmem [resolvable:$true] %s16
      %22 = dma.hbm_to_vmem [thread:$0]  %s15, 1024, %s17, [#allocation3], 64, 64, 4
    $region9: #{hrgat_forward.26} parent=1 // pred_fallthru
      _
    // Predicated region
    $region10: #{hrgat_forward.26} parent=1 // pred_check
      _
    $region11: #{hrgat_forward.26} parent=1 // pred_check_branch
      %24 = sbr.rel (0) target = $region13
    $region12: #{hrgat_forward.26} parent=1 // pred_region
      %26 = dma.done [#allocation3], 1024
    $region13: #{hrgat_forward.26} parent=1 // pred_fallthru
      _
    %v27 = vld [vmem:[%s0] sm:$0xf]
    %v28 = vld [vmem:[%s0 + $0x4] sm:$0xf]
    %v29 = vld [vmem:[#allocation2] sm:$0xf]
    %v30 = vld [vmem:[#allocation2 + $0x4] sm:$0xf]
    %v31 = vld [vmem:[#allocation2 + $0x8] sm:$0xf]
    %v32 = vld [vmem:[#allocation2 + $0xc] sm:$0xf]
    %v33 = vld [vmem:[#allocation2 + $0x10] sm:$0xf]
    %v34 = vld [vmem:[#allocation2 + $0x14] sm:$0xf]
    %v35 = vld [vmem:[#allocation2 + $0x18] sm:$0xf]
    %v36 = vld [vmem:[#allocation2 + $0x1c] sm:$0xf]
    %v37 = vld [vmem:[#allocation2 + $0x20] sm:$0xf]
    %v38 = vld [vmem:[#allocation2 + $0x24] sm:$0xf]
    %v39 = vld [vmem:[#allocation2 + $0x28] sm:$0xf]
    %v40 = vld [vmem:[#allocation2 + $0x2c] sm:$0xf]
    %v41 = vld [vmem:[#allocation2 + $0x30] sm:$0xf]
    %v42 = vld [vmem:[#allocation2 + $0x34] sm:$0xf]
    %v43 = vld [vmem:[#allocation2 + $0x38] sm:$0xf]
    %v44 = vld [vmem:[#allocation2 + $0x3c] sm:$0xf]
    %v47 = vunpack.c.l.b16 %v27
    %v48 = vunpack.c.l.b16 %v28
    %v49 = vpack.c.b16 %v48, %v47
    %v67 = vunpack.c.l.b16 %v29
    %v68 = vunpack.c.l.b16 %v30
    %v69 = vunpack.c.l.b16 %v31
    %v70 = vunpack.c.l.b16 %v32
    %v71 = vunpack.c.l.b16 %v33
    %v72 = vunpack.c.l.b16 %v34
    %v73 = vunpack.c.l.b16 %v35
    %v74 = vunpack.c.l.b16 %v36
    %v75 = vunpack.c.l.b16 %v37
    %v76 = vunpack.c.l.b16 %v38
    %v77 = vunpack.c.l.b16 %v39
    %v78 = vunpack.c.l.b16 %v40
    %v79 = vunpack.c.l.b16 %v41
    %v80 = vunpack.c.l.b16 %v42
    %v81 = vunpack.c.l.b16 %v43
    %v82 = vunpack.c.l.b16 %v44
    %v83 = vpack.c.b16 %v68, %v67
    %v84 = vpack.c.b16 %v70, %v69
    %v85 = vpack.c.b16 %v72, %v71
    %v86 = vpack.c.b16 %v74, %v73
    %v87 = vpack.c.b16 %v76, %v75
    %v88 = vpack.c.b16 %v78, %v77
    %v89 = vpack.c.b16 %v80, %v79
    %v90 = vpack.c.b16 %v82, %v81
    %99 = vmatpush.bf16.msra.mxu0 %v90
    %100 = vmatpush.bf16.msra.mxu0 %v89
    %101 = vmatpush.bf16.msra.mxu0 %v88
    %102 = vmatpush.bf16.msra.mxu0 %v87
    %103 = vmatpush.bf16.msra.mxu0 %v86
    %104 = vmatpush.bf16.msra.mxu0 %v85
    %105 = vmatpush.bf16.msra.mxu0 %v84
    %106 = vmatpush.bf16.msra.mxu0 %v83
    %107 = vmatmul.bf16.gmra.mxu0 %v49
    %v108 = vpop.f32.mrf.mxu0
    %v109 = vadd.f32 0.0, %v108
    %v110 = vpop.f32.mrf.mxu0
    %v111 = vadd.f32 0.0, %v110
    %112 = vdwg.mxu0
    %v113 = vpack.c.bf16 %v109, %v109
    %v114 = vpack.c.bf16 %v111, %v111
    %115 = vst [vmem:[%s2] sm:$0xf] %v113
    %116 = vst [vmem:[%s2 + $0x4] sm:$0xf] %v114
    // Predicated region
    $region14: #{hrgat_forward.26} parent=1 // pred_check
      _
    $region15: #{hrgat_forward.26} parent=1 // pred_check_branch
      %118 = sbr.rel (0) target = $region17
    $region16: #{hrgat_forward.26} parent=1 // pred_region
      _
    $region17: #{hrgat_forward.26} parent=1 // pred_fallthru
      _
    // Predicated region
    $region18: #{hrgat_forward.26} parent=1 // pred_check
      _
    $region19: #{hrgat_forward.26} parent=1 // pred_check_branch
      %120 = sbr.rel (0) target = $region21
    $region20: #{hrgat_forward.26} parent=1 // pred_region
      _
    $region21: #{hrgat_forward.26} parent=1 // pred_fallthru
      _
    %121 = vsyncpa [#allocation3], 1

// kernel: hrgat_forward.22
$region0: #{hrgat_forward.22}
  #allocation0 [shape = 'u32[]', space=smem, size = 0x4, offset = 0x4, fixed_abs, tag = 'smem constant byte address 0x4 - core index']
  #allocation1 [shape = 'u32[72,128]{1,0:T(1,128)}', space=vmem, size = 0x9000, scoped, tag = 'internal scratch']
  %s0 = inlined_call_operand.vmem [shape: bf16[3,16,128], index: 0, kind: input, shape index: {}]
  %s1 = inlined_call_operand.vmem [shape: bf16[16,128], index: 1, kind: input, shape index: {}]
  %s2 = inlined_call_operand.vmem [shape: f32[2,128], index: 2, kind: input, shape index: {}]
  %s3 = inlined_call_operand.vmem [shape: f32[3], index: 3, kind: input, shape index: {}]
  %s4 = inlined_call_operand.vmem [shape: f32[2], index: 4, kind: input, shape index: {}]
  %s5 = inlined_call_operand.vmem [shape: f32[1,128], index: 5, kind: input, shape index: {}]
  %s6 = inlined_call_operand.vmem [shape: f32[1,128], index: 6, kind: input, shape index: {}]
  %s7 = inlined_call_operand.vmem [shape: bf16[16,128], index: 7, kind: output, shape index: {}]
  %s8 = sld [smem:[#allocation0]]
  $region46: #{hrgat_forward.22} parent=0
    _
  %s10 = ssub.s32 1, %s8
  %s11 = scalar_select 0, %s10, %s8
  $region1: #{hrgat_forward.22} parent=0
    #allocation2 [shape = 'u8[512]{0}', space=smem, size = 0x200, scoped, tag = 'input window, operand 3, single buffered']
    #allocation3 [shape = 's32[1]{0}', space=sflag, size = 0x4, scoped, tag = 'scoped memory for hrgat_forward.22']
    #allocation4 [shape = 'u8[512]{0}', space=smem, size = 0x200, scoped, tag = 'input window, operand 4, single buffered']
    #allocation5 [shape = 's32[1]{0}', space=sflag, size = 0x4, scoped, tag = 'scoped memory for hrgat_forward.22']
    %12 = vsyncpa [#allocation3], 0
    %13 = vsyncpa [#allocation5], 0
    // Predicated region
    $region2: #{hrgat_forward.22} parent=1 // pred_check
      _
    $region3: #{hrgat_forward.22} parent=1 // pred_check_branch
      %15 = sbr.rel (0) target = $region5
    $region4: #{hrgat_forward.22} parent=1 // pred_region
      _
    $region5: #{hrgat_forward.22} parent=1 // pred_fallthru
      _
    // Predicated region
    $region6: #{hrgat_forward.22} parent=1 // pred_check
      _
    $region7: #{hrgat_forward.22} parent=1 // pred_check_branch
      %17 = sbr.rel (0) target = $region9
    $region8: #{hrgat_forward.22} parent=1 // pred_region
      _
    $region9: #{hrgat_forward.22} parent=1 // pred_fallthru
      _
    // Predicated region
    $region10: #{hrgat_forward.22} parent=1 // pred_check
      _
    $region11: #{hrgat_forward.22} parent=1 // pred_check_branch
      %19 = sbr.rel (0) target = $region13
    $region12: #{hrgat_forward.22} parent=1 // pred_region
      _
    $region13: #{hrgat_forward.22} parent=1 // pred_fallthru
      _
    // Predicated region
    $region14: #{hrgat_forward.22} parent=1 // pred_check
      _
    $region15: #{hrgat_forward.22} parent=1 // pred_check_branch
      %21 = sbr.rel (0) target = $region17
    $region16: #{hrgat_forward.22} parent=1 // pred_region
      %23 = vsyncadd [#allocation3], 0
      %s25 = sshll.u32 %s3, 4
      %s26 = int_to_ptr.vmem [resolvable:$true] %s25
      %28 = dma.vmem_to_smem %s26, 16, [#allocation2], [#allocation3]
    $region17: #{hrgat_forward.22} parent=1 // pred_fallthru
      _
    // Predicated region
    $region18: #{hrgat_forward.22} parent=1 // pred_check
      _
    $region19: #{hrgat_forward.22} parent=1 // pred_check_branch
      %30 = sbr.rel (0) target = $region21
    $region20: #{hrgat_forward.22} parent=1 // pred_region
      %32 = vsyncadd [#allocation5], 0
      %s34 = sshll.u32 %s4, 4
      %s35 = int_to_ptr.vmem [resolvable:$true] %s34
      %37 = dma.vmem_to_smem %s35, 16, [#allocation4], [#allocation5]
    $region21: #{hrgat_forward.22} parent=1 // pred_fallthru
      _
    // Predicated region
    $region22: #{hrgat_forward.22} parent=1 // pred_check
      _
    $region23: #{hrgat_forward.22} parent=1 // pred_check_branch
      %39 = sbr.rel (0) target = $region25
    $region24: #{hrgat_forward.22} parent=1 // pred_region
      _
    $region25: #{hrgat_forward.22} parent=1 // pred_fallthru
      _
    // Predicated region
    $region26: #{hrgat_forward.22} parent=1 // pred_check
      _
    $region27: #{hrgat_forward.22} parent=1 // pred_check_branch
      %41 = sbr.rel (0) target = $region29
    $region28: #{hrgat_forward.22} parent=1 // pred_region
      _
    $region29: #{hrgat_forward.22} parent=1 // pred_fallthru
      _
    // Predicated region
    $region30: #{hrgat_forward.22} parent=1 // pred_check
      _
    $region31: #{hrgat_forward.22} parent=1 // pred_check_branch
      %43 = sbr.rel (0) target = $region33
    $region32: #{hrgat_forward.22} parent=1 // pred_region
      %45 = dma.done [#allocation3], 16
    $region33: #{hrgat_forward.22} parent=1 // pred_fallthru
      _
    // Predicated region
    $region34: #{hrgat_forward.22} parent=1 // pred_check
      _
    $region35: #{hrgat_forward.22} parent=1 // pred_check_branch
      %47 = sbr.rel (0) target = $region37
    $region36: #{hrgat_forward.22} parent=1 // pred_region
      %49 = dma.done [#allocation5], 16
    $region37: #{hrgat_forward.22} parent=1 // pred_fallthru
      _
    %50 = sfence
    %v51 = vlaneseq
    %v52 = vand.u32 %v51, 127
    %vm53 = vcmp.lt.s32.totalorder %v52, 32
    %v54 = vld [vmem:[%s1] sm:$0xf]
    %v55 = vld [vmem:[%s1 + $0x4] sm:$0xf]
    %v56 = vunpack.c.l.bf16 %v54
    %v57 = vunpack.c.l.bf16 %v55
    %v58 = vld [vmem:[%s2] sm:$0x1]
    %v59 = vld [vmem:[%s2 + $0x1] sm:$0x1]
    %v60 = vperm.slane %v58, 0
    %v61 = vmul.f32 %v56, %v60
    %v62 = vmul.f32 %v57, %v60
    %63 = vadd.xlane.f32.xlu0 %v61
    %v64 = vpop.xlane.xlu0 %63
    %65 = vadd.xlane.f32.xlu0 %v62
    %v66 = vpop.xlane.xlu0 %65
    %v67 = vld [vmem:[%s0] sm:$0xf]
    %v68 = vld [vmem:[%s0 + $0x4] sm:$0xf]
    %v69 = vunpack.c.l.bf16 %v67
    %v70 = vunpack.c.l.bf16 %v68
    %s71 = scalar_lea.vmem %s0, 8
    %v72 = vld [vmem:[%s71] sm:$0xf]
    %v73 = vld [vmem:[%s71 + $0x4] sm:$0xf]
    %v74 = vunpack.c.l.bf16 %v72
    %v75 = vunpack.c.l.bf16 %v73
    %s76 = scalar_lea.vmem %s0, 16
    %v77 = vld [vmem:[%s76] sm:$0xf]
    %v78 = vld [vmem:[%s76 + $0x4] sm:$0xf]
    %v79 = vunpack.c.l.bf16 %v77
    %v80 = vunpack.c.l.bf16 %v78
    %v81 = vperm.slane %v59, 0
    %v82 = vmul.f32 %v69, %v81
    %v83 = vmul.f32 %v70, %v81
    %84 = vadd.xlane.f32.xlu0 %v82
    %v85 = vpop.xlane.xlu0 %84
    %86 = vadd.xlane.f32.xlu0 %v83
    %v87 = vpop.xlane.xlu0 %86
    %v88 = vadd.f32 %v64, %v85
    %v89 = vadd.f32 %v66, %v87
    %v90 = vmul.f32 %v74, %v81
    %v91 = vmul.f32 %v75, %v81
    %92 = vadd.xlane.f32.xlu0 %v90
    %v93 = vpop.xlane.xlu0 %92
    %94 = vadd.xlane.f32.xlu0 %v91
    %v95 = vpop.xlane.xlu0 %94
    %v96 = vadd.f32 %v64, %v93
    %v97 = vadd.f32 %v66, %v95
    %v98 = vmul.f32 %v79, %v81
    %v99 = vmul.f32 %v80, %v81
    %100 = vadd.xlane.f32.xlu0 %v98
    %v101 = vpop.xlane.xlu0 %100
    %102 = vadd.xlane.f32.xlu0 %v99
    %v103 = vpop.xlane.xlu0 %102
    %v104 = vadd.f32 %v64, %v101
    %v105 = vadd.f32 %v66, %v103
    %v106 = vmax.f32 %v88, %v96
    %v107 = vmax.f32 %v89, %v97
    %v108 = vmax.f32 %v106, %v104
    %v109 = vmax.f32 %v107, %v105
    %v110 = vsub.f32 %v88, %v108
    %v111 = vsub.f32 %v89, %v109
    %v112 = vmul.f32 %v110, 1.442695
    %v113 = vpow.pop %v112
    %v114 = vmul.f32 %v111, 1.442695
    %v115 = vpow.pop %v114
    %v116 = vsub.f32 %v96, %v108
    %v117 = vsub.f32 %v97, %v109
    %v118 = vmul.f32 %v116, 1.442695
    %v119 = vpow.pop %v118
    %v120 = vmul.f32 %v117, 1.442695
    %v121 = vpow.pop %v120
    %v122 = vsub.f32 %v104, %v108
    %v123 = vsub.f32 %v105, %v109
    %v124 = vmul.f32 %v122, 1.442695
    %v125 = vpow.pop %v124
    %v126 = vmul.f32 %v123, 1.442695
    %v127 = vpow.pop %v126
    %v128 = vadd.f32 %v113, %v119
    %v129 = vadd.f32 %v115, %v121
    %v130 = vadd.f32 %v128, %v125
    %v131 = vadd.f32 %v129, %v127
    %v132 = vrcp.pop %v130
    %v133 = vrcp.pop %v131
    %s134 = sld [smem:[#allocation4]]
    %s135 = sld [smem:[#allocation4 + $0x1]]
    %v136 = vmul.f32 %v113, %v132
    %v137 = vmul.f32 %v115, %v133
    %v138 = vstv %s134
    %v139 = vmul.f32 %v138, %v136
    %v140 = vmul.f32 %v138, %v137
    %s141 = sld [smem:[#allocation2]]
    %v142 = vstv %s141
    %v143 = vadd.f32 %v139, %v142
    %v144 = vadd.f32 %v140, %v142
    %v145 = vmul.f32 %v69, %v143
    %v146 = vmul.f32 %v70, %v144
    %v147 = vadd.f32 %v145, 0.0
    %v148 = vadd.f32 %v146, 0.0
    %v149 = vmul.f32 %v119, %v132
    %v150 = vmul.f32 %v121, %v133
    %v151 = vmul.f32 %v138, %v149
    %v152 = vmul.f32 %v138, %v150
    %s153 = sld [smem:[#allocation2 + $0x1]]
    %v154 = vstv %s153
    %v155 = vadd.f32 %v151, %v154
    %v156 = vadd.f32 %v152, %v154
    %v157 = vmul.f32 %v74, %v155
    %v158 = vmul.f32 %v75, %v156
    %v159 = vadd.f32 %v147, %v157
    %v160 = vadd.f32 %v148, %v158
    %v161 = vmul.f32 %v125, %v132
    %v162 = vmul.f32 %v127, %v133
    %v163 = vmul.f32 %v138, %v161
    %v164 = vmul.f32 %v138, %v162
    %s165 = sld [smem:[#allocation2 + $0x2]]
    %v166 = vstv %s165
    %v167 = vadd.f32 %v163, %v166
    %v168 = vadd.f32 %v164, %v166
    %v169 = vmul.f32 %v79, %v167
    %v170 = vmul.f32 %v80, %v168
    %v171 = vadd.f32 %v159, %v169
    %v172 = vadd.f32 %v160, %v170
    %v173 = vmul.f32 %v171, 0.5
    %v174 = vmul.f32 %v172, 0.5
    %v175 = vmul.f32 %v171, 0.044715
    %v176 = vmul.f32 %v172, 0.044715
    %v177 = vmul.f32 %v175, %v171
    %v178 = vmul.f32 %v176, %v172
    %v179 = vmul.f32 %v177, %v171
    %v180 = vmul.f32 %v178, %v172
    %v181 = vadd.f32 %v171, %v179
    %v182 = vadd.f32 %v172, %v180
    %v183 = vmul.f32 %v181, 0.7978846
    %v184 = vmul.f32 %v182, 0.7978846
    %v185 = vtanh.pop %v183
    %v186 = vtanh.pop %v184
    %v187 = vadd.f32 %v185, 1.0
    %v188 = vadd.f32 %v186, 1.0
    %v189 = vmul.f32 %v173, %v187
    %v190 = vmul.f32 %v174, %v188
    %v191 = vstv %s135
    %v192 = vmul.f32 %v189, %v191
    %v193 = vmul.f32 %v190, %v191
    %s194 = ssub.f32 1.0, %s135
    %v195 = vstv %s194
    %v196 = vmul.f32 %v56, %v195
    %v197 = vmul.f32 %v57, %v195
    %v198 = vadd.f32 %v192, %v196
    %v199 = vadd.f32 %v193, %v197
    %v200 = vld [vmem:[%s5] sm:$0x1]
    %v201 = vld [vmem:[%s6] sm:$0x1]
    %v202 = vsel %vm53, 1, 0
    %vm203 = vcmp.eq.s32.totalorder %v202, 1
    %v204 = vsel %vm203, %v198, 0.0
    %v205 = vsel %vm203, %v199, 0.0
    %206 = vadd.xlane.f32.xlu0 %v204
    %v207 = vpop.xlane.xlu0 %206
    %208 = vadd.xlane.f32.xlu0 %v205
    %v209 = vpop.xlane.xlu0 %208
    %v210 = vmul.f32 %v207, 0.03125
    %v211 = vmul.f32 %v209, 0.03125
    %v212 = vsub.f32 %v198, %v210
    %v213 = vsub.f32 %v199, %v211
    %v214 = vsel %vm203, %v212, 0.0
    %v215 = vsel %vm203, %v213, 0.0
    %v216 = vmul.f32 %v214, %v214
    %v217 = vmul.f32 %v215, %v215
    %218 = vadd.xlane.f32.xlu0 %v216
    %v219 = vpop.xlane.xlu0 %218
    %220 = vadd.xlane.f32.xlu0 %v217
    %v221 = vpop.xlane.xlu0 %220
    %v222 = vmul.f32 %v219, 0.03125
    %v223 = vmul.f32 %v221, 0.03125
    %v224 = vadd.f32 %v222, 1e-05
    %v225 = vadd.f32 %v223, 1e-05
    %v226 = vrsqrt.pop %v224
    %v227 = vmul.f32 %v226, %v224
    %v228 = vmul.f32 %v227, %v226
    %v229 = vmul.f32 0.5, %v228
    %v230 = vsub.f32 1.5, %v229
    %v231 = vmul.f32 %v226, %v230
    %vm232 = vweird.f32 %v224
    %vm233 = vweird.f32 %v226
    %vm234 = vmor %vm232, %vm233
    %v235 = vsel %vm234, %v226, %v231
    %v236 = vrsqrt.pop %v225
    %v237 = vmul.f32 %v236, %v225
    %v238 = vmul.f32 %v237, %v236
    %v239 = vmul.f32 0.5, %v238
    %v240 = vsub.f32 1.5, %v239
    %v241 = vmul.f32 %v236, %v240
    %vm242 = vweird.f32 %v225
    %vm243 = vweird.f32 %v236
    %vm244 = vmor %vm242, %vm243
    %v245 = vsel %vm244, %v236, %v241
    %v246 = vmul.f32 %v214, %v235
    %v247 = vmul.f32 %v215, %v245
    %v249 = vperm.slane %v200, 0
    %v251 = vmul.f32 %v246, %v249
    %v252 = vmul.f32 %v247, %v249
    %v254 = vperm.slane %v201, 0
    %v256 = vadd.f32 %v251, %v254
    %v257 = vadd.f32 %v252, %v254
    %v258 = vpack.c.bf16 %v256, %v256
    %v259 = vpack.c.bf16 %v257, %v257
    %260 = vst [vmem:[%s7] sm:$0xf] %v258
    %261 = vst [vmem:[%s7 + $0x4] sm:$0xf] %v259
    // Predicated region
    $region38: #{hrgat_forward.22} parent=1 // pred_check
      _
    $region39: #{hrgat_forward.22} parent=1 // pred_check_branch
      %263 = sbr.rel (0) target = $region41
    $region40: #{hrgat_forward.22} parent=1 // pred_region
      _
    $region41: #{hrgat_forward.22} parent=1 // pred_fallthru
      _
    // Predicated region
    $region42: #{hrgat_forward.22} parent=1 // pred_check
      _
    $region43: #{hrgat_forward.22} parent=1 // pred_check_branch
      %265 = sbr.rel (0) target = $region45
    $region44: #{hrgat_forward.22} parent=1 // pred_region
      _
    $region45: #{hrgat_forward.22} parent=1 // pred_fallthru
      _
    %266 = vsyncpa [#allocation3], 1
    %267 = vsyncpa [#allocation5], 1

// kernel: hrgat_forward.21
$region0: #{hrgat_forward.21}
  #allocation0 [shape = 'u32[]', space=smem, size = 0x4, offset = 0x4, fixed_abs, tag = 'smem constant byte address 0x4 - core index']
  #allocation1 [shape = 'u32[72,128]{1,0:T(1,128)}', space=vmem, size = 0x9000, scoped, tag = 'internal scratch']
  #allocation2 [shape = 'f32[16,1]{1,0:T(8,128)}', space=vmem, size = 0x2000, scoped, tag = 'scratch operand']
  #allocation3 [shape = 'f32[16,1]{1,0:T(8,128)}', space=vmem, size = 0x2000, scoped, tag = 'scratch operand']
  #allocation4 [shape = 'f32[16,1]{1,0:T(8,128)}', space=vmem, size = 0x2000, scoped, tag = 'scratch operand']
  #allocation5 [shape = 'f32[16,128]{1,0:T(8,128)}', space=vmem, size = 0x2000, scoped, tag = 'scratch operand']
  #allocation6 [shape = 's32[1]{0}', space=sflag, size = 0x4, scoped, tag = 'scoped memory for hrgat_forward.21']
  #allocation7 [shape = 'u8[512]{0}', space=smem, size = 0x200, scoped, tag = 'prefetched SMEM operand 0']
  %s0 = inlined_call_operand.vmem [shape: s32[3], index: 0, kind: input, shape index: {}]
  %s1 = inlined_call_operand.vmem [shape: bf16[16,128], index: 1, kind: input, shape index: {}, may-alias: {1,2}]
  %s2 = inlined_call_operand.vmem [shape: bf16[16,128], index: 2, kind: input, shape index: {}, may-alias: {1,2}]
  %s3 = inlined_call_operand.vmem [shape: f32[3,2,128], index: 3, kind: input, shape index: {}]
  %s4 = inlined_call_operand.vmem [shape: s8[3,16,16], index: 4, kind: input, shape index: {}]
  %s5 = inlined_call_operand.vmem [shape: f32[3,1,128], index: 5, kind: input, shape index: {}]
  %s6 = inlined_call_operand.vmem [shape: f32[3,1,128], index: 6, kind: input, shape index: {}]
  %s7 = inlined_call_operand.hbm [shape: bf16[128,128], index: 7, kind: input, shape index: {}]
  %s8 = inlined_call_operand.vmem [shape: bf16[3,16,128], index: 8, kind: output, shape index: {}]
  %s9 = sld [smem:[#allocation0]]
  $region77: #{hrgat_forward.21} parent=0
    _
  %s11 = ssub.s32 1, %s9
  %s12 = scalar_select 0, %s11, %s9
  %s14 = sshll.u32 %s0, 4
  %s15 = int_to_ptr.vmem [resolvable:$true] %s14
  %17 = dma.vmem_to_smem %s15, 16, [#allocation7], [#allocation6]
  %19 = dma.done [#allocation6], 16
  %20 = sfence
  $region1: #{hrgat_forward.21} parent=0
    #allocation8 [shape = 'u8[32768]{0}', space=vmem, size = 0x8000, scoped, tag = 'input window, operand 7, single buffered']
    #allocation9 [shape = 's32[2]{0}', space=sflag, size = 0x8, scoped, tag = 'scoped memory for hrgat_forward.21']
    %21 = vsyncpa [#allocation9], 0
    loop: start=0, step=1, limit=5
    $region2: #{hrgat_forward.21} parent=1 // loop_pre_header
      _
    $region3: #{hrgat_forward.21} parent=1 // loop_header
      %s23 = sphi 0, %s27
      %p24 = scmp.ge.s32.totalorder %s23, 5
      %s30 = sphi 0, %s49
      %s31 = sphi 0, %s45
      %s32 = sphi 0, %s41
      %s33 = sphi 0, %s30
      %s34 = sphi 0, %s31
      %s35 = sphi 0, %s32
      %s36 = sphi 0, %s33
      %s37 = sphi 0, %s34
      %s38 = sphi 0, %s35
      %s52 = sphi 0, %s54
      %s55 = sphi 0, %s52
      %s56 = sphi 0, %s55
      %s72 = sphi 0, %s56
      %s78 = sphi 0, %s80
      %s81 = sphi 0, %s78
      %s82 = sphi 0, %s81
      %s98 = sphi 0, %s82
      %s104 = sphi 0, %s106
      %s107 = sphi 0, %s104
      %s108 = sphi 0, %s107
      %s124 = sphi 0, %s108
      %s134 = sphi 0, %s136
      %s137 = sphi 0, %s134
      %s138 = sphi 0, %s137
      %s154 = sphi 0, %s138
      %s160 = sphi 0, %s162
      %s163 = sphi 0, %s160
      %s164 = sphi 0, %s163
      %s180 = sphi 0, %s164
      %s186 = sphi 0, %s188
      %s189 = sphi 0, %s186
      %s190 = sphi 0, %s189
      %s206 = sphi 0, %s190
      %s210 = sphi 0, %s210
      %s212 = sphi 0, %s210
      %s213 = sphi 0, %s212
      %s227 = sphi 0, %s213
      %s235 = sphi 0, %s237
      %s238 = sphi 0, %s235
      %s239 = sphi 0, %s238
      %s255 = sphi 0, %s239
    $region4: #{hrgat_forward.21} parent=1 // loop_header_branch
      %26 = sbr.rel (%p24) target = $region8
    $region5: #{hrgat_forward.21} parent=1 // loop_body
      %s28 = ssub.s32 %s23, 1
      %s29 = ssub.s32 %s23, 2
      %s39 = sadd.s32 1, %s32
      %p40 = scmp.ge.s32.totalorder %s39, 1
      %s41 = scalar_select %p40, 0, %s39
      %s42 = sadd.s32 1, %s31
      %s43 = scalar_select %p40, %s42, %s31
      %p44 = scmp.ge.s32.totalorder %s43, 1
      %s45 = scalar_select %p44, 0, %s43
      %s46 = sadd.s32 1, %s30
      %s47 = scalar_select %p44, %s46, %s30
      %p48 = scmp.ge.s32.totalorder %s47, 3
      %s49 = scalar_select %p48, 0, %s47
      %s50 = ssub.s32 %s31, %s45
      %p51 = scmp.eq.s32.totalorder %s50, 0
      %s53 = sadd.s32 %s52, 1
      %s54 = scalar_select %p51, %s52, %s53
      %p57 = pneg %p51
      %p58 = scmp.eq.s32.totalorder %s23, 2
      %p59 = por %p57, %p58
      %p60 = scmp.ne.s32.totalorder %s52, %s55
      %p61 = scmp.eq.s32.totalorder %s23, 0
      %p62 = por %p60, %p61
      %p63 = scmp.ne.s32.totalorder %s52, %s55
      %p64 = scmp.eq.s32.totalorder %s28, 2
      %p65 = por %p63, %p64
      %p66 = scmp.ne.s32.totalorder %s55, %s56
      %p67 = scmp.eq.s32.totalorder %s28, 0
      %p68 = por %p66, %p67
      %p69 = scmp.ne.s32.totalorder %s55, %s56
      %p70 = scmp.eq.s32.totalorder %s29, 2
      %p71 = por %p69, %p70
      %p73 = scmp.ne.s32.totalorder %s56, %s72
      %p74 = scmp.eq.s32.totalorder %s29, 0
      %p75 = por %p73, %p74
      %s76 = ssub.s32 %s32, %s41
      %p77 = scmp.eq.s32.totalorder %s76, 0
      %s79 = sadd.s32 %s78, 1
      %s80 = scalar_select %p77, %s78, %s79
      %p83 = pneg %p77
      %p84 = scmp.eq.s32.totalorder %s23, 2
      %p85 = por %p83, %p84
      %p86 = scmp.ne.s32.totalorder %s78, %s81
      %p87 = scmp.eq.s32.totalorder %s23, 0
      %p88 = por %p86, %p87
      %p89 = scmp.ne.s32.totalorder %s78, %s81
      %p90 = scmp.eq.s32.totalorder %s28, 2
      %p91 = por %p89, %p90
      %p92 = scmp.ne.s32.totalorder %s81, %s82
      %p93 = scmp.eq.s32.totalorder %s28, 0
      %p94 = por %p92, %p93
      %p95 = scmp.ne.s32.totalorder %s81, %s82
      %p96 = scmp.eq.s32.totalorder %s29, 2
      %p97 = por %p95, %p96
      %p99 = scmp.ne.s32.totalorder %s82, %s98
      %p100 = scmp.eq.s32.totalorder %s29, 0
      %p101 = por %p99, %p100
      %s102 = ssub.s32 %s30, %s49
      %p103 = scmp.eq.s32.totalorder %s102, 0
      %s105 = sadd.s32 %s104, 1
      %s106 = scalar_select %p103, %s104, %s105
      %p109 = pneg %p103
      %p110 = scmp.eq.s32.totalorder %s23, 2
      %p111 = por %p109, %p110
      %p112 = scmp.ne.s32.totalorder %s104, %s107
      %p113 = scmp.eq.s32.totalorder %s23, 0
      %p114 = por %p112, %p113
      %p115 = scmp.ne.s32.totalorder %s104, %s107
      %p116 = scmp.eq.s32.totalorder %s28, 2
      %p117 = por %p115, %p116
      %p118 = scmp.ne.s32.totalorder %s107, %s108
      %p119 = scmp.eq.s32.totalorder %s28, 0
      %p120 = por %p118, %p119
      %p121 = scmp.ne.s32.totalorder %s107, %s108
      %p122 = scmp.eq.s32.totalorder %s29, 2
      %p123 = por %p121, %p122
      %p125 = scmp.ne.s32.totalorder %s108, %s124
      %p126 = scmp.eq.s32.totalorder %s29, 0
      %p127 = por %p125, %p126
      %s128 = ssub.s32 %s30, %s49
      %s129 = ssub.s32 %s31, %s45
      %s130 = sor.u32 %s128, %s129
      %s131 = ssub.s32 %s32, %s41
      %s132 = sor.u32 %s130, %s131
      %p133 = scmp.eq.s32.totalorder %s132, 0
      %s135 = sadd.s32 %s134, 1
      %s136 = scalar_select %p133, %s134, %s135
      %p139 = pneg %p133
      %p140 = scmp.eq.s32.totalorder %s23, 2
      %p141 = por %p139, %p140
      %p142 = scmp.ne.s32.totalorder %s134, %s137
      %p143 = scmp.eq.s32.totalorder %s23, 0
      %p144 = por %p142, %p143
      %p145 = scmp.ne.s32.totalorder %s134, %s137
      %p146 = scmp.eq.s32.totalorder %s28, 2
      %p147 = por %p145, %p146
      %p148 = scmp.ne.s32.totalorder %s137, %s138
      %p149 = scmp.eq.s32.totalorder %s28, 0
      %p150 = por %p148, %p149
      %p151 = scmp.ne.s32.totalorder %s137, %s138
      %p152 = scmp.eq.s32.totalorder %s29, 2
      %p153 = por %p151, %p152
      %p155 = scmp.ne.s32.totalorder %s138, %s154
      %p156 = scmp.eq.s32.totalorder %s29, 0
      %p157 = por %p155, %p156
      %s158 = ssub.s32 %s30, %s49
      %p159 = scmp.eq.s32.totalorder %s158, 0
      %s161 = sadd.s32 %s160, 1
      %s162 = scalar_select %p159, %s160, %s161
      %p165 = pneg %p159
      %p166 = scmp.eq.s32.totalorder %s23, 2
      %p167 = por %p165, %p166
      %p168 = scmp.ne.s32.totalorder %s160, %s163
      %p169 = scmp.eq.s32.totalorder %s23, 0
      %p170 = por %p168, %p169
      %p171 = scmp.ne.s32.totalorder %s160, %s163
      %p172 = scmp.eq.s32.totalorder %s28, 2
      %p173 = por %p171, %p172
      %p174 = scmp.ne.s32.totalorder %s163, %s164
      %p175 = scmp.eq.s32.totalorder %s28, 0
      %p176 = por %p174, %p175
      %p177 = scmp.ne.s32.totalorder %s163, %s164
      %p178 = scmp.eq.s32.totalorder %s29, 2
      %p179 = por %p177, %p178
      %p181 = scmp.ne.s32.totalorder %s164, %s180
      %p182 = scmp.eq.s32.totalorder %s29, 0
      %p183 = por %p181, %p182
      %s184 = ssub.s32 %s30, %s49
      %p185 = scmp.eq.s32.totalorder %s184, 0
      %s187 = sadd.s32 %s186, 1
      %s188 = scalar_select %p185, %s186, %s187
      %p191 = pneg %p185
      %p192 = scmp.eq.s32.totalorder %s23, 2
      %p193 = por %p191, %p192
      %p194 = scmp.ne.s32.totalorder %s186, %s189
      %p195 = scmp.eq.s32.totalorder %s23, 0
      %p196 = por %p194, %p195
      %p197 = scmp.ne.s32.totalorder %s186, %s189
      %p198 = scmp.eq.s32.totalorder %s28, 2
      %p199 = por %p197, %p198
      %p200 = scmp.ne.s32.totalorder %s189, %s190
      %p201 = scmp.eq.s32.totalorder %s28, 0
      %p202 = por %p200, %p201
      %p203 = scmp.ne.s32.totalorder %s189, %s190
      %p204 = scmp.eq.s32.totalorder %s29, 2
      %p205 = por %p203, %p204
      %p207 = scmp.ne.s32.totalorder %s190, %s206
      %p208 = scmp.eq.s32.totalorder %s29, 0
      %p209 = por %p207, %p208
      %s211 = sadd.s32 %s210, 1
      %p214 = scmp.eq.s32.totalorder %s23, 2
      %p215 = scmp.ne.s32.totalorder %s210, %s212
      %p216 = scmp.eq.s32.totalorder %s23, 0
      %p217 = por %p215, %p216
      %p218 = scmp.ne.s32.totalorder %s210, %s212
      %p219 = scmp.eq.s32.totalorder %s28, 2
      %p220 = por %p218, %p219
      %p221 = scmp.ne.s32.totalorder %s212, %s213
      %p222 = scmp.eq.s32.totalorder %s28, 0
      %p223 = por %p221, %p222
      %p224 = scmp.ne.s32.totalorder %s212, %s213
      %p225 = scmp.eq.s32.totalorder %s29, 2
      %p226 = por %p224, %p225
      %p228 = scmp.ne.s32.totalorder %s213, %s227
      %p229 = scmp.eq.s32.totalorder %s29, 0
      %p230 = por %p228, %p229
      %s231 = ssub.s32 %s30, %s49
      %s232 = ssub.s32 %s31, %s45
      %s233 = sor.u32 %s231, %s232
      %p234 = scmp.eq.s32.totalorder %s233, 0
      %s236 = sadd.s32 %s235, 1
      %s237 = scalar_select %p234, %s235, %s236
      %p240 = pneg %p234
      %p241 = scmp.eq.s32.totalorder %s23, 2
      %p242 = por %p240, %p241
      %p243 = scmp.ne.s32.totalorder %s235, %s238
      %p244 = scmp.eq.s32.totalorder %s23, 0
      %p245 = por %p243, %p244
      %p246 = scmp.ne.s32.totalorder %s235, %s238
      %p247 = scmp.eq.s32.totalorder %s28, 2
      %p248 = por %p246, %p247
      %p249 = scmp.ne.s32.totalorder %s238, %s239
      %p250 = scmp.eq.s32.totalorder %s28, 0
      %p251 = por %p249, %p250
      %p252 = scmp.ne.s32.totalorder %s238, %s239
      %p253 = scmp.eq.s32.totalorder %s29, 2
      %p254 = por %p252, %p253
      %p256 = scmp.ne.s32.totalorder %s239, %s255
      %p257 = scmp.eq.s32.totalorder %s29, 0
      %p258 = por %p256, %p257
      %p259 = scmp.le.s32.totalorder 1, %s23
      %p260 = scmp.lt.s32.totalorder %s23, 4
      %p261 = pnand %p259, %p260
      %p262 = pneg %p261
      // Predicated region
      $region9: #{hrgat_forward.21} parent=5 // pred_check
        _
      $region10: #{hrgat_forward.21} parent=5 // pred_check_branch
        %264 = sbr.rel (%p261) target = $region12
      $region11: #{hrgat_forward.21} parent=5 // pred_region
        %s265 = ssub.s32 %s23, 1
        // Predicated region
        $region13: #{hrgat_forward.21} parent=11 // pred_check
          %p266 = pneg %p68
        $region14: #{hrgat_forward.21} parent=11 // pred_check_branch
          %268 = sbr.rel (%p266) target = $region16
        $region15: #{hrgat_forward.21} parent=11 // pred_region
          %s269 = smul.u32 2, %s34
          %p270 = scmp.lt.s32.totalorder %s269, 1
          %s271 = scalar_select %p270, %s269, 1
          %s272 = smul.addr %s271, 4
          %s273 = scalar_lea.vmem %s1, %s272
          %s274 = smul.u32 2, %s34
        $region16: #{hrgat_forward.21} parent=11 // pred_fallthru
          _
        // Predicated region
        $region17: #{hrgat_forward.21} parent=11 // pred_check
          %p275 = pneg %p94
        $region18: #{hrgat_forward.21} parent=11 // pred_check_branch
          %277 = sbr.rel (%p275) target = $region20
        $region19: #{hrgat_forward.21} parent=11 // pred_region
          %s278 = smul.u32 2, %s35
          %p279 = scmp.lt.s32.totalorder %s278, 1
          %s280 = scalar_select %p279, %s278, 1
          %s281 = smul.addr %s280, 4
          %s282 = scalar_lea.vmem %s2, %s281
          %s283 = smul.u32 2, %s35
        $region20: #{hrgat_forward.21} parent=11 // pred_fallthru
          _
        // Predicated region
        $region21: #{hrgat_forward.21} parent=11 // pred_check
          %p284 = pneg %p223
        $region22: #{hrgat_forward.21} parent=11 // pred_check_branch
          %286 = sbr.rel (%p284) target = $region24
        $region23: #{hrgat_forward.21} parent=11 // pred_region
          %288 = vsyncadd [#allocation9], 0
          %s289 = sshll.u32 %s7, 4
          %s290 = int_to_ptr.hbm [resolvable:$true] %s289
          %s291 = sshll.u32 [#allocation8], 4
          %s292 = int_to_ptr.vmem [resolvable:$true] %s291
          %297 = dma.hbm_to_vmem [thread:$0]  %s290, 1024, %s292, [#allocation9], 64, 64, 4
        $region24: #{hrgat_forward.21} parent=11 // pred_fallthru
          _
      $region12: #{hrgat_forward.21} parent=5 // pred_fallthru
        _
      %p298 = scmp.lt.s32.totalorder %s23, 3
      // Predicated region
      $region25: #{hrgat_forward.21} parent=5 // pred_check
        %p299 = pneg %p298
      $region26: #{hrgat_forward.21} parent=5 // pred_check_branch
        %301 = sbr.rel (%p299) target = $region28
      $region27: #{hrgat_forward.21} parent=5 // pred_region
        // Predicated region
        $region29: #{hrgat_forward.21} parent=27 // pred_check
          %p302 = pneg %p114
        $region30: #{hrgat_forward.21} parent=27 // pred_check_branch
          %304 = sbr.rel (%p302) target = $region32
        $region31: #{hrgat_forward.21} parent=27 // pred_region
          %p305 = scmp.lt.s32.totalorder %s30, 2
          %s306 = scalar_select %p305, %s30, 2
          %s307 = smul.addr %s306, 2
          %s308 = scalar_lea.vmem %s3, %s307
        $region32: #{hrgat_forward.21} parent=27 // pred_fallthru
          _
        // Predicated region
        $region33: #{hrgat_forward.21} parent=27 // pred_check
          %p309 = pneg %p144
        $region34: #{hrgat_forward.21} parent=27 // pred_check_branch
          %311 = sbr.rel (%p309) target = $region36
        $region35: #{hrgat_forward.21} parent=27 // pred_region
          %s312 = smul.u32 2, %s31
          %p313 = scmp.lt.s32.totalorder %s30, 2
          %s314 = scalar_select %p313, %s30, 2
          %p315 = scmp.lt.s32.totalorder %s312, 1
          %s316 = scalar_select %p315, %s312, 1
          %p317 = scmp.lt.s32.totalorder %s32, 0
          %s318 = scalar_select %p317, %s32, 0
          %s319 = sadd.s32 %s318, %s316
          %s320 = smul.addr %s314, 2
          %s321 = sadd.s32 %s319, %s320
          %s322 = smul.addr %s321, 2
          %s323 = scalar_lea.vmem %s4, %s322
          %s324 = smul.u32 2, %s31
        $region36: #{hrgat_forward.21} parent=27 // pred_fallthru
          _
        // Predicated region
        $region37: #{hrgat_forward.21} parent=27 // pred_check
          %p325 = pneg %p170
        $region38: #{hrgat_forward.21} parent=27 // pred_check_branch
          %327 = sbr.rel (%p325) target = $region40
        $region39: #{hrgat_forward.21} parent=27 // pred_region
          %p328 = scmp.lt.s32.totalorder %s30, 2
          %s329 = scalar_select %p328, %s30, 2
          %s330 = scalar_lea.vmem %s5, %s329
        $region40: #{hrgat_forward.21} parent=27 // pred_fallthru
          _
        // Predicated region
        $region41: #{hrgat_forward.21} parent=27 // pred_check
          %p331 = pneg %p196
        $region42: #{hrgat_forward.21} parent=27 // pred_check_branch
          %333 = sbr.rel (%p331) target = $region44
        $region43: #{hrgat_forward.21} parent=27 // pred_region
          %p334 = scmp.lt.s32.totalorder %s30, 2
          %s335 = scalar_select %p334, %s30, 2
          %s336 = scalar_lea.vmem %s6, %s335
        $region44: #{hrgat_forward.21} parent=27 // pred_fallthru
          _
      $region28: #{hrgat_forward.21} parent=5 // pred_fallthru
        _
      %p337 = scmp.le.s32.totalorder 1, %s23
      %p338 = scmp.lt.s32.totalorder %s23, 4
      %p339 = pnand %p337, %p338
      %p340 = pneg %p339
      // Predicated region
      $region45: #{hrgat_forward.21} parent=5 // pred_check
        _
      $region46: #{hrgat_forward.21} parent=5 // pred_check_branch
        %342 = sbr.rel (%p339) target = $region48
      $region47: #{hrgat_forward.21} parent=5 // pred_region
        %s343 = ssub.s32 %s23, 1
        // Predicated region
        $region49: #{hrgat_forward.21} parent=47 // pred_check
          %p344 = pneg %p223
        $region50: #{hrgat_forward.21} parent=47 // pred_check_branch
          %346 = sbr.rel (%p344) target = $region52
        $region51: #{hrgat_forward.21} parent=47 // pred_region
          %348 = dma.done [#allocation9], 1024
        $region52: #{hrgat_forward.21} parent=47 // pred_fallthru
          _
        %s349 = smul.u32 2, %s34
        %p350 = scmp.lt.s32.totalorder %s349, 1
        %s351 = scalar_select %p350, %s349, 1
        %s352 = smul.addr %s351, 4
        %s353 = scalar_lea.vmem %s1, %s352
        %p354 = pneg %p68
        %p355 = pneg %p65
        %s356 = smul.u32 2, %s35
        %p357 = scmp.lt.s32.totalorder %s356, 1
        %s358 = scalar_select %p357, %s356, 1
        %s359 = smul.addr %s358, 4
        %s360 = scalar_lea.vmem %s2, %s359
        %p361 = pneg %p94
        %p362 = pneg %p91
        %p363 = scmp.lt.s32.totalorder %s33, 2
        %s364 = scalar_select %p363, %s33, 2
        %s365 = smul.addr %s364, 2
        %s366 = scalar_lea.vmem %s3, %s365
        %p367 = pneg %p120
        %p368 = pneg %p117
        %s369 = smul.u32 2, %s34
        %p370 = scmp.lt.s32.totalorder %s33, 2
        %s371 = scalar_select %p370, %s33, 2
        %p372 = scmp.lt.s32.totalorder %s369, 1
        %s373 = scalar_select %p372, %s369, 1
        %p374 = scmp.lt.s32.totalorder %s35, 0
        %s375 = scalar_select %p374, %s35, 0
        %s376 = sadd.s32 %s375, %s373
        %s377 = smul.addr %s371, 2
        %s378 = sadd.s32 %s376, %s377
        %s379 = smul.addr %s378, 2
        %s380 = scalar_lea.vmem %s4, %s379
        %p381 = pneg %p150
        %p382 = pneg %p147
        %p383 = scmp.lt.s32.totalorder %s33, 2
        %s384 = scalar_select %p383, %s33, 2
        %s385 = scalar_lea.vmem %s5, %s384
        %p386 = pneg %p176
        %p387 = pneg %p173
        %p388 = scmp.lt.s32.totalorder %s33, 2
        %s389 = scalar_select %p388, %s33, 2
        %s390 = scalar_lea.vmem %s6, %s389
        %p391 = pneg %p202
        %p392 = pneg %p199
        %p393 = pneg %p223
        %p394 = pneg %p220
        %p395 = pneg %p251
        %p396 = pneg %p248
        %s397 = smul.u32 2, %s34
        %p398 = scmp.lt.s32.totalorder %s33, 2
        %s399 = scalar_select %p398, %s33, 2
        %p400 = scmp.lt.s32.totalorder %s397, 1
        %s401 = scalar_select %p400, %s397, 1
        %s402 = smul.addr %s399, 2
        %s403 = sadd.s32 %s401, %s402
        %s404 = smul.addr %s403, 4
        %s405 = scalar_lea.vmem %s8, %s404
        %s406 = smul.u32 2, %s34
        %p407 = scmp.lt.s32.totalorder %s406, 1
        %s408 = scalar_select %p407, %s406, 1
        %s409 = smul.addr %s408, 4
        %s410 = scalar_lea.vmem %s1, %s409
        %s411 = smul.u32 2, %s34
        %s412 = smul.u32 2, %s35
        %p413 = scmp.lt.s32.totalorder %s412, 1
        %s414 = scalar_select %p413, %s412, 1
        %s415 = smul.addr %s414, 4
        %s416 = scalar_lea.vmem %s2, %s415
        %s417 = smul.u32 2, %s35
        %p418 = scmp.lt.s32.totalorder %s33, 2
        %s419 = scalar_select %p418, %s33, 2
        %s420 = smul.addr %s419, 2
        %s421 = scalar_lea.vmem %s3, %s420
        %s422 = smul.u32 2, %s34
        %p423 = scmp.lt.s32.totalorder %s33, 2
        %s424 = scalar_select %p423, %s33, 2
        %p425 = scmp.lt.s32.totalorder %s422, 1
        %s426 = scalar_select %p425, %s422, 1
        %p427 = scmp.lt.s32.totalorder %s35, 0
        %s428 = scalar_select %p427, %s35, 0
        %s429 = sadd.s32 %s428, %s426
        %s430 = smul.addr %s424, 2
        %s431 = sadd.s32 %s429, %s430
        %s432 = smul.addr %s431, 2
        %s433 = scalar_lea.vmem %s4, %s432
        %s434 = smul.u32 2, %s34
        %p435 = scmp.lt.s32.totalorder %s33, 2
        %s436 = scalar_select %p435, %s33, 2
        %s437 = scalar_lea.vmem %s5, %s436
        %p438 = scmp.lt.s32.totalorder %s33, 2
        %s439 = scalar_select %p438, %s33, 2
        %s440 = scalar_lea.vmem %s6, %s439
        %s441 = smul.u32 2, %s34
        %p442 = scmp.lt.s32.totalorder %s33, 2
        %s443 = scalar_select %p442, %s33, 2
        %p444 = scmp.lt.s32.totalorder %s441, 1
        %s445 = scalar_select %p444, %s441, 1
        %s446 = smul.addr %s443, 2
        %s447 = sadd.s32 %s445, %s446
        %s448 = smul.addr %s447, 4
        %s449 = scalar_lea.vmem %s8, %s448
        %s450 = smul.u32 2, %s34
        %p454 = scmp.eq.s32.totalorder %s35, 0
        // Predicated region
        $region53: #{hrgat_forward.21} parent=47 // pred_check
          %p455 = pneg %p454
        $region54: #{hrgat_forward.21} parent=47 // pred_check_branch
          %457 = sbr.rel (%p455) target = $region56
        $region55: #{hrgat_forward.21} parent=47 // pred_region
          %vm458 = vcmask 7168
          %459 = vst.msk [vmem:[#allocation3] sm:$0xff] %vm458, -1e+30
          %460 = vst.msk [vmem:[#allocation3 + $0x8] sm:$0xff] %vm458, -1e+30
          %461 = vst.msk [vmem:[#allocation4] sm:$0xff] %vm458, 0.0
          %462 = vst.msk [vmem:[#allocation4 + $0x8] sm:$0xff] %vm458, 0.0
          %463 = vst [vmem:[#allocation5] sm:$0xff] 0.0
          %464 = vst [vmem:[#allocation5 + $0x8] sm:$0xff] 0.0
          %v465 = vld [vmem:[%s410] sm:$0xf]
          %v466 = vld [vmem:[%s410 + $0x4] sm:$0xf]
          %v467 = vunpack.c.l.bf16 %v465
          %v468 = vunpack.c.l.bf16 %v466
          %v469 = vld [vmem:[%s421] sm:$0x1]
          %v470 = vperm.slane %v469, 0
          %v471 = vmul.f32 %v467, %v470
          %v472 = vmul.f32 %v468, %v470
          %473 = vadd.xlane.f32.xlu0 %v471
          %v474 = vpop.xlane.xlu0 %473
          %475 = vadd.xlane.f32.xlu0 %v472
          %v476 = vpop.xlane.xlu0 %475
          %477 = vst.msk [vmem:[#allocation2] sm:$0xff] %vm458, %v474
          %478 = vst.msk [vmem:[#allocation2 + $0x8] sm:$0xff] %vm458, %v476
        $region56: #{hrgat_forward.21} parent=47 // pred_fallthru
          _
        %s479 = sadd.s32 %s33, %s34
        %s480 = sadd.s32 %s479, %s35
        %s481 = sld [smem:[#allocation7 + %s480]]
        %p482 = scmp.gt.s32.totalorder %s481, 0
        // Predicated region
        $region57: #{hrgat_forward.21} parent=47 // pred_check
          %p483 = pneg %p482
        $region58: #{hrgat_forward.21} parent=47 // pred_check_branch
          %485 = sbr.rel (%p483) target = $region60
        $region59: #{hrgat_forward.21} parent=47 // pred_region
          %v486 = vld [vmem:[%s416] sm:$0xf]
          %v487 = vld [vmem:[%s416 + $0x4] sm:$0xf]
          %v488 = vld [vmem:[%s433] sm:$0x3]
          %v489 = vld [vmem:[%s433 + $0x2] sm:$0x3]
          %vm490 = vnez %v488
          %vm491 = vnez %v489
          %v492 = vld [vmem:[%s421 + $0x1] sm:$0x1]
          %v493 = vpack.c.bf16 %v492, %v492
          %v496 = vunpack.c.l.b16 %v486
          %v497 = vunpack.c.l.b16 %v487
          %v498 = vpack.c.b16 %v497, %v496
          %500 = vmatpush.bf16.xpose.msra.mxu0 0
          %501 = vmatpush.bf16.xpose.msra.mxu0 0
          %502 = vmatpush.bf16.xpose.msra.mxu0 0
          %503 = vmatpush.bf16.xpose.msra.mxu0 0
          %504 = vmatpush.bf16.xpose.msra.mxu0 0
          %505 = vmatpush.bf16.xpose.msra.mxu0 0
          %506 = vmatpush.bf16.xpose.msra.mxu0 0
          %507 = vmatpush.bf16.xpose.msra.mxu0 %v498
          %508 = vmatmul.bf16.gmra.mxu0 %v493
          %v509 = vpop.f32.mrf.mxu0
          %v510 = vadd.f32 0.0, %v509
          %v511 = vpop.f32.mrf.mxu0
          %512 = vdwg.mxu0
          %v513 = vld [vmem:[#allocation2] sm:$0xff]
          %v514 = vld [vmem:[#allocation2 + $0x8] sm:$0xff]
          %516 = vset.pattern.permute.xlu0 0
          %517 = vperm.xlu0 %516, %v513
          %v518 = vpop.permute.xlu0 %517
          %521 = vset.pattern.permute.xlu0 0
          %522 = vperm.xlu0 %521, %v514
          %v523 = vpop.permute.xlu0 %522
          %v525 = vperm.slane %v510, 0
          %v526 = vadd.f32 %v518, %v525
          %v527 = vadd.f32 %v523, %v525
          %v528 = vsel %vm490, 16843009, 0
          %v529 = vsel %vm491, 16843009, 0
          %v530 = vunpack.c.0.s8 %v528
          %v531 = vunpack.c.0.s8 %v529
          %vm532 = vcmp.ne.s32.totalorder %v530, 0
          %vm533 = vcmp.ne.s32.totalorder %v531, 0
          %v534 = vsel %vm532, %v526, -1e+30
          %v535 = vsel %vm533, %v527, -1e+30
          %v536 = vld [vmem:[#allocation3] sm:$0xff]
          %v537 = vld [vmem:[#allocation3 + $0x8] sm:$0xff]
          %vm538 = vcmask 130048
          %v539 = vsel %vm538, %v534, -inf
          %540 = vmax.xlane.f32.xlu0 %v539
          %v541 = vpop.xlane.xlu0 %540
          %v542 = vsel %vm538, %v535, -inf
          %543 = vmax.xlane.f32.xlu0 %v542
          %v544 = vpop.xlane.xlu0 %543
          %v545 = vmax.f32 %v536, %v541
          %v546 = vmax.f32 %v537, %v544
          %v547 = vsub.f32 %v536, %v545
          %v548 = vsub.f32 %v537, %v546
          %v549 = vmul.f32 %v547, 1.442695
          %v550 = vpow.pop %v549
          %v551 = vmul.f32 %v548, 1.442695
          %v552 = vpow.pop %v551
          %554 = vset.pattern.permute.xlu0 0
          %555 = vperm.xlu0 %554, %v545
          %v556 = vpop.permute.xlu0 %555
          %559 = vset.pattern.permute.xlu0 0
          %560 = vperm.xlu0 %559, %v546
          %v561 = vpop.permute.xlu0 %560
          %v563 = vsub.f32 %v534, %v556
          %v564 = vsub.f32 %v535, %v561
          %v565 = vmul.f32 %v563, 1.442695
          %v566 = vpow.pop %v565
          %v567 = vmul.f32 %v564, 1.442695
          %v568 = vpow.pop %v567
          %v569 = vsel %vm532, %v566, 0.0
          %v570 = vsel %vm533, %v568, 0.0
          %v571 = vld [vmem:[#allocation4] sm:$0xff]
          %v572 = vld [vmem:[#allocation4 + $0x8] sm:$0xff]
          %v573 = vmul.f32 %v550, %v571
          %v574 = vmul.f32 %v552, %v572
          %v575 = vsel %vm538, %v569, 0.0
          %576 = vadd.xlane.f32.xlu0 %v575
          %v577 = vpop.xlane.xlu0 %576
          %v578 = vsel %vm538, %v570, 0.0
          %579 = vadd.xlane.f32.xlu0 %v578
          %v580 = vpop.xlane.xlu0 %579
          %v581 = vadd.f32 %v573, %v577
          %v582 = vadd.f32 %v574, %v580
          %vm583 = vcmask 7168
          %584 = vst.msk [vmem:[#allocation4] sm:$0xff] %vm583, %v581
          %585 = vst.msk [vmem:[#allocation4 + $0x8] sm:$0xff] %vm583, %v582
          %v586 = vld [vmem:[#allocation5] sm:$0xff]
          %v587 = vld [vmem:[#allocation5 + $0x8] sm:$0xff]
          %589 = vset.pattern.permute.xlu0 0
          %590 = vperm.xlu0 %589, %v550
          %v591 = vpop.permute.xlu0 %590
          %594 = vset.pattern.permute.xlu0 0
          %595 = vperm.xlu0 %594, %v552
          %v596 = vpop.permute.xlu0 %595
          %v598 = vmul.f32 %v591, %v586
          %v599 = vmul.f32 %v596, %v587
          %v600 = vpack.c.bf16 %v570, %v569
          %v602 = vsel %vm538, %v600, 0
          %604 = vmatpush.bf16.msra.mxu0 0
          %605 = vmatpush.bf16.msra.mxu0 0
          %606 = vmatpush.bf16.msra.mxu0 0
          %607 = vmatpush.bf16.msra.mxu0 0
          %608 = vmatpush.bf16.msra.mxu0 0
          %609 = vmatpush.bf16.msra.mxu0 0
          %610 = vmatpush.bf16.msra.mxu0 0
          %611 = vmatpush.bf16.msra.mxu0 %v498
          %612 = vmatmul.bf16.gmra.mxu0 %v602
          %v613 = vpop.f32.mrf.mxu0
          %v614 = vadd.f32 0.0, %v613
          %v615 = vpop.f32.mrf.mxu0
          %v616 = vadd.f32 0.0, %v615
          %617 = vdwg.mxu0
          %v618 = vadd.f32 %v598, %v614
          %v619 = vadd.f32 %v599, %v616
          %620 = vst [vmem:[#allocation5] sm:$0xff] %v618
          %621 = vst [vmem:[#allocation5 + $0x8] sm:$0xff] %v619
          %622 = vst.msk [vmem:[#allocation3] sm:$0xff] %vm583, %v545
          %623 = vst.msk [vmem:[#allocation3 + $0x8] sm:$0xff] %vm583, %v546
        $region60: #{hrgat_forward.21} parent=47 // pred_fallthru
          _
        // Predicated region
        $region61: #{hrgat_forward.21} parent=47 // pred_check
          %p624 = pneg %p454
        $region62: #{hrgat_forward.21} parent=47 // pred_check_branch
          %626 = sbr.rel (%p624) target = $region64
        $region63: #{hrgat_forward.21} parent=47 // pred_region
          %v627 = vld [vmem:[#allocation4] sm:$0xff]
          %v628 = vld [vmem:[#allocation4 + $0x8] sm:$0xff]
          %v629 = vadd.f32 %v627, 1e-16
          %v630 = vadd.f32 %v628, 1e-16
          %v631 = vrcp.pop %v629
          %v632 = vrcp.pop %v630
          %v633 = vld [vmem:[#allocation5] sm:$0xff]
          %v634 = vld [vmem:[#allocation5 + $0x8] sm:$0xff]
          %636 = vset.pattern.permute.xlu0 0
          %637 = vperm.xlu0 %636, %v631
          %v638 = vpop.permute.xlu0 %637
          %641 = vset.pattern.permute.xlu0 0
          %642 = vperm.xlu0 %641, %v632
          %v643 = vpop.permute.xlu0 %642
          %v645 = vmul.f32 %v633, %v638
          %v646 = vmul.f32 %v634, %v643
          %v647 = vlaneseq
          %v648 = vand.u32 %v647, 127
          %vm649 = vcmp.lt.s32.totalorder %v648, 32
          %v650 = vld [vmem:[%s437] sm:$0x1]
          %v651 = vld [vmem:[%s440] sm:$0x1]
          %v652 = vsel %vm649, 1, 0
          %vm653 = vcmp.eq.s32.totalorder %v652, 1
          %v654 = vsel %vm653, %v645, 0.0
          %v655 = vsel %vm653, %v646, 0.0
          %656 = vadd.xlane.f32.xlu0 %v654
          %v657 = vpop.xlane.xlu0 %656
          %658 = vadd.xlane.f32.xlu0 %v655
          %v659 = vpop.xlane.xlu0 %658
          %v660 = vmul.f32 %v657, 0.03125
          %v661 = vmul.f32 %v659, 0.03125
          %v662 = vsub.f32 %v645, %v660
          %v663 = vsub.f32 %v646, %v661
          %v664 = vsel %vm653, %v662, 0.0
          %v665 = vsel %vm653, %v663, 0.0
          %v666 = vmul.f32 %v664, %v664
          %v667 = vmul.f32 %v665, %v665
          %668 = vadd.xlane.f32.xlu0 %v666
          %v669 = vpop.xlane.xlu0 %668
          %670 = vadd.xlane.f32.xlu0 %v667
          %v671 = vpop.xlane.xlu0 %670
          %v672 = vmul.f32 %v669, 0.03125
          %v673 = vmul.f32 %v671, 0.03125
          %v674 = vadd.f32 %v672, 1e-05
          %v675 = vadd.f32 %v673, 1e-05
          %v676 = vrsqrt.pop %v674
          %v677 = vmul.f32 %v676, %v674
          %v678 = vmul.f32 %v677, %v676
          %v679 = vmul.f32 0.5, %v678
          %v680 = vsub.f32 1.5, %v679
          %v681 = vmul.f32 %v676, %v680
          %vm682 = vweird.f32 %v674
          %vm683 = vweird.f32 %v676
          %vm684 = vmor %vm682, %vm683
          %v685 = vsel %vm684, %v676, %v681
          %v686 = vrsqrt.pop %v675
          %v687 = vmul.f32 %v686, %v675
          %v688 = vmul.f32 %v687, %v686
          %v689 = vmul.f32 0.5, %v688
          %v690 = vsub.f32 1.5, %v689
          %v691 = vmul.f32 %v686, %v690
          %vm692 = vweird.f32 %v675
          %vm693 = vweird.f32 %v686
          %vm694 = vmor %vm692, %vm693
          %v695 = vsel %vm694, %v686, %v691
          %v696 = vmul.f32 %v664, %v685
          %v697 = vmul.f32 %v665, %v695
          %v699 = vperm.slane %v650, 0
          %v701 = vmul.f32 %v696, %v699
          %v702 = vmul.f32 %v697, %v699
          %v704 = vperm.slane %v651, 0
          %v706 = vadd.f32 %v701, %v704
          %v707 = vadd.f32 %v702, %v704
          %vm708 = vcmp.gt.f32.partialorder %v706, 0.0
          %vm709 = vcmp.gt.f32.partialorder %v707, 0.0
          %v710 = vmul.f32 %v706, 0.2
          %v711 = vmul.f32 %v707, 0.2
          %v712 = vsel %vm708, %v706, %v710
          %v713 = vsel %vm709, %v707, %v711
          %v714 = vpack.c.bf16 %v713, %v712
          %v715 = vld [vmem:[#allocation8] sm:$0xf]
          %v716 = vld [vmem:[#allocation8 + $0x4] sm:$0xf]
          %v717 = vld [vmem:[#allocation8 + $0x8] sm:$0xf]
          %v718 = vld [vmem:[#allocation8 + $0xc] sm:$0xf]
          %v719 = vld [vmem:[#allocation8 + $0x10] sm:$0xf]
          %v720 = vld [vmem:[#allocation8 + $0x14] sm:$0xf]
          %v721 = vld [vmem:[#allocation8 + $0x18] sm:$0xf]
          %v722 = vld [vmem:[#allocation8 + $0x1c] sm:$0xf]
          %v723 = vld [vmem:[#allocation8 + $0x20] sm:$0xf]
          %v724 = vld [vmem:[#allocation8 + $0x24] sm:$0xf]
          %v725 = vld [vmem:[#allocation8 + $0x28] sm:$0xf]
          %v726 = vld [vmem:[#allocation8 + $0x2c] sm:$0xf]
          %v727 = vld [vmem:[#allocation8 + $0x30] sm:$0xf]
          %v728 = vld [vmem:[#allocation8 + $0x34] sm:$0xf]
          %v729 = vld [vmem:[#allocation8 + $0x38] sm:$0xf]
          %v730 = vld [vmem:[#allocation8 + $0x3c] sm:$0xf]
          %v747 = vunpack.c.l.b16 %v715
          %v748 = vunpack.c.l.b16 %v716
          %v749 = vunpack.c.l.b16 %v717
          %v750 = vunpack.c.l.b16 %v718
          %v751 = vunpack.c.l.b16 %v719
          %v752 = vunpack.c.l.b16 %v720
          %v753 = vunpack.c.l.b16 %v721
          %v754 = vunpack.c.l.b16 %v722
          %v755 = vunpack.c.l.b16 %v723
          %v756 = vunpack.c.l.b16 %v724
          %v757 = vunpack.c.l.b16 %v725
          %v758 = vunpack.c.l.b16 %v726
          %v759 = vunpack.c.l.b16 %v727
          %v760 = vunpack.c.l.b16 %v728
          %v761 = vunpack.c.l.b16 %v729
          %v762 = vunpack.c.l.b16 %v730
          %v763 = vpack.c.b16 %v748, %v747
          %v764 = vpack.c.b16 %v750, %v749
          %v765 = vpack.c.b16 %v752, %v751
          %v766 = vpack.c.b16 %v754, %v753
          %v767 = vpack.c.b16 %v756, %v755
          %v768 = vpack.c.b16 %v758, %v757
          %v769 = vpack.c.b16 %v760, %v759
          %v770 = vpack.c.b16 %v762, %v761
          %779 = vmatpush.bf16.msra.mxu0 %v770
          %780 = vmatpush.bf16.msra.mxu0 %v769
          %781 = vmatpush.bf16.msra.mxu0 %v768
          %782 = vmatpush.bf16.msra.mxu0 %v767
          %783 = vmatpush.bf16.msra.mxu0 %v766
          %784 = vmatpush.bf16.msra.mxu0 %v765
          %785 = vmatpush.bf16.msra.mxu0 %v764
          %786 = vmatpush.bf16.msra.mxu0 %v763
          %787 = vmatmul.bf16.gmra.mxu0 %v714
          %v788 = vpop.f32.mrf.mxu0
          %v789 = vadd.f32 0.0, %v788
          %v790 = vpop.f32.mrf.mxu0
          %v791 = vadd.f32 0.0, %v790
          %792 = vdwg.mxu0
          %v793 = vpack.c.bf16 %v789, %v789
          %v794 = vpack.c.bf16 %v791, %v791
          %795 = vst [vmem:[%s449] sm:$0xf] %v793
          %796 = vst [vmem:[%s449 + $0x4] sm:$0xf] %v794
        $region64: #{hrgat_forward.21} parent=47 // pred_fallthru
          _
        %s797 = smul.u32 2, %s34
        %p798 = scmp.lt.s32.totalorder %s33, 2
        %s799 = scalar_select %p798, %s33, 2
        %p800 = scmp.lt.s32.totalorder %s797, 1
        %s801 = scalar_select %p800, %s797, 1
        %s802 = smul.addr %s799, 2
        %s803 = sadd.s32 %s801, %s802
        %s804 = smul.addr %s803, 4
        %s805 = scalar_lea.vmem %s8, %s804
        // Predicated region
        $region65: #{hrgat_forward.21} parent=47 // pred_check
          %p806 = pneg %p248
        $region66: #{hrgat_forward.21} parent=47 // pred_check_branch
          %808 = sbr.rel (%p806) target = $region68
        $region67: #{hrgat_forward.21} parent=47 // pred_region
          %s809 = smul.u32 2, %s34
        $region68: #{hrgat_forward.21} parent=47 // pred_fallthru
          _
      $region48: #{hrgat_forward.21} parent=5 // pred_fallthru
        _
      %p810 = scmp.le.s32.totalorder 2, %s23
      // Predicated region
      $region69: #{hrgat_forward.21} parent=5 // pred_check
        %p811 = pneg %p810
      $region70: #{hrgat_forward.21} parent=5 // pred_check_branch
        %813 = sbr.rel (%p811) target = $region72
      $region71: #{hrgat_forward.21} parent=5 // pred_region
        %s814 = ssub.s32 %s23, 2
        // Predicated region
        $region73: #{hrgat_forward.21} parent=71 // pred_check
          %p815 = pneg %p254
        $region74: #{hrgat_forward.21} parent=71 // pred_check_branch
          %817 = sbr.rel (%p815) target = $region76
        $region75: #{hrgat_forward.21} parent=71 // pred_region
          %s818 = smul.u32 2, %s37
          %p819 = scmp.lt.s32.totalorder %s36, 2
          %s820 = scalar_select %p819, %s36, 2
          %p821 = scmp.lt.s32.totalorder %s818, 1
          %s822 = scalar_select %p821, %s818, 1
          %s823 = smul.addr %s820, 2
          %s824 = sadd.s32 %s822, %s823
          %s825 = smul.addr %s824, 4
          %s826 = scalar_lea.vmem %s8, %s825
        $region76: #{hrgat_forward.21} parent=71 // pred_fallthru
          _
      $region72: #{hrgat_forward.21} parent=5 // pred_fallthru
        _
    $region6: #{hrgat_forward.21} parent=1 // loop_footer
      %s27 = sadd.s32 1, %s23
    $region7: #{hrgat_forward.21} parent=1 // loop_footer_branch
      %22 = sbr.rel target = $region3
    $region8: #{hrgat_forward.21} parent=1 // loop_exit
      _
    %827 = vsyncpa [#allocation9], 1
    %s828 = scalar_lea.sflag [#allocation9], 1
    %829 = vsyncpa %s828, 1

// kernel: hrgat_forward.23
$region0: #{hrgat_forward.23}
  #allocation0 [shape = 'u32[]', space=smem, size = 0x4, offset = 0x4, fixed_abs, tag = 'smem constant byte address 0x4 - core index']
  #allocation1 [shape = 'u32[72,128]{1,0:T(1,128)}', space=vmem, size = 0x9000, scoped, tag = 'internal scratch']
  %s0 = inlined_call_operand.vmem [shape: bf16[12,128], index: 0, kind: input, shape index: {}]
  %s1 = inlined_call_operand.hbm [shape: bf16[128,128], index: 1, kind: input, shape index: {}]
  %s2 = inlined_call_operand.vmem [shape: bf16[12,128], index: 2, kind: output, shape index: {}]
  %s3 = sld [smem:[#allocation0]]
  $region22: #{hrgat_forward.23} parent=0
    _
  %s5 = ssub.s32 1, %s3
  %s6 = scalar_select 0, %s5, %s3
  $region1: #{hrgat_forward.23} parent=0
    #allocation2 [shape = 'u8[32768]{0}', space=vmem, size = 0x8000, scoped, tag = 'input window, operand 1, single buffered']
    #allocation3 [shape = 's32[1]{0}', space=sflag, size = 0x4, scoped, tag = 'scoped memory for hrgat_forward.23']
    %7 = vsyncpa [#allocation3], 0
    // Predicated region
    $region2: #{hrgat_forward.23} parent=1 // pred_check
      _
    $region3: #{hrgat_forward.23} parent=1 // pred_check_branch
      %9 = sbr.rel (0) target = $region5
    $region4: #{hrgat_forward.23} parent=1 // pred_region
      _
    $region5: #{hrgat_forward.23} parent=1 // pred_fallthru
      _
    // Predicated region
    $region6: #{hrgat_forward.23} parent=1 // pred_check
      _
    $region7: #{hrgat_forward.23} parent=1 // pred_check_branch
      %11 = sbr.rel (0) target = $region9
    $region8: #{hrgat_forward.23} parent=1 // pred_region
      %13 = vsyncadd [#allocation3], 0
      %s14 = sshll.u32 %s1, 4
      %s15 = int_to_ptr.hbm [resolvable:$true] %s14
      %s16 = sshll.u32 [#allocation2], 4
      %s17 = int_to_ptr.vmem [resolvable:$true] %s16
      %22 = dma.hbm_to_vmem [thread:$0]  %s15, 1024, %s17, [#allocation3], 64, 64, 4
    $region9: #{hrgat_forward.23} parent=1 // pred_fallthru
      _
    // Predicated region
    $region10: #{hrgat_forward.23} parent=1 // pred_check
      _
    $region11: #{hrgat_forward.23} parent=1 // pred_check_branch
      %24 = sbr.rel (0) target = $region13
    $region12: #{hrgat_forward.23} parent=1 // pred_region
      %26 = dma.done [#allocation3], 1024
    $region13: #{hrgat_forward.23} parent=1 // pred_fallthru
      _
    %v27 = vld [vmem:[%s0] sm:$0xf]
    %v28 = vld [vmem:[%s0 + $0x4] sm:$0x3]
    %v29 = vld [vmem:[#allocation2] sm:$0xf]
    %v30 = vld [vmem:[#allocation2 + $0x4] sm:$0xf]
    %v31 = vld [vmem:[#allocation2 + $0x8] sm:$0xf]
    %v32 = vld [vmem:[#allocation2 + $0xc] sm:$0xf]
    %v33 = vld [vmem:[#allocation2 + $0x10] sm:$0xf]
    %v34 = vld [vmem:[#allocation2 + $0x14] sm:$0xf]
    %v35 = vld [vmem:[#allocation2 + $0x18] sm:$0xf]
    %v36 = vld [vmem:[#allocation2 + $0x1c] sm:$0xf]
    %v37 = vld [vmem:[#allocation2 + $0x20] sm:$0xf]
    %v38 = vld [vmem:[#allocation2 + $0x24] sm:$0xf]
    %v39 = vld [vmem:[#allocation2 + $0x28] sm:$0xf]
    %v40 = vld [vmem:[#allocation2 + $0x2c] sm:$0xf]
    %v41 = vld [vmem:[#allocation2 + $0x30] sm:$0xf]
    %v42 = vld [vmem:[#allocation2 + $0x34] sm:$0xf]
    %v43 = vld [vmem:[#allocation2 + $0x38] sm:$0xf]
    %v44 = vld [vmem:[#allocation2 + $0x3c] sm:$0xf]
    %v47 = vunpack.c.l.b16 %v27
    %v48 = vunpack.c.l.b16 %v28
    %v49 = vpack.c.b16 %v48, %v47
    %v67 = vunpack.c.l.b16 %v29
    %v68 = vunpack.c.l.b16 %v30
    %v69 = vunpack.c.l.b16 %v31
    %v70 = vunpack.c.l.b16 %v32
    %v71 = vunpack.c.l.b16 %v33
    %v72 = vunpack.c.l.b16 %v34
    %v73 = vunpack.c.l.b16 %v35
    %v74 = vunpack.c.l.b16 %v36
    %v75 = vunpack.c.l.b16 %v37
    %v76 = vunpack.c.l.b16 %v38
    %v77 = vunpack.c.l.b16 %v39
    %v78 = vunpack.c.l.b16 %v40
    %v79 = vunpack.c.l.b16 %v41
    %v80 = vunpack.c.l.b16 %v42
    %v81 = vunpack.c.l.b16 %v43
    %v82 = vunpack.c.l.b16 %v44
    %v83 = vpack.c.b16 %v68, %v67
    %v84 = vpack.c.b16 %v70, %v69
    %v85 = vpack.c.b16 %v72, %v71
    %v86 = vpack.c.b16 %v74, %v73
    %v87 = vpack.c.b16 %v76, %v75
    %v88 = vpack.c.b16 %v78, %v77
    %v89 = vpack.c.b16 %v80, %v79
    %v90 = vpack.c.b16 %v82, %v81
    %99 = vmatpush.bf16.msra.mxu0 %v90
    %100 = vmatpush.bf16.msra.mxu0 %v89
    %101 = vmatpush.bf16.msra.mxu0 %v88
    %102 = vmatpush.bf16.msra.mxu0 %v87
    %103 = vmatpush.bf16.msra.mxu0 %v86
    %104 = vmatpush.bf16.msra.mxu0 %v85
    %105 = vmatpush.bf16.msra.mxu0 %v84
    %106 = vmatpush.bf16.msra.mxu0 %v83
    %107 = vmatmul.bf16.gmra.mxu0 %v49
    %v108 = vpop.f32.mrf.mxu0
    %v109 = vadd.f32 0.0, %v108
    %v110 = vpop.f32.mrf.mxu0
    %v111 = vadd.f32 0.0, %v110
    %112 = vdwg.mxu0
    %v113 = vpack.c.bf16 %v109, %v109
    %v114 = vpack.c.bf16 %v111, %v111
    %115 = vst [vmem:[%s2] sm:$0xf] %v113
    %116 = vst [vmem:[%s2 + $0x4] sm:$0x3] %v114
    // Predicated region
    $region14: #{hrgat_forward.23} parent=1 // pred_check
      _
    $region15: #{hrgat_forward.23} parent=1 // pred_check_branch
      %118 = sbr.rel (0) target = $region17
    $region16: #{hrgat_forward.23} parent=1 // pred_region
      _
    $region17: #{hrgat_forward.23} parent=1 // pred_fallthru
      _
    // Predicated region
    $region18: #{hrgat_forward.23} parent=1 // pred_check
      _
    $region19: #{hrgat_forward.23} parent=1 // pred_check_branch
      %120 = sbr.rel (0) target = $region21
    $region20: #{hrgat_forward.23} parent=1 // pred_region
      _
    $region21: #{hrgat_forward.23} parent=1 // pred_fallthru
      _
    %121 = vsyncpa [#allocation3], 1

// kernel: hrgat_forward.25
$region0: #{hrgat_forward.25}
  #allocation0 [shape = 'u32[]', space=smem, size = 0x4, offset = 0x4, fixed_abs, tag = 'smem constant byte address 0x4 - core index']
  #allocation1 [shape = 'u32[72,128]{1,0:T(1,128)}', space=vmem, size = 0x9000, scoped, tag = 'internal scratch']
  %s0 = inlined_call_operand.vmem [shape: bf16[2,12,128], index: 0, kind: input, shape index: {}]
  %s1 = inlined_call_operand.vmem [shape: bf16[12,128], index: 1, kind: input, shape index: {}]
  %s2 = inlined_call_operand.vmem [shape: f32[2,128], index: 2, kind: input, shape index: {}]
  %s3 = inlined_call_operand.vmem [shape: f32[2], index: 3, kind: input, shape index: {}]
  %s4 = inlined_call_operand.vmem [shape: f32[2], index: 4, kind: input, shape index: {}]
  %s5 = inlined_call_operand.vmem [shape: f32[1,128], index: 5, kind: input, shape index: {}]
  %s6 = inlined_call_operand.vmem [shape: f32[1,128], index: 6, kind: input, shape index: {}]
  %s7 = inlined_call_operand.vmem [shape: bf16[12,128], index: 7, kind: output, shape index: {}]
  %s8 = sld [smem:[#allocation0]]
  $region46: #{hrgat_forward.25} parent=0
    _
  %s10 = ssub.s32 1, %s8
  %s11 = scalar_select 0, %s10, %s8
  $region1: #{hrgat_forward.25} parent=0
    #allocation2 [shape = 'u8[512]{0}', space=smem, size = 0x200, scoped, tag = 'input window, operand 3, single buffered']
    #allocation3 [shape = 's32[1]{0}', space=sflag, size = 0x4, scoped, tag = 'scoped memory for hrgat_forward.25']
    #allocation4 [shape = 'u8[512]{0}', space=smem, size = 0x200, scoped, tag = 'input window, operand 4, single buffered']
    #allocation5 [shape = 's32[1]{0}', space=sflag, size = 0x4, scoped, tag = 'scoped memory for hrgat_forward.25']
    %12 = vsyncpa [#allocation3], 0
    %13 = vsyncpa [#allocation5], 0
    // Predicated region
    $region2: #{hrgat_forward.25} parent=1 // pred_check
      _
    $region3: #{hrgat_forward.25} parent=1 // pred_check_branch
      %15 = sbr.rel (0) target = $region5
    $region4: #{hrgat_forward.25} parent=1 // pred_region
      _
    $region5: #{hrgat_forward.25} parent=1 // pred_fallthru
      _
    // Predicated region
    $region6: #{hrgat_forward.25} parent=1 // pred_check
      _
    $region7: #{hrgat_forward.25} parent=1 // pred_check_branch
      %17 = sbr.rel (0) target = $region9
    $region8: #{hrgat_forward.25} parent=1 // pred_region
      _
    $region9: #{hrgat_forward.25} parent=1 // pred_fallthru
      _
    // Predicated region
    $region10: #{hrgat_forward.25} parent=1 // pred_check
      _
    $region11: #{hrgat_forward.25} parent=1 // pred_check_branch
      %19 = sbr.rel (0) target = $region13
    $region12: #{hrgat_forward.25} parent=1 // pred_region
      _
    $region13: #{hrgat_forward.25} parent=1 // pred_fallthru
      _
    // Predicated region
    $region14: #{hrgat_forward.25} parent=1 // pred_check
      _
    $region15: #{hrgat_forward.25} parent=1 // pred_check_branch
      %21 = sbr.rel (0) target = $region17
    $region16: #{hrgat_forward.25} parent=1 // pred_region
      %23 = vsyncadd [#allocation3], 0
      %s25 = sshll.u32 %s3, 4
      %s26 = int_to_ptr.vmem [resolvable:$true] %s25
      %28 = dma.vmem_to_smem %s26, 16, [#allocation2], [#allocation3]
    $region17: #{hrgat_forward.25} parent=1 // pred_fallthru
      _
    // Predicated region
    $region18: #{hrgat_forward.25} parent=1 // pred_check
      _
    $region19: #{hrgat_forward.25} parent=1 // pred_check_branch
      %30 = sbr.rel (0) target = $region21
    $region20: #{hrgat_forward.25} parent=1 // pred_region
      %32 = vsyncadd [#allocation5], 0
      %s34 = sshll.u32 %s4, 4
      %s35 = int_to_ptr.vmem [resolvable:$true] %s34
      %37 = dma.vmem_to_smem %s35, 16, [#allocation4], [#allocation5]
    $region21: #{hrgat_forward.25} parent=1 // pred_fallthru
      _
    // Predicated region
    $region22: #{hrgat_forward.25} parent=1 // pred_check
      _
    $region23: #{hrgat_forward.25} parent=1 // pred_check_branch
      %39 = sbr.rel (0) target = $region25
    $region24: #{hrgat_forward.25} parent=1 // pred_region
      _
    $region25: #{hrgat_forward.25} parent=1 // pred_fallthru
      _
    // Predicated region
    $region26: #{hrgat_forward.25} parent=1 // pred_check
      _
    $region27: #{hrgat_forward.25} parent=1 // pred_check_branch
      %41 = sbr.rel (0) target = $region29
    $region28: #{hrgat_forward.25} parent=1 // pred_region
      _
    $region29: #{hrgat_forward.25} parent=1 // pred_fallthru
      _
    // Predicated region
    $region30: #{hrgat_forward.25} parent=1 // pred_check
      _
    $region31: #{hrgat_forward.25} parent=1 // pred_check_branch
      %43 = sbr.rel (0) target = $region33
    $region32: #{hrgat_forward.25} parent=1 // pred_region
      %45 = dma.done [#allocation3], 16
    $region33: #{hrgat_forward.25} parent=1 // pred_fallthru
      _
    // Predicated region
    $region34: #{hrgat_forward.25} parent=1 // pred_check
      _
    $region35: #{hrgat_forward.25} parent=1 // pred_check_branch
      %47 = sbr.rel (0) target = $region37
    $region36: #{hrgat_forward.25} parent=1 // pred_region
      %49 = dma.done [#allocation5], 16
    $region37: #{hrgat_forward.25} parent=1 // pred_fallthru
      _
    %50 = sfence
    %v51 = vlaneseq
    %v52 = vand.u32 %v51, 127
    %vm53 = vcmp.lt.s32.totalorder %v52, 32
    %v54 = vld [vmem:[%s1] sm:$0xf]
    %v55 = vld [vmem:[%s1 + $0x4] sm:$0x3]
    %v56 = vunpack.c.l.bf16 %v54
    %v57 = vunpack.c.l.bf16 %v55
    %v58 = vld [vmem:[%s2] sm:$0x1]
    %v59 = vld [vmem:[%s2 + $0x1] sm:$0x1]
    %v60 = vperm.slane %v58, 0
    %v61 = vmul.f32 %v56, %v60
    %v62 = vmul.f32 %v57, %v60
    %63 = vadd.xlane.f32.xlu0 %v61
    %v64 = vpop.xlane.xlu0 %63
    %vm65 = vcmask 1043456
    %v66 = vsel %vm65, %v62, 0.0
    %67 = vadd.xlane.f32.xlu0 %v66
    %v68 = vpop.xlane.xlu0 %67
    %v69 = vld [vmem:[%s0] sm:$0xf]
    %v70 = vld [vmem:[%s0 + $0x4] sm:$0x3]
    %v71 = vunpack.c.l.bf16 %v69
    %v72 = vunpack.c.l.bf16 %v70
    %s73 = scalar_lea.vmem %s0, 8
    %v74 = vld [vmem:[%s73] sm:$0xf]
    %v75 = vld [vmem:[%s73 + $0x4] sm:$0x3]
    %v76 = vunpack.c.l.bf16 %v74
    %v77 = vunpack.c.l.bf16 %v75
    %v78 = vperm.slane %v59, 0
    %v79 = vmul.f32 %v71, %v78
    %v80 = vmul.f32 %v72, %v78
    %81 = vadd.xlane.f32.xlu0 %v79
    %v82 = vpop.xlane.xlu0 %81
    %v83 = vsel %vm65, %v80, 0.0
    %84 = vadd.xlane.f32.xlu0 %v83
    %v85 = vpop.xlane.xlu0 %84
    %v86 = vadd.f32 %v64, %v82
    %v87 = vadd.f32 %v68, %v85
    %v88 = vmul.f32 %v76, %v78
    %v89 = vmul.f32 %v77, %v78
    %90 = vadd.xlane.f32.xlu0 %v88
    %v91 = vpop.xlane.xlu0 %90
    %v92 = vsel %vm65, %v89, 0.0
    %93 = vadd.xlane.f32.xlu0 %v92
    %v94 = vpop.xlane.xlu0 %93
    %v95 = vadd.f32 %v64, %v91
    %v96 = vadd.f32 %v68, %v94
    %v97 = vmax.f32 %v86, %v95
    %v98 = vmax.f32 %v87, %v96
    %v99 = vsub.f32 %v86, %v97
    %v100 = vsub.f32 %v87, %v98
    %v101 = vmul.f32 %v99, 1.442695
    %v102 = vpow.pop %v101
    %v103 = vmul.f32 %v100, 1.442695
    %v104 = vpow.pop %v103
    %v105 = vsub.f32 %v95, %v97
    %v106 = vsub.f32 %v96, %v98
    %v107 = vmul.f32 %v105, 1.442695
    %v108 = vpow.pop %v107
    %v109 = vmul.f32 %v106, 1.442695
    %v110 = vpow.pop %v109
    %v111 = vadd.f32 %v102, %v108
    %v112 = vadd.f32 %v104, %v110
    %v113 = vrcp.pop %v111
    %v114 = vrcp.pop %v112
    %s115 = sld [smem:[#allocation4]]
    %s116 = sld [smem:[#allocation4 + $0x1]]
    %v117 = vmul.f32 %v102, %v113
    %v118 = vmul.f32 %v104, %v114
    %v119 = vstv %s115
    %v120 = vmul.f32 %v119, %v117
    %v121 = vmul.f32 %v119, %v118
    %s122 = sld [smem:[#allocation2]]
    %v123 = vstv %s122
    %v124 = vadd.f32 %v120, %v123
    %v125 = vadd.f32 %v121, %v123
    %v126 = vmul.f32 %v71, %v124
    %v127 = vmul.f32 %v72, %v125
    %v128 = vadd.f32 %v126, 0.0
    %v129 = vadd.f32 %v127, 0.0
    %v130 = vmul.f32 %v108, %v113
    %v131 = vmul.f32 %v110, %v114
    %v132 = vmul.f32 %v119, %v130
    %v133 = vmul.f32 %v119, %v131
    %s134 = sld [smem:[#allocation2 + $0x1]]
    %v135 = vstv %s134
    %v136 = vadd.f32 %v132, %v135
    %v137 = vadd.f32 %v133, %v135
    %v138 = vmul.f32 %v76, %v136
    %v139 = vmul.f32 %v77, %v137
    %v140 = vadd.f32 %v128, %v138
    %v141 = vadd.f32 %v129, %v139
    %v142 = vmul.f32 %v140, 0.5
    %v143 = vmul.f32 %v141, 0.5
    %v144 = vmul.f32 %v140, 0.044715
    %v145 = vmul.f32 %v141, 0.044715
    %v146 = vmul.f32 %v144, %v140
    %v147 = vmul.f32 %v145, %v141
    %v148 = vmul.f32 %v146, %v140
    %v149 = vmul.f32 %v147, %v141
    %v150 = vadd.f32 %v140, %v148
    %v151 = vadd.f32 %v141, %v149
    %v152 = vmul.f32 %v150, 0.7978846
    %v153 = vmul.f32 %v151, 0.7978846
    %v154 = vtanh.pop %v152
    %v155 = vtanh.pop %v153
    %v156 = vadd.f32 %v154, 1.0
    %v157 = vadd.f32 %v155, 1.0
    %v158 = vmul.f32 %v142, %v156
    %v159 = vmul.f32 %v143, %v157
    %v160 = vstv %s116
    %v161 = vmul.f32 %v158, %v160
    %v162 = vmul.f32 %v159, %v160
    %s163 = ssub.f32 1.0, %s116
    %v164 = vstv %s163
    %v165 = vmul.f32 %v56, %v164
    %v166 = vmul.f32 %v57, %v164
    %v167 = vadd.f32 %v161, %v165
    %v168 = vadd.f32 %v162, %v166
    %v169 = vld [vmem:[%s5] sm:$0x1]
    %v170 = vld [vmem:[%s6] sm:$0x1]
    %v171 = vsel %vm53, 1, 0
    %vm172 = vcmp.eq.s32.totalorder %v171, 1
    %v173 = vsel %vm172, %v167, 0.0
    %v174 = vsel %vm172, %v168, 0.0
    %175 = vadd.xlane.f32.xlu0 %v173
    %v176 = vpop.xlane.xlu0 %175
    %v177 = vsel %vm65, %v174, 0.0
    %178 = vadd.xlane.f32.xlu0 %v177
    %v179 = vpop.xlane.xlu0 %178
    %v180 = vmul.f32 %v176, 0.03125
    %v181 = vmul.f32 %v179, 0.03125
    %v182 = vsub.f32 %v167, %v180
    %v183 = vsub.f32 %v168, %v181
    %v184 = vsel %vm172, %v182, 0.0
    %v185 = vsel %vm172, %v183, 0.0
    %v186 = vmul.f32 %v184, %v184
    %v187 = vmul.f32 %v185, %v185
    %188 = vadd.xlane.f32.xlu0 %v186
    %v189 = vpop.xlane.xlu0 %188
    %v190 = vsel %vm65, %v187, 0.0
    %191 = vadd.xlane.f32.xlu0 %v190
    %v192 = vpop.xlane.xlu0 %191
    %v193 = vmul.f32 %v189, 0.03125
    %v194 = vmul.f32 %v192, 0.03125
    %v195 = vadd.f32 %v193, 1e-05
    %v196 = vadd.f32 %v194, 1e-05
    %v197 = vrsqrt.pop %v195
    %v198 = vmul.f32 %v197, %v195
    %v199 = vmul.f32 %v198, %v197
    %v200 = vmul.f32 0.5, %v199
    %v201 = vsub.f32 1.5, %v200
    %v202 = vmul.f32 %v197, %v201
    %vm203 = vweird.f32 %v195
    %vm204 = vweird.f32 %v197
    %vm205 = vmor %vm203, %vm204
    %v206 = vsel %vm205, %v197, %v202
    %v207 = vrsqrt.pop %v196
    %v208 = vmul.f32 %v207, %v196
    %v209 = vmul.f32 %v208, %v207
    %v210 = vmul.f32 0.5, %v209
    %v211 = vsub.f32 1.5, %v210
    %v212 = vmul.f32 %v207, %v211
    %vm213 = vweird.f32 %v196
    %vm214 = vweird.f32 %v207
    %vm215 = vmor %vm213, %vm214
    %v216 = vsel %vm215, %v207, %v212
    %v217 = vmul.f32 %v184, %v206
    %v218 = vmul.f32 %v185, %v216
    %v220 = vperm.slane %v169, 0
    %v222 = vmul.f32 %v217, %v220
    %v223 = vmul.f32 %v218, %v220
    %v225 = vperm.slane %v170, 0
    %v227 = vadd.f32 %v222, %v225
    %v228 = vadd.f32 %v223, %v225
    %v229 = vpack.c.bf16 %v227, %v227
    %v230 = vpack.c.bf16 %v228, %v228
    %231 = vst [vmem:[%s7] sm:$0xf] %v229
    %232 = vst [vmem:[%s7 + $0x4] sm:$0x3] %v230
    // Predicated region
    $region38: #{hrgat_forward.25} parent=1 // pred_check
      _
    $region39: #{hrgat_forward.25} parent=1 // pred_check_branch
      %234 = sbr.rel (0) target = $region41
    $region40: #{hrgat_forward.25} parent=1 // pred_region
      _
    $region41: #{hrgat_forward.25} parent=1 // pred_fallthru
      _
    // Predicated region
    $region42: #{hrgat_forward.25} parent=1 // pred_check
      _
    $region43: #{hrgat_forward.25} parent=1 // pred_check_branch
      %236 = sbr.rel (0) target = $region45
    $region44: #{hrgat_forward.25} parent=1 // pred_region
      _
    $region45: #{hrgat_forward.25} parent=1 // pred_fallthru
      _
    %237 = vsyncpa [#allocation3], 1
    %238 = vsyncpa [#allocation5], 1

// kernel: hrgat_forward.24
$region0: #{hrgat_forward.24}
  #allocation0 [shape = 'u32[]', space=smem, size = 0x4, offset = 0x4, fixed_abs, tag = 'smem constant byte address 0x4 - core index']
  #allocation1 [shape = 'u32[72,128]{1,0:T(1,128)}', space=vmem, size = 0x9000, scoped, tag = 'internal scratch']
  #allocation2 [shape = 'f32[12,1]{1,0:T(8,128)}', space=vmem, size = 0x2000, scoped, tag = 'scratch operand']
  #allocation3 [shape = 'f32[12,1]{1,0:T(8,128)}', space=vmem, size = 0x2000, scoped, tag = 'scratch operand']
  #allocation4 [shape = 'f32[12,1]{1,0:T(8,128)}', space=vmem, size = 0x2000, scoped, tag = 'scratch operand']
  #allocation5 [shape = 'f32[12,128]{1,0:T(8,128)}', space=vmem, size = 0x2000, scoped, tag = 'scratch operand']
  #allocation6 [shape = 's32[1]{0}', space=sflag, size = 0x4, scoped, tag = 'scoped memory for hrgat_forward.24']
  #allocation7 [shape = 'u8[512]{0}', space=smem, size = 0x200, scoped, tag = 'prefetched SMEM operand 0']
  %s0 = inlined_call_operand.vmem [shape: s32[2], index: 0, kind: input, shape index: {}]
  %s1 = inlined_call_operand.vmem [shape: bf16[12,128], index: 1, kind: input, shape index: {}, may-alias: {1,2}]
  %s2 = inlined_call_operand.vmem [shape: bf16[12,128], index: 2, kind: input, shape index: {}, may-alias: {1,2}]
  %s3 = inlined_call_operand.vmem [shape: f32[2,2,128], index: 3, kind: input, shape index: {}]
  %s4 = inlined_call_operand.vmem [shape: s8[2,12,12], index: 4, kind: input, shape index: {}]
  %s5 = inlined_call_operand.vmem [shape: f32[2,1,128], index: 5, kind: input, shape index: {}]
  %s6 = inlined_call_operand.vmem [shape: f32[2,1,128], index: 6, kind: input, shape index: {}]
  %s7 = inlined_call_operand.hbm [shape: bf16[128,128], index: 7, kind: input, shape index: {}]
  %s8 = inlined_call_operand.vmem [shape: bf16[2,12,128], index: 8, kind: output, shape index: {}]
  %s9 = sld [smem:[#allocation0]]
  $region77: #{hrgat_forward.24} parent=0
    _
  %s11 = ssub.s32 1, %s9
  %s12 = scalar_select 0, %s11, %s9
  %s14 = sshll.u32 %s0, 4
  %s15 = int_to_ptr.vmem [resolvable:$true] %s14
  %17 = dma.vmem_to_smem %s15, 16, [#allocation7], [#allocation6]
  %19 = dma.done [#allocation6], 16
  %20 = sfence
  $region1: #{hrgat_forward.24} parent=0
    #allocation8 [shape = 'u8[32768]{0}', space=vmem, size = 0x8000, scoped, tag = 'input window, operand 7, single buffered']
    #allocation9 [shape = 's32[2]{0}', space=sflag, size = 0x8, scoped, tag = 'scoped memory for hrgat_forward.24']
    %21 = vsyncpa [#allocation9], 0
    loop: start=0, step=1, limit=4
    $region2: #{hrgat_forward.24} parent=1 // loop_pre_header
      _
    $region3: #{hrgat_forward.24} parent=1 // loop_header
      %s23 = sphi 0, %s27
      %p24 = scmp.ge.s32.totalorder %s23, 4
      %s30 = sphi 0, %s49
      %s31 = sphi 0, %s45
      %s32 = sphi 0, %s41
      %s33 = sphi 0, %s30
      %s34 = sphi 0, %s31
      %s35 = sphi 0, %s32
      %s36 = sphi 0, %s33
      %s37 = sphi 0, %s34
      %s38 = sphi 0, %s35
      %s52 = sphi 0, %s54
      %s55 = sphi 0, %s52
      %s56 = sphi 0, %s55
      %s72 = sphi 0, %s56
      %s78 = sphi 0, %s80
      %s81 = sphi 0, %s78
      %s82 = sphi 0, %s81
      %s98 = sphi 0, %s82
      %s104 = sphi 0, %s106
      %s107 = sphi 0, %s104
      %s108 = sphi 0, %s107
      %s124 = sphi 0, %s108
      %s134 = sphi 0, %s136
      %s137 = sphi 0, %s134
      %s138 = sphi 0, %s137
      %s154 = sphi 0, %s138
      %s160 = sphi 0, %s162
      %s163 = sphi 0, %s160
      %s164 = sphi 0, %s163
      %s180 = sphi 0, %s164
      %s186 = sphi 0, %s188
      %s189 = sphi 0, %s186
      %s190 = sphi 0, %s189
      %s206 = sphi 0, %s190
      %s210 = sphi 0, %s210
      %s212 = sphi 0, %s210
      %s213 = sphi 0, %s212
      %s227 = sphi 0, %s213
      %s235 = sphi 0, %s237
      %s238 = sphi 0, %s235
      %s239 = sphi 0, %s238
      %s255 = sphi 0, %s239
    $region4: #{hrgat_forward.24} parent=1 // loop_header_branch
      %26 = sbr.rel (%p24) target = $region8
    $region5: #{hrgat_forward.24} parent=1 // loop_body
      %s28 = ssub.s32 %s23, 1
      %s29 = ssub.s32 %s23, 2
      %s39 = sadd.s32 1, %s32
      %p40 = scmp.ge.s32.totalorder %s39, 1
      %s41 = scalar_select %p40, 0, %s39
      %s42 = sadd.s32 1, %s31
      %s43 = scalar_select %p40, %s42, %s31
      %p44 = scmp.ge.s32.totalorder %s43, 1
      %s45 = scalar_select %p44, 0, %s43
      %s46 = sadd.s32 1, %s30
      %s47 = scalar_select %p44, %s46, %s30
      %p48 = scmp.ge.s32.totalorder %s47, 2
      %s49 = scalar_select %p48, 0, %s47
      %s50 = ssub.s32 %s31, %s45
      %p51 = scmp.eq.s32.totalorder %s50, 0
      %s53 = sadd.s32 %s52, 1
      %s54 = scalar_select %p51, %s52, %s53
      %p57 = pneg %p51
      %p58 = scmp.eq.s32.totalorder %s23, 1
      %p59 = por %p57, %p58
      %p60 = scmp.ne.s32.totalorder %s52, %s55
      %p61 = scmp.eq.s32.totalorder %s23, 0
      %p62 = por %p60, %p61
      %p63 = scmp.ne.s32.totalorder %s52, %s55
      %p64 = scmp.eq.s32.totalorder %s28, 1
      %p65 = por %p63, %p64
      %p66 = scmp.ne.s32.totalorder %s55, %s56
      %p67 = scmp.eq.s32.totalorder %s28, 0
      %p68 = por %p66, %p67
      %p69 = scmp.ne.s32.totalorder %s55, %s56
      %p70 = scmp.eq.s32.totalorder %s29, 1
      %p71 = por %p69, %p70
      %p73 = scmp.ne.s32.totalorder %s56, %s72
      %p74 = scmp.eq.s32.totalorder %s29, 0
      %p75 = por %p73, %p74
      %s76 = ssub.s32 %s32, %s41
      %p77 = scmp.eq.s32.totalorder %s76, 0
      %s79 = sadd.s32 %s78, 1
      %s80 = scalar_select %p77, %s78, %s79
      %p83 = pneg %p77
      %p84 = scmp.eq.s32.totalorder %s23, 1
      %p85 = por %p83, %p84
      %p86 = scmp.ne.s32.totalorder %s78, %s81
      %p87 = scmp.eq.s32.totalorder %s23, 0
      %p88 = por %p86, %p87
      %p89 = scmp.ne.s32.totalorder %s78, %s81
      %p90 = scmp.eq.s32.totalorder %s28, 1
      %p91 = por %p89, %p90
      %p92 = scmp.ne.s32.totalorder %s81, %s82
      %p93 = scmp.eq.s32.totalorder %s28, 0
      %p94 = por %p92, %p93
      %p95 = scmp.ne.s32.totalorder %s81, %s82
      %p96 = scmp.eq.s32.totalorder %s29, 1
      %p97 = por %p95, %p96
      %p99 = scmp.ne.s32.totalorder %s82, %s98
      %p100 = scmp.eq.s32.totalorder %s29, 0
      %p101 = por %p99, %p100
      %s102 = ssub.s32 %s30, %s49
      %p103 = scmp.eq.s32.totalorder %s102, 0
      %s105 = sadd.s32 %s104, 1
      %s106 = scalar_select %p103, %s104, %s105
      %p109 = pneg %p103
      %p110 = scmp.eq.s32.totalorder %s23, 1
      %p111 = por %p109, %p110
      %p112 = scmp.ne.s32.totalorder %s104, %s107
      %p113 = scmp.eq.s32.totalorder %s23, 0
      %p114 = por %p112, %p113
      %p115 = scmp.ne.s32.totalorder %s104, %s107
      %p116 = scmp.eq.s32.totalorder %s28, 1
      %p117 = por %p115, %p116
      %p118 = scmp.ne.s32.totalorder %s107, %s108
      %p119 = scmp.eq.s32.totalorder %s28, 0
      %p120 = por %p118, %p119
      %p121 = scmp.ne.s32.totalorder %s107, %s108
      %p122 = scmp.eq.s32.totalorder %s29, 1
      %p123 = por %p121, %p122
      %p125 = scmp.ne.s32.totalorder %s108, %s124
      %p126 = scmp.eq.s32.totalorder %s29, 0
      %p127 = por %p125, %p126
      %s128 = ssub.s32 %s30, %s49
      %s129 = ssub.s32 %s31, %s45
      %s130 = sor.u32 %s128, %s129
      %s131 = ssub.s32 %s32, %s41
      %s132 = sor.u32 %s130, %s131
      %p133 = scmp.eq.s32.totalorder %s132, 0
      %s135 = sadd.s32 %s134, 1
      %s136 = scalar_select %p133, %s134, %s135
      %p139 = pneg %p133
      %p140 = scmp.eq.s32.totalorder %s23, 1
      %p141 = por %p139, %p140
      %p142 = scmp.ne.s32.totalorder %s134, %s137
      %p143 = scmp.eq.s32.totalorder %s23, 0
      %p144 = por %p142, %p143
      %p145 = scmp.ne.s32.totalorder %s134, %s137
      %p146 = scmp.eq.s32.totalorder %s28, 1
      %p147 = por %p145, %p146
      %p148 = scmp.ne.s32.totalorder %s137, %s138
      %p149 = scmp.eq.s32.totalorder %s28, 0
      %p150 = por %p148, %p149
      %p151 = scmp.ne.s32.totalorder %s137, %s138
      %p152 = scmp.eq.s32.totalorder %s29, 1
      %p153 = por %p151, %p152
      %p155 = scmp.ne.s32.totalorder %s138, %s154
      %p156 = scmp.eq.s32.totalorder %s29, 0
      %p157 = por %p155, %p156
      %s158 = ssub.s32 %s30, %s49
      %p159 = scmp.eq.s32.totalorder %s158, 0
      %s161 = sadd.s32 %s160, 1
      %s162 = scalar_select %p159, %s160, %s161
      %p165 = pneg %p159
      %p166 = scmp.eq.s32.totalorder %s23, 1
      %p167 = por %p165, %p166
      %p168 = scmp.ne.s32.totalorder %s160, %s163
      %p169 = scmp.eq.s32.totalorder %s23, 0
      %p170 = por %p168, %p169
      %p171 = scmp.ne.s32.totalorder %s160, %s163
      %p172 = scmp.eq.s32.totalorder %s28, 1
      %p173 = por %p171, %p172
      %p174 = scmp.ne.s32.totalorder %s163, %s164
      %p175 = scmp.eq.s32.totalorder %s28, 0
      %p176 = por %p174, %p175
      %p177 = scmp.ne.s32.totalorder %s163, %s164
      %p178 = scmp.eq.s32.totalorder %s29, 1
      %p179 = por %p177, %p178
      %p181 = scmp.ne.s32.totalorder %s164, %s180
      %p182 = scmp.eq.s32.totalorder %s29, 0
      %p183 = por %p181, %p182
      %s184 = ssub.s32 %s30, %s49
      %p185 = scmp.eq.s32.totalorder %s184, 0
      %s187 = sadd.s32 %s186, 1
      %s188 = scalar_select %p185, %s186, %s187
      %p191 = pneg %p185
      %p192 = scmp.eq.s32.totalorder %s23, 1
      %p193 = por %p191, %p192
      %p194 = scmp.ne.s32.totalorder %s186, %s189
      %p195 = scmp.eq.s32.totalorder %s23, 0
      %p196 = por %p194, %p195
      %p197 = scmp.ne.s32.totalorder %s186, %s189
      %p198 = scmp.eq.s32.totalorder %s28, 1
      %p199 = por %p197, %p198
      %p200 = scmp.ne.s32.totalorder %s189, %s190
      %p201 = scmp.eq.s32.totalorder %s28, 0
      %p202 = por %p200, %p201
      %p203 = scmp.ne.s32.totalorder %s189, %s190
      %p204 = scmp.eq.s32.totalorder %s29, 1
      %p205 = por %p203, %p204
      %p207 = scmp.ne.s32.totalorder %s190, %s206
      %p208 = scmp.eq.s32.totalorder %s29, 0
      %p209 = por %p207, %p208
      %s211 = sadd.s32 %s210, 1
      %p214 = scmp.eq.s32.totalorder %s23, 1
      %p215 = scmp.ne.s32.totalorder %s210, %s212
      %p216 = scmp.eq.s32.totalorder %s23, 0
      %p217 = por %p215, %p216
      %p218 = scmp.ne.s32.totalorder %s210, %s212
      %p219 = scmp.eq.s32.totalorder %s28, 1
      %p220 = por %p218, %p219
      %p221 = scmp.ne.s32.totalorder %s212, %s213
      %p222 = scmp.eq.s32.totalorder %s28, 0
      %p223 = por %p221, %p222
      %p224 = scmp.ne.s32.totalorder %s212, %s213
      %p225 = scmp.eq.s32.totalorder %s29, 1
      %p226 = por %p224, %p225
      %p228 = scmp.ne.s32.totalorder %s213, %s227
      %p229 = scmp.eq.s32.totalorder %s29, 0
      %p230 = por %p228, %p229
      %s231 = ssub.s32 %s30, %s49
      %s232 = ssub.s32 %s31, %s45
      %s233 = sor.u32 %s231, %s232
      %p234 = scmp.eq.s32.totalorder %s233, 0
      %s236 = sadd.s32 %s235, 1
      %s237 = scalar_select %p234, %s235, %s236
      %p240 = pneg %p234
      %p241 = scmp.eq.s32.totalorder %s23, 1
      %p242 = por %p240, %p241
      %p243 = scmp.ne.s32.totalorder %s235, %s238
      %p244 = scmp.eq.s32.totalorder %s23, 0
      %p245 = por %p243, %p244
      %p246 = scmp.ne.s32.totalorder %s235, %s238
      %p247 = scmp.eq.s32.totalorder %s28, 1
      %p248 = por %p246, %p247
      %p249 = scmp.ne.s32.totalorder %s238, %s239
      %p250 = scmp.eq.s32.totalorder %s28, 0
      %p251 = por %p249, %p250
      %p252 = scmp.ne.s32.totalorder %s238, %s239
      %p253 = scmp.eq.s32.totalorder %s29, 1
      %p254 = por %p252, %p253
      %p256 = scmp.ne.s32.totalorder %s239, %s255
      %p257 = scmp.eq.s32.totalorder %s29, 0
      %p258 = por %p256, %p257
      %p259 = scmp.le.s32.totalorder 1, %s23
      %p260 = scmp.lt.s32.totalorder %s23, 3
      %p261 = pnand %p259, %p260
      %p262 = pneg %p261
      // Predicated region
      $region9: #{hrgat_forward.24} parent=5 // pred_check
        _
      $region10: #{hrgat_forward.24} parent=5 // pred_check_branch
        %264 = sbr.rel (%p261) target = $region12
      $region11: #{hrgat_forward.24} parent=5 // pred_region
        %s265 = ssub.s32 %s23, 1
        // Predicated region
        $region13: #{hrgat_forward.24} parent=11 // pred_check
          %p266 = pneg %p68
        $region14: #{hrgat_forward.24} parent=11 // pred_check_branch
          %268 = sbr.rel (%p266) target = $region16
        $region15: #{hrgat_forward.24} parent=11 // pred_region
          %s269 = smul.u32 2, %s34
          %p270 = scmp.lt.s32.totalorder %s269, 1
          %s271 = scalar_select %p270, %s269, 1
          %s272 = smul.addr %s271, 4
          %s273 = scalar_lea.vmem %s1, %s272
          %s274 = smul.u32 2, %s34
        $region16: #{hrgat_forward.24} parent=11 // pred_fallthru
          _
        // Predicated region
        $region17: #{hrgat_forward.24} parent=11 // pred_check
          %p275 = pneg %p94
        $region18: #{hrgat_forward.24} parent=11 // pred_check_branch
          %277 = sbr.rel (%p275) target = $region20
        $region19: #{hrgat_forward.24} parent=11 // pred_region
          %s278 = smul.u32 2, %s35
          %p279 = scmp.lt.s32.totalorder %s278, 1
          %s280 = scalar_select %p279, %s278, 1
          %s281 = smul.addr %s280, 4
          %s282 = scalar_lea.vmem %s2, %s281
          %s283 = smul.u32 2, %s35
        $region20: #{hrgat_forward.24} parent=11 // pred_fallthru
          _
        // Predicated region
        $region21: #{hrgat_forward.24} parent=11 // pred_check
          %p284 = pneg %p223
        $region22: #{hrgat_forward.24} parent=11 // pred_check_branch
          %286 = sbr.rel (%p284) target = $region24
        $region23: #{hrgat_forward.24} parent=11 // pred_region
          %288 = vsyncadd [#allocation9], 0
          %s289 = sshll.u32 %s7, 4
          %s290 = int_to_ptr.hbm [resolvable:$true] %s289
          %s291 = sshll.u32 [#allocation8], 4
          %s292 = int_to_ptr.vmem [resolvable:$true] %s291
          %297 = dma.hbm_to_vmem [thread:$0]  %s290, 1024, %s292, [#allocation9], 64, 64, 4
        $region24: #{hrgat_forward.24} parent=11 // pred_fallthru
          _
      $region12: #{hrgat_forward.24} parent=5 // pred_fallthru
        _
      %p298 = scmp.lt.s32.totalorder %s23, 2
      // Predicated region
      $region25: #{hrgat_forward.24} parent=5 // pred_check
        %p299 = pneg %p298
      $region26: #{hrgat_forward.24} parent=5 // pred_check_branch
        %301 = sbr.rel (%p299) target = $region28
      $region27: #{hrgat_forward.24} parent=5 // pred_region
        // Predicated region
        $region29: #{hrgat_forward.24} parent=27 // pred_check
          %p302 = pneg %p114
        $region30: #{hrgat_forward.24} parent=27 // pred_check_branch
          %304 = sbr.rel (%p302) target = $region32
        $region31: #{hrgat_forward.24} parent=27 // pred_region
          %p305 = scmp.lt.s32.totalorder %s30, 1
          %s306 = scalar_select %p305, %s30, 1
          %s307 = smul.addr %s306, 2
          %s308 = scalar_lea.vmem %s3, %s307
        $region32: #{hrgat_forward.24} parent=27 // pred_fallthru
          _
        // Predicated region
        $region33: #{hrgat_forward.24} parent=27 // pred_check
          %p309 = pneg %p144
        $region34: #{hrgat_forward.24} parent=27 // pred_check_branch
          %311 = sbr.rel (%p309) target = $region36
        $region35: #{hrgat_forward.24} parent=27 // pred_region
          %s312 = smul.u32 2, %s31
          %p313 = scmp.lt.s32.totalorder %s30, 1
          %s314 = scalar_select %p313, %s30, 1
          %p315 = scmp.lt.s32.totalorder %s312, 1
          %s316 = scalar_select %p315, %s312, 1
          %p317 = scmp.lt.s32.totalorder %s32, 0
          %s318 = scalar_select %p317, %s32, 0
          %s319 = sadd.s32 %s318, %s316
          %s320 = smul.addr %s314, 2
          %s321 = sadd.s32 %s319, %s320
          %s322 = smul.addr %s321, 2
          %s323 = scalar_lea.vmem %s4, %s322
          %s324 = smul.u32 2, %s31
        $region36: #{hrgat_forward.24} parent=27 // pred_fallthru
          _
        // Predicated region
        $region37: #{hrgat_forward.24} parent=27 // pred_check
          %p325 = pneg %p170
        $region38: #{hrgat_forward.24} parent=27 // pred_check_branch
          %327 = sbr.rel (%p325) target = $region40
        $region39: #{hrgat_forward.24} parent=27 // pred_region
          %p328 = scmp.lt.s32.totalorder %s30, 1
          %s329 = scalar_select %p328, %s30, 1
          %s330 = scalar_lea.vmem %s5, %s329
        $region40: #{hrgat_forward.24} parent=27 // pred_fallthru
          _
        // Predicated region
        $region41: #{hrgat_forward.24} parent=27 // pred_check
          %p331 = pneg %p196
        $region42: #{hrgat_forward.24} parent=27 // pred_check_branch
          %333 = sbr.rel (%p331) target = $region44
        $region43: #{hrgat_forward.24} parent=27 // pred_region
          %p334 = scmp.lt.s32.totalorder %s30, 1
          %s335 = scalar_select %p334, %s30, 1
          %s336 = scalar_lea.vmem %s6, %s335
        $region44: #{hrgat_forward.24} parent=27 // pred_fallthru
          _
      $region28: #{hrgat_forward.24} parent=5 // pred_fallthru
        _
      %p337 = scmp.le.s32.totalorder 1, %s23
      %p338 = scmp.lt.s32.totalorder %s23, 3
      %p339 = pnand %p337, %p338
      %p340 = pneg %p339
      // Predicated region
      $region45: #{hrgat_forward.24} parent=5 // pred_check
        _
      $region46: #{hrgat_forward.24} parent=5 // pred_check_branch
        %342 = sbr.rel (%p339) target = $region48
      $region47: #{hrgat_forward.24} parent=5 // pred_region
        %s343 = ssub.s32 %s23, 1
        // Predicated region
        $region49: #{hrgat_forward.24} parent=47 // pred_check
          %p344 = pneg %p223
        $region50: #{hrgat_forward.24} parent=47 // pred_check_branch
          %346 = sbr.rel (%p344) target = $region52
        $region51: #{hrgat_forward.24} parent=47 // pred_region
          %348 = dma.done [#allocation9], 1024
        $region52: #{hrgat_forward.24} parent=47 // pred_fallthru
          _
        %s349 = smul.u32 2, %s34
        %p350 = scmp.lt.s32.totalorder %s349, 1
        %s351 = scalar_select %p350, %s349, 1
        %s352 = smul.addr %s351, 4
        %s353 = scalar_lea.vmem %s1, %s352
        %p354 = pneg %p68
        %p355 = pneg %p65
        %s356 = smul.u32 2, %s35
        %p357 = scmp.lt.s32.totalorder %s356, 1
        %s358 = scalar_select %p357, %s356, 1
        %s359 = smul.addr %s358, 4
        %s360 = scalar_lea.vmem %s2, %s359
        %p361 = pneg %p94
        %p362 = pneg %p91
        %p363 = scmp.lt.s32.totalorder %s33, 1
        %s364 = scalar_select %p363, %s33, 1
        %s365 = smul.addr %s364, 2
        %s366 = scalar_lea.vmem %s3, %s365
        %p367 = pneg %p120
        %p368 = pneg %p117
        %s369 = smul.u32 2, %s34
        %p370 = scmp.lt.s32.totalorder %s33, 1
        %s371 = scalar_select %p370, %s33, 1
        %p372 = scmp.lt.s32.totalorder %s369, 1
        %s373 = scalar_select %p372, %s369, 1
        %p374 = scmp.lt.s32.totalorder %s35, 0
        %s375 = scalar_select %p374, %s35, 0
        %s376 = sadd.s32 %s375, %s373
        %s377 = smul.addr %s371, 2
        %s378 = sadd.s32 %s376, %s377
        %s379 = smul.addr %s378, 2
        %s380 = scalar_lea.vmem %s4, %s379
        %p381 = pneg %p150
        %p382 = pneg %p147
        %p383 = scmp.lt.s32.totalorder %s33, 1
        %s384 = scalar_select %p383, %s33, 1
        %s385 = scalar_lea.vmem %s5, %s384
        %p386 = pneg %p176
        %p387 = pneg %p173
        %p388 = scmp.lt.s32.totalorder %s33, 1
        %s389 = scalar_select %p388, %s33, 1
        %s390 = scalar_lea.vmem %s6, %s389
        %p391 = pneg %p202
        %p392 = pneg %p199
        %p393 = pneg %p223
        %p394 = pneg %p220
        %p395 = pneg %p251
        %p396 = pneg %p248
        %s397 = smul.u32 2, %s34
        %p398 = scmp.lt.s32.totalorder %s33, 1
        %s399 = scalar_select %p398, %s33, 1
        %p400 = scmp.lt.s32.totalorder %s397, 1
        %s401 = scalar_select %p400, %s397, 1
        %s402 = smul.addr %s399, 2
        %s403 = sadd.s32 %s401, %s402
        %s404 = smul.addr %s403, 4
        %s405 = scalar_lea.vmem %s8, %s404
        %s406 = smul.u32 2, %s34
        %p407 = scmp.lt.s32.totalorder %s406, 1
        %s408 = scalar_select %p407, %s406, 1
        %s409 = smul.addr %s408, 4
        %s410 = scalar_lea.vmem %s1, %s409
        %s411 = smul.u32 2, %s34
        %s412 = smul.u32 2, %s35
        %p413 = scmp.lt.s32.totalorder %s412, 1
        %s414 = scalar_select %p413, %s412, 1
        %s415 = smul.addr %s414, 4
        %s416 = scalar_lea.vmem %s2, %s415
        %s417 = smul.u32 2, %s35
        %p418 = scmp.lt.s32.totalorder %s33, 1
        %s419 = scalar_select %p418, %s33, 1
        %s420 = smul.addr %s419, 2
        %s421 = scalar_lea.vmem %s3, %s420
        %s422 = smul.u32 2, %s34
        %p423 = scmp.lt.s32.totalorder %s33, 1
        %s424 = scalar_select %p423, %s33, 1
        %p425 = scmp.lt.s32.totalorder %s422, 1
        %s426 = scalar_select %p425, %s422, 1
        %p427 = scmp.lt.s32.totalorder %s35, 0
        %s428 = scalar_select %p427, %s35, 0
        %s429 = sadd.s32 %s428, %s426
        %s430 = smul.addr %s424, 2
        %s431 = sadd.s32 %s429, %s430
        %s432 = smul.addr %s431, 2
        %s433 = scalar_lea.vmem %s4, %s432
        %s434 = smul.u32 2, %s34
        %p435 = scmp.lt.s32.totalorder %s33, 1
        %s436 = scalar_select %p435, %s33, 1
        %s437 = scalar_lea.vmem %s5, %s436
        %p438 = scmp.lt.s32.totalorder %s33, 1
        %s439 = scalar_select %p438, %s33, 1
        %s440 = scalar_lea.vmem %s6, %s439
        %s441 = smul.u32 2, %s34
        %p442 = scmp.lt.s32.totalorder %s33, 1
        %s443 = scalar_select %p442, %s33, 1
        %p444 = scmp.lt.s32.totalorder %s441, 1
        %s445 = scalar_select %p444, %s441, 1
        %s446 = smul.addr %s443, 2
        %s447 = sadd.s32 %s445, %s446
        %s448 = smul.addr %s447, 4
        %s449 = scalar_lea.vmem %s8, %s448
        %s450 = smul.u32 2, %s34
        %p454 = scmp.eq.s32.totalorder %s35, 0
        // Predicated region
        $region53: #{hrgat_forward.24} parent=47 // pred_check
          %p455 = pneg %p454
        $region54: #{hrgat_forward.24} parent=47 // pred_check_branch
          %457 = sbr.rel (%p455) target = $region56
        $region55: #{hrgat_forward.24} parent=47 // pred_region
          %vm458 = vcmask 7168
          %459 = vst.msk [vmem:[#allocation3] sm:$0xff] %vm458, -1e+30
          %vm460 = vcmask 3072
          %461 = vst.msk [vmem:[#allocation3 + $0x8] sm:$0xf] %vm460, -1e+30
          %462 = vst.msk [vmem:[#allocation4] sm:$0xff] %vm458, 0.0
          %463 = vst.msk [vmem:[#allocation4 + $0x8] sm:$0xf] %vm460, 0.0
          %464 = vst [vmem:[#allocation5] sm:$0xff] 0.0
          %465 = vst [vmem:[#allocation5 + $0x8] sm:$0xf] 0.0
          %v466 = vld [vmem:[%s410] sm:$0xf]
          %v467 = vld [vmem:[%s410 + $0x4] sm:$0x3]
          %v468 = vunpack.c.l.bf16 %v466
          %v469 = vunpack.c.l.bf16 %v467
          %v470 = vld [vmem:[%s421] sm:$0x1]
          %v471 = vperm.slane %v470, 0
          %v472 = vmul.f32 %v468, %v471
          %v473 = vmul.f32 %v469, %v471
          %474 = vadd.xlane.f32.xlu0 %v472
          %v475 = vpop.xlane.xlu0 %474
          %vm476 = vcmask 1043456
          %v477 = vsel %vm476, %v473, 0.0
          %478 = vadd.xlane.f32.xlu0 %v477
          %v479 = vpop.xlane.xlu0 %478
          %480 = vst.msk [vmem:[#allocation2] sm:$0xff] %vm458, %v475
          %481 = vst.msk [vmem:[#allocation2 + $0x8] sm:$0xf] %vm460, %v479
        $region56: #{hrgat_forward.24} parent=47 // pred_fallthru
          _
        %s482 = sadd.s32 %s33, %s34
        %s483 = sadd.s32 %s482, %s35
        %s484 = sld [smem:[#allocation7 + %s483]]
        %p485 = scmp.gt.s32.totalorder %s484, 0
        // Predicated region
        $region57: #{hrgat_forward.24} parent=47 // pred_check
          %p486 = pneg %p485
        $region58: #{hrgat_forward.24} parent=47 // pred_check_branch
          %488 = sbr.rel (%p486) target = $region60
        $region59: #{hrgat_forward.24} parent=47 // pred_region
          %v489 = vld [vmem:[%s416] sm:$0xf]
          %v490 = vld [vmem:[%s416 + $0x4] sm:$0x3]
          %v491 = vld [vmem:[%s433] sm:$0x3]
          %v492 = vld [vmem:[%s433 + $0x2] sm:$0x1]
          %vm493 = vnez %v491
          %vm494 = vnez %v492
          %v495 = vld [vmem:[%s421 + $0x1] sm:$0x1]
          %v496 = vpack.c.bf16 %v495, %v495
          %v499 = vunpack.c.l.b16 %v489
          %v500 = vunpack.c.l.b16 %v490
          %v501 = vpack.c.b16 %v500, %v499
          %503 = vmatpush.bf16.xpose.msra.mxu0 0
          %504 = vmatpush.bf16.xpose.msra.mxu0 0
          %505 = vmatpush.bf16.xpose.msra.mxu0 0
          %506 = vmatpush.bf16.xpose.msra.mxu0 0
          %507 = vmatpush.bf16.xpose.msra.mxu0 0
          %508 = vmatpush.bf16.xpose.msra.mxu0 0
          %509 = vmatpush.bf16.xpose.msra.mxu0 0
          %510 = vmatpush.bf16.xpose.msra.mxu0 %v501
          %511 = vmatmul.bf16.gmra.mxu0 %v496
          %v512 = vpop.f32.mrf.mxu0
          %v513 = vadd.f32 0.0, %v512
          %v514 = vpop.f32.mrf.mxu0
          %515 = vdwg.mxu0
          %v516 = vld [vmem:[#allocation2] sm:$0xff]
          %v517 = vld [vmem:[#allocation2 + $0x8] sm:$0xf]
          %519 = vset.pattern.permute.xlu0 0
          %520 = vperm.xlu0 %519, %v516
          %v521 = vpop.permute.xlu0 %520
          %524 = vset.pattern.permute.xlu0 0
          %525 = vperm.xlu0 %524, %v517
          %v526 = vpop.permute.xlu0 %525
          %v528 = vperm.slane %v513, 0
          %v529 = vadd.f32 %v521, %v528
          %v530 = vadd.f32 %v526, %v528
          %v531 = vsel %vm493, 16843009, 0
          %v532 = vsel %vm494, 16843009, 0
          %v533 = vunpack.c.0.s8 %v531
          %v534 = vunpack.c.0.s8 %v532
          %vm535 = vcmp.ne.s32.totalorder %v533, 0
          %vm536 = vcmp.ne.s32.totalorder %v534, 0
          %v537 = vsel %vm535, %v529, -1e+30
          %v538 = vsel %vm536, %v530, -1e+30
          %v539 = vld [vmem:[#allocation3] sm:$0xff]
          %v540 = vld [vmem:[#allocation3 + $0x8] sm:$0xf]
          %vm541 = vcmask 97280
          %v542 = vsel %vm541, %v537, -inf
          %543 = vmax.xlane.f32.xlu0 %v542
          %v544 = vpop.xlane.xlu0 %543
          %vm545 = vcmask 93184
          %v546 = vsel %vm545, %v538, -inf
          %547 = vmax.xlane.f32.xlu0 %v546
          %v548 = vpop.xlane.xlu0 %547
          %v549 = vmax.f32 %v539, %v544
          %v550 = vmax.f32 %v540, %v548
          %v551 = vsub.f32 %v539, %v549
          %v552 = vsub.f32 %v540, %v550
          %v553 = vmul.f32 %v551, 1.442695
          %v554 = vpow.pop %v553
          %v555 = vmul.f32 %v552, 1.442695
          %v556 = vpow.pop %v555
          %558 = vset.pattern.permute.xlu0 0
          %559 = vperm.xlu0 %558, %v549
          %v560 = vpop.permute.xlu0 %559
          %563 = vset.pattern.permute.xlu0 0
          %564 = vperm.xlu0 %563, %v550
          %v565 = vpop.permute.xlu0 %564
          %v567 = vsub.f32 %v537, %v560
          %v568 = vsub.f32 %v538, %v565
          %v569 = vmul.f32 %v567, 1.442695
          %v570 = vpow.pop %v569
          %v571 = vmul.f32 %v568, 1.442695
          %v572 = vpow.pop %v571
          %v573 = vsel %vm535, %v570, 0.0
          %v574 = vsel %vm536, %v572, 0.0
          %v575 = vld [vmem:[#allocation4] sm:$0xff]
          %v576 = vld [vmem:[#allocation4 + $0x8] sm:$0xf]
          %v577 = vmul.f32 %v554, %v575
          %v578 = vmul.f32 %v556, %v576
          %v579 = vsel %vm541, %v573, 0.0
          %580 = vadd.xlane.f32.xlu0 %v579
          %v581 = vpop.xlane.xlu0 %580
          %v582 = vsel %vm545, %v574, 0.0
          %583 = vadd.xlane.f32.xlu0 %v582
          %v584 = vpop.xlane.xlu0 %583
          %v585 = vadd.f32 %v577, %v581
          %v586 = vadd.f32 %v578, %v584
          %vm587 = vcmask 7168
          %588 = vst.msk [vmem:[#allocation4] sm:$0xff] %vm587, %v585
          %vm589 = vcmask 3072
          %590 = vst.msk [vmem:[#allocation4 + $0x8] sm:$0xf] %vm589, %v586
          %v591 = vld [vmem:[#allocation5] sm:$0xff]
          %v592 = vld [vmem:[#allocation5 + $0x8] sm:$0xf]
          %594 = vset.pattern.permute.xlu0 0
          %595 = vperm.xlu0 %594, %v554
          %v596 = vpop.permute.xlu0 %595
          %599 = vset.pattern.permute.xlu0 0
          %600 = vperm.xlu0 %599, %v556
          %v601 = vpop.permute.xlu0 %600
          %v603 = vmul.f32 %v596, %v591
          %v604 = vmul.f32 %v601, %v592
          %v605 = vpack.c.bf16 %v574, %v573
          %v607 = vsel %vm541, %v605, 0
          %vm609 = vcmask 1045504
          %v611 = vsel %vm609, %v501, 0
          %613 = vmatpush.bf16.msra.mxu0 0
          %614 = vmatpush.bf16.msra.mxu0 0
          %615 = vmatpush.bf16.msra.mxu0 0
          %616 = vmatpush.bf16.msra.mxu0 0
          %617 = vmatpush.bf16.msra.mxu0 0
          %618 = vmatpush.bf16.msra.mxu0 0
          %619 = vmatpush.bf16.msra.mxu0 0
          %620 = vmatpush.bf16.msra.mxu0 %v611
          %621 = vmatmul.bf16.gmra.mxu0 %v607
          %v622 = vpop.f32.mrf.mxu0
          %v623 = vadd.f32 0.0, %v622
          %v624 = vpop.f32.mrf.mxu0
          %v625 = vadd.f32 0.0, %v624
          %626 = vdwg.mxu0
          %v627 = vadd.f32 %v603, %v623
          %v628 = vadd.f32 %v604, %v625
          %629 = vst [vmem:[#allocation5] sm:$0xff] %v627
          %630 = vst [vmem:[#allocation5 + $0x8] sm:$0xf] %v628
          %631 = vst.msk [vmem:[#allocation3] sm:$0xff] %vm587, %v549
          %632 = vst.msk [vmem:[#allocation3 + $0x8] sm:$0xf] %vm589, %v550
        $region60: #{hrgat_forward.24} parent=47 // pred_fallthru
          _
        // Predicated region
        $region61: #{hrgat_forward.24} parent=47 // pred_check
          %p633 = pneg %p454
        $region62: #{hrgat_forward.24} parent=47 // pred_check_branch
          %635 = sbr.rel (%p633) target = $region64
        $region63: #{hrgat_forward.24} parent=47 // pred_region
          %v636 = vld [vmem:[#allocation4] sm:$0xff]
          %v637 = vld [vmem:[#allocation4 + $0x8] sm:$0xf]
          %v638 = vadd.f32 %v636, 1e-16
          %v639 = vadd.f32 %v637, 1e-16
          %v640 = vrcp.pop %v638
          %v641 = vrcp.pop %v639
          %v642 = vld [vmem:[#allocation5] sm:$0xff]
          %v643 = vld [vmem:[#allocation5 + $0x8] sm:$0xf]
          %645 = vset.pattern.permute.xlu0 0
          %646 = vperm.xlu0 %645, %v640
          %v647 = vpop.permute.xlu0 %646
          %650 = vset.pattern.permute.xlu0 0
          %651 = vperm.xlu0 %650, %v641
          %v652 = vpop.permute.xlu0 %651
          %v654 = vmul.f32 %v642, %v647
          %v655 = vmul.f32 %v643, %v652
          %v656 = vlaneseq
          %v657 = vand.u32 %v656, 127
          %vm658 = vcmp.lt.s32.totalorder %v657, 32
          %v659 = vld [vmem:[%s437] sm:$0x1]
          %v660 = vld [vmem:[%s440] sm:$0x1]
          %v661 = vsel %vm658, 1, 0
          %vm662 = vcmp.eq.s32.totalorder %v661, 1
          %v663 = vsel %vm662, %v654, 0.0
          %v664 = vsel %vm662, %v655, 0.0
          %665 = vadd.xlane.f32.xlu0 %v663
          %v666 = vpop.xlane.xlu0 %665
          %vm667 = vcmask 1043456
          %v668 = vsel %vm667, %v664, 0.0
          %669 = vadd.xlane.f32.xlu0 %v668
          %v670 = vpop.xlane.xlu0 %669
          %v671 = vmul.f32 %v666, 0.03125
          %v672 = vmul.f32 %v670, 0.03125
          %v673 = vsub.f32 %v654, %v671
          %v674 = vsub.f32 %v655, %v672
          %v675 = vsel %vm662, %v673, 0.0
          %v676 = vsel %vm662, %v674, 0.0
          %v677 = vmul.f32 %v675, %v675
          %v678 = vmul.f32 %v676, %v676
          %679 = vadd.xlane.f32.xlu0 %v677
          %v680 = vpop.xlane.xlu0 %679
          %v681 = vsel %vm667, %v678, 0.0
          %682 = vadd.xlane.f32.xlu0 %v681
          %v683 = vpop.xlane.xlu0 %682
          %v684 = vmul.f32 %v680, 0.03125
          %v685 = vmul.f32 %v683, 0.03125
          %v686 = vadd.f32 %v684, 1e-05
          %v687 = vadd.f32 %v685, 1e-05
          %v688 = vrsqrt.pop %v686
          %v689 = vmul.f32 %v688, %v686
          %v690 = vmul.f32 %v689, %v688
          %v691 = vmul.f32 0.5, %v690
          %v692 = vsub.f32 1.5, %v691
          %v693 = vmul.f32 %v688, %v692
          %vm694 = vweird.f32 %v686
          %vm695 = vweird.f32 %v688
          %vm696 = vmor %vm694, %vm695
          %v697 = vsel %vm696, %v688, %v693
          %v698 = vrsqrt.pop %v687
          %v699 = vmul.f32 %v698, %v687
          %v700 = vmul.f32 %v699, %v698
          %v701 = vmul.f32 0.5, %v700
          %v702 = vsub.f32 1.5, %v701
          %v703 = vmul.f32 %v698, %v702
          %vm704 = vweird.f32 %v687
          %vm705 = vweird.f32 %v698
          %vm706 = vmor %vm704, %vm705
          %v707 = vsel %vm706, %v698, %v703
          %v708 = vmul.f32 %v675, %v697
          %v709 = vmul.f32 %v676, %v707
          %v711 = vperm.slane %v659, 0
          %v713 = vmul.f32 %v708, %v711
          %v714 = vmul.f32 %v709, %v711
          %v716 = vperm.slane %v660, 0
          %v718 = vadd.f32 %v713, %v716
          %v719 = vadd.f32 %v714, %v716
          %vm720 = vcmp.gt.f32.partialorder %v718, 0.0
          %vm721 = vcmp.gt.f32.partialorder %v719, 0.0
          %v722 = vmul.f32 %v718, 0.2
          %v723 = vmul.f32 %v719, 0.2
          %v724 = vsel %vm720, %v718, %v722
          %v725 = vsel %vm721, %v719, %v723
          %v726 = vpack.c.bf16 %v725, %v724
          %v727 = vld [vmem:[#allocation8] sm:$0xf]
          %v728 = vld [vmem:[#allocation8 + $0x4] sm:$0xf]
          %v729 = vld [vmem:[#allocation8 + $0x8] sm:$0xf]
          %v730 = vld [vmem:[#allocation8 + $0xc] sm:$0xf]
          %v731 = vld [vmem:[#allocation8 + $0x10] sm:$0xf]
          %v732 = vld [vmem:[#allocation8 + $0x14] sm:$0xf]
          %v733 = vld [vmem:[#allocation8 + $0x18] sm:$0xf]
          %v734 = vld [vmem:[#allocation8 + $0x1c] sm:$0xf]
          %v735 = vld [vmem:[#allocation8 + $0x20] sm:$0xf]
          %v736 = vld [vmem:[#allocation8 + $0x24] sm:$0xf]
          %v737 = vld [vmem:[#allocation8 + $0x28] sm:$0xf]
          %v738 = vld [vmem:[#allocation8 + $0x2c] sm:$0xf]
          %v739 = vld [vmem:[#allocation8 + $0x30] sm:$0xf]
          %v740 = vld [vmem:[#allocation8 + $0x34] sm:$0xf]
          %v741 = vld [vmem:[#allocation8 + $0x38] sm:$0xf]
          %v742 = vld [vmem:[#allocation8 + $0x3c] sm:$0xf]
          %v759 = vunpack.c.l.b16 %v727
          %v760 = vunpack.c.l.b16 %v728
          %v761 = vunpack.c.l.b16 %v729
          %v762 = vunpack.c.l.b16 %v730
          %v763 = vunpack.c.l.b16 %v731
          %v764 = vunpack.c.l.b16 %v732
          %v765 = vunpack.c.l.b16 %v733
          %v766 = vunpack.c.l.b16 %v734
          %v767 = vunpack.c.l.b16 %v735
          %v768 = vunpack.c.l.b16 %v736
          %v769 = vunpack.c.l.b16 %v737
          %v770 = vunpack.c.l.b16 %v738
          %v771 = vunpack.c.l.b16 %v739
          %v772 = vunpack.c.l.b16 %v740
          %v773 = vunpack.c.l.b16 %v741
          %v774 = vunpack.c.l.b16 %v742
          %v775 = vpack.c.b16 %v760, %v759
          %v776 = vpack.c.b16 %v762, %v761
          %v777 = vpack.c.b16 %v764, %v763
          %v778 = vpack.c.b16 %v766, %v765
          %v779 = vpack.c.b16 %v768, %v767
          %v780 = vpack.c.b16 %v770, %v769
          %v781 = vpack.c.b16 %v772, %v771
          %v782 = vpack.c.b16 %v774, %v773
          %791 = vmatpush.bf16.msra.mxu0 %v782
          %792 = vmatpush.bf16.msra.mxu0 %v781
          %793 = vmatpush.bf16.msra.mxu0 %v780
          %794 = vmatpush.bf16.msra.mxu0 %v779
          %795 = vmatpush.bf16.msra.mxu0 %v778
          %796 = vmatpush.bf16.msra.mxu0 %v777
          %797 = vmatpush.bf16.msra.mxu0 %v776
          %798 = vmatpush.bf16.msra.mxu0 %v775
          %799 = vmatmul.bf16.gmra.mxu0 %v726
          %v800 = vpop.f32.mrf.mxu0
          %v801 = vadd.f32 0.0, %v800
          %v802 = vpop.f32.mrf.mxu0
          %v803 = vadd.f32 0.0, %v802
          %804 = vdwg.mxu0
          %v805 = vpack.c.bf16 %v801, %v801
          %v806 = vpack.c.bf16 %v803, %v803
          %807 = vst [vmem:[%s449] sm:$0xf] %v805
          %808 = vst [vmem:[%s449 + $0x4] sm:$0x3] %v806
        $region64: #{hrgat_forward.24} parent=47 // pred_fallthru
          _
        %s809 = smul.u32 2, %s34
        %p810 = scmp.lt.s32.totalorder %s33, 1
        %s811 = scalar_select %p810, %s33, 1
        %p812 = scmp.lt.s32.totalorder %s809, 1
        %s813 = scalar_select %p812, %s809, 1
        %s814 = smul.addr %s811, 2
        %s815 = sadd.s32 %s813, %s814
        %s816 = smul.addr %s815, 4
        %s817 = scalar_lea.vmem %s8, %s816
        // Predicated region
        $region65: #{hrgat_forward.24} parent=47 // pred_check
          %p818 = pneg %p248
        $region66: #{hrgat_forward.24} parent=47 // pred_check_branch
          %820 = sbr.rel (%p818) target = $region68
        $region67: #{hrgat_forward.24} parent=47 // pred_region
          %s821 = smul.u32 2, %s34
        $region68: #{hrgat_forward.24} parent=47 // pred_fallthru
          _
      $region48: #{hrgat_forward.24} parent=5 // pred_fallthru
        _
      %p822 = scmp.le.s32.totalorder 2, %s23
      // Predicated region
      $region69: #{hrgat_forward.24} parent=5 // pred_check
        %p823 = pneg %p822
      $region70: #{hrgat_forward.24} parent=5 // pred_check_branch
        %825 = sbr.rel (%p823) target = $region72
      $region71: #{hrgat_forward.24} parent=5 // pred_region
        %s826 = ssub.s32 %s23, 2
        // Predicated region
        $region73: #{hrgat_forward.24} parent=71 // pred_check
          %p827 = pneg %p254
        $region74: #{hrgat_forward.24} parent=71 // pred_check_branch
          %829 = sbr.rel (%p827) target = $region76
        $region75: #{hrgat_forward.24} parent=71 // pred_region
          %s830 = smul.u32 2, %s37
          %p831 = scmp.lt.s32.totalorder %s36, 1
          %s832 = scalar_select %p831, %s36, 1
          %p833 = scmp.lt.s32.totalorder %s830, 1
          %s834 = scalar_select %p833, %s830, 1
          %s835 = smul.addr %s832, 2
          %s836 = sadd.s32 %s834, %s835
          %s837 = smul.addr %s836, 4
          %s838 = scalar_lea.vmem %s8, %s837
        $region76: #{hrgat_forward.24} parent=71 // pred_fallthru
          _
      $region72: #{hrgat_forward.24} parent=5 // pred_fallthru
        _
    $region6: #{hrgat_forward.24} parent=1 // loop_footer
      %s27 = sadd.s32 1, %s23
    $region7: #{hrgat_forward.24} parent=1 // loop_footer_branch
      %22 = sbr.rel target = $region3
    $region8: #{hrgat_forward.24} parent=1 // loop_exit
      _
    %839 = vsyncpa [#allocation9], 1
    %s840 = scalar_lea.sflag [#allocation9], 1
    %841 = vsyncpa %s840, 1

// kernel: hrgat_forward.34
$region0: #{hrgat_forward.34}
  #allocation0 [shape = 'u32[]', space=smem, size = 0x4, offset = 0x4, fixed_abs, tag = 'smem constant byte address 0x4 - core index']
  #allocation1 [shape = 'u32[72,128]{1,0:T(1,128)}', space=vmem, size = 0x9000, scoped, tag = 'internal scratch']
  #allocation2 [shape = 'f32[12,1]{1,0:T(8,128)}', space=vmem, size = 0x2000, scoped, tag = 'scratch operand']
  #allocation3 [shape = 'f32[12,1]{1,0:T(8,128)}', space=vmem, size = 0x2000, scoped, tag = 'scratch operand']
  #allocation4 [shape = 'f32[12,1]{1,0:T(8,128)}', space=vmem, size = 0x2000, scoped, tag = 'scratch operand']
  #allocation5 [shape = 'f32[12,128]{1,0:T(8,128)}', space=vmem, size = 0x2000, scoped, tag = 'scratch operand']
  #allocation6 [shape = 's32[1]{0}', space=sflag, size = 0x4, scoped, tag = 'scoped memory for hrgat_forward.34']
  #allocation7 [shape = 'u8[512]{0}', space=smem, size = 0x200, scoped, tag = 'prefetched SMEM operand 0']
  %s0 = inlined_call_operand.vmem [shape: s32[2], index: 0, kind: input, shape index: {}]
  %s1 = inlined_call_operand.vmem [shape: bf16[12,128], index: 1, kind: input, shape index: {}]
  %s2 = inlined_call_operand.vmem [shape: bf16[16,128], index: 2, kind: input, shape index: {}]
  %s3 = inlined_call_operand.vmem [shape: f32[2,2,128], index: 3, kind: input, shape index: {}]
  %s4 = inlined_call_operand.vmem [shape: s8[2,12,16], index: 4, kind: input, shape index: {}]
  %s5 = inlined_call_operand.hbm [shape: bf16[128,128], index: 5, kind: input, shape index: {}]
  %s6 = inlined_call_operand.vmem [shape: bf16[2,12,128], index: 6, kind: output, shape index: {}]
  %s7 = sld [smem:[#allocation0]]
  $region69: #{hrgat_forward.34} parent=0
    _
  %s9 = ssub.s32 1, %s7
  %s10 = scalar_select 0, %s9, %s7
  %s12 = sshll.u32 %s0, 4
  %s13 = int_to_ptr.vmem [resolvable:$true] %s12
  %15 = dma.vmem_to_smem %s13, 16, [#allocation7], [#allocation6]
  %17 = dma.done [#allocation6], 16
  %18 = sfence
  $region1: #{hrgat_forward.34} parent=0
    #allocation8 [shape = 'u8[32768]{0}', space=vmem, size = 0x8000, scoped, tag = 'input window, operand 5, single buffered']
    #allocation9 [shape = 's32[2]{0}', space=sflag, size = 0x8, scoped, tag = 'scoped memory for hrgat_forward.34']
    %19 = vsyncpa [#allocation9], 0
    loop: start=0, step=1, limit=4
    $region2: #{hrgat_forward.34} parent=1 // loop_pre_header
      _
    $region3: #{hrgat_forward.34} parent=1 // loop_header
      %s21 = sphi 0, %s25
      %p22 = scmp.ge.s32.totalorder %s21, 4
      %s28 = sphi 0, %s47
      %s29 = sphi 0, %s43
      %s30 = sphi 0, %s39
      %s31 = sphi 0, %s28
      %s32 = sphi 0, %s29
      %s33 = sphi 0, %s30
      %s34 = sphi 0, %s31
      %s35 = sphi 0, %s32
      %s36 = sphi 0, %s33
      %s50 = sphi 0, %s52
      %s53 = sphi 0, %s50
      %s54 = sphi 0, %s53
      %s70 = sphi 0, %s54
      %s76 = sphi 0, %s78
      %s79 = sphi 0, %s76
      %s80 = sphi 0, %s79
      %s96 = sphi 0, %s80
      %s102 = sphi 0, %s104
      %s105 = sphi 0, %s102
      %s106 = sphi 0, %s105
      %s122 = sphi 0, %s106
      %s132 = sphi 0, %s134
      %s135 = sphi 0, %s132
      %s136 = sphi 0, %s135
      %s152 = sphi 0, %s136
      %s156 = sphi 0, %s156
      %s158 = sphi 0, %s156
      %s159 = sphi 0, %s158
      %s173 = sphi 0, %s159
      %s181 = sphi 0, %s183
      %s184 = sphi 0, %s181
      %s185 = sphi 0, %s184
      %s201 = sphi 0, %s185
    $region4: #{hrgat_forward.34} parent=1 // loop_header_branch
      %24 = sbr.rel (%p22) target = $region8
    $region5: #{hrgat_forward.34} parent=1 // loop_body
      %s26 = ssub.s32 %s21, 1
      %s27 = ssub.s32 %s21, 2
      %s37 = sadd.s32 1, %s30
      %p38 = scmp.ge.s32.totalorder %s37, 1
      %s39 = scalar_select %p38, 0, %s37
      %s40 = sadd.s32 1, %s29
      %s41 = scalar_select %p38, %s40, %s29
      %p42 = scmp.ge.s32.totalorder %s41, 1
      %s43 = scalar_select %p42, 0, %s41
      %s44 = sadd.s32 1, %s28
      %s45 = scalar_select %p42, %s44, %s28
      %p46 = scmp.ge.s32.totalorder %s45, 2
      %s47 = scalar_select %p46, 0, %s45
      %s48 = ssub.s32 %s29, %s43
      %p49 = scmp.eq.s32.totalorder %s48, 0
      %s51 = sadd.s32 %s50, 1
      %s52 = scalar_select %p49, %s50, %s51
      %p55 = pneg %p49
      %p56 = scmp.eq.s32.totalorder %s21, 1
      %p57 = por %p55, %p56
      %p58 = scmp.ne.s32.totalorder %s50, %s53
      %p59 = scmp.eq.s32.totalorder %s21, 0
      %p60 = por %p58, %p59
      %p61 = scmp.ne.s32.totalorder %s50, %s53
      %p62 = scmp.eq.s32.totalorder %s26, 1
      %p63 = por %p61, %p62
      %p64 = scmp.ne.s32.totalorder %s53, %s54
      %p65 = scmp.eq.s32.totalorder %s26, 0
      %p66 = por %p64, %p65
      %p67 = scmp.ne.s32.totalorder %s53, %s54
      %p68 = scmp.eq.s32.totalorder %s27, 1
      %p69 = por %p67, %p68
      %p71 = scmp.ne.s32.totalorder %s54, %s70
      %p72 = scmp.eq.s32.totalorder %s27, 0
      %p73 = por %p71, %p72
      %s74 = ssub.s32 %s30, %s39
      %p75 = scmp.eq.s32.totalorder %s74, 0
      %s77 = sadd.s32 %s76, 1
      %s78 = scalar_select %p75, %s76, %s77
      %p81 = pneg %p75
      %p82 = scmp.eq.s32.totalorder %s21, 1
      %p83 = por %p81, %p82
      %p84 = scmp.ne.s32.totalorder %s76, %s79
      %p85 = scmp.eq.s32.totalorder %s21, 0
      %p86 = por %p84, %p85
      %p87 = scmp.ne.s32.totalorder %s76, %s79
      %p88 = scmp.eq.s32.totalorder %s26, 1
      %p89 = por %p87, %p88
      %p90 = scmp.ne.s32.totalorder %s79, %s80
      %p91 = scmp.eq.s32.totalorder %s26, 0
      %p92 = por %p90, %p91
      %p93 = scmp.ne.s32.totalorder %s79, %s80
      %p94 = scmp.eq.s32.totalorder %s27, 1
      %p95 = por %p93, %p94
      %p97 = scmp.ne.s32.totalorder %s80, %s96
      %p98 = scmp.eq.s32.totalorder %s27, 0
      %p99 = por %p97, %p98
      %s100 = ssub.s32 %s28, %s47
      %p101 = scmp.eq.s32.totalorder %s100, 0
      %s103 = sadd.s32 %s102, 1
      %s104 = scalar_select %p101, %s102, %s103
      %p107 = pneg %p101
      %p108 = scmp.eq.s32.totalorder %s21, 1
      %p109 = por %p107, %p108
      %p110 = scmp.ne.s32.totalorder %s102, %s105
      %p111 = scmp.eq.s32.totalorder %s21, 0
      %p112 = por %p110, %p111
      %p113 = scmp.ne.s32.totalorder %s102, %s105
      %p114 = scmp.eq.s32.totalorder %s26, 1
      %p115 = por %p113, %p114
      %p116 = scmp.ne.s32.totalorder %s105, %s106
      %p117 = scmp.eq.s32.totalorder %s26, 0
      %p118 = por %p116, %p117
      %p119 = scmp.ne.s32.totalorder %s105, %s106
      %p120 = scmp.eq.s32.totalorder %s27, 1
      %p121 = por %p119, %p120
      %p123 = scmp.ne.s32.totalorder %s106, %s122
      %p124 = scmp.eq.s32.totalorder %s27, 0
      %p125 = por %p123, %p124
      %s126 = ssub.s32 %s28, %s47
      %s127 = ssub.s32 %s29, %s43
      %s128 = sor.u32 %s126, %s127
      %s129 = ssub.s32 %s30, %s39
      %s130 = sor.u32 %s128, %s129
      %p131 = scmp.eq.s32.totalorder %s130, 0
      %s133 = sadd.s32 %s132, 1
      %s134 = scalar_select %p131, %s132, %s133
      %p137 = pneg %p131
      %p138 = scmp.eq.s32.totalorder %s21, 1
      %p139 = por %p137, %p138
      %p140 = scmp.ne.s32.totalorder %s132, %s135
      %p141 = scmp.eq.s32.totalorder %s21, 0
      %p142 = por %p140, %p141
      %p143 = scmp.ne.s32.totalorder %s132, %s135
      %p144 = scmp.eq.s32.totalorder %s26, 1
      %p145 = por %p143, %p144
      %p146 = scmp.ne.s32.totalorder %s135, %s136
      %p147 = scmp.eq.s32.totalorder %s26, 0
      %p148 = por %p146, %p147
      %p149 = scmp.ne.s32.totalorder %s135, %s136
      %p150 = scmp.eq.s32.totalorder %s27, 1
      %p151 = por %p149, %p150
      %p153 = scmp.ne.s32.totalorder %s136, %s152
      %p154 = scmp.eq.s32.totalorder %s27, 0
      %p155 = por %p153, %p154
      %s157 = sadd.s32 %s156, 1
      %p160 = scmp.eq.s32.totalorder %s21, 1
      %p161 = scmp.ne.s32.totalorder %s156, %s158
      %p162 = scmp.eq.s32.totalorder %s21, 0
      %p163 = por %p161, %p162
      %p164 = scmp.ne.s32.totalorder %s156, %s158
      %p165 = scmp.eq.s32.totalorder %s26, 1
      %p166 = por %p164, %p165
      %p167 = scmp.ne.s32.totalorder %s158, %s159
      %p168 = scmp.eq.s32.totalorder %s26, 0
      %p169 = por %p167, %p168
      %p170 = scmp.ne.s32.totalorder %s158, %s159
      %p171 = scmp.eq.s32.totalorder %s27, 1
      %p172 = por %p170, %p171
      %p174 = scmp.ne.s32.totalorder %s159, %s173
      %p175 = scmp.eq.s32.totalorder %s27, 0
      %p176 = por %p174, %p175
      %s177 = ssub.s32 %s28, %s47
      %s178 = ssub.s32 %s29, %s43
      %s179 = sor.u32 %s177, %s178
      %p180 = scmp.eq.s32.totalorder %s179, 0
      %s182 = sadd.s32 %s181, 1
      %s183 = scalar_select %p180, %s181, %s182
      %p186 = pneg %p180
      %p187 = scmp.eq.s32.totalorder %s21, 1
      %p188 = por %p186, %p187
      %p189 = scmp.ne.s32.totalorder %s181, %s184
      %p190 = scmp.eq.s32.totalorder %s21, 0
      %p191 = por %p189, %p190
      %p192 = scmp.ne.s32.totalorder %s181, %s184
      %p193 = scmp.eq.s32.totalorder %s26, 1
      %p194 = por %p192, %p193
      %p195 = scmp.ne.s32.totalorder %s184, %s185
      %p196 = scmp.eq.s32.totalorder %s26, 0
      %p197 = por %p195, %p196
      %p198 = scmp.ne.s32.totalorder %s184, %s185
      %p199 = scmp.eq.s32.totalorder %s27, 1
      %p200 = por %p198, %p199
      %p202 = scmp.ne.s32.totalorder %s185, %s201
      %p203 = scmp.eq.s32.totalorder %s27, 0
      %p204 = por %p202, %p203
      %p205 = scmp.le.s32.totalorder 1, %s21
      %p206 = scmp.lt.s32.totalorder %s21, 3
      %p207 = pnand %p205, %p206
      %p208 = pneg %p207
      // Predicated region
      $region9: #{hrgat_forward.34} parent=5 // pred_check
        _
      $region10: #{hrgat_forward.34} parent=5 // pred_check_branch
        %210 = sbr.rel (%p207) target = $region12
      $region11: #{hrgat_forward.34} parent=5 // pred_region
        %s211 = ssub.s32 %s21, 1
        // Predicated region
        $region13: #{hrgat_forward.34} parent=11 // pred_check
          %p212 = pneg %p66
        $region14: #{hrgat_forward.34} parent=11 // pred_check_branch
          %214 = sbr.rel (%p212) target = $region16
        $region15: #{hrgat_forward.34} parent=11 // pred_region
          %s215 = smul.u32 2, %s32
          %p216 = scmp.lt.s32.totalorder %s215, 1
          %s217 = scalar_select %p216, %s215, 1
          %s218 = smul.addr %s217, 4
          %s219 = scalar_lea.vmem %s1, %s218
          %s220 = smul.u32 2, %s32
        $region16: #{hrgat_forward.34} parent=11 // pred_fallthru
          _
        // Predicated region
        $region17: #{hrgat_forward.34} parent=11 // pred_check
          %p221 = pneg %p92
        $region18: #{hrgat_forward.34} parent=11 // pred_check_branch
          %223 = sbr.rel (%p221) target = $region20
        $region19: #{hrgat_forward.34} parent=11 // pred_region
          %s224 = smul.u32 2, %s33
          %p225 = scmp.lt.s32.totalorder %s224, 1
          %s226 = scalar_select %p225, %s224, 1
          %s227 = smul.addr %s226, 4
          %s228 = scalar_lea.vmem %s2, %s227
          %s229 = smul.u32 2, %s33
        $region20: #{hrgat_forward.34} parent=11 // pred_fallthru
          _
        // Predicated region
        $region21: #{hrgat_forward.34} parent=11 // pred_check
          %p230 = pneg %p169
        $region22: #{hrgat_forward.34} parent=11 // pred_check_branch
          %232 = sbr.rel (%p230) target = $region24
        $region23: #{hrgat_forward.34} parent=11 // pred_region
          %234 = vsyncadd [#allocation9], 0
          %s235 = sshll.u32 %s5, 4
          %s236 = int_to_ptr.hbm [resolvable:$true] %s235
          %s237 = sshll.u32 [#allocation8], 4
          %s238 = int_to_ptr.vmem [resolvable:$true] %s237
          %243 = dma.hbm_to_vmem [thread:$0]  %s236, 1024, %s238, [#allocation9], 64, 64, 4
        $region24: #{hrgat_forward.34} parent=11 // pred_fallthru
          _
      $region12: #{hrgat_forward.34} parent=5 // pred_fallthru
        _
      %p244 = scmp.lt.s32.totalorder %s21, 2
      // Predicated region
      $region25: #{hrgat_forward.34} parent=5 // pred_check
        %p245 = pneg %p244
      $region26: #{hrgat_forward.34} parent=5 // pred_check_branch
        %247 = sbr.rel (%p245) target = $region28
      $region27: #{hrgat_forward.34} parent=5 // pred_region
        // Predicated region
        $region29: #{hrgat_forward.34} parent=27 // pred_check
          %p248 = pneg %p112
        $region30: #{hrgat_forward.34} parent=27 // pred_check_branch
          %250 = sbr.rel (%p248) target = $region32
        $region31: #{hrgat_forward.34} parent=27 // pred_region
          %p251 = scmp.lt.s32.totalorder %s28, 1
          %s252 = scalar_select %p251, %s28, 1
          %s253 = smul.addr %s252, 2
          %s254 = scalar_lea.vmem %s3, %s253
        $region32: #{hrgat_forward.34} parent=27 // pred_fallthru
          _
        // Predicated region
        $region33: #{hrgat_forward.34} parent=27 // pred_check
          %p255 = pneg %p142
        $region34: #{hrgat_forward.34} parent=27 // pred_check_branch
          %257 = sbr.rel (%p255) target = $region36
        $region35: #{hrgat_forward.34} parent=27 // pred_region
          %s258 = smul.u32 2, %s29
          %p259 = scmp.lt.s32.totalorder %s28, 1
          %s260 = scalar_select %p259, %s28, 1
          %p261 = scmp.lt.s32.totalorder %s258, 1
          %s262 = scalar_select %p261, %s258, 1
          %p263 = scmp.lt.s32.totalorder %s30, 0
          %s264 = scalar_select %p263, %s30, 0
          %s265 = sadd.s32 %s264, %s262
          %s266 = smul.addr %s260, 2
          %s267 = sadd.s32 %s265, %s266
          %s268 = smul.addr %s267, 2
          %s269 = scalar_lea.vmem %s4, %s268
          %s270 = smul.u32 2, %s29
        $region36: #{hrgat_forward.34} parent=27 // pred_fallthru
          _
      $region28: #{hrgat_forward.34} parent=5 // pred_fallthru
        _
      %p271 = scmp.le.s32.totalorder 1, %s21
      %p272 = scmp.lt.s32.totalorder %s21, 3
      %p273 = pnand %p271, %p272
      %p274 = pneg %p273
      // Predicated region
      $region37: #{hrgat_forward.34} parent=5 // pred_check
        _
      $region38: #{hrgat_forward.34} parent=5 // pred_check_branch
        %276 = sbr.rel (%p273) target = $region40
      $region39: #{hrgat_forward.34} parent=5 // pred_region
        %s277 = ssub.s32 %s21, 1
        // Predicated region
        $region41: #{hrgat_forward.34} parent=39 // pred_check
          %p278 = pneg %p169
        $region42: #{hrgat_forward.34} parent=39 // pred_check_branch
          %280 = sbr.rel (%p278) target = $region44
        $region43: #{hrgat_forward.34} parent=39 // pred_region
          %282 = dma.done [#allocation9], 1024
        $region44: #{hrgat_forward.34} parent=39 // pred_fallthru
          _
        %s283 = smul.u32 2, %s32
        %p284 = scmp.lt.s32.totalorder %s283, 1
        %s285 = scalar_select %p284, %s283, 1
        %s286 = smul.addr %s285, 4
        %s287 = scalar_lea.vmem %s1, %s286
        %p288 = pneg %p66
        %p289 = pneg %p63
        %s290 = smul.u32 2, %s33
        %p291 = scmp.lt.s32.totalorder %s290, 1
        %s292 = scalar_select %p291, %s290, 1
        %s293 = smul.addr %s292, 4
        %s294 = scalar_lea.vmem %s2, %s293
        %p295 = pneg %p92
        %p296 = pneg %p89
        %p297 = scmp.lt.s32.totalorder %s31, 1
        %s298 = scalar_select %p297, %s31, 1
        %s299 = smul.addr %s298, 2
        %s300 = scalar_lea.vmem %s3, %s299
        %p301 = pneg %p118
        %p302 = pneg %p115
        %s303 = smul.u32 2, %s32
        %p304 = scmp.lt.s32.totalorder %s31, 1
        %s305 = scalar_select %p304, %s31, 1
        %p306 = scmp.lt.s32.totalorder %s303, 1
        %s307 = scalar_select %p306, %s303, 1
        %p308 = scmp.lt.s32.totalorder %s33, 0
        %s309 = scalar_select %p308, %s33, 0
        %s310 = sadd.s32 %s309, %s307
        %s311 = smul.addr %s305, 2
        %s312 = sadd.s32 %s310, %s311
        %s313 = smul.addr %s312, 2
        %s314 = scalar_lea.vmem %s4, %s313
        %p315 = pneg %p148
        %p316 = pneg %p145
        %p317 = pneg %p169
        %p318 = pneg %p166
        %p319 = pneg %p197
        %p320 = pneg %p194
        %s321 = smul.u32 2, %s32
        %p322 = scmp.lt.s32.totalorder %s31, 1
        %s323 = scalar_select %p322, %s31, 1
        %p324 = scmp.lt.s32.totalorder %s321, 1
        %s325 = scalar_select %p324, %s321, 1
        %s326 = smul.addr %s323, 2
        %s327 = sadd.s32 %s325, %s326
        %s328 = smul.addr %s327, 4
        %s329 = scalar_lea.vmem %s6, %s328
        %s330 = smul.u32 2, %s32
        %p331 = scmp.lt.s32.totalorder %s330, 1
        %s332 = scalar_select %p331, %s330, 1
        %s333 = smul.addr %s332, 4
        %s334 = scalar_lea.vmem %s1, %s333
        %s335 = smul.u32 2, %s32
        %s336 = smul.u32 2, %s33
        %p337 = scmp.lt.s32.totalorder %s336, 1
        %s338 = scalar_select %p337, %s336, 1
        %s339 = smul.addr %s338, 4
        %s340 = scalar_lea.vmem %s2, %s339
        %s341 = smul.u32 2, %s33
        %p342 = scmp.lt.s32.totalorder %s31, 1
        %s343 = scalar_select %p342, %s31, 1
        %s344 = smul.addr %s343, 2
        %s345 = scalar_lea.vmem %s3, %s344
        %s346 = smul.u32 2, %s32
        %p347 = scmp.lt.s32.totalorder %s31, 1
        %s348 = scalar_select %p347, %s31, 1
        %p349 = scmp.lt.s32.totalorder %s346, 1
        %s350 = scalar_select %p349, %s346, 1
        %p351 = scmp.lt.s32.totalorder %s33, 0
        %s352 = scalar_select %p351, %s33, 0
        %s353 = sadd.s32 %s352, %s350
        %s354 = smul.addr %s348, 2
        %s355 = sadd.s32 %s353, %s354
        %s356 = smul.addr %s355, 2
        %s357 = scalar_lea.vmem %s4, %s356
        %s358 = smul.u32 2, %s32
        %s359 = smul.u32 2, %s32
        %p360 = scmp.lt.s32.totalorder %s31, 1
        %s361 = scalar_select %p360, %s31, 1
        %p362 = scmp.lt.s32.totalorder %s359, 1
        %s363 = scalar_select %p362, %s359, 1
        %s364 = smul.addr %s361, 2
        %s365 = sadd.s32 %s363, %s364
        %s366 = smul.addr %s365, 4
        %s367 = scalar_lea.vmem %s6, %s366
        %s368 = smul.u32 2, %s32
        %p372 = scmp.eq.s32.totalorder %s33, 0
        // Predicated region
        $region45: #{hrgat_forward.34} parent=39 // pred_check
          %p373 = pneg %p372
        $region46: #{hrgat_forward.34} parent=39 // pred_check_branch
          %375 = sbr.rel (%p373) target = $region48
        $region47: #{hrgat_forward.34} parent=39 // pred_region
          %vm376 = vcmask 7168
          %377 = vst.msk [vmem:[#allocation3] sm:$0xff] %vm376, -1e+30
          %vm378 = vcmask 3072
          %379 = vst.msk [vmem:[#allocation3 + $0x8] sm:$0xf] %vm378, -1e+30
          %380 = vst.msk [vmem:[#allocation4] sm:$0xff] %vm376, 0.0
          %381 = vst.msk [vmem:[#allocation4 + $0x8] sm:$0xf] %vm378, 0.0
          %382 = vst [vmem:[#allocation5] sm:$0xff] 0.0
          %383 = vst [vmem:[#allocation5 + $0x8] sm:$0xf] 0.0
          %v384 = vld [vmem:[%s334] sm:$0xf]
          %v385 = vld [vmem:[%s334 + $0x4] sm:$0x3]
          %v386 = vunpack.c.l.bf16 %v384
          %v387 = vunpack.c.l.bf16 %v385
          %v388 = vld [vmem:[%s345] sm:$0x1]
          %v389 = vperm.slane %v388, 0
          %v390 = vmul.f32 %v386, %v389
          %v391 = vmul.f32 %v387, %v389
          %392 = vadd.xlane.f32.xlu0 %v390
          %v393 = vpop.xlane.xlu0 %392
          %vm394 = vcmask 1043456
          %v395 = vsel %vm394, %v391, 0.0
          %396 = vadd.xlane.f32.xlu0 %v395
          %v397 = vpop.xlane.xlu0 %396
          %398 = vst.msk [vmem:[#allocation2] sm:$0xff] %vm376, %v393
          %399 = vst.msk [vmem:[#allocation2 + $0x8] sm:$0xf] %vm378, %v397
        $region48: #{hrgat_forward.34} parent=39 // pred_fallthru
          _
        %s400 = sadd.s32 %s31, %s32
        %s401 = sadd.s32 %s400, %s33
        %s402 = sld [smem:[#allocation7 + %s401]]
        %p403 = scmp.gt.s32.totalorder %s402, 0
        // Predicated region
        $region49: #{hrgat_forward.34} parent=39 // pred_check
          %p404 = pneg %p403
        $region50: #{hrgat_forward.34} parent=39 // pred_check_branch
          %406 = sbr.rel (%p404) target = $region52
        $region51: #{hrgat_forward.34} parent=39 // pred_region
          %v407 = vld [vmem:[%s340] sm:$0xf]
          %v408 = vld [vmem:[%s340 + $0x4] sm:$0xf]
          %v409 = vld [vmem:[%s357] sm:$0x3]
          %v410 = vld [vmem:[%s357 + $0x2] sm:$0x1]
          %vm411 = vnez %v409
          %vm412 = vnez %v410
          %v413 = vld [vmem:[%s345 + $0x1] sm:$0x1]
          %v414 = vpack.c.bf16 %v413, %v413
          %v417 = vunpack.c.l.b16 %v407
          %v418 = vunpack.c.l.b16 %v408
          %v419 = vpack.c.b16 %v418, %v417
          %421 = vmatpush.bf16.xpose.msra.mxu0 0
          %422 = vmatpush.bf16.xpose.msra.mxu0 0
          %423 = vmatpush.bf16.xpose.msra.mxu0 0
          %424 = vmatpush.bf16.xpose.msra.mxu0 0
          %425 = vmatpush.bf16.xpose.msra.mxu0 0
          %426 = vmatpush.bf16.xpose.msra.mxu0 0
          %427 = vmatpush.bf16.xpose.msra.mxu0 0
          %428 = vmatpush.bf16.xpose.msra.mxu0 %v419
          %429 = vmatmul.bf16.gmra.mxu0 %v414
          %v430 = vpop.f32.mrf.mxu0
          %v431 = vadd.f32 0.0, %v430
          %v432 = vpop.f32.mrf.mxu0
          %433 = vdwg.mxu0
          %v434 = vld [vmem:[#allocation2] sm:$0xff]
          %v435 = vld [vmem:[#allocation2 + $0x8] sm:$0xf]
          %437 = vset.pattern.permute.xlu0 0
          %438 = vperm.xlu0 %437, %v434
          %v439 = vpop.permute.xlu0 %438
          %442 = vset.pattern.permute.xlu0 0
          %443 = vperm.xlu0 %442, %v435
          %v444 = vpop.permute.xlu0 %443
          %v446 = vperm.slane %v431, 0
          %v447 = vadd.f32 %v439, %v446
          %v448 = vadd.f32 %v444, %v446
          %v449 = vsel %vm411, 16843009, 0
          %v450 = vsel %vm412, 16843009, 0
          %v451 = vunpack.c.0.s8 %v449
          %v452 = vunpack.c.0.s8 %v450
          %vm453 = vcmp.ne.s32.totalorder %v451, 0
          %vm454 = vcmp.ne.s32.totalorder %v452, 0
          %v455 = vsel %vm453, %v447, -1e+30
          %v456 = vsel %vm454, %v448, -1e+30
          %v457 = vld [vmem:[#allocation3] sm:$0xff]
          %v458 = vld [vmem:[#allocation3 + $0x8] sm:$0xf]
          %vm459 = vcmask 130048
          %v460 = vsel %vm459, %v455, -inf
          %461 = vmax.xlane.f32.xlu0 %v460
          %v462 = vpop.xlane.xlu0 %461
          %vm463 = vcmask 125952
          %v464 = vsel %vm463, %v456, -inf
          %465 = vmax.xlane.f32.xlu0 %v464
          %v466 = vpop.xlane.xlu0 %465
          %v467 = vmax.f32 %v457, %v462
          %v468 = vmax.f32 %v458, %v466
          %v469 = vsub.f32 %v457, %v467
          %v470 = vsub.f32 %v458, %v468
          %v471 = vmul.f32 %v469, 1.442695
          %v472 = vpow.pop %v471
          %v473 = vmul.f32 %v470, 1.442695
          %v474 = vpow.pop %v473
          %476 = vset.pattern.permute.xlu0 0
          %477 = vperm.xlu0 %476, %v467
          %v478 = vpop.permute.xlu0 %477
          %481 = vset.pattern.permute.xlu0 0
          %482 = vperm.xlu0 %481, %v468
          %v483 = vpop.permute.xlu0 %482
          %v485 = vsub.f32 %v455, %v478
          %v486 = vsub.f32 %v456, %v483
          %v487 = vmul.f32 %v485, 1.442695
          %v488 = vpow.pop %v487
          %v489 = vmul.f32 %v486, 1.442695
          %v490 = vpow.pop %v489
          %v491 = vsel %vm453, %v488, 0.0
          %v492 = vsel %vm454, %v490, 0.0
          %v493 = vld [vmem:[#allocation4] sm:$0xff]
          %v494 = vld [vmem:[#allocation4 + $0x8] sm:$0xf]
          %v495 = vmul.f32 %v472, %v493
          %v496 = vmul.f32 %v474, %v494
          %v497 = vsel %vm459, %v491, 0.0
          %498 = vadd.xlane.f32.xlu0 %v497
          %v499 = vpop.xlane.xlu0 %498
          %v500 = vsel %vm463, %v492, 0.0
          %501 = vadd.xlane.f32.xlu0 %v500
          %v502 = vpop.xlane.xlu0 %501
          %v503 = vadd.f32 %v495, %v499
          %v504 = vadd.f32 %v496, %v502
          %vm505 = vcmask 7168
          %506 = vst.msk [vmem:[#allocation4] sm:$0xff] %vm505, %v503
          %vm507 = vcmask 3072
          %508 = vst.msk [vmem:[#allocation4 + $0x8] sm:$0xf] %vm507, %v504
          %v509 = vld [vmem:[#allocation5] sm:$0xff]
          %v510 = vld [vmem:[#allocation5 + $0x8] sm:$0xf]
          %512 = vset.pattern.permute.xlu0 0
          %513 = vperm.xlu0 %512, %v472
          %v514 = vpop.permute.xlu0 %513
          %517 = vset.pattern.permute.xlu0 0
          %518 = vperm.xlu0 %517, %v474
          %v519 = vpop.permute.xlu0 %518
          %v521 = vmul.f32 %v514, %v509
          %v522 = vmul.f32 %v519, %v510
          %v523 = vpack.c.bf16 %v492, %v491
          %v525 = vsel %vm459, %v523, 0
          %527 = vmatpush.bf16.msra.mxu0 0
          %528 = vmatpush.bf16.msra.mxu0 0
          %529 = vmatpush.bf16.msra.mxu0 0
          %530 = vmatpush.bf16.msra.mxu0 0
          %531 = vmatpush.bf16.msra.mxu0 0
          %532 = vmatpush.bf16.msra.mxu0 0
          %533 = vmatpush.bf16.msra.mxu0 0
          %534 = vmatpush.bf16.msra.mxu0 %v419
          %535 = vmatmul.bf16.gmra.mxu0 %v525
          %v536 = vpop.f32.mrf.mxu0
          %v537 = vadd.f32 0.0, %v536
          %v538 = vpop.f32.mrf.mxu0
          %v539 = vadd.f32 0.0, %v538
          %540 = vdwg.mxu0
          %v541 = vadd.f32 %v521, %v537
          %v542 = vadd.f32 %v522, %v539
          %543 = vst [vmem:[#allocation5] sm:$0xff] %v541
          %544 = vst [vmem:[#allocation5 + $0x8] sm:$0xf] %v542
          %545 = vst.msk [vmem:[#allocation3] sm:$0xff] %vm505, %v467
          %546 = vst.msk [vmem:[#allocation3 + $0x8] sm:$0xf] %vm507, %v468
        $region52: #{hrgat_forward.34} parent=39 // pred_fallthru
          _
        // Predicated region
        $region53: #{hrgat_forward.34} parent=39 // pred_check
          %p547 = pneg %p372
        $region54: #{hrgat_forward.34} parent=39 // pred_check_branch
          %549 = sbr.rel (%p547) target = $region56
        $region55: #{hrgat_forward.34} parent=39 // pred_region
          %v550 = vld [vmem:[#allocation4] sm:$0xff]
          %v551 = vld [vmem:[#allocation4 + $0x8] sm:$0xf]
          %v552 = vadd.f32 %v550, 1e-16
          %v553 = vadd.f32 %v551, 1e-16
          %v554 = vrcp.pop %v552
          %v555 = vrcp.pop %v553
          %v556 = vld [vmem:[#allocation5] sm:$0xff]
          %v557 = vld [vmem:[#allocation5 + $0x8] sm:$0xf]
          %559 = vset.pattern.permute.xlu0 0
          %560 = vperm.xlu0 %559, %v554
          %v561 = vpop.permute.xlu0 %560
          %564 = vset.pattern.permute.xlu0 0
          %565 = vperm.xlu0 %564, %v555
          %v566 = vpop.permute.xlu0 %565
          %v568 = vmul.f32 %v556, %v561
          %v569 = vmul.f32 %v557, %v566
          %vm570 = vcmp.gt.f32.partialorder %v568, 0.0
          %vm571 = vcmp.gt.f32.partialorder %v569, 0.0
          %v572 = vmul.f32 %v568, 0.2
          %v573 = vmul.f32 %v569, 0.2
          %v574 = vsel %vm570, %v568, %v572
          %v575 = vsel %vm571, %v569, %v573
          %v576 = vpack.c.bf16 %v575, %v574
          %v577 = vld [vmem:[#allocation8] sm:$0xf]
          %v578 = vld [vmem:[#allocation8 + $0x4] sm:$0xf]
          %v579 = vld [vmem:[#allocation8 + $0x8] sm:$0xf]
          %v580 = vld [vmem:[#allocation8 + $0xc] sm:$0xf]
          %v581 = vld [vmem:[#allocation8 + $0x10] sm:$0xf]
          %v582 = vld [vmem:[#allocation8 + $0x14] sm:$0xf]
          %v583 = vld [vmem:[#allocation8 + $0x18] sm:$0xf]
          %v584 = vld [vmem:[#allocation8 + $0x1c] sm:$0xf]
          %v585 = vld [vmem:[#allocation8 + $0x20] sm:$0xf]
          %v586 = vld [vmem:[#allocation8 + $0x24] sm:$0xf]
          %v587 = vld [vmem:[#allocation8 + $0x28] sm:$0xf]
          %v588 = vld [vmem:[#allocation8 + $0x2c] sm:$0xf]
          %v589 = vld [vmem:[#allocation8 + $0x30] sm:$0xf]
          %v590 = vld [vmem:[#allocation8 + $0x34] sm:$0xf]
          %v591 = vld [vmem:[#allocation8 + $0x38] sm:$0xf]
          %v592 = vld [vmem:[#allocation8 + $0x3c] sm:$0xf]
          %v609 = vunpack.c.l.b16 %v577
          %v610 = vunpack.c.l.b16 %v578
          %v611 = vunpack.c.l.b16 %v579
          %v612 = vunpack.c.l.b16 %v580
          %v613 = vunpack.c.l.b16 %v581
          %v614 = vunpack.c.l.b16 %v582
          %v615 = vunpack.c.l.b16 %v583
          %v616 = vunpack.c.l.b16 %v584
          %v617 = vunpack.c.l.b16 %v585
          %v618 = vunpack.c.l.b16 %v586
          %v619 = vunpack.c.l.b16 %v587
          %v620 = vunpack.c.l.b16 %v588
          %v621 = vunpack.c.l.b16 %v589
          %v622 = vunpack.c.l.b16 %v590
          %v623 = vunpack.c.l.b16 %v591
          %v624 = vunpack.c.l.b16 %v592
          %v625 = vpack.c.b16 %v610, %v609
          %v626 = vpack.c.b16 %v612, %v611
          %v627 = vpack.c.b16 %v614, %v613
          %v628 = vpack.c.b16 %v616, %v615
          %v629 = vpack.c.b16 %v618, %v617
          %v630 = vpack.c.b16 %v620, %v619
          %v631 = vpack.c.b16 %v622, %v621
          %v632 = vpack.c.b16 %v624, %v623
          %641 = vmatpush.bf16.msra.mxu0 %v632
          %642 = vmatpush.bf16.msra.mxu0 %v631
          %643 = vmatpush.bf16.msra.mxu0 %v630
          %644 = vmatpush.bf16.msra.mxu0 %v629
          %645 = vmatpush.bf16.msra.mxu0 %v628
          %646 = vmatpush.bf16.msra.mxu0 %v627
          %647 = vmatpush.bf16.msra.mxu0 %v626
          %648 = vmatpush.bf16.msra.mxu0 %v625
          %649 = vmatmul.bf16.gmra.mxu0 %v576
          %v650 = vpop.f32.mrf.mxu0
          %v651 = vadd.f32 0.0, %v650
          %v652 = vpop.f32.mrf.mxu0
          %v653 = vadd.f32 0.0, %v652
          %654 = vdwg.mxu0
          %v655 = vpack.c.bf16 %v651, %v651
          %v656 = vpack.c.bf16 %v653, %v653
          %657 = vst [vmem:[%s367] sm:$0xf] %v655
          %658 = vst [vmem:[%s367 + $0x4] sm:$0x3] %v656
        $region56: #{hrgat_forward.34} parent=39 // pred_fallthru
          _
        %s659 = smul.u32 2, %s32
        %p660 = scmp.lt.s32.totalorder %s31, 1
        %s661 = scalar_select %p660, %s31, 1
        %p662 = scmp.lt.s32.totalorder %s659, 1
        %s663 = scalar_select %p662, %s659, 1
        %s664 = smul.addr %s661, 2
        %s665 = sadd.s32 %s663, %s664
        %s666 = smul.addr %s665, 4
        %s667 = scalar_lea.vmem %s6, %s666
        // Predicated region
        $region57: #{hrgat_forward.34} parent=39 // pred_check
          %p668 = pneg %p194
        $region58: #{hrgat_forward.34} parent=39 // pred_check_branch
          %670 = sbr.rel (%p668) target = $region60
        $region59: #{hrgat_forward.34} parent=39 // pred_region
          %s671 = smul.u32 2, %s32
        $region60: #{hrgat_forward.34} parent=39 // pred_fallthru
          _
      $region40: #{hrgat_forward.34} parent=5 // pred_fallthru
        _
      %p672 = scmp.le.s32.totalorder 2, %s21
      // Predicated region
      $region61: #{hrgat_forward.34} parent=5 // pred_check
        %p673 = pneg %p672
      $region62: #{hrgat_forward.34} parent=5 // pred_check_branch
        %675 = sbr.rel (%p673) target = $region64
      $region63: #{hrgat_forward.34} parent=5 // pred_region
        %s676 = ssub.s32 %s21, 2
        // Predicated region
        $region65: #{hrgat_forward.34} parent=63 // pred_check
          %p677 = pneg %p200
        $region66: #{hrgat_forward.34} parent=63 // pred_check_branch
          %679 = sbr.rel (%p677) target = $region68
        $region67: #{hrgat_forward.34} parent=63 // pred_region
          %s680 = smul.u32 2, %s35
          %p681 = scmp.lt.s32.totalorder %s34, 1
          %s682 = scalar_select %p681, %s34, 1
          %p683 = scmp.lt.s32.totalorder %s680, 1
          %s684 = scalar_select %p683, %s680, 1
          %s685 = smul.addr %s682, 2
          %s686 = sadd.s32 %s684, %s685
          %s687 = smul.addr %s686, 4
          %s688 = scalar_lea.vmem %s6, %s687
        $region68: #{hrgat_forward.34} parent=63 // pred_fallthru
          _
      $region64: #{hrgat_forward.34} parent=5 // pred_fallthru
        _
    $region6: #{hrgat_forward.34} parent=1 // loop_footer
      %s25 = sadd.s32 1, %s21
    $region7: #{hrgat_forward.34} parent=1 // loop_footer_branch
      %20 = sbr.rel target = $region3
    $region8: #{hrgat_forward.34} parent=1 // loop_exit
      _
    %689 = vsyncpa [#allocation9], 1
    %s690 = scalar_lea.sflag [#allocation9], 1
    %691 = vsyncpa %s690, 1

// kernel: hrgat_forward.32
$region0: #{hrgat_forward.32}
  #allocation0 [shape = 'u32[]', space=smem, size = 0x4, offset = 0x4, fixed_abs, tag = 'smem constant byte address 0x4 - core index']
  #allocation1 [shape = 'u32[72,128]{1,0:T(1,128)}', space=vmem, size = 0x9000, scoped, tag = 'internal scratch']
  #allocation2 [shape = 'f32[16,1]{1,0:T(8,128)}', space=vmem, size = 0x2000, scoped, tag = 'scratch operand']
  #allocation3 [shape = 'f32[16,1]{1,0:T(8,128)}', space=vmem, size = 0x2000, scoped, tag = 'scratch operand']
  #allocation4 [shape = 'f32[16,1]{1,0:T(8,128)}', space=vmem, size = 0x2000, scoped, tag = 'scratch operand']
  #allocation5 [shape = 'f32[16,128]{1,0:T(8,128)}', space=vmem, size = 0x2000, scoped, tag = 'scratch operand']
  #allocation6 [shape = 's32[1]{0}', space=sflag, size = 0x4, scoped, tag = 'scoped memory for hrgat_forward.32']
  #allocation7 [shape = 'u8[512]{0}', space=smem, size = 0x200, scoped, tag = 'prefetched SMEM operand 0']
  %s0 = inlined_call_operand.vmem [shape: s32[2], index: 0, kind: input, shape index: {}]
  %s1 = inlined_call_operand.vmem [shape: bf16[16,128], index: 1, kind: input, shape index: {}]
  %s2 = inlined_call_operand.vmem [shape: bf16[12,128], index: 2, kind: input, shape index: {}]
  %s3 = inlined_call_operand.vmem [shape: f32[2,2,128], index: 3, kind: input, shape index: {}]
  %s4 = inlined_call_operand.vmem [shape: s8[2,16,12], index: 4, kind: input, shape index: {}]
  %s5 = inlined_call_operand.hbm [shape: bf16[128,128], index: 5, kind: input, shape index: {}]
  %s6 = inlined_call_operand.vmem [shape: bf16[2,16,128], index: 6, kind: output, shape index: {}]
  %s7 = sld [smem:[#allocation0]]
  $region69: #{hrgat_forward.32} parent=0
    _
  %s9 = ssub.s32 1, %s7
  %s10 = scalar_select 0, %s9, %s7
  %s12 = sshll.u32 %s0, 4
  %s13 = int_to_ptr.vmem [resolvable:$true] %s12
  %15 = dma.vmem_to_smem %s13, 16, [#allocation7], [#allocation6]
  %17 = dma.done [#allocation6], 16
  %18 = sfence
  $region1: #{hrgat_forward.32} parent=0
    #allocation8 [shape = 'u8[32768]{0}', space=vmem, size = 0x8000, scoped, tag = 'input window, operand 5, single buffered']
    #allocation9 [shape = 's32[2]{0}', space=sflag, size = 0x8, scoped, tag = 'scoped memory for hrgat_forward.32']
    %19 = vsyncpa [#allocation9], 0
    loop: start=0, step=1, limit=4
    $region2: #{hrgat_forward.32} parent=1 // loop_pre_header
      _
    $region3: #{hrgat_forward.32} parent=1 // loop_header
      %s21 = sphi 0, %s25
      %p22 = scmp.ge.s32.totalorder %s21, 4
      %s28 = sphi 0, %s47
      %s29 = sphi 0, %s43
      %s30 = sphi 0, %s39
      %s31 = sphi 0, %s28
      %s32 = sphi 0, %s29
      %s33 = sphi 0, %s30
      %s34 = sphi 0, %s31
      %s35 = sphi 0, %s32
      %s36 = sphi 0, %s33
      %s50 = sphi 0, %s52
      %s53 = sphi 0, %s50
      %s54 = sphi 0, %s53
      %s70 = sphi 0, %s54
      %s76 = sphi 0, %s78
      %s79 = sphi 0, %s76
      %s80 = sphi 0, %s79
      %s96 = sphi 0, %s80
      %s102 = sphi 0, %s104
      %s105 = sphi 0, %s102
      %s106 = sphi 0, %s105
      %s122 = sphi 0, %s106
      %s132 = sphi 0, %s134
      %s135 = sphi 0, %s132
      %s136 = sphi 0, %s135
      %s152 = sphi 0, %s136
      %s156 = sphi 0, %s156
      %s158 = sphi 0, %s156
      %s159 = sphi 0, %s158
      %s173 = sphi 0, %s159
      %s181 = sphi 0, %s183
      %s184 = sphi 0, %s181
      %s185 = sphi 0, %s184
      %s201 = sphi 0, %s185
    $region4: #{hrgat_forward.32} parent=1 // loop_header_branch
      %24 = sbr.rel (%p22) target = $region8
    $region5: #{hrgat_forward.32} parent=1 // loop_body
      %s26 = ssub.s32 %s21, 1
      %s27 = ssub.s32 %s21, 2
      %s37 = sadd.s32 1, %s30
      %p38 = scmp.ge.s32.totalorder %s37, 1
      %s39 = scalar_select %p38, 0, %s37
      %s40 = sadd.s32 1, %s29
      %s41 = scalar_select %p38, %s40, %s29
      %p42 = scmp.ge.s32.totalorder %s41, 1
      %s43 = scalar_select %p42, 0, %s41
      %s44 = sadd.s32 1, %s28
      %s45 = scalar_select %p42, %s44, %s28
      %p46 = scmp.ge.s32.totalorder %s45, 2
      %s47 = scalar_select %p46, 0, %s45
      %s48 = ssub.s32 %s29, %s43
      %p49 = scmp.eq.s32.totalorder %s48, 0
      %s51 = sadd.s32 %s50, 1
      %s52 = scalar_select %p49, %s50, %s51
      %p55 = pneg %p49
      %p56 = scmp.eq.s32.totalorder %s21, 1
      %p57 = por %p55, %p56
      %p58 = scmp.ne.s32.totalorder %s50, %s53
      %p59 = scmp.eq.s32.totalorder %s21, 0
      %p60 = por %p58, %p59
      %p61 = scmp.ne.s32.totalorder %s50, %s53
      %p62 = scmp.eq.s32.totalorder %s26, 1
      %p63 = por %p61, %p62
      %p64 = scmp.ne.s32.totalorder %s53, %s54
      %p65 = scmp.eq.s32.totalorder %s26, 0
      %p66 = por %p64, %p65
      %p67 = scmp.ne.s32.totalorder %s53, %s54
      %p68 = scmp.eq.s32.totalorder %s27, 1
      %p69 = por %p67, %p68
      %p71 = scmp.ne.s32.totalorder %s54, %s70
      %p72 = scmp.eq.s32.totalorder %s27, 0
      %p73 = por %p71, %p72
      %s74 = ssub.s32 %s30, %s39
      %p75 = scmp.eq.s32.totalorder %s74, 0
      %s77 = sadd.s32 %s76, 1
      %s78 = scalar_select %p75, %s76, %s77
      %p81 = pneg %p75
      %p82 = scmp.eq.s32.totalorder %s21, 1
      %p83 = por %p81, %p82
      %p84 = scmp.ne.s32.totalorder %s76, %s79
      %p85 = scmp.eq.s32.totalorder %s21, 0
      %p86 = por %p84, %p85
      %p87 = scmp.ne.s32.totalorder %s76, %s79
      %p88 = scmp.eq.s32.totalorder %s26, 1
      %p89 = por %p87, %p88
      %p90 = scmp.ne.s32.totalorder %s79, %s80
      %p91 = scmp.eq.s32.totalorder %s26, 0
      %p92 = por %p90, %p91
      %p93 = scmp.ne.s32.totalorder %s79, %s80
      %p94 = scmp.eq.s32.totalorder %s27, 1
      %p95 = por %p93, %p94
      %p97 = scmp.ne.s32.totalorder %s80, %s96
      %p98 = scmp.eq.s32.totalorder %s27, 0
      %p99 = por %p97, %p98
      %s100 = ssub.s32 %s28, %s47
      %p101 = scmp.eq.s32.totalorder %s100, 0
      %s103 = sadd.s32 %s102, 1
      %s104 = scalar_select %p101, %s102, %s103
      %p107 = pneg %p101
      %p108 = scmp.eq.s32.totalorder %s21, 1
      %p109 = por %p107, %p108
      %p110 = scmp.ne.s32.totalorder %s102, %s105
      %p111 = scmp.eq.s32.totalorder %s21, 0
      %p112 = por %p110, %p111
      %p113 = scmp.ne.s32.totalorder %s102, %s105
      %p114 = scmp.eq.s32.totalorder %s26, 1
      %p115 = por %p113, %p114
      %p116 = scmp.ne.s32.totalorder %s105, %s106
      %p117 = scmp.eq.s32.totalorder %s26, 0
      %p118 = por %p116, %p117
      %p119 = scmp.ne.s32.totalorder %s105, %s106
      %p120 = scmp.eq.s32.totalorder %s27, 1
      %p121 = por %p119, %p120
      %p123 = scmp.ne.s32.totalorder %s106, %s122
      %p124 = scmp.eq.s32.totalorder %s27, 0
      %p125 = por %p123, %p124
      %s126 = ssub.s32 %s28, %s47
      %s127 = ssub.s32 %s29, %s43
      %s128 = sor.u32 %s126, %s127
      %s129 = ssub.s32 %s30, %s39
      %s130 = sor.u32 %s128, %s129
      %p131 = scmp.eq.s32.totalorder %s130, 0
      %s133 = sadd.s32 %s132, 1
      %s134 = scalar_select %p131, %s132, %s133
      %p137 = pneg %p131
      %p138 = scmp.eq.s32.totalorder %s21, 1
      %p139 = por %p137, %p138
      %p140 = scmp.ne.s32.totalorder %s132, %s135
      %p141 = scmp.eq.s32.totalorder %s21, 0
      %p142 = por %p140, %p141
      %p143 = scmp.ne.s32.totalorder %s132, %s135
      %p144 = scmp.eq.s32.totalorder %s26, 1
      %p145 = por %p143, %p144
      %p146 = scmp.ne.s32.totalorder %s135, %s136
      %p147 = scmp.eq.s32.totalorder %s26, 0
      %p148 = por %p146, %p147
      %p149 = scmp.ne.s32.totalorder %s135, %s136
      %p150 = scmp.eq.s32.totalorder %s27, 1
      %p151 = por %p149, %p150
      %p153 = scmp.ne.s32.totalorder %s136, %s152
      %p154 = scmp.eq.s32.totalorder %s27, 0
      %p155 = por %p153, %p154
      %s157 = sadd.s32 %s156, 1
      %p160 = scmp.eq.s32.totalorder %s21, 1
      %p161 = scmp.ne.s32.totalorder %s156, %s158
      %p162 = scmp.eq.s32.totalorder %s21, 0
      %p163 = por %p161, %p162
      %p164 = scmp.ne.s32.totalorder %s156, %s158
      %p165 = scmp.eq.s32.totalorder %s26, 1
      %p166 = por %p164, %p165
      %p167 = scmp.ne.s32.totalorder %s158, %s159
      %p168 = scmp.eq.s32.totalorder %s26, 0
      %p169 = por %p167, %p168
      %p170 = scmp.ne.s32.totalorder %s158, %s159
      %p171 = scmp.eq.s32.totalorder %s27, 1
      %p172 = por %p170, %p171
      %p174 = scmp.ne.s32.totalorder %s159, %s173
      %p175 = scmp.eq.s32.totalorder %s27, 0
      %p176 = por %p174, %p175
      %s177 = ssub.s32 %s28, %s47
      %s178 = ssub.s32 %s29, %s43
      %s179 = sor.u32 %s177, %s178
      %p180 = scmp.eq.s32.totalorder %s179, 0
      %s182 = sadd.s32 %s181, 1
      %s183 = scalar_select %p180, %s181, %s182
      %p186 = pneg %p180
      %p187 = scmp.eq.s32.totalorder %s21, 1
      %p188 = por %p186, %p187
      %p189 = scmp.ne.s32.totalorder %s181, %s184
      %p190 = scmp.eq.s32.totalorder %s21, 0
      %p191 = por %p189, %p190
      %p192 = scmp.ne.s32.totalorder %s181, %s184
      %p193 = scmp.eq.s32.totalorder %s26, 1
      %p194 = por %p192, %p193
      %p195 = scmp.ne.s32.totalorder %s184, %s185
      %p196 = scmp.eq.s32.totalorder %s26, 0
      %p197 = por %p195, %p196
      %p198 = scmp.ne.s32.totalorder %s184, %s185
      %p199 = scmp.eq.s32.totalorder %s27, 1
      %p200 = por %p198, %p199
      %p202 = scmp.ne.s32.totalorder %s185, %s201
      %p203 = scmp.eq.s32.totalorder %s27, 0
      %p204 = por %p202, %p203
      %p205 = scmp.le.s32.totalorder 1, %s21
      %p206 = scmp.lt.s32.totalorder %s21, 3
      %p207 = pnand %p205, %p206
      %p208 = pneg %p207
      // Predicated region
      $region9: #{hrgat_forward.32} parent=5 // pred_check
        _
      $region10: #{hrgat_forward.32} parent=5 // pred_check_branch
        %210 = sbr.rel (%p207) target = $region12
      $region11: #{hrgat_forward.32} parent=5 // pred_region
        %s211 = ssub.s32 %s21, 1
        // Predicated region
        $region13: #{hrgat_forward.32} parent=11 // pred_check
          %p212 = pneg %p66
        $region14: #{hrgat_forward.32} parent=11 // pred_check_branch
          %214 = sbr.rel (%p212) target = $region16
        $region15: #{hrgat_forward.32} parent=11 // pred_region
          %s215 = smul.u32 2, %s32
          %p216 = scmp.lt.s32.totalorder %s215, 1
          %s217 = scalar_select %p216, %s215, 1
          %s218 = smul.addr %s217, 4
          %s219 = scalar_lea.vmem %s1, %s218
          %s220 = smul.u32 2, %s32
        $region16: #{hrgat_forward.32} parent=11 // pred_fallthru
          _
        // Predicated region
        $region17: #{hrgat_forward.32} parent=11 // pred_check
          %p221 = pneg %p92
        $region18: #{hrgat_forward.32} parent=11 // pred_check_branch
          %223 = sbr.rel (%p221) target = $region20
        $region19: #{hrgat_forward.32} parent=11 // pred_region
          %s224 = smul.u32 2, %s33
          %p225 = scmp.lt.s32.totalorder %s224, 1
          %s226 = scalar_select %p225, %s224, 1
          %s227 = smul.addr %s226, 4
          %s228 = scalar_lea.vmem %s2, %s227
          %s229 = smul.u32 2, %s33
        $region20: #{hrgat_forward.32} parent=11 // pred_fallthru
          _
        // Predicated region
        $region21: #{hrgat_forward.32} parent=11 // pred_check
          %p230 = pneg %p169
        $region22: #{hrgat_forward.32} parent=11 // pred_check_branch
          %232 = sbr.rel (%p230) target = $region24
        $region23: #{hrgat_forward.32} parent=11 // pred_region
          %234 = vsyncadd [#allocation9], 0
          %s235 = sshll.u32 %s5, 4
          %s236 = int_to_ptr.hbm [resolvable:$true] %s235
          %s237 = sshll.u32 [#allocation8], 4
          %s238 = int_to_ptr.vmem [resolvable:$true] %s237
          %243 = dma.hbm_to_vmem [thread:$0]  %s236, 1024, %s238, [#allocation9], 64, 64, 4
        $region24: #{hrgat_forward.32} parent=11 // pred_fallthru
          _
      $region12: #{hrgat_forward.32} parent=5 // pred_fallthru
        _
      %p244 = scmp.lt.s32.totalorder %s21, 2
      // Predicated region
      $region25: #{hrgat_forward.32} parent=5 // pred_check
        %p245 = pneg %p244
      $region26: #{hrgat_forward.32} parent=5 // pred_check_branch
        %247 = sbr.rel (%p245) target = $region28
      $region27: #{hrgat_forward.32} parent=5 // pred_region
        // Predicated region
        $region29: #{hrgat_forward.32} parent=27 // pred_check
          %p248 = pneg %p112
        $region30: #{hrgat_forward.32} parent=27 // pred_check_branch
          %250 = sbr.rel (%p248) target = $region32
        $region31: #{hrgat_forward.32} parent=27 // pred_region
          %p251 = scmp.lt.s32.totalorder %s28, 1
          %s252 = scalar_select %p251, %s28, 1
          %s253 = smul.addr %s252, 2
          %s254 = scalar_lea.vmem %s3, %s253
        $region32: #{hrgat_forward.32} parent=27 // pred_fallthru
          _
        // Predicated region
        $region33: #{hrgat_forward.32} parent=27 // pred_check
          %p255 = pneg %p142
        $region34: #{hrgat_forward.32} parent=27 // pred_check_branch
          %257 = sbr.rel (%p255) target = $region36
        $region35: #{hrgat_forward.32} parent=27 // pred_region
          %s258 = smul.u32 2, %s29
          %p259 = scmp.lt.s32.totalorder %s28, 1
          %s260 = scalar_select %p259, %s28, 1
          %p261 = scmp.lt.s32.totalorder %s258, 1
          %s262 = scalar_select %p261, %s258, 1
          %p263 = scmp.lt.s32.totalorder %s30, 0
          %s264 = scalar_select %p263, %s30, 0
          %s265 = sadd.s32 %s264, %s262
          %s266 = smul.addr %s260, 2
          %s267 = sadd.s32 %s265, %s266
          %s268 = smul.addr %s267, 2
          %s269 = scalar_lea.vmem %s4, %s268
          %s270 = smul.u32 2, %s29
        $region36: #{hrgat_forward.32} parent=27 // pred_fallthru
          _
      $region28: #{hrgat_forward.32} parent=5 // pred_fallthru
        _
      %p271 = scmp.le.s32.totalorder 1, %s21
      %p272 = scmp.lt.s32.totalorder %s21, 3
      %p273 = pnand %p271, %p272
      %p274 = pneg %p273
      // Predicated region
      $region37: #{hrgat_forward.32} parent=5 // pred_check
        _
      $region38: #{hrgat_forward.32} parent=5 // pred_check_branch
        %276 = sbr.rel (%p273) target = $region40
      $region39: #{hrgat_forward.32} parent=5 // pred_region
        %s277 = ssub.s32 %s21, 1
        // Predicated region
        $region41: #{hrgat_forward.32} parent=39 // pred_check
          %p278 = pneg %p169
        $region42: #{hrgat_forward.32} parent=39 // pred_check_branch
          %280 = sbr.rel (%p278) target = $region44
        $region43: #{hrgat_forward.32} parent=39 // pred_region
          %282 = dma.done [#allocation9], 1024
        $region44: #{hrgat_forward.32} parent=39 // pred_fallthru
          _
        %s283 = smul.u32 2, %s32
        %p284 = scmp.lt.s32.totalorder %s283, 1
        %s285 = scalar_select %p284, %s283, 1
        %s286 = smul.addr %s285, 4
        %s287 = scalar_lea.vmem %s1, %s286
        %p288 = pneg %p66
        %p289 = pneg %p63
        %s290 = smul.u32 2, %s33
        %p291 = scmp.lt.s32.totalorder %s290, 1
        %s292 = scalar_select %p291, %s290, 1
        %s293 = smul.addr %s292, 4
        %s294 = scalar_lea.vmem %s2, %s293
        %p295 = pneg %p92
        %p296 = pneg %p89
        %p297 = scmp.lt.s32.totalorder %s31, 1
        %s298 = scalar_select %p297, %s31, 1
        %s299 = smul.addr %s298, 2
        %s300 = scalar_lea.vmem %s3, %s299
        %p301 = pneg %p118
        %p302 = pneg %p115
        %s303 = smul.u32 2, %s32
        %p304 = scmp.lt.s32.totalorder %s31, 1
        %s305 = scalar_select %p304, %s31, 1
        %p306 = scmp.lt.s32.totalorder %s303, 1
        %s307 = scalar_select %p306, %s303, 1
        %p308 = scmp.lt.s32.totalorder %s33, 0
        %s309 = scalar_select %p308, %s33, 0
        %s310 = sadd.s32 %s309, %s307
        %s311 = smul.addr %s305, 2
        %s312 = sadd.s32 %s310, %s311
        %s313 = smul.addr %s312, 2
        %s314 = scalar_lea.vmem %s4, %s313
        %p315 = pneg %p148
        %p316 = pneg %p145
        %p317 = pneg %p169
        %p318 = pneg %p166
        %p319 = pneg %p197
        %p320 = pneg %p194
        %s321 = smul.u32 2, %s32
        %p322 = scmp.lt.s32.totalorder %s31, 1
        %s323 = scalar_select %p322, %s31, 1
        %p324 = scmp.lt.s32.totalorder %s321, 1
        %s325 = scalar_select %p324, %s321, 1
        %s326 = smul.addr %s323, 2
        %s327 = sadd.s32 %s325, %s326
        %s328 = smul.addr %s327, 4
        %s329 = scalar_lea.vmem %s6, %s328
        %s330 = smul.u32 2, %s32
        %p331 = scmp.lt.s32.totalorder %s330, 1
        %s332 = scalar_select %p331, %s330, 1
        %s333 = smul.addr %s332, 4
        %s334 = scalar_lea.vmem %s1, %s333
        %s335 = smul.u32 2, %s32
        %s336 = smul.u32 2, %s33
        %p337 = scmp.lt.s32.totalorder %s336, 1
        %s338 = scalar_select %p337, %s336, 1
        %s339 = smul.addr %s338, 4
        %s340 = scalar_lea.vmem %s2, %s339
        %s341 = smul.u32 2, %s33
        %p342 = scmp.lt.s32.totalorder %s31, 1
        %s343 = scalar_select %p342, %s31, 1
        %s344 = smul.addr %s343, 2
        %s345 = scalar_lea.vmem %s3, %s344
        %s346 = smul.u32 2, %s32
        %p347 = scmp.lt.s32.totalorder %s31, 1
        %s348 = scalar_select %p347, %s31, 1
        %p349 = scmp.lt.s32.totalorder %s346, 1
        %s350 = scalar_select %p349, %s346, 1
        %p351 = scmp.lt.s32.totalorder %s33, 0
        %s352 = scalar_select %p351, %s33, 0
        %s353 = sadd.s32 %s352, %s350
        %s354 = smul.addr %s348, 2
        %s355 = sadd.s32 %s353, %s354
        %s356 = smul.addr %s355, 2
        %s357 = scalar_lea.vmem %s4, %s356
        %s358 = smul.u32 2, %s32
        %s359 = smul.u32 2, %s32
        %p360 = scmp.lt.s32.totalorder %s31, 1
        %s361 = scalar_select %p360, %s31, 1
        %p362 = scmp.lt.s32.totalorder %s359, 1
        %s363 = scalar_select %p362, %s359, 1
        %s364 = smul.addr %s361, 2
        %s365 = sadd.s32 %s363, %s364
        %s366 = smul.addr %s365, 4
        %s367 = scalar_lea.vmem %s6, %s366
        %s368 = smul.u32 2, %s32
        %p372 = scmp.eq.s32.totalorder %s33, 0
        // Predicated region
        $region45: #{hrgat_forward.32} parent=39 // pred_check
          %p373 = pneg %p372
        $region46: #{hrgat_forward.32} parent=39 // pred_check_branch
          %375 = sbr.rel (%p373) target = $region48
        $region47: #{hrgat_forward.32} parent=39 // pred_region
          %vm376 = vcmask 7168
          %377 = vst.msk [vmem:[#allocation3] sm:$0xff] %vm376, -1e+30
          %378 = vst.msk [vmem:[#allocation3 + $0x8] sm:$0xff] %vm376, -1e+30
          %379 = vst.msk [vmem:[#allocation4] sm:$0xff] %vm376, 0.0
          %380 = vst.msk [vmem:[#allocation4 + $0x8] sm:$0xff] %vm376, 0.0
          %381 = vst [vmem:[#allocation5] sm:$0xff] 0.0
          %382 = vst [vmem:[#allocation5 + $0x8] sm:$0xff] 0.0
          %v383 = vld [vmem:[%s334] sm:$0xf]
          %v384 = vld [vmem:[%s334 + $0x4] sm:$0xf]
          %v385 = vunpack.c.l.bf16 %v383
          %v386 = vunpack.c.l.bf16 %v384
          %v387 = vld [vmem:[%s345] sm:$0x1]
          %v388 = vperm.slane %v387, 0
          %v389 = vmul.f32 %v385, %v388
          %v390 = vmul.f32 %v386, %v388
          %391 = vadd.xlane.f32.xlu0 %v389
          %v392 = vpop.xlane.xlu0 %391
          %393 = vadd.xlane.f32.xlu0 %v390
          %v394 = vpop.xlane.xlu0 %393
          %395 = vst.msk [vmem:[#allocation2] sm:$0xff] %vm376, %v392
          %396 = vst.msk [vmem:[#allocation2 + $0x8] sm:$0xff] %vm376, %v394
        $region48: #{hrgat_forward.32} parent=39 // pred_fallthru
          _
        %s397 = sadd.s32 %s31, %s32
        %s398 = sadd.s32 %s397, %s33
        %s399 = sld [smem:[#allocation7 + %s398]]
        %p400 = scmp.gt.s32.totalorder %s399, 0
        // Predicated region
        $region49: #{hrgat_forward.32} parent=39 // pred_check
          %p401 = pneg %p400
        $region50: #{hrgat_forward.32} parent=39 // pred_check_branch
          %403 = sbr.rel (%p401) target = $region52
        $region51: #{hrgat_forward.32} parent=39 // pred_region
          %v404 = vld [vmem:[%s340] sm:$0xf]
          %v405 = vld [vmem:[%s340 + $0x4] sm:$0x3]
          %v406 = vld [vmem:[%s357] sm:$0x3]
          %v407 = vld [vmem:[%s357 + $0x2] sm:$0x3]
          %vm408 = vnez %v406
          %vm409 = vnez %v407
          %v410 = vld [vmem:[%s345 + $0x1] sm:$0x1]
          %v411 = vpack.c.bf16 %v410, %v410
          %v414 = vunpack.c.l.b16 %v404
          %v415 = vunpack.c.l.b16 %v405
          %v416 = vpack.c.b16 %v415, %v414
          %418 = vmatpush.bf16.xpose.msra.mxu0 0
          %419 = vmatpush.bf16.xpose.msra.mxu0 0
          %420 = vmatpush.bf16.xpose.msra.mxu0 0
          %421 = vmatpush.bf16.xpose.msra.mxu0 0
          %422 = vmatpush.bf16.xpose.msra.mxu0 0
          %423 = vmatpush.bf16.xpose.msra.mxu0 0
          %424 = vmatpush.bf16.xpose.msra.mxu0 0
          %425 = vmatpush.bf16.xpose.msra.mxu0 %v416
          %426 = vmatmul.bf16.gmra.mxu0 %v411
          %v427 = vpop.f32.mrf.mxu0
          %v428 = vadd.f32 0.0, %v427
          %v429 = vpop.f32.mrf.mxu0
          %430 = vdwg.mxu0
          %v431 = vld [vmem:[#allocation2] sm:$0xff]
          %v432 = vld [vmem:[#allocation2 + $0x8] sm:$0xff]
          %434 = vset.pattern.permute.xlu0 0
          %435 = vperm.xlu0 %434, %v431
          %v436 = vpop.permute.xlu0 %435
          %439 = vset.pattern.permute.xlu0 0
          %440 = vperm.xlu0 %439, %v432
          %v441 = vpop.permute.xlu0 %440
          %v443 = vperm.slane %v428, 0
          %v444 = vadd.f32 %v436, %v443
          %v445 = vadd.f32 %v441, %v443
          %v446 = vsel %vm408, 16843009, 0
          %v447 = vsel %vm409, 16843009, 0
          %v448 = vunpack.c.0.s8 %v446
          %v449 = vunpack.c.0.s8 %v447
          %vm450 = vcmp.ne.s32.totalorder %v448, 0
          %vm451 = vcmp.ne.s32.totalorder %v449, 0
          %v452 = vsel %vm450, %v444, -1e+30
          %v453 = vsel %vm451, %v445, -1e+30
          %v454 = vld [vmem:[#allocation3] sm:$0xff]
          %v455 = vld [vmem:[#allocation3 + $0x8] sm:$0xff]
          %vm456 = vcmask 97280
          %v457 = vsel %vm456, %v452, -inf
          %458 = vmax.xlane.f32.xlu0 %v457
          %v459 = vpop.xlane.xlu0 %458
          %v460 = vsel %vm456, %v453, -inf
          %461 = vmax.xlane.f32.xlu0 %v460
          %v462 = vpop.xlane.xlu0 %461
          %v463 = vmax.f32 %v454, %v459
          %v464 = vmax.f32 %v455, %v462
          %v465 = vsub.f32 %v454, %v463
          %v466 = vsub.f32 %v455, %v464
          %v467 = vmul.f32 %v465, 1.442695
          %v468 = vpow.pop %v467
          %v469 = vmul.f32 %v466, 1.442695
          %v470 = vpow.pop %v469
          %472 = vset.pattern.permute.xlu0 0
          %473 = vperm.xlu0 %472, %v463
          %v474 = vpop.permute.xlu0 %473
          %477 = vset.pattern.permute.xlu0 0
          %478 = vperm.xlu0 %477, %v464
          %v479 = vpop.permute.xlu0 %478
          %v481 = vsub.f32 %v452, %v474
          %v482 = vsub.f32 %v453, %v479
          %v483 = vmul.f32 %v481, 1.442695
          %v484 = vpow.pop %v483
          %v485 = vmul.f32 %v482, 1.442695
          %v486 = vpow.pop %v485
          %v487 = vsel %vm450, %v484, 0.0
          %v488 = vsel %vm451, %v486, 0.0
          %v489 = vld [vmem:[#allocation4] sm:$0xff]
          %v490 = vld [vmem:[#allocation4 + $0x8] sm:$0xff]
          %v491 = vmul.f32 %v468, %v489
          %v492 = vmul.f32 %v470, %v490
          %v493 = vsel %vm456, %v487, 0.0
          %494 = vadd.xlane.f32.xlu0 %v493
          %v495 = vpop.xlane.xlu0 %494
          %v496 = vsel %vm456, %v488, 0.0
          %497 = vadd.xlane.f32.xlu0 %v496
          %v498 = vpop.xlane.xlu0 %497
          %v499 = vadd.f32 %v491, %v495
          %v500 = vadd.f32 %v492, %v498
          %vm501 = vcmask 7168
          %502 = vst.msk [vmem:[#allocation4] sm:$0xff] %vm501, %v499
          %503 = vst.msk [vmem:[#allocation4 + $0x8] sm:$0xff] %vm501, %v500
          %v504 = vld [vmem:[#allocation5] sm:$0xff]
          %v505 = vld [vmem:[#allocation5 + $0x8] sm:$0xff]
          %507 = vset.pattern.permute.xlu0 0
          %508 = vperm.xlu0 %507, %v468
          %v509 = vpop.permute.xlu0 %508
          %512 = vset.pattern.permute.xlu0 0
          %513 = vperm.xlu0 %512, %v470
          %v514 = vpop.permute.xlu0 %513
          %v516 = vmul.f32 %v509, %v504
          %v517 = vmul.f32 %v514, %v505
          %v518 = vpack.c.bf16 %v488, %v487
          %v520 = vsel %vm456, %v518, 0
          %vm522 = vcmask 1045504
          %v524 = vsel %vm522, %v416, 0
          %526 = vmatpush.bf16.msra.mxu0 0
          %527 = vmatpush.bf16.msra.mxu0 0
          %528 = vmatpush.bf16.msra.mxu0 0
          %529 = vmatpush.bf16.msra.mxu0 0
          %530 = vmatpush.bf16.msra.mxu0 0
          %531 = vmatpush.bf16.msra.mxu0 0
          %532 = vmatpush.bf16.msra.mxu0 0
          %533 = vmatpush.bf16.msra.mxu0 %v524
          %534 = vmatmul.bf16.gmra.mxu0 %v520
          %v535 = vpop.f32.mrf.mxu0
          %v536 = vadd.f32 0.0, %v535
          %v537 = vpop.f32.mrf.mxu0
          %v538 = vadd.f32 0.0, %v537
          %539 = vdwg.mxu0
          %v540 = vadd.f32 %v516, %v536
          %v541 = vadd.f32 %v517, %v538
          %542 = vst [vmem:[#allocation5] sm:$0xff] %v540
          %543 = vst [vmem:[#allocation5 + $0x8] sm:$0xff] %v541
          %544 = vst.msk [vmem:[#allocation3] sm:$0xff] %vm501, %v463
          %545 = vst.msk [vmem:[#allocation3 + $0x8] sm:$0xff] %vm501, %v464
        $region52: #{hrgat_forward.32} parent=39 // pred_fallthru
          _
        // Predicated region
        $region53: #{hrgat_forward.32} parent=39 // pred_check
          %p546 = pneg %p372
        $region54: #{hrgat_forward.32} parent=39 // pred_check_branch
          %548 = sbr.rel (%p546) target = $region56
        $region55: #{hrgat_forward.32} parent=39 // pred_region
          %v549 = vld [vmem:[#allocation4] sm:$0xff]
          %v550 = vld [vmem:[#allocation4 + $0x8] sm:$0xff]
          %v551 = vadd.f32 %v549, 1e-16
          %v552 = vadd.f32 %v550, 1e-16
          %v553 = vrcp.pop %v551
          %v554 = vrcp.pop %v552
          %v555 = vld [vmem:[#allocation5] sm:$0xff]
          %v556 = vld [vmem:[#allocation5 + $0x8] sm:$0xff]
          %558 = vset.pattern.permute.xlu0 0
          %559 = vperm.xlu0 %558, %v553
          %v560 = vpop.permute.xlu0 %559
          %563 = vset.pattern.permute.xlu0 0
          %564 = vperm.xlu0 %563, %v554
          %v565 = vpop.permute.xlu0 %564
          %v567 = vmul.f32 %v555, %v560
          %v568 = vmul.f32 %v556, %v565
          %vm569 = vcmp.gt.f32.partialorder %v567, 0.0
          %vm570 = vcmp.gt.f32.partialorder %v568, 0.0
          %v571 = vmul.f32 %v567, 0.2
          %v572 = vmul.f32 %v568, 0.2
          %v573 = vsel %vm569, %v567, %v571
          %v574 = vsel %vm570, %v568, %v572
          %v575 = vpack.c.bf16 %v574, %v573
          %v576 = vld [vmem:[#allocation8] sm:$0xf]
          %v577 = vld [vmem:[#allocation8 + $0x4] sm:$0xf]
          %v578 = vld [vmem:[#allocation8 + $0x8] sm:$0xf]
          %v579 = vld [vmem:[#allocation8 + $0xc] sm:$0xf]
          %v580 = vld [vmem:[#allocation8 + $0x10] sm:$0xf]
          %v581 = vld [vmem:[#allocation8 + $0x14] sm:$0xf]
          %v582 = vld [vmem:[#allocation8 + $0x18] sm:$0xf]
          %v583 = vld [vmem:[#allocation8 + $0x1c] sm:$0xf]
          %v584 = vld [vmem:[#allocation8 + $0x20] sm:$0xf]
          %v585 = vld [vmem:[#allocation8 + $0x24] sm:$0xf]
          %v586 = vld [vmem:[#allocation8 + $0x28] sm:$0xf]
          %v587 = vld [vmem:[#allocation8 + $0x2c] sm:$0xf]
          %v588 = vld [vmem:[#allocation8 + $0x30] sm:$0xf]
          %v589 = vld [vmem:[#allocation8 + $0x34] sm:$0xf]
          %v590 = vld [vmem:[#allocation8 + $0x38] sm:$0xf]
          %v591 = vld [vmem:[#allocation8 + $0x3c] sm:$0xf]
          %v608 = vunpack.c.l.b16 %v576
          %v609 = vunpack.c.l.b16 %v577
          %v610 = vunpack.c.l.b16 %v578
          %v611 = vunpack.c.l.b16 %v579
          %v612 = vunpack.c.l.b16 %v580
          %v613 = vunpack.c.l.b16 %v581
          %v614 = vunpack.c.l.b16 %v582
          %v615 = vunpack.c.l.b16 %v583
          %v616 = vunpack.c.l.b16 %v584
          %v617 = vunpack.c.l.b16 %v585
          %v618 = vunpack.c.l.b16 %v586
          %v619 = vunpack.c.l.b16 %v587
          %v620 = vunpack.c.l.b16 %v588
          %v621 = vunpack.c.l.b16 %v589
          %v622 = vunpack.c.l.b16 %v590
          %v623 = vunpack.c.l.b16 %v591
          %v624 = vpack.c.b16 %v609, %v608
          %v625 = vpack.c.b16 %v611, %v610
          %v626 = vpack.c.b16 %v613, %v612
          %v627 = vpack.c.b16 %v615, %v614
          %v628 = vpack.c.b16 %v617, %v616
          %v629 = vpack.c.b16 %v619, %v618
          %v630 = vpack.c.b16 %v621, %v620
          %v631 = vpack.c.b16 %v623, %v622
          %640 = vmatpush.bf16.msra.mxu0 %v631
          %641 = vmatpush.bf16.msra.mxu0 %v630
          %642 = vmatpush.bf16.msra.mxu0 %v629
          %643 = vmatpush.bf16.msra.mxu0 %v628
          %644 = vmatpush.bf16.msra.mxu0 %v627
          %645 = vmatpush.bf16.msra.mxu0 %v626
          %646 = vmatpush.bf16.msra.mxu0 %v625
          %647 = vmatpush.bf16.msra.mxu0 %v624
          %648 = vmatmul.bf16.gmra.mxu0 %v575
          %v649 = vpop.f32.mrf.mxu0
          %v650 = vadd.f32 0.0, %v649
          %v651 = vpop.f32.mrf.mxu0
          %v652 = vadd.f32 0.0, %v651
          %653 = vdwg.mxu0
          %v654 = vpack.c.bf16 %v650, %v650
          %v655 = vpack.c.bf16 %v652, %v652
          %656 = vst [vmem:[%s367] sm:$0xf] %v654
          %657 = vst [vmem:[%s367 + $0x4] sm:$0xf] %v655
        $region56: #{hrgat_forward.32} parent=39 // pred_fallthru
          _
        %s658 = smul.u32 2, %s32
        %p659 = scmp.lt.s32.totalorder %s31, 1
        %s660 = scalar_select %p659, %s31, 1
        %p661 = scmp.lt.s32.totalorder %s658, 1
        %s662 = scalar_select %p661, %s658, 1
        %s663 = smul.addr %s660, 2
        %s664 = sadd.s32 %s662, %s663
        %s665 = smul.addr %s664, 4
        %s666 = scalar_lea.vmem %s6, %s665
        // Predicated region
        $region57: #{hrgat_forward.32} parent=39 // pred_check
          %p667 = pneg %p194
        $region58: #{hrgat_forward.32} parent=39 // pred_check_branch
          %669 = sbr.rel (%p667) target = $region60
        $region59: #{hrgat_forward.32} parent=39 // pred_region
          %s670 = smul.u32 2, %s32
        $region60: #{hrgat_forward.32} parent=39 // pred_fallthru
          _
      $region40: #{hrgat_forward.32} parent=5 // pred_fallthru
        _
      %p671 = scmp.le.s32.totalorder 2, %s21
      // Predicated region
      $region61: #{hrgat_forward.32} parent=5 // pred_check
        %p672 = pneg %p671
      $region62: #{hrgat_forward.32} parent=5 // pred_check_branch
        %674 = sbr.rel (%p672) target = $region64
      $region63: #{hrgat_forward.32} parent=5 // pred_region
        %s675 = ssub.s32 %s21, 2
        // Predicated region
        $region65: #{hrgat_forward.32} parent=63 // pred_check
          %p676 = pneg %p200
        $region66: #{hrgat_forward.32} parent=63 // pred_check_branch
          %678 = sbr.rel (%p676) target = $region68
        $region67: #{hrgat_forward.32} parent=63 // pred_region
          %s679 = smul.u32 2, %s35
          %p680 = scmp.lt.s32.totalorder %s34, 1
          %s681 = scalar_select %p680, %s34, 1
          %p682 = scmp.lt.s32.totalorder %s679, 1
          %s683 = scalar_select %p682, %s679, 1
          %s684 = smul.addr %s681, 2
          %s685 = sadd.s32 %s683, %s684
          %s686 = smul.addr %s685, 4
          %s687 = scalar_lea.vmem %s6, %s686
        $region68: #{hrgat_forward.32} parent=63 // pred_fallthru
          _
      $region64: #{hrgat_forward.32} parent=5 // pred_fallthru
        _
    $region6: #{hrgat_forward.32} parent=1 // loop_footer
      %s25 = sadd.s32 1, %s21
    $region7: #{hrgat_forward.32} parent=1 // loop_footer_branch
      %20 = sbr.rel target = $region3
    $region8: #{hrgat_forward.32} parent=1 // loop_exit
      _
    %688 = vsyncpa [#allocation9], 1
    %s689 = scalar_lea.sflag [#allocation9], 1
    %690 = vsyncpa %s689, 1

// kernel: hrgat_forward.33
$region0: #{hrgat_forward.33}
  #allocation0 [shape = 'u32[]', space=smem, size = 0x4, offset = 0x4, fixed_abs, tag = 'smem constant byte address 0x4 - core index']
  #allocation1 [shape = 'u32[72,128]{1,0:T(1,128)}', space=vmem, size = 0x9000, scoped, tag = 'internal scratch']
  %s0 = inlined_call_operand.vmem [shape: bf16[2,16,128], index: 0, kind: input, shape index: {}]
  %s1 = inlined_call_operand.vmem [shape: bf16[16,128], index: 1, kind: input, shape index: {}]
  %s2 = inlined_call_operand.vmem [shape: f32[2,128], index: 2, kind: input, shape index: {}]
  %s3 = inlined_call_operand.vmem [shape: f32[2], index: 3, kind: input, shape index: {}]
  %s4 = inlined_call_operand.vmem [shape: f32[2], index: 4, kind: input, shape index: {}]
  %s5 = inlined_call_operand.vmem [shape: f32[1,128], index: 5, kind: input, shape index: {}]
  %s6 = inlined_call_operand.vmem [shape: f32[1,128], index: 6, kind: input, shape index: {}]
  %s7 = inlined_call_operand.vmem [shape: bf16[16,128], index: 7, kind: output, shape index: {}]
  %s8 = sld [smem:[#allocation0]]
  $region46: #{hrgat_forward.33} parent=0
    _
  %s10 = ssub.s32 1, %s8
  %s11 = scalar_select 0, %s10, %s8
  $region1: #{hrgat_forward.33} parent=0
    #allocation2 [shape = 'u8[512]{0}', space=smem, size = 0x200, scoped, tag = 'input window, operand 3, single buffered']
    #allocation3 [shape = 's32[1]{0}', space=sflag, size = 0x4, scoped, tag = 'scoped memory for hrgat_forward.33']
    #allocation4 [shape = 'u8[512]{0}', space=smem, size = 0x200, scoped, tag = 'input window, operand 4, single buffered']
    #allocation5 [shape = 's32[1]{0}', space=sflag, size = 0x4, scoped, tag = 'scoped memory for hrgat_forward.33']
    %12 = vsyncpa [#allocation3], 0
    %13 = vsyncpa [#allocation5], 0
    // Predicated region
    $region2: #{hrgat_forward.33} parent=1 // pred_check
      _
    $region3: #{hrgat_forward.33} parent=1 // pred_check_branch
      %15 = sbr.rel (0) target = $region5
    $region4: #{hrgat_forward.33} parent=1 // pred_region
      _
    $region5: #{hrgat_forward.33} parent=1 // pred_fallthru
      _
    // Predicated region
    $region6: #{hrgat_forward.33} parent=1 // pred_check
      _
    $region7: #{hrgat_forward.33} parent=1 // pred_check_branch
      %17 = sbr.rel (0) target = $region9
    $region8: #{hrgat_forward.33} parent=1 // pred_region
      _
    $region9: #{hrgat_forward.33} parent=1 // pred_fallthru
      _
    // Predicated region
    $region10: #{hrgat_forward.33} parent=1 // pred_check
      _
    $region11: #{hrgat_forward.33} parent=1 // pred_check_branch
      %19 = sbr.rel (0) target = $region13
    $region12: #{hrgat_forward.33} parent=1 // pred_region
      _
    $region13: #{hrgat_forward.33} parent=1 // pred_fallthru
      _
    // Predicated region
    $region14: #{hrgat_forward.33} parent=1 // pred_check
      _
    $region15: #{hrgat_forward.33} parent=1 // pred_check_branch
      %21 = sbr.rel (0) target = $region17
    $region16: #{hrgat_forward.33} parent=1 // pred_region
      %23 = vsyncadd [#allocation3], 0
      %s25 = sshll.u32 %s3, 4
      %s26 = int_to_ptr.vmem [resolvable:$true] %s25
      %28 = dma.vmem_to_smem %s26, 16, [#allocation2], [#allocation3]
    $region17: #{hrgat_forward.33} parent=1 // pred_fallthru
      _
    // Predicated region
    $region18: #{hrgat_forward.33} parent=1 // pred_check
      _
    $region19: #{hrgat_forward.33} parent=1 // pred_check_branch
      %30 = sbr.rel (0) target = $region21
    $region20: #{hrgat_forward.33} parent=1 // pred_region
      %32 = vsyncadd [#allocation5], 0
      %s34 = sshll.u32 %s4, 4
      %s35 = int_to_ptr.vmem [resolvable:$true] %s34
      %37 = dma.vmem_to_smem %s35, 16, [#allocation4], [#allocation5]
    $region21: #{hrgat_forward.33} parent=1 // pred_fallthru
      _
    // Predicated region
    $region22: #{hrgat_forward.33} parent=1 // pred_check
      _
    $region23: #{hrgat_forward.33} parent=1 // pred_check_branch
      %39 = sbr.rel (0) target = $region25
    $region24: #{hrgat_forward.33} parent=1 // pred_region
      _
    $region25: #{hrgat_forward.33} parent=1 // pred_fallthru
      _
    // Predicated region
    $region26: #{hrgat_forward.33} parent=1 // pred_check
      _
    $region27: #{hrgat_forward.33} parent=1 // pred_check_branch
      %41 = sbr.rel (0) target = $region29
    $region28: #{hrgat_forward.33} parent=1 // pred_region
      _
    $region29: #{hrgat_forward.33} parent=1 // pred_fallthru
      _
    // Predicated region
    $region30: #{hrgat_forward.33} parent=1 // pred_check
      _
    $region31: #{hrgat_forward.33} parent=1 // pred_check_branch
      %43 = sbr.rel (0) target = $region33
    $region32: #{hrgat_forward.33} parent=1 // pred_region
      %45 = dma.done [#allocation3], 16
    $region33: #{hrgat_forward.33} parent=1 // pred_fallthru
      _
    // Predicated region
    $region34: #{hrgat_forward.33} parent=1 // pred_check
      _
    $region35: #{hrgat_forward.33} parent=1 // pred_check_branch
      %47 = sbr.rel (0) target = $region37
    $region36: #{hrgat_forward.33} parent=1 // pred_region
      %49 = dma.done [#allocation5], 16
    $region37: #{hrgat_forward.33} parent=1 // pred_fallthru
      _
    %50 = sfence
    %v51 = vlaneseq
    %v52 = vand.u32 %v51, 127
    %vm53 = vcmp.lt.s32.totalorder %v52, 32
    %v54 = vld [vmem:[%s1] sm:$0xf]
    %v55 = vld [vmem:[%s1 + $0x4] sm:$0xf]
    %v56 = vunpack.c.l.bf16 %v54
    %v57 = vunpack.c.l.bf16 %v55
    %v58 = vld [vmem:[%s2] sm:$0x1]
    %v59 = vld [vmem:[%s2 + $0x1] sm:$0x1]
    %v60 = vperm.slane %v58, 0
    %v61 = vmul.f32 %v56, %v60
    %v62 = vmul.f32 %v57, %v60
    %63 = vadd.xlane.f32.xlu0 %v61
    %v64 = vpop.xlane.xlu0 %63
    %65 = vadd.xlane.f32.xlu0 %v62
    %v66 = vpop.xlane.xlu0 %65
    %v67 = vld [vmem:[%s0] sm:$0xf]
    %v68 = vld [vmem:[%s0 + $0x4] sm:$0xf]
    %v69 = vunpack.c.l.bf16 %v67
    %v70 = vunpack.c.l.bf16 %v68
    %s71 = scalar_lea.vmem %s0, 8
    %v72 = vld [vmem:[%s71] sm:$0xf]
    %v73 = vld [vmem:[%s71 + $0x4] sm:$0xf]
    %v74 = vunpack.c.l.bf16 %v72
    %v75 = vunpack.c.l.bf16 %v73
    %v76 = vperm.slane %v59, 0
    %v77 = vmul.f32 %v69, %v76
    %v78 = vmul.f32 %v70, %v76
    %79 = vadd.xlane.f32.xlu0 %v77
    %v80 = vpop.xlane.xlu0 %79
    %81 = vadd.xlane.f32.xlu0 %v78
    %v82 = vpop.xlane.xlu0 %81
    %v83 = vadd.f32 %v64, %v80
    %v84 = vadd.f32 %v66, %v82
    %v85 = vmul.f32 %v74, %v76
    %v86 = vmul.f32 %v75, %v76
    %87 = vadd.xlane.f32.xlu0 %v85
    %v88 = vpop.xlane.xlu0 %87
    %89 = vadd.xlane.f32.xlu0 %v86
    %v90 = vpop.xlane.xlu0 %89
    %v91 = vadd.f32 %v64, %v88
    %v92 = vadd.f32 %v66, %v90
    %v93 = vmax.f32 %v83, %v91
    %v94 = vmax.f32 %v84, %v92
    %v95 = vsub.f32 %v83, %v93
    %v96 = vsub.f32 %v84, %v94
    %v97 = vmul.f32 %v95, 1.442695
    %v98 = vpow.pop %v97
    %v99 = vmul.f32 %v96, 1.442695
    %v100 = vpow.pop %v99
    %v101 = vsub.f32 %v91, %v93
    %v102 = vsub.f32 %v92, %v94
    %v103 = vmul.f32 %v101, 1.442695
    %v104 = vpow.pop %v103
    %v105 = vmul.f32 %v102, 1.442695
    %v106 = vpow.pop %v105
    %v107 = vadd.f32 %v98, %v104
    %v108 = vadd.f32 %v100, %v106
    %v109 = vrcp.pop %v107
    %v110 = vrcp.pop %v108
    %s111 = sld [smem:[#allocation4]]
    %s112 = sld [smem:[#allocation4 + $0x1]]
    %v113 = vmul.f32 %v98, %v109
    %v114 = vmul.f32 %v100, %v110
    %v115 = vstv %s111
    %v116 = vmul.f32 %v115, %v113
    %v117 = vmul.f32 %v115, %v114
    %s118 = sld [smem:[#allocation2]]
    %v119 = vstv %s118
    %v120 = vadd.f32 %v116, %v119
    %v121 = vadd.f32 %v117, %v119
    %v122 = vmul.f32 %v69, %v120
    %v123 = vmul.f32 %v70, %v121
    %v124 = vadd.f32 %v122, 0.0
    %v125 = vadd.f32 %v123, 0.0
    %v126 = vmul.f32 %v104, %v109
    %v127 = vmul.f32 %v106, %v110
    %v128 = vmul.f32 %v115, %v126
    %v129 = vmul.f32 %v115, %v127
    %s130 = sld [smem:[#allocation2 + $0x1]]
    %v131 = vstv %s130
    %v132 = vadd.f32 %v128, %v131
    %v133 = vadd.f32 %v129, %v131
    %v134 = vmul.f32 %v74, %v132
    %v135 = vmul.f32 %v75, %v133
    %v136 = vadd.f32 %v124, %v134
    %v137 = vadd.f32 %v125, %v135
    %v138 = vmul.f32 %v136, 0.5
    %v139 = vmul.f32 %v137, 0.5
    %v140 = vmul.f32 %v136, 0.044715
    %v141 = vmul.f32 %v137, 0.044715
    %v142 = vmul.f32 %v140, %v136
    %v143 = vmul.f32 %v141, %v137
    %v144 = vmul.f32 %v142, %v136
    %v145 = vmul.f32 %v143, %v137
    %v146 = vadd.f32 %v136, %v144
    %v147 = vadd.f32 %v137, %v145
    %v148 = vmul.f32 %v146, 0.7978846
    %v149 = vmul.f32 %v147, 0.7978846
    %v150 = vtanh.pop %v148
    %v151 = vtanh.pop %v149
    %v152 = vadd.f32 %v150, 1.0
    %v153 = vadd.f32 %v151, 1.0
    %v154 = vmul.f32 %v138, %v152
    %v155 = vmul.f32 %v139, %v153
    %v156 = vstv %s112
    %v157 = vmul.f32 %v154, %v156
    %v158 = vmul.f32 %v155, %v156
    %s159 = ssub.f32 1.0, %s112
    %v160 = vstv %s159
    %v161 = vmul.f32 %v56, %v160
    %v162 = vmul.f32 %v57, %v160
    %v163 = vadd.f32 %v157, %v161
    %v164 = vadd.f32 %v158, %v162
    %v165 = vld [vmem:[%s5] sm:$0x1]
    %v166 = vld [vmem:[%s6] sm:$0x1]
    %v167 = vsel %vm53, 1, 0
    %vm168 = vcmp.eq.s32.totalorder %v167, 1
    %v169 = vsel %vm168, %v163, 0.0
    %v170 = vsel %vm168, %v164, 0.0
    %171 = vadd.xlane.f32.xlu0 %v169
    %v172 = vpop.xlane.xlu0 %171
    %173 = vadd.xlane.f32.xlu0 %v170
    %v174 = vpop.xlane.xlu0 %173
    %v175 = vmul.f32 %v172, 0.03125
    %v176 = vmul.f32 %v174, 0.03125
    %v177 = vsub.f32 %v163, %v175
    %v178 = vsub.f32 %v164, %v176
    %v179 = vsel %vm168, %v177, 0.0
    %v180 = vsel %vm168, %v178, 0.0
    %v181 = vmul.f32 %v179, %v179
    %v182 = vmul.f32 %v180, %v180
    %183 = vadd.xlane.f32.xlu0 %v181
    %v184 = vpop.xlane.xlu0 %183
    %185 = vadd.xlane.f32.xlu0 %v182
    %v186 = vpop.xlane.xlu0 %185
    %v187 = vmul.f32 %v184, 0.03125
    %v188 = vmul.f32 %v186, 0.03125
    %v189 = vadd.f32 %v187, 1e-05
    %v190 = vadd.f32 %v188, 1e-05
    %v191 = vrsqrt.pop %v189
    %v192 = vmul.f32 %v191, %v189
    %v193 = vmul.f32 %v192, %v191
    %v194 = vmul.f32 0.5, %v193
    %v195 = vsub.f32 1.5, %v194
    %v196 = vmul.f32 %v191, %v195
    %vm197 = vweird.f32 %v189
    %vm198 = vweird.f32 %v191
    %vm199 = vmor %vm197, %vm198
    %v200 = vsel %vm199, %v191, %v196
    %v201 = vrsqrt.pop %v190
    %v202 = vmul.f32 %v201, %v190
    %v203 = vmul.f32 %v202, %v201
    %v204 = vmul.f32 0.5, %v203
    %v205 = vsub.f32 1.5, %v204
    %v206 = vmul.f32 %v201, %v205
    %vm207 = vweird.f32 %v190
    %vm208 = vweird.f32 %v201
    %vm209 = vmor %vm207, %vm208
    %v210 = vsel %vm209, %v201, %v206
    %v211 = vmul.f32 %v179, %v200
    %v212 = vmul.f32 %v180, %v210
    %v214 = vperm.slane %v165, 0
    %v216 = vmul.f32 %v211, %v214
    %v217 = vmul.f32 %v212, %v214
    %v219 = vperm.slane %v166, 0
    %v221 = vadd.f32 %v216, %v219
    %v222 = vadd.f32 %v217, %v219
    %v223 = vpack.c.bf16 %v221, %v221
    %v224 = vpack.c.bf16 %v222, %v222
    %225 = vst [vmem:[%s7] sm:$0xf] %v223
    %226 = vst [vmem:[%s7 + $0x4] sm:$0xf] %v224
    // Predicated region
    $region38: #{hrgat_forward.33} parent=1 // pred_check
      _
    $region39: #{hrgat_forward.33} parent=1 // pred_check_branch
      %228 = sbr.rel (0) target = $region41
    $region40: #{hrgat_forward.33} parent=1 // pred_region
      _
    $region41: #{hrgat_forward.33} parent=1 // pred_fallthru
      _
    // Predicated region
    $region42: #{hrgat_forward.33} parent=1 // pred_check
      _
    $region43: #{hrgat_forward.33} parent=1 // pred_check_branch
      %230 = sbr.rel (0) target = $region45
    $region44: #{hrgat_forward.33} parent=1 // pred_region
      _
    $region45: #{hrgat_forward.33} parent=1 // pred_fallthru
      _
    %231 = vsyncpa [#allocation3], 1
    %232 = vsyncpa [#allocation5], 1

// kernel: hrgat_forward.36
$region0: #{hrgat_forward.36}
  #allocation0 [shape = 'u32[]', space=smem, size = 0x4, offset = 0x4, fixed_abs, tag = 'smem constant byte address 0x4 - core index']
  #allocation1 [shape = 'u32[72,128]{1,0:T(1,128)}', space=vmem, size = 0x9000, scoped, tag = 'internal scratch']
  #allocation2 [shape = 'f32[16,1]{1,0:T(8,128)}', space=vmem, size = 0x2000, scoped, tag = 'scratch operand']
  #allocation3 [shape = 'f32[16,1]{1,0:T(8,128)}', space=vmem, size = 0x2000, scoped, tag = 'scratch operand']
  #allocation4 [shape = 'f32[16,1]{1,0:T(8,128)}', space=vmem, size = 0x2000, scoped, tag = 'scratch operand']
  #allocation5 [shape = 'f32[16,128]{1,0:T(8,128)}', space=vmem, size = 0x2000, scoped, tag = 'scratch operand']
  #allocation6 [shape = 's32[1]{0}', space=sflag, size = 0x4, scoped, tag = 'scoped memory for hrgat_forward.36']
  #allocation7 [shape = 'u8[512]{0}', space=smem, size = 0x200, scoped, tag = 'prefetched SMEM operand 0']
  %s0 = inlined_call_operand.vmem [shape: s32[2], index: 0, kind: input, shape index: {}]
  %s1 = inlined_call_operand.vmem [shape: bf16[16,128], index: 1, kind: input, shape index: {}]
  %s2 = inlined_call_operand.vmem [shape: bf16[12,128], index: 2, kind: input, shape index: {}]
  %s3 = inlined_call_operand.vmem [shape: f32[2,2,128], index: 3, kind: input, shape index: {}]
  %s4 = inlined_call_operand.vmem [shape: s8[2,16,12], index: 4, kind: input, shape index: {}]
  %s5 = inlined_call_operand.vmem [shape: bf16[128,128], index: 5, kind: input, shape index: {}]
  %s6 = inlined_call_operand.vmem [shape: bf16[2,16,128], index: 6, kind: output, shape index: {}]
  %s7 = sld [smem:[#allocation0]]
  $region65: #{hrgat_forward.36} parent=0
    _
  %s9 = ssub.s32 1, %s7
  %s10 = scalar_select 0, %s9, %s7
  %s12 = sshll.u32 %s0, 4
  %s13 = int_to_ptr.vmem [resolvable:$true] %s12
  %15 = dma.vmem_to_smem %s13, 16, [#allocation7], [#allocation6]
  %17 = dma.done [#allocation6], 16
  %18 = sfence
  loop: start=0, step=1, limit=4
  $region2: #{hrgat_forward.36} parent=0 // loop_pre_header
    _
  $region3: #{hrgat_forward.36} parent=0 // loop_header
    %s20 = sphi 0, %s24
    %p21 = scmp.ge.s32.totalorder %s20, 4
    %s27 = sphi 0, %s46
    %s28 = sphi 0, %s42
    %s29 = sphi 0, %s38
    %s30 = sphi 0, %s27
    %s31 = sphi 0, %s28
    %s32 = sphi 0, %s29
    %s33 = sphi 0, %s30
    %s34 = sphi 0, %s31
    %s35 = sphi 0, %s32
    %s49 = sphi 0, %s51
    %s52 = sphi 0, %s49
    %s53 = sphi 0, %s52
    %s69 = sphi 0, %s53
    %s75 = sphi 0, %s77
    %s78 = sphi 0, %s75
    %s79 = sphi 0, %s78
    %s95 = sphi 0, %s79
    %s101 = sphi 0, %s103
    %s104 = sphi 0, %s101
    %s105 = sphi 0, %s104
    %s121 = sphi 0, %s105
    %s131 = sphi 0, %s133
    %s134 = sphi 0, %s131
    %s135 = sphi 0, %s134
    %s151 = sphi 0, %s135
    %s155 = sphi 0, %s155
    %s157 = sphi 0, %s155
    %s158 = sphi 0, %s157
    %s172 = sphi 0, %s158
    %s180 = sphi 0, %s182
    %s183 = sphi 0, %s180
    %s184 = sphi 0, %s183
    %s200 = sphi 0, %s184
  $region4: #{hrgat_forward.36} parent=0 // loop_header_branch
    %23 = sbr.rel (%p21) target = $region8
  $region5: #{hrgat_forward.36} parent=0 // loop_body
    %s25 = ssub.s32 %s20, 1
    %s26 = ssub.s32 %s20, 2
    %s36 = sadd.s32 1, %s29
    %p37 = scmp.ge.s32.totalorder %s36, 1
    %s38 = scalar_select %p37, 0, %s36
    %s39 = sadd.s32 1, %s28
    %s40 = scalar_select %p37, %s39, %s28
    %p41 = scmp.ge.s32.totalorder %s40, 1
    %s42 = scalar_select %p41, 0, %s40
    %s43 = sadd.s32 1, %s27
    %s44 = scalar_select %p41, %s43, %s27
    %p45 = scmp.ge.s32.totalorder %s44, 2
    %s46 = scalar_select %p45, 0, %s44
    %s47 = ssub.s32 %s28, %s42
    %p48 = scmp.eq.s32.totalorder %s47, 0
    %s50 = sadd.s32 %s49, 1
    %s51 = scalar_select %p48, %s49, %s50
    %p54 = pneg %p48
    %p55 = scmp.eq.s32.totalorder %s20, 1
    %p56 = por %p54, %p55
    %p57 = scmp.ne.s32.totalorder %s49, %s52
    %p58 = scmp.eq.s32.totalorder %s20, 0
    %p59 = por %p57, %p58
    %p60 = scmp.ne.s32.totalorder %s49, %s52
    %p61 = scmp.eq.s32.totalorder %s25, 1
    %p62 = por %p60, %p61
    %p63 = scmp.ne.s32.totalorder %s52, %s53
    %p64 = scmp.eq.s32.totalorder %s25, 0
    %p65 = por %p63, %p64
    %p66 = scmp.ne.s32.totalorder %s52, %s53
    %p67 = scmp.eq.s32.totalorder %s26, 1
    %p68 = por %p66, %p67
    %p70 = scmp.ne.s32.totalorder %s53, %s69
    %p71 = scmp.eq.s32.totalorder %s26, 0
    %p72 = por %p70, %p71
    %s73 = ssub.s32 %s29, %s38
    %p74 = scmp.eq.s32.totalorder %s73, 0
    %s76 = sadd.s32 %s75, 1
    %s77 = scalar_select %p74, %s75, %s76
    %p80 = pneg %p74
    %p81 = scmp.eq.s32.totalorder %s20, 1
    %p82 = por %p80, %p81
    %p83 = scmp.ne.s32.totalorder %s75, %s78
    %p84 = scmp.eq.s32.totalorder %s20, 0
    %p85 = por %p83, %p84
    %p86 = scmp.ne.s32.totalorder %s75, %s78
    %p87 = scmp.eq.s32.totalorder %s25, 1
    %p88 = por %p86, %p87
    %p89 = scmp.ne.s32.totalorder %s78, %s79
    %p90 = scmp.eq.s32.totalorder %s25, 0
    %p91 = por %p89, %p90
    %p92 = scmp.ne.s32.totalorder %s78, %s79
    %p93 = scmp.eq.s32.totalorder %s26, 1
    %p94 = por %p92, %p93
    %p96 = scmp.ne.s32.totalorder %s79, %s95
    %p97 = scmp.eq.s32.totalorder %s26, 0
    %p98 = por %p96, %p97
    %s99 = ssub.s32 %s27, %s46
    %p100 = scmp.eq.s32.totalorder %s99, 0
    %s102 = sadd.s32 %s101, 1
    %s103 = scalar_select %p100, %s101, %s102
    %p106 = pneg %p100
    %p107 = scmp.eq.s32.totalorder %s20, 1
    %p108 = por %p106, %p107
    %p109 = scmp.ne.s32.totalorder %s101, %s104
    %p110 = scmp.eq.s32.totalorder %s20, 0
    %p111 = por %p109, %p110
    %p112 = scmp.ne.s32.totalorder %s101, %s104
    %p113 = scmp.eq.s32.totalorder %s25, 1
    %p114 = por %p112, %p113
    %p115 = scmp.ne.s32.totalorder %s104, %s105
    %p116 = scmp.eq.s32.totalorder %s25, 0
    %p117 = por %p115, %p116
    %p118 = scmp.ne.s32.totalorder %s104, %s105
    %p119 = scmp.eq.s32.totalorder %s26, 1
    %p120 = por %p118, %p119
    %p122 = scmp.ne.s32.totalorder %s105, %s121
    %p123 = scmp.eq.s32.totalorder %s26, 0
    %p124 = por %p122, %p123
    %s125 = ssub.s32 %s27, %s46
    %s126 = ssub.s32 %s28, %s42
    %s127 = sor.u32 %s125, %s126
    %s128 = ssub.s32 %s29, %s38
    %s129 = sor.u32 %s127, %s128
    %p130 = scmp.eq.s32.totalorder %s129, 0
    %s132 = sadd.s32 %s131, 1
    %s133 = scalar_select %p130, %s131, %s132
    %p136 = pneg %p130
    %p137 = scmp.eq.s32.totalorder %s20, 1
    %p138 = por %p136, %p137
    %p139 = scmp.ne.s32.totalorder %s131, %s134
    %p140 = scmp.eq.s32.totalorder %s20, 0
    %p141 = por %p139, %p140
    %p142 = scmp.ne.s32.totalorder %s131, %s134
    %p143 = scmp.eq.s32.totalorder %s25, 1
    %p144 = por %p142, %p143
    %p145 = scmp.ne.s32.totalorder %s134, %s135
    %p146 = scmp.eq.s32.totalorder %s25, 0
    %p147 = por %p145, %p146
    %p148 = scmp.ne.s32.totalorder %s134, %s135
    %p149 = scmp.eq.s32.totalorder %s26, 1
    %p150 = por %p148, %p149
    %p152 = scmp.ne.s32.totalorder %s135, %s151
    %p153 = scmp.eq.s32.totalorder %s26, 0
    %p154 = por %p152, %p153
    %s156 = sadd.s32 %s155, 1
    %p159 = scmp.eq.s32.totalorder %s20, 1
    %p160 = scmp.ne.s32.totalorder %s155, %s157
    %p161 = scmp.eq.s32.totalorder %s20, 0
    %p162 = por %p160, %p161
    %p163 = scmp.ne.s32.totalorder %s155, %s157
    %p164 = scmp.eq.s32.totalorder %s25, 1
    %p165 = por %p163, %p164
    %p166 = scmp.ne.s32.totalorder %s157, %s158
    %p167 = scmp.eq.s32.totalorder %s25, 0
    %p168 = por %p166, %p167
    %p169 = scmp.ne.s32.totalorder %s157, %s158
    %p170 = scmp.eq.s32.totalorder %s26, 1
    %p171 = por %p169, %p170
    %p173 = scmp.ne.s32.totalorder %s158, %s172
    %p174 = scmp.eq.s32.totalorder %s26, 0
    %p175 = por %p173, %p174
    %s176 = ssub.s32 %s27, %s46
    %s177 = ssub.s32 %s28, %s42
    %s178 = sor.u32 %s176, %s177
    %p179 = scmp.eq.s32.totalorder %s178, 0
    %s181 = sadd.s32 %s180, 1
    %s182 = scalar_select %p179, %s180, %s181
    %p185 = pneg %p179
    %p186 = scmp.eq.s32.totalorder %s20, 1
    %p187 = por %p185, %p186
    %p188 = scmp.ne.s32.totalorder %s180, %s183
    %p189 = scmp.eq.s32.totalorder %s20, 0
    %p190 = por %p188, %p189
    %p191 = scmp.ne.s32.totalorder %s180, %s183
    %p192 = scmp.eq.s32.totalorder %s25, 1
    %p193 = por %p191, %p192
    %p194 = scmp.ne.s32.totalorder %s183, %s184
    %p195 = scmp.eq.s32.totalorder %s25, 0
    %p196 = por %p194, %p195
    %p197 = scmp.ne.s32.totalorder %s183, %s184
    %p198 = scmp.eq.s32.totalorder %s26, 1
    %p199 = por %p197, %p198
    %p201 = scmp.ne.s32.totalorder %s184, %s200
    %p202 = scmp.eq.s32.totalorder %s26, 0
    %p203 = por %p201, %p202
    %p204 = scmp.le.s32.totalorder 1, %s20
    %p205 = scmp.lt.s32.totalorder %s20, 3
    %p206 = pnand %p204, %p205
    %p207 = pneg %p206
    // Predicated region
    $region9: #{hrgat_forward.36} parent=5 // pred_check
      _
    $region10: #{hrgat_forward.36} parent=5 // pred_check_branch
      %209 = sbr.rel (%p206) target = $region12
    $region11: #{hrgat_forward.36} parent=5 // pred_region
      %s210 = ssub.s32 %s20, 1
      // Predicated region
      $region13: #{hrgat_forward.36} parent=11 // pred_check
        %p211 = pneg %p65
      $region14: #{hrgat_forward.36} parent=11 // pred_check_branch
        %213 = sbr.rel (%p211) target = $region16
      $region15: #{hrgat_forward.36} parent=11 // pred_region
        %s214 = smul.u32 2, %s31
        %p215 = scmp.lt.s32.totalorder %s214, 1
        %s216 = scalar_select %p215, %s214, 1
        %s217 = smul.addr %s216, 4
        %s218 = scalar_lea.vmem %s1, %s217
        %s219 = smul.u32 2, %s31
      $region16: #{hrgat_forward.36} parent=11 // pred_fallthru
        _
      // Predicated region
      $region17: #{hrgat_forward.36} parent=11 // pred_check
        %p220 = pneg %p91
      $region18: #{hrgat_forward.36} parent=11 // pred_check_branch
        %222 = sbr.rel (%p220) target = $region20
      $region19: #{hrgat_forward.36} parent=11 // pred_region
        %s223 = smul.u32 2, %s32
        %p224 = scmp.lt.s32.totalorder %s223, 1
        %s225 = scalar_select %p224, %s223, 1
        %s226 = smul.addr %s225, 4
        %s227 = scalar_lea.vmem %s2, %s226
        %s228 = smul.u32 2, %s32
      $region20: #{hrgat_forward.36} parent=11 // pred_fallthru
        _
      // Predicated region
      $region21: #{hrgat_forward.36} parent=11 // pred_check
        %p229 = pneg %p168
      $region22: #{hrgat_forward.36} parent=11 // pred_check_branch
        %231 = sbr.rel (%p229) target = $region24
      $region23: #{hrgat_forward.36} parent=11 // pred_region
        _
      $region24: #{hrgat_forward.36} parent=11 // pred_fallthru
        _
    $region12: #{hrgat_forward.36} parent=5 // pred_fallthru
      _
    %p232 = scmp.lt.s32.totalorder %s20, 2
    // Predicated region
    $region25: #{hrgat_forward.36} parent=5 // pred_check
      %p233 = pneg %p232
    $region26: #{hrgat_forward.36} parent=5 // pred_check_branch
      %235 = sbr.rel (%p233) target = $region28
    $region27: #{hrgat_forward.36} parent=5 // pred_region
      // Predicated region
      $region29: #{hrgat_forward.36} parent=27 // pred_check
        %p236 = pneg %p111
      $region30: #{hrgat_forward.36} parent=27 // pred_check_branch
        %238 = sbr.rel (%p236) target = $region32
      $region31: #{hrgat_forward.36} parent=27 // pred_region
        %p239 = scmp.lt.s32.totalorder %s27, 1
        %s240 = scalar_select %p239, %s27, 1
        %s241 = smul.addr %s240, 2
        %s242 = scalar_lea.vmem %s3, %s241
      $region32: #{hrgat_forward.36} parent=27 // pred_fallthru
        _
      // Predicated region
      $region33: #{hrgat_forward.36} parent=27 // pred_check
        %p243 = pneg %p141
      $region34: #{hrgat_forward.36} parent=27 // pred_check_branch
        %245 = sbr.rel (%p243) target = $region36
      $region35: #{hrgat_forward.36} parent=27 // pred_region
        %s246 = smul.u32 2, %s28
        %p247 = scmp.lt.s32.totalorder %s27, 1
        %s248 = scalar_select %p247, %s27, 1
        %p249 = scmp.lt.s32.totalorder %s246, 1
        %s250 = scalar_select %p249, %s246, 1
        %p251 = scmp.lt.s32.totalorder %s29, 0
        %s252 = scalar_select %p251, %s29, 0
        %s253 = sadd.s32 %s252, %s250
        %s254 = smul.addr %s248, 2
        %s255 = sadd.s32 %s253, %s254
        %s256 = smul.addr %s255, 2
        %s257 = scalar_lea.vmem %s4, %s256
        %s258 = smul.u32 2, %s28
      $region36: #{hrgat_forward.36} parent=27 // pred_fallthru
        _
    $region28: #{hrgat_forward.36} parent=5 // pred_fallthru
      _
    %p259 = scmp.le.s32.totalorder 1, %s20
    %p260 = scmp.lt.s32.totalorder %s20, 3
    %p261 = pnand %p259, %p260
    %p262 = pneg %p261
    // Predicated region
    $region37: #{hrgat_forward.36} parent=5 // pred_check
      _
    $region38: #{hrgat_forward.36} parent=5 // pred_check_branch
      %264 = sbr.rel (%p261) target = $region40
    $region39: #{hrgat_forward.36} parent=5 // pred_region
      %s265 = ssub.s32 %s20, 1
      %s266 = smul.u32 2, %s31
      %p267 = scmp.lt.s32.totalorder %s266, 1
      %s268 = scalar_select %p267, %s266, 1
      %s269 = smul.addr %s268, 4
      %s270 = scalar_lea.vmem %s1, %s269
      %p271 = pneg %p65
      %p272 = pneg %p62
      %s273 = smul.u32 2, %s32
      %p274 = scmp.lt.s32.totalorder %s273, 1
      %s275 = scalar_select %p274, %s273, 1
      %s276 = smul.addr %s275, 4
      %s277 = scalar_lea.vmem %s2, %s276
      %p278 = pneg %p91
      %p279 = pneg %p88
      %p280 = scmp.lt.s32.totalorder %s30, 1
      %s281 = scalar_select %p280, %s30, 1
      %s282 = smul.addr %s281, 2
      %s283 = scalar_lea.vmem %s3, %s282
      %p284 = pneg %p117
      %p285 = pneg %p114
      %s286 = smul.u32 2, %s31
      %p287 = scmp.lt.s32.totalorder %s30, 1
      %s288 = scalar_select %p287, %s30, 1
      %p289 = scmp.lt.s32.totalorder %s286, 1
      %s290 = scalar_select %p289, %s286, 1
      %p291 = scmp.lt.s32.totalorder %s32, 0
      %s292 = scalar_select %p291, %s32, 0
      %s293 = sadd.s32 %s292, %s290
      %s294 = smul.addr %s288, 2
      %s295 = sadd.s32 %s293, %s294
      %s296 = smul.addr %s295, 2
      %s297 = scalar_lea.vmem %s4, %s296
      %p298 = pneg %p147
      %p299 = pneg %p144
      %p300 = pneg %p168
      %p301 = pneg %p165
      %p302 = pneg %p196
      %p303 = pneg %p193
      %s304 = smul.u32 2, %s31
      %p305 = scmp.lt.s32.totalorder %s30, 1
      %s306 = scalar_select %p305, %s30, 1
      %p307 = scmp.lt.s32.totalorder %s304, 1
      %s308 = scalar_select %p307, %s304, 1
      %s309 = smul.addr %s306, 2
      %s310 = sadd.s32 %s308, %s309
      %s311 = smul.addr %s310, 4
      %s312 = scalar_lea.vmem %s6, %s311
      %s313 = smul.u32 2, %s31
      %p314 = scmp.lt.s32.totalorder %s313, 1
      %s315 = scalar_select %p314, %s313, 1
      %s316 = smul.addr %s315, 4
      %s317 = scalar_lea.vmem %s1, %s316
      %s318 = smul.u32 2, %s31
      %s319 = smul.u32 2, %s32
      %p320 = scmp.lt.s32.totalorder %s319, 1
      %s321 = scalar_select %p320, %s319, 1
      %s322 = smul.addr %s321, 4
      %s323 = scalar_lea.vmem %s2, %s322
      %s324 = smul.u32 2, %s32
      %p325 = scmp.lt.s32.totalorder %s30, 1
      %s326 = scalar_select %p325, %s30, 1
      %s327 = smul.addr %s326, 2
      %s328 = scalar_lea.vmem %s3, %s327
      %s329 = smul.u32 2, %s31
      %p330 = scmp.lt.s32.totalorder %s30, 1
      %s331 = scalar_select %p330, %s30, 1
      %p332 = scmp.lt.s32.totalorder %s329, 1
      %s333 = scalar_select %p332, %s329, 1
      %p334 = scmp.lt.s32.totalorder %s32, 0
      %s335 = scalar_select %p334, %s32, 0
      %s336 = sadd.s32 %s335, %s333
      %s337 = smul.addr %s331, 2
      %s338 = sadd.s32 %s336, %s337
      %s339 = smul.addr %s338, 2
      %s340 = scalar_lea.vmem %s4, %s339
      %s341 = smul.u32 2, %s31
      %s342 = smul.u32 2, %s31
      %p343 = scmp.lt.s32.totalorder %s30, 1
      %s344 = scalar_select %p343, %s30, 1
      %p345 = scmp.lt.s32.totalorder %s342, 1
      %s346 = scalar_select %p345, %s342, 1
      %s347 = smul.addr %s344, 2
      %s348 = sadd.s32 %s346, %s347
      %s349 = smul.addr %s348, 4
      %s350 = scalar_lea.vmem %s6, %s349
      %s351 = smul.u32 2, %s31
      %p355 = scmp.eq.s32.totalorder %s32, 0
      // Predicated region
      $region41: #{hrgat_forward.36} parent=39 // pred_check
        %p356 = pneg %p355
      $region42: #{hrgat_forward.36} parent=39 // pred_check_branch
        %358 = sbr.rel (%p356) target = $region44
      $region43: #{hrgat_forward.36} parent=39 // pred_region
        %vm359 = vcmask 7168
        %360 = vst.msk [vmem:[#allocation3] sm:$0xff] %vm359, -1e+30
        %361 = vst.msk [vmem:[#allocation3 + $0x8] sm:$0xff] %vm359, -1e+30
        %362 = vst.msk [vmem:[#allocation4] sm:$0xff] %vm359, 0.0
        %363 = vst.msk [vmem:[#allocation4 + $0x8] sm:$0xff] %vm359, 0.0
        %364 = vst [vmem:[#allocation5] sm:$0xff] 0.0
        %365 = vst [vmem:[#allocation5 + $0x8] sm:$0xff] 0.0
        %v366 = vld [vmem:[%s317] sm:$0xf]
        %v367 = vld [vmem:[%s317 + $0x4] sm:$0xf]
        %v368 = vunpack.c.l.bf16 %v366
        %v369 = vunpack.c.l.bf16 %v367
        %v370 = vld [vmem:[%s328] sm:$0x1]
        %v371 = vperm.slane %v370, 0
        %v372 = vmul.f32 %v368, %v371
        %v373 = vmul.f32 %v369, %v371
        %374 = vadd.xlane.f32.xlu0 %v372
        %v375 = vpop.xlane.xlu0 %374
        %376 = vadd.xlane.f32.xlu0 %v373
        %v377 = vpop.xlane.xlu0 %376
        %378 = vst.msk [vmem:[#allocation2] sm:$0xff] %vm359, %v375
        %379 = vst.msk [vmem:[#allocation2 + $0x8] sm:$0xff] %vm359, %v377
      $region44: #{hrgat_forward.36} parent=39 // pred_fallthru
        _
      %s380 = sadd.s32 %s30, %s31
      %s381 = sadd.s32 %s380, %s32
      %s382 = sld [smem:[#allocation7 + %s381]]
      %p383 = scmp.gt.s32.totalorder %s382, 0
      // Predicated region
      $region45: #{hrgat_forward.36} parent=39 // pred_check
        %p384 = pneg %p383
      $region46: #{hrgat_forward.36} parent=39 // pred_check_branch
        %386 = sbr.rel (%p384) target = $region48
      $region47: #{hrgat_forward.36} parent=39 // pred_region
        %v387 = vld [vmem:[%s323] sm:$0xf]
        %v388 = vld [vmem:[%s323 + $0x4] sm:$0x3]
        %v389 = vld [vmem:[%s340] sm:$0x3]
        %v390 = vld [vmem:[%s340 + $0x2] sm:$0x3]
        %vm391 = vnez %v389
        %vm392 = vnez %v390
        %v393 = vld [vmem:[%s328 + $0x1] sm:$0x1]
        %v394 = vpack.c.bf16 %v393, %v393
        %v397 = vunpack.c.l.b16 %v387
        %v398 = vunpack.c.l.b16 %v388
        %v399 = vpack.c.b16 %v398, %v397
        %401 = vmatpush.bf16.xpose.msra.mxu0 0
        %402 = vmatpush.bf16.xpose.msra.mxu0 0
        %403 = vmatpush.bf16.xpose.msra.mxu0 0
        %404 = vmatpush.bf16.xpose.msra.mxu0 0
        %405 = vmatpush.bf16.xpose.msra.mxu0 0
        %406 = vmatpush.bf16.xpose.msra.mxu0 0
        %407 = vmatpush.bf16.xpose.msra.mxu0 0
        %408 = vmatpush.bf16.xpose.msra.mxu0 %v399
        %409 = vmatmul.bf16.gmra.mxu0 %v394
        %v410 = vpop.f32.mrf.mxu0
        %v411 = vadd.f32 0.0, %v410
        %v412 = vpop.f32.mrf.mxu0
        %413 = vdwg.mxu0
        %v414 = vld [vmem:[#allocation2] sm:$0xff]
        %v415 = vld [vmem:[#allocation2 + $0x8] sm:$0xff]
        %417 = vset.pattern.permute.xlu0 0
        %418 = vperm.xlu0 %417, %v414
        %v419 = vpop.permute.xlu0 %418
        %422 = vset.pattern.permute.xlu0 0
        %423 = vperm.xlu0 %422, %v415
        %v424 = vpop.permute.xlu0 %423
        %v426 = vperm.slane %v411, 0
        %v427 = vadd.f32 %v419, %v426
        %v428 = vadd.f32 %v424, %v426
        %v429 = vsel %vm391, 16843009, 0
        %v430 = vsel %vm392, 16843009, 0
        %v431 = vunpack.c.0.s8 %v429
        %v432 = vunpack.c.0.s8 %v430
        %vm433 = vcmp.ne.s32.totalorder %v431, 0
        %vm434 = vcmp.ne.s32.totalorder %v432, 0
        %v435 = vsel %vm433, %v427, -1e+30
        %v436 = vsel %vm434, %v428, -1e+30
        %v437 = vld [vmem:[#allocation3] sm:$0xff]
        %v438 = vld [vmem:[#allocation3 + $0x8] sm:$0xff]
        %vm439 = vcmask 97280
        %v440 = vsel %vm439, %v435, -inf
        %441 = vmax.xlane.f32.xlu0 %v440
        %v442 = vpop.xlane.xlu0 %441
        %v443 = vsel %vm439, %v436, -inf
        %444 = vmax.xlane.f32.xlu0 %v443
        %v445 = vpop.xlane.xlu0 %444
        %v446 = vmax.f32 %v437, %v442
        %v447 = vmax.f32 %v438, %v445
        %v448 = vsub.f32 %v437, %v446
        %v449 = vsub.f32 %v438, %v447
        %v450 = vmul.f32 %v448, 1.442695
        %v451 = vpow.pop %v450
        %v452 = vmul.f32 %v449, 1.442695
        %v453 = vpow.pop %v452
        %455 = vset.pattern.permute.xlu0 0
        %456 = vperm.xlu0 %455, %v446
        %v457 = vpop.permute.xlu0 %456
        %460 = vset.pattern.permute.xlu0 0
        %461 = vperm.xlu0 %460, %v447
        %v462 = vpop.permute.xlu0 %461
        %v464 = vsub.f32 %v435, %v457
        %v465 = vsub.f32 %v436, %v462
        %v466 = vmul.f32 %v464, 1.442695
        %v467 = vpow.pop %v466
        %v468 = vmul.f32 %v465, 1.442695
        %v469 = vpow.pop %v468
        %v470 = vsel %vm433, %v467, 0.0
        %v471 = vsel %vm434, %v469, 0.0
        %v472 = vld [vmem:[#allocation4] sm:$0xff]
        %v473 = vld [vmem:[#allocation4 + $0x8] sm:$0xff]
        %v474 = vmul.f32 %v451, %v472
        %v475 = vmul.f32 %v453, %v473
        %v476 = vsel %vm439, %v470, 0.0
        %477 = vadd.xlane.f32.xlu0 %v476
        %v478 = vpop.xlane.xlu0 %477
        %v479 = vsel %vm439, %v471, 0.0
        %480 = vadd.xlane.f32.xlu0 %v479
        %v481 = vpop.xlane.xlu0 %480
        %v482 = vadd.f32 %v474, %v478
        %v483 = vadd.f32 %v475, %v481
        %vm484 = vcmask 7168
        %485 = vst.msk [vmem:[#allocation4] sm:$0xff] %vm484, %v482
        %486 = vst.msk [vmem:[#allocation4 + $0x8] sm:$0xff] %vm484, %v483
        %v487 = vld [vmem:[#allocation5] sm:$0xff]
        %v488 = vld [vmem:[#allocation5 + $0x8] sm:$0xff]
        %490 = vset.pattern.permute.xlu0 0
        %491 = vperm.xlu0 %490, %v451
        %v492 = vpop.permute.xlu0 %491
        %495 = vset.pattern.permute.xlu0 0
        %496 = vperm.xlu0 %495, %v453
        %v497 = vpop.permute.xlu0 %496
        %v499 = vmul.f32 %v492, %v487
        %v500 = vmul.f32 %v497, %v488
        %v501 = vpack.c.bf16 %v471, %v470
        %v503 = vsel %vm439, %v501, 0
        %vm505 = vcmask 1045504
        %v507 = vsel %vm505, %v399, 0
        %509 = vmatpush.bf16.msra.mxu0 0
        %510 = vmatpush.bf16.msra.mxu0 0
        %511 = vmatpush.bf16.msra.mxu0 0
        %512 = vmatpush.bf16.msra.mxu0 0
        %513 = vmatpush.bf16.msra.mxu0 0
        %514 = vmatpush.bf16.msra.mxu0 0
        %515 = vmatpush.bf16.msra.mxu0 0
        %516 = vmatpush.bf16.msra.mxu0 %v507
        %517 = vmatmul.bf16.gmra.mxu0 %v503
        %v518 = vpop.f32.mrf.mxu0
        %v519 = vadd.f32 0.0, %v518
        %v520 = vpop.f32.mrf.mxu0
        %v521 = vadd.f32 0.0, %v520
        %522 = vdwg.mxu0
        %v523 = vadd.f32 %v499, %v519
        %v524 = vadd.f32 %v500, %v521
        %525 = vst [vmem:[#allocation5] sm:$0xff] %v523
        %526 = vst [vmem:[#allocation5 + $0x8] sm:$0xff] %v524
        %527 = vst.msk [vmem:[#allocation3] sm:$0xff] %vm484, %v446
        %528 = vst.msk [vmem:[#allocation3 + $0x8] sm:$0xff] %vm484, %v447
      $region48: #{hrgat_forward.36} parent=39 // pred_fallthru
        _
      // Predicated region
      $region49: #{hrgat_forward.36} parent=39 // pred_check
        %p529 = pneg %p355
      $region50: #{hrgat_forward.36} parent=39 // pred_check_branch
        %531 = sbr.rel (%p529) target = $region52
      $region51: #{hrgat_forward.36} parent=39 // pred_region
        %v532 = vld [vmem:[#allocation4] sm:$0xff]
        %v533 = vld [vmem:[#allocation4 + $0x8] sm:$0xff]
        %v534 = vadd.f32 %v532, 1e-16
        %v535 = vadd.f32 %v533, 1e-16
        %v536 = vrcp.pop %v534
        %v537 = vrcp.pop %v535
        %v538 = vld [vmem:[#allocation5] sm:$0xff]
        %v539 = vld [vmem:[#allocation5 + $0x8] sm:$0xff]
        %541 = vset.pattern.permute.xlu0 0
        %542 = vperm.xlu0 %541, %v536
        %v543 = vpop.permute.xlu0 %542
        %546 = vset.pattern.permute.xlu0 0
        %547 = vperm.xlu0 %546, %v537
        %v548 = vpop.permute.xlu0 %547
        %v550 = vmul.f32 %v538, %v543
        %v551 = vmul.f32 %v539, %v548
        %vm552 = vcmp.gt.f32.partialorder %v550, 0.0
        %vm553 = vcmp.gt.f32.partialorder %v551, 0.0
        %v554 = vmul.f32 %v550, 0.2
        %v555 = vmul.f32 %v551, 0.2
        %v556 = vsel %vm552, %v550, %v554
        %v557 = vsel %vm553, %v551, %v555
        %v558 = vpack.c.bf16 %v557, %v556
        %v559 = vld [vmem:[%s5] sm:$0xf]
        %v560 = vld [vmem:[%s5 + $0x4] sm:$0xf]
        %v561 = vld [vmem:[%s5 + $0x8] sm:$0xf]
        %v562 = vld [vmem:[%s5 + $0xc] sm:$0xf]
        %v563 = vld [vmem:[%s5 + $0x10] sm:$0xf]
        %v564 = vld [vmem:[%s5 + $0x14] sm:$0xf]
        %v565 = vld [vmem:[%s5 + $0x18] sm:$0xf]
        %v566 = vld [vmem:[%s5 + $0x1c] sm:$0xf]
        %v567 = vld [vmem:[%s5 + $0x20] sm:$0xf]
        %v568 = vld [vmem:[%s5 + $0x24] sm:$0xf]
        %v569 = vld [vmem:[%s5 + $0x28] sm:$0xf]
        %v570 = vld [vmem:[%s5 + $0x2c] sm:$0xf]
        %v571 = vld [vmem:[%s5 + $0x30] sm:$0xf]
        %v572 = vld [vmem:[%s5 + $0x34] sm:$0xf]
        %v573 = vld [vmem:[%s5 + $0x38] sm:$0xf]
        %v574 = vld [vmem:[%s5 + $0x3c] sm:$0xf]
        %v591 = vunpack.c.l.b16 %v559
        %v592 = vunpack.c.l.b16 %v560
        %v593 = vunpack.c.l.b16 %v561
        %v594 = vunpack.c.l.b16 %v562
        %v595 = vunpack.c.l.b16 %v563
        %v596 = vunpack.c.l.b16 %v564
        %v597 = vunpack.c.l.b16 %v565
        %v598 = vunpack.c.l.b16 %v566
        %v599 = vunpack.c.l.b16 %v567
        %v600 = vunpack.c.l.b16 %v568
        %v601 = vunpack.c.l.b16 %v569
        %v602 = vunpack.c.l.b16 %v570
        %v603 = vunpack.c.l.b16 %v571
        %v604 = vunpack.c.l.b16 %v572
        %v605 = vunpack.c.l.b16 %v573
        %v606 = vunpack.c.l.b16 %v574
        %v607 = vpack.c.b16 %v592, %v591
        %v608 = vpack.c.b16 %v594, %v593
        %v609 = vpack.c.b16 %v596, %v595
        %v610 = vpack.c.b16 %v598, %v597
        %v611 = vpack.c.b16 %v600, %v599
        %v612 = vpack.c.b16 %v602, %v601
        %v613 = vpack.c.b16 %v604, %v603
        %v614 = vpack.c.b16 %v606, %v605
        %623 = vmatpush.bf16.msra.mxu0 %v614
        %624 = vmatpush.bf16.msra.mxu0 %v613
        %625 = vmatpush.bf16.msra.mxu0 %v612
        %626 = vmatpush.bf16.msra.mxu0 %v611
        %627 = vmatpush.bf16.msra.mxu0 %v610
        %628 = vmatpush.bf16.msra.mxu0 %v609
        %629 = vmatpush.bf16.msra.mxu0 %v608
        %630 = vmatpush.bf16.msra.mxu0 %v607
        %631 = vmatmul.bf16.gmra.mxu0 %v558
        %v632 = vpop.f32.mrf.mxu0
        %v633 = vadd.f32 0.0, %v632
        %v634 = vpop.f32.mrf.mxu0
        %v635 = vadd.f32 0.0, %v634
        %636 = vdwg.mxu0
        %v637 = vpack.c.bf16 %v633, %v633
        %v638 = vpack.c.bf16 %v635, %v635
        %639 = vst [vmem:[%s350] sm:$0xf] %v637
        %640 = vst [vmem:[%s350 + $0x4] sm:$0xf] %v638
      $region52: #{hrgat_forward.36} parent=39 // pred_fallthru
        _
      %s641 = smul.u32 2, %s31
      %p642 = scmp.lt.s32.totalorder %s30, 1
      %s643 = scalar_select %p642, %s30, 1
      %p644 = scmp.lt.s32.totalorder %s641, 1
      %s645 = scalar_select %p644, %s641, 1
      %s646 = smul.addr %s643, 2
      %s647 = sadd.s32 %s645, %s646
      %s648 = smul.addr %s647, 4
      %s649 = scalar_lea.vmem %s6, %s648
      // Predicated region
      $region53: #{hrgat_forward.36} parent=39 // pred_check
        %p650 = pneg %p193
      $region54: #{hrgat_forward.36} parent=39 // pred_check_branch
        %652 = sbr.rel (%p650) target = $region56
      $region55: #{hrgat_forward.36} parent=39 // pred_region
        %s653 = smul.u32 2, %s31
      $region56: #{hrgat_forward.36} parent=39 // pred_fallthru
        _
    $region40: #{hrgat_forward.36} parent=5 // pred_fallthru
      _
    %p654 = scmp.le.s32.totalorder 2, %s20
    // Predicated region
    $region57: #{hrgat_forward.36} parent=5 // pred_check
      %p655 = pneg %p654
    $region58: #{hrgat_forward.36} parent=5 // pred_check_branch
      %657 = sbr.rel (%p655) target = $region60
    $region59: #{hrgat_forward.36} parent=5 // pred_region
      %s658 = ssub.s32 %s20, 2
      // Predicated region
      $region61: #{hrgat_forward.36} parent=59 // pred_check
        %p659 = pneg %p199
      $region62: #{hrgat_forward.36} parent=59 // pred_check_branch
        %661 = sbr.rel (%p659) target = $region64
      $region63: #{hrgat_forward.36} parent=59 // pred_region
        %s662 = smul.u32 2, %s34
        %p663 = scmp.lt.s32.totalorder %s33, 1
        %s664 = scalar_select %p663, %s33, 1
        %p665 = scmp.lt.s32.totalorder %s662, 1
        %s666 = scalar_select %p665, %s662, 1
        %s667 = smul.addr %s664, 2
        %s668 = sadd.s32 %s666, %s667
        %s669 = smul.addr %s668, 4
        %s670 = scalar_lea.vmem %s6, %s669
      $region64: #{hrgat_forward.36} parent=59 // pred_fallthru
        _
    $region60: #{hrgat_forward.36} parent=5 // pred_fallthru
      _
  $region6: #{hrgat_forward.36} parent=0 // loop_footer
    %s24 = sadd.s32 1, %s20
  $region7: #{hrgat_forward.36} parent=0 // loop_footer_branch
    %19 = sbr.rel target = $region3
  $region8: #{hrgat_forward.36} parent=0 // loop_exit
    _

// kernel: hrgat_forward.37
$region0: #{hrgat_forward.37}
  #allocation0 [shape = 'u32[]', space=smem, size = 0x4, offset = 0x4, fixed_abs, tag = 'smem constant byte address 0x4 - core index']
  #allocation1 [shape = 'u32[72,128]{1,0:T(1,128)}', space=vmem, size = 0x9000, scoped, tag = 'internal scratch']
  %s0 = inlined_call_operand.vmem [shape: bf16[2,16,128], index: 0, kind: input, shape index: {}]
  %s1 = inlined_call_operand.vmem [shape: bf16[16,128], index: 1, kind: input, shape index: {}]
  %s2 = inlined_call_operand.vmem [shape: f32[2,128], index: 2, kind: input, shape index: {}]
  %s3 = inlined_call_operand.vmem [shape: f32[2], index: 3, kind: input, shape index: {}]
  %s4 = inlined_call_operand.vmem [shape: f32[2], index: 4, kind: input, shape index: {}]
  %s5 = inlined_call_operand.vmem [shape: f32[1,128], index: 5, kind: input, shape index: {}]
  %s6 = inlined_call_operand.vmem [shape: f32[1,128], index: 6, kind: input, shape index: {}]
  %s7 = inlined_call_operand.vmem [shape: f32[1,128], index: 7, kind: input, shape index: {}]
  %s8 = inlined_call_operand.vmem [shape: f32[1,128], index: 8, kind: input, shape index: {}]
  %s9 = inlined_call_operand.hbm [shape: f32[16,128], index: 9, kind: output, shape index: {}]
  %s10 = sld [smem:[#allocation0]]
  $region54: #{hrgat_forward.37} parent=0
    _
  %s12 = ssub.s32 1, %s10
  %s13 = scalar_select 0, %s12, %s10
  $region1: #{hrgat_forward.37} parent=0
    #allocation2 [shape = 'u8[512]{0}', space=smem, size = 0x200, scoped, tag = 'input window, operand 3, single buffered']
    #allocation3 [shape = 's32[1]{0}', space=sflag, size = 0x4, scoped, tag = 'scoped memory for hrgat_forward.37']
    #allocation4 [shape = 's32[1]{0}', space=sflag, size = 0x4, scoped, tag = 'scoped memory for hrgat_forward.37']
    #allocation5 [shape = 'u8[512]{0}', space=smem, size = 0x200, scoped, tag = 'input window, operand 4, single buffered']
    #allocation6 [shape = 's32[1]{0}', space=sflag, size = 0x4, scoped, tag = 'scoped memory for hrgat_forward.37']
    #allocation7 [shape = 'u8[8192]{0}', space=vmem, size = 0x2000, scoped, tag = 'output window, operand 0, single buffered']
    %14 = vsyncpa [#allocation4], 0
    %15 = vsyncpa [#allocation6], 0
    %16 = vsyncpa [#allocation3], 0
    // Predicated region
    $region2: #{hrgat_forward.37} parent=1 // pred_check
      _
    $region3: #{hrgat_forward.37} parent=1 // pred_check_branch
      %18 = sbr.rel (0) target = $region5
    $region4: #{hrgat_forward.37} parent=1 // pred_region
      _
    $region5: #{hrgat_forward.37} parent=1 // pred_fallthru
      _
    // Predicated region
    $region6: #{hrgat_forward.37} parent=1 // pred_check
      _
    $region7: #{hrgat_forward.37} parent=1 // pred_check_branch
      %20 = sbr.rel (0) target = $region9
    $region8: #{hrgat_forward.37} parent=1 // pred_region
      _
    $region9: #{hrgat_forward.37} parent=1 // pred_fallthru
      _
    // Predicated region
    $region10: #{hrgat_forward.37} parent=1 // pred_check
      _
    $region11: #{hrgat_forward.37} parent=1 // pred_check_branch
      %22 = sbr.rel (0) target = $region13
    $region12: #{hrgat_forward.37} parent=1 // pred_region
      _
    $region13: #{hrgat_forward.37} parent=1 // pred_fallthru
      _
    // Predicated region
    $region14: #{hrgat_forward.37} parent=1 // pred_check
      _
    $region15: #{hrgat_forward.37} parent=1 // pred_check_branch
      %24 = sbr.rel (0) target = $region17
    $region16: #{hrgat_forward.37} parent=1 // pred_region
      %26 = vsyncadd [#allocation4], 0
      %s28 = sshll.u32 %s3, 4
      %s29 = int_to_ptr.vmem [resolvable:$true] %s28
      %31 = dma.vmem_to_smem %s29, 16, [#allocation2], [#allocation4]
    $region17: #{hrgat_forward.37} parent=1 // pred_fallthru
      _
    // Predicated region
    $region18: #{hrgat_forward.37} parent=1 // pred_check
      _
    $region19: #{hrgat_forward.37} parent=1 // pred_check_branch
      %33 = sbr.rel (0) target = $region21
    $region20: #{hrgat_forward.37} parent=1 // pred_region
      %35 = vsyncadd [#allocation6], 0
      %s37 = sshll.u32 %s4, 4
      %s38 = int_to_ptr.vmem [resolvable:$true] %s37
      %40 = dma.vmem_to_smem %s38, 16, [#allocation5], [#allocation6]
    $region21: #{hrgat_forward.37} parent=1 // pred_fallthru
      _
    // Predicated region
    $region22: #{hrgat_forward.37} parent=1 // pred_check
      _
    $region23: #{hrgat_forward.37} parent=1 // pred_check_branch
      %42 = sbr.rel (0) target = $region25
    $region24: #{hrgat_forward.37} parent=1 // pred_region
      _
    $region25: #{hrgat_forward.37} parent=1 // pred_fallthru
      _
    // Predicated region
    $region26: #{hrgat_forward.37} parent=1 // pred_check
      _
    $region27: #{hrgat_forward.37} parent=1 // pred_check_branch
      %44 = sbr.rel (0) target = $region29
    $region28: #{hrgat_forward.37} parent=1 // pred_region
      _
    $region29: #{hrgat_forward.37} parent=1 // pred_fallthru
      _
    // Predicated region
    $region30: #{hrgat_forward.37} parent=1 // pred_check
      _
    $region31: #{hrgat_forward.37} parent=1 // pred_check_branch
      %46 = sbr.rel (0) target = $region33
    $region32: #{hrgat_forward.37} parent=1 // pred_region
      _
    $region33: #{hrgat_forward.37} parent=1 // pred_fallthru
      _
    // Predicated region
    $region34: #{hrgat_forward.37} parent=1 // pred_check
      _
    $region35: #{hrgat_forward.37} parent=1 // pred_check_branch
      %48 = sbr.rel (0) target = $region37
    $region36: #{hrgat_forward.37} parent=1 // pred_region
      _
    $region37: #{hrgat_forward.37} parent=1 // pred_fallthru
      _
    // Predicated region
    $region38: #{hrgat_forward.37} parent=1 // pred_check
      _
    $region39: #{hrgat_forward.37} parent=1 // pred_check_branch
      %50 = sbr.rel (0) target = $region41
    $region40: #{hrgat_forward.37} parent=1 // pred_region
      %52 = dma.done [#allocation4], 16
    $region41: #{hrgat_forward.37} parent=1 // pred_fallthru
      _
    // Predicated region
    $region42: #{hrgat_forward.37} parent=1 // pred_check
      _
    $region43: #{hrgat_forward.37} parent=1 // pred_check_branch
      %54 = sbr.rel (0) target = $region45
    $region44: #{hrgat_forward.37} parent=1 // pred_region
      %56 = dma.done [#allocation6], 16
    $region45: #{hrgat_forward.37} parent=1 // pred_fallthru
      _
    %57 = sfence
    %v58 = vlaneseq
    %v59 = vand.u32 %v58, 127
    %vm60 = vcmp.lt.s32.totalorder %v59, 32
    %v61 = vld [vmem:[%s1] sm:$0xf]
    %v62 = vld [vmem:[%s1 + $0x4] sm:$0xf]
    %v63 = vunpack.c.l.bf16 %v61
    %v64 = vunpack.c.l.bf16 %v62
    %v65 = vld [vmem:[%s2] sm:$0x1]
    %v66 = vld [vmem:[%s2 + $0x1] sm:$0x1]
    %v67 = vperm.slane %v65, 0
    %v68 = vmul.f32 %v63, %v67
    %v69 = vmul.f32 %v64, %v67
    %70 = vadd.xlane.f32.xlu0 %v68
    %v71 = vpop.xlane.xlu0 %70
    %72 = vadd.xlane.f32.xlu0 %v69
    %v73 = vpop.xlane.xlu0 %72
    %v74 = vld [vmem:[%s0] sm:$0xf]
    %v75 = vld [vmem:[%s0 + $0x4] sm:$0xf]
    %v76 = vunpack.c.l.bf16 %v74
    %v77 = vunpack.c.l.bf16 %v75
    %s78 = scalar_lea.vmem %s0, 8
    %v79 = vld [vmem:[%s78] sm:$0xf]
    %v80 = vld [vmem:[%s78 + $0x4] sm:$0xf]
    %v81 = vunpack.c.l.bf16 %v79
    %v82 = vunpack.c.l.bf16 %v80
    %v83 = vperm.slane %v66, 0
    %v84 = vmul.f32 %v76, %v83
    %v85 = vmul.f32 %v77, %v83
    %86 = vadd.xlane.f32.xlu0 %v84
    %v87 = vpop.xlane.xlu0 %86
    %88 = vadd.xlane.f32.xlu0 %v85
    %v89 = vpop.xlane.xlu0 %88
    %v90 = vadd.f32 %v71, %v87
    %v91 = vadd.f32 %v73, %v89
    %v92 = vmul.f32 %v81, %v83
    %v93 = vmul.f32 %v82, %v83
    %94 = vadd.xlane.f32.xlu0 %v92
    %v95 = vpop.xlane.xlu0 %94
    %96 = vadd.xlane.f32.xlu0 %v93
    %v97 = vpop.xlane.xlu0 %96
    %v98 = vadd.f32 %v71, %v95
    %v99 = vadd.f32 %v73, %v97
    %v100 = vmax.f32 %v90, %v98
    %v101 = vmax.f32 %v91, %v99
    %v102 = vsub.f32 %v90, %v100
    %v103 = vsub.f32 %v91, %v101
    %v104 = vmul.f32 %v102, 1.442695
    %v105 = vpow.pop %v104
    %v106 = vmul.f32 %v103, 1.442695
    %v107 = vpow.pop %v106
    %v108 = vsub.f32 %v98, %v100
    %v109 = vsub.f32 %v99, %v101
    %v110 = vmul.f32 %v108, 1.442695
    %v111 = vpow.pop %v110
    %v112 = vmul.f32 %v109, 1.442695
    %v113 = vpow.pop %v112
    %v114 = vadd.f32 %v105, %v111
    %v115 = vadd.f32 %v107, %v113
    %v116 = vrcp.pop %v114
    %v117 = vrcp.pop %v115
    %s118 = sld [smem:[#allocation5]]
    %s119 = sld [smem:[#allocation5 + $0x1]]
    %v120 = vmul.f32 %v105, %v116
    %v121 = vmul.f32 %v107, %v117
    %v122 = vstv %s118
    %v123 = vmul.f32 %v122, %v120
    %v124 = vmul.f32 %v122, %v121
    %s125 = sld [smem:[#allocation2]]
    %v126 = vstv %s125
    %v127 = vadd.f32 %v123, %v126
    %v128 = vadd.f32 %v124, %v126
    %v129 = vmul.f32 %v76, %v127
    %v130 = vmul.f32 %v77, %v128
    %v131 = vadd.f32 %v129, 0.0
    %v132 = vadd.f32 %v130, 0.0
    %v133 = vmul.f32 %v111, %v116
    %v134 = vmul.f32 %v113, %v117
    %v135 = vmul.f32 %v122, %v133
    %v136 = vmul.f32 %v122, %v134
    %s137 = sld [smem:[#allocation2 + $0x1]]
    %v138 = vstv %s137
    %v139 = vadd.f32 %v135, %v138
    %v140 = vadd.f32 %v136, %v138
    %v141 = vmul.f32 %v81, %v139
    %v142 = vmul.f32 %v82, %v140
    %v143 = vadd.f32 %v131, %v141
    %v144 = vadd.f32 %v132, %v142
    %v145 = vmul.f32 %v143, 0.5
    %v146 = vmul.f32 %v144, 0.5
    %v147 = vmul.f32 %v143, 0.044715
    %v148 = vmul.f32 %v144, 0.044715
    %v149 = vmul.f32 %v147, %v143
    %v150 = vmul.f32 %v148, %v144
    %v151 = vmul.f32 %v149, %v143
    %v152 = vmul.f32 %v150, %v144
    %v153 = vadd.f32 %v143, %v151
    %v154 = vadd.f32 %v144, %v152
    %v155 = vmul.f32 %v153, 0.7978846
    %v156 = vmul.f32 %v154, 0.7978846
    %v157 = vtanh.pop %v155
    %v158 = vtanh.pop %v156
    %v159 = vadd.f32 %v157, 1.0
    %v160 = vadd.f32 %v158, 1.0
    %v161 = vmul.f32 %v145, %v159
    %v162 = vmul.f32 %v146, %v160
    %v163 = vstv %s119
    %v164 = vmul.f32 %v161, %v163
    %v165 = vmul.f32 %v162, %v163
    %s166 = ssub.f32 1.0, %s119
    %v167 = vstv %s166
    %v168 = vmul.f32 %v63, %v167
    %v169 = vmul.f32 %v64, %v167
    %v170 = vadd.f32 %v164, %v168
    %v171 = vadd.f32 %v165, %v169
    %v172 = vld [vmem:[%s5] sm:$0x1]
    %v173 = vld [vmem:[%s6] sm:$0x1]
    %v174 = vsel %vm60, 1, 0
    %vm175 = vcmp.eq.s32.totalorder %v174, 1
    %v176 = vsel %vm175, %v170, 0.0
    %v177 = vsel %vm175, %v171, 0.0
    %178 = vadd.xlane.f32.xlu0 %v176
    %v179 = vpop.xlane.xlu0 %178
    %180 = vadd.xlane.f32.xlu0 %v177
    %v181 = vpop.xlane.xlu0 %180
    %v182 = vmul.f32 %v179, 0.03125
    %v183 = vmul.f32 %v181, 0.03125
    %v184 = vsub.f32 %v170, %v182
    %v185 = vsub.f32 %v171, %v183
    %v186 = vsel %vm175, %v184, 0.0
    %v187 = vsel %vm175, %v185, 0.0
    %v188 = vmul.f32 %v186, %v186
    %v189 = vmul.f32 %v187, %v187
    %190 = vadd.xlane.f32.xlu0 %v188
    %v191 = vpop.xlane.xlu0 %190
    %192 = vadd.xlane.f32.xlu0 %v189
    %v193 = vpop.xlane.xlu0 %192
    %v194 = vmul.f32 %v191, 0.03125
    %v195 = vmul.f32 %v193, 0.03125
    %v196 = vadd.f32 %v194, 1e-05
    %v197 = vadd.f32 %v195, 1e-05
    %v198 = vrsqrt.pop %v196
    %v199 = vmul.f32 %v198, %v196
    %v200 = vmul.f32 %v199, %v198
    %v201 = vmul.f32 0.5, %v200
    %v202 = vsub.f32 1.5, %v201
    %v203 = vmul.f32 %v198, %v202
    %vm204 = vweird.f32 %v196
    %vm205 = vweird.f32 %v198
    %vm206 = vmor %vm204, %vm205
    %v207 = vsel %vm206, %v198, %v203
    %v208 = vrsqrt.pop %v197
    %v209 = vmul.f32 %v208, %v197
    %v210 = vmul.f32 %v209, %v208
    %v211 = vmul.f32 0.5, %v210
    %v212 = vsub.f32 1.5, %v211
    %v213 = vmul.f32 %v208, %v212
    %vm214 = vweird.f32 %v197
    %vm215 = vweird.f32 %v208
    %vm216 = vmor %vm214, %vm215
    %v217 = vsel %vm216, %v208, %v213
    %v218 = vmul.f32 %v186, %v207
    %v219 = vmul.f32 %v187, %v217
    %v221 = vperm.slane %v172, 0
    %v223 = vmul.f32 %v218, %v221
    %v224 = vmul.f32 %v219, %v221
    %v226 = vperm.slane %v173, 0
    %v228 = vadd.f32 %v223, %v226
    %v229 = vadd.f32 %v224, %v226
    %v230 = vld [vmem:[%s7] sm:$0x1]
    %v231 = vld [vmem:[%s8] sm:$0x1]
    %v232 = vsel %vm175, %v228, 0.0
    %v233 = vsel %vm175, %v229, 0.0
    %234 = vadd.xlane.f32.xlu0 %v232
    %v235 = vpop.xlane.xlu0 %234
    %236 = vadd.xlane.f32.xlu0 %v233
    %v237 = vpop.xlane.xlu0 %236
    %v238 = vmul.f32 %v235, 0.03125
    %v239 = vmul.f32 %v237, 0.03125
    %v240 = vsub.f32 %v228, %v238
    %v241 = vsub.f32 %v229, %v239
    %v242 = vsel %vm175, %v240, 0.0
    %v243 = vsel %vm175, %v241, 0.0
    %v244 = vmul.f32 %v242, %v242
    %v245 = vmul.f32 %v243, %v243
    %246 = vadd.xlane.f32.xlu0 %v244
    %v247 = vpop.xlane.xlu0 %246
    %248 = vadd.xlane.f32.xlu0 %v245
    %v249 = vpop.xlane.xlu0 %248
    %v250 = vmul.f32 %v247, 0.03125
    %v251 = vmul.f32 %v249, 0.03125
    %v252 = vadd.f32 %v250, 1e-05
    %v253 = vadd.f32 %v251, 1e-05
    %v254 = vrsqrt.pop %v252
    %v255 = vmul.f32 %v254, %v252
    %v256 = vmul.f32 %v255, %v254
    %v257 = vmul.f32 0.5, %v256
    %v258 = vsub.f32 1.5, %v257
    %v259 = vmul.f32 %v254, %v258
    %vm260 = vweird.f32 %v252
    %vm261 = vweird.f32 %v254
    %vm262 = vmor %vm260, %vm261
    %v263 = vsel %vm262, %v254, %v259
    %v264 = vrsqrt.pop %v253
    %v265 = vmul.f32 %v264, %v253
    %v266 = vmul.f32 %v265, %v264
    %v267 = vmul.f32 0.5, %v266
    %v268 = vsub.f32 1.5, %v267
    %v269 = vmul.f32 %v264, %v268
    %vm270 = vweird.f32 %v253
    %vm271 = vweird.f32 %v264
    %vm272 = vmor %vm270, %vm271
    %v273 = vsel %vm272, %v264, %v269
    %v274 = vmul.f32 %v242, %v263
    %v275 = vmul.f32 %v243, %v273
    %v277 = vperm.slane %v230, 0
    %v279 = vmul.f32 %v274, %v277
    %v280 = vmul.f32 %v275, %v277
    %v282 = vperm.slane %v231, 0
    %v284 = vadd.f32 %v279, %v282
    %v285 = vadd.f32 %v280, %v282
    %286 = vst [vmem:[#allocation7] sm:$0xff] %v284
    %287 = vst [vmem:[#allocation7 + $0x8] sm:$0xff] %v285
    // Predicated region
    $region46: #{hrgat_forward.37} parent=1 // pred_check
      _
    $region47: #{hrgat_forward.37} parent=1 // pred_check_branch
      %289 = sbr.rel (0) target = $region49
    $region48: #{hrgat_forward.37} parent=1 // pred_region
      %291 = vsyncadd [#allocation3], 0
      %s292 = sshll.u32 [#allocation7], 4
      %s293 = int_to_ptr.vmem [resolvable:$true] %s292
      %s294 = sshll.u32 %s9, 4
      %s295 = int_to_ptr.hbm [resolvable:$true] %s294
      %300 = dma.vmem_to_hbm [thread:$0]  %s293, 256, %s295, [#allocation3], 128, 128, 8
    $region49: #{hrgat_forward.37} parent=1 // pred_fallthru
      _
    // Predicated region
    $region50: #{hrgat_forward.37} parent=1 // pred_check
      _
    $region51: #{hrgat_forward.37} parent=1 // pred_check_branch
      %302 = sbr.rel (0) target = $region53
    $region52: #{hrgat_forward.37} parent=1 // pred_region
      %304 = dma.done [#allocation3], 256
    $region53: #{hrgat_forward.37} parent=1 // pred_fallthru
      _
    %305 = vsyncpa [#allocation3], 1
    %306 = vsyncpa [#allocation4], 1
    %307 = vsyncpa [#allocation6], 1

// kernel: hrgat_forward.39
$region0: #{hrgat_forward.39}
  #allocation0 [shape = 'u32[]', space=smem, size = 0x4, offset = 0x4, fixed_abs, tag = 'smem constant byte address 0x4 - core index']
  #allocation1 [shape = 'u32[72,128]{1,0:T(1,128)}', space=vmem, size = 0x9000, scoped, tag = 'internal scratch']
  %s0 = inlined_call_operand.vmem [shape: bf16[2,12,128], index: 0, kind: input, shape index: {}]
  %s1 = inlined_call_operand.vmem [shape: bf16[12,128], index: 1, kind: input, shape index: {}]
  %s2 = inlined_call_operand.vmem [shape: f32[2,128], index: 2, kind: input, shape index: {}]
  %s3 = inlined_call_operand.vmem [shape: f32[2], index: 3, kind: input, shape index: {}]
  %s4 = inlined_call_operand.vmem [shape: f32[2], index: 4, kind: input, shape index: {}]
  %s5 = inlined_call_operand.vmem [shape: f32[1,128], index: 5, kind: input, shape index: {}]
  %s6 = inlined_call_operand.vmem [shape: f32[1,128], index: 6, kind: input, shape index: {}]
  %s7 = inlined_call_operand.vmem [shape: f32[1,128], index: 7, kind: input, shape index: {}]
  %s8 = inlined_call_operand.vmem [shape: f32[1,128], index: 8, kind: input, shape index: {}]
  %s9 = inlined_call_operand.hbm [shape: f32[12,128], index: 9, kind: output, shape index: {}]
  %s10 = sld [smem:[#allocation0]]
  $region54: #{hrgat_forward.39} parent=0
    _
  %s12 = ssub.s32 1, %s10
  %s13 = scalar_select 0, %s12, %s10
  $region1: #{hrgat_forward.39} parent=0
    #allocation2 [shape = 'u8[512]{0}', space=smem, size = 0x200, scoped, tag = 'input window, operand 3, single buffered']
    #allocation3 [shape = 's32[1]{0}', space=sflag, size = 0x4, scoped, tag = 'scoped memory for hrgat_forward.39']
    #allocation4 [shape = 's32[1]{0}', space=sflag, size = 0x4, scoped, tag = 'scoped memory for hrgat_forward.39']
    #allocation5 [shape = 'u8[512]{0}', space=smem, size = 0x200, scoped, tag = 'input window, operand 4, single buffered']
    #allocation6 [shape = 's32[1]{0}', space=sflag, size = 0x4, scoped, tag = 'scoped memory for hrgat_forward.39']
    #allocation7 [shape = 'u8[8192]{0}', space=vmem, size = 0x2000, scoped, tag = 'output window, operand 0, single buffered']
    %14 = vsyncpa [#allocation4], 0
    %15 = vsyncpa [#allocation6], 0
    %16 = vsyncpa [#allocation3], 0
    // Predicated region
    $region2: #{hrgat_forward.39} parent=1 // pred_check
      _
    $region3: #{hrgat_forward.39} parent=1 // pred_check_branch
      %18 = sbr.rel (0) target = $region5
    $region4: #{hrgat_forward.39} parent=1 // pred_region
      _
    $region5: #{hrgat_forward.39} parent=1 // pred_fallthru
      _
    // Predicated region
    $region6: #{hrgat_forward.39} parent=1 // pred_check
      _
    $region7: #{hrgat_forward.39} parent=1 // pred_check_branch
      %20 = sbr.rel (0) target = $region9
    $region8: #{hrgat_forward.39} parent=1 // pred_region
      _
    $region9: #{hrgat_forward.39} parent=1 // pred_fallthru
      _
    // Predicated region
    $region10: #{hrgat_forward.39} parent=1 // pred_check
      _
    $region11: #{hrgat_forward.39} parent=1 // pred_check_branch
      %22 = sbr.rel (0) target = $region13
    $region12: #{hrgat_forward.39} parent=1 // pred_region
      _
    $region13: #{hrgat_forward.39} parent=1 // pred_fallthru
      _
    // Predicated region
    $region14: #{hrgat_forward.39} parent=1 // pred_check
      _
    $region15: #{hrgat_forward.39} parent=1 // pred_check_branch
      %24 = sbr.rel (0) target = $region17
    $region16: #{hrgat_forward.39} parent=1 // pred_region
      %26 = vsyncadd [#allocation4], 0
      %s28 = sshll.u32 %s3, 4
      %s29 = int_to_ptr.vmem [resolvable:$true] %s28
      %31 = dma.vmem_to_smem %s29, 16, [#allocation2], [#allocation4]
    $region17: #{hrgat_forward.39} parent=1 // pred_fallthru
      _
    // Predicated region
    $region18: #{hrgat_forward.39} parent=1 // pred_check
      _
    $region19: #{hrgat_forward.39} parent=1 // pred_check_branch
      %33 = sbr.rel (0) target = $region21
    $region20: #{hrgat_forward.39} parent=1 // pred_region
      %35 = vsyncadd [#allocation6], 0
      %s37 = sshll.u32 %s4, 4
      %s38 = int_to_ptr.vmem [resolvable:$true] %s37
      %40 = dma.vmem_to_smem %s38, 16, [#allocation5], [#allocation6]
    $region21: #{hrgat_forward.39} parent=1 // pred_fallthru
      _
    // Predicated region
    $region22: #{hrgat_forward.39} parent=1 // pred_check
      _
    $region23: #{hrgat_forward.39} parent=1 // pred_check_branch
      %42 = sbr.rel (0) target = $region25
    $region24: #{hrgat_forward.39} parent=1 // pred_region
      _
    $region25: #{hrgat_forward.39} parent=1 // pred_fallthru
      _
    // Predicated region
    $region26: #{hrgat_forward.39} parent=1 // pred_check
      _
    $region27: #{hrgat_forward.39} parent=1 // pred_check_branch
      %44 = sbr.rel (0) target = $region29
    $region28: #{hrgat_forward.39} parent=1 // pred_region
      _
    $region29: #{hrgat_forward.39} parent=1 // pred_fallthru
      _
    // Predicated region
    $region30: #{hrgat_forward.39} parent=1 // pred_check
      _
    $region31: #{hrgat_forward.39} parent=1 // pred_check_branch
      %46 = sbr.rel (0) target = $region33
    $region32: #{hrgat_forward.39} parent=1 // pred_region
      _
    $region33: #{hrgat_forward.39} parent=1 // pred_fallthru
      _
    // Predicated region
    $region34: #{hrgat_forward.39} parent=1 // pred_check
      _
    $region35: #{hrgat_forward.39} parent=1 // pred_check_branch
      %48 = sbr.rel (0) target = $region37
    $region36: #{hrgat_forward.39} parent=1 // pred_region
      _
    $region37: #{hrgat_forward.39} parent=1 // pred_fallthru
      _
    // Predicated region
    $region38: #{hrgat_forward.39} parent=1 // pred_check
      _
    $region39: #{hrgat_forward.39} parent=1 // pred_check_branch
      %50 = sbr.rel (0) target = $region41
    $region40: #{hrgat_forward.39} parent=1 // pred_region
      %52 = dma.done [#allocation4], 16
    $region41: #{hrgat_forward.39} parent=1 // pred_fallthru
      _
    // Predicated region
    $region42: #{hrgat_forward.39} parent=1 // pred_check
      _
    $region43: #{hrgat_forward.39} parent=1 // pred_check_branch
      %54 = sbr.rel (0) target = $region45
    $region44: #{hrgat_forward.39} parent=1 // pred_region
      %56 = dma.done [#allocation6], 16
    $region45: #{hrgat_forward.39} parent=1 // pred_fallthru
      _
    %57 = sfence
    %v58 = vlaneseq
    %v59 = vand.u32 %v58, 127
    %vm60 = vcmp.lt.s32.totalorder %v59, 32
    %v61 = vld [vmem:[%s1] sm:$0xf]
    %v62 = vld [vmem:[%s1 + $0x4] sm:$0x3]
    %v63 = vunpack.c.l.bf16 %v61
    %v64 = vunpack.c.l.bf16 %v62
    %v65 = vld [vmem:[%s2] sm:$0x1]
    %v66 = vld [vmem:[%s2 + $0x1] sm:$0x1]
    %v67 = vperm.slane %v65, 0
    %v68 = vmul.f32 %v63, %v67
    %v69 = vmul.f32 %v64, %v67
    %70 = vadd.xlane.f32.xlu0 %v68
    %v71 = vpop.xlane.xlu0 %70
    %vm72 = vcmask 1043456
    %v73 = vsel %vm72, %v69, 0.0
    %74 = vadd.xlane.f32.xlu0 %v73
    %v75 = vpop.xlane.xlu0 %74
    %v76 = vld [vmem:[%s0] sm:$0xf]
    %v77 = vld [vmem:[%s0 + $0x4] sm:$0x3]
    %v78 = vunpack.c.l.bf16 %v76
    %v79 = vunpack.c.l.bf16 %v77
    %s80 = scalar_lea.vmem %s0, 8
    %v81 = vld [vmem:[%s80] sm:$0xf]
    %v82 = vld [vmem:[%s80 + $0x4] sm:$0x3]
    %v83 = vunpack.c.l.bf16 %v81
    %v84 = vunpack.c.l.bf16 %v82
    %v85 = vperm.slane %v66, 0
    %v86 = vmul.f32 %v78, %v85
    %v87 = vmul.f32 %v79, %v85
    %88 = vadd.xlane.f32.xlu0 %v86
    %v89 = vpop.xlane.xlu0 %88
    %v90 = vsel %vm72, %v87, 0.0
    %91 = vadd.xlane.f32.xlu0 %v90
    %v92 = vpop.xlane.xlu0 %91
    %v93 = vadd.f32 %v71, %v89
    %v94 = vadd.f32 %v75, %v92
    %v95 = vmul.f32 %v83, %v85
    %v96 = vmul.f32 %v84, %v85
    %97 = vadd.xlane.f32.xlu0 %v95
    %v98 = vpop.xlane.xlu0 %97
    %v99 = vsel %vm72, %v96, 0.0
    %100 = vadd.xlane.f32.xlu0 %v99
    %v101 = vpop.xlane.xlu0 %100
    %v102 = vadd.f32 %v71, %v98
    %v103 = vadd.f32 %v75, %v101
    %v104 = vmax.f32 %v93, %v102
    %v105 = vmax.f32 %v94, %v103
    %v106 = vsub.f32 %v93, %v104
    %v107 = vsub.f32 %v94, %v105
    %v108 = vmul.f32 %v106, 1.442695
    %v109 = vpow.pop %v108
    %v110 = vmul.f32 %v107, 1.442695
    %v111 = vpow.pop %v110
    %v112 = vsub.f32 %v102, %v104
    %v113 = vsub.f32 %v103, %v105
    %v114 = vmul.f32 %v112, 1.442695
    %v115 = vpow.pop %v114
    %v116 = vmul.f32 %v113, 1.442695
    %v117 = vpow.pop %v116
    %v118 = vadd.f32 %v109, %v115
    %v119 = vadd.f32 %v111, %v117
    %v120 = vrcp.pop %v118
    %v121 = vrcp.pop %v119
    %s122 = sld [smem:[#allocation5]]
    %s123 = sld [smem:[#allocation5 + $0x1]]
    %v124 = vmul.f32 %v109, %v120
    %v125 = vmul.f32 %v111, %v121
    %v126 = vstv %s122
    %v127 = vmul.f32 %v126, %v124
    %v128 = vmul.f32 %v126, %v125
    %s129 = sld [smem:[#allocation2]]
    %v130 = vstv %s129
    %v131 = vadd.f32 %v127, %v130
    %v132 = vadd.f32 %v128, %v130
    %v133 = vmul.f32 %v78, %v131
    %v134 = vmul.f32 %v79, %v132
    %v135 = vadd.f32 %v133, 0.0
    %v136 = vadd.f32 %v134, 0.0
    %v137 = vmul.f32 %v115, %v120
    %v138 = vmul.f32 %v117, %v121
    %v139 = vmul.f32 %v126, %v137
    %v140 = vmul.f32 %v126, %v138
    %s141 = sld [smem:[#allocation2 + $0x1]]
    %v142 = vstv %s141
    %v143 = vadd.f32 %v139, %v142
    %v144 = vadd.f32 %v140, %v142
    %v145 = vmul.f32 %v83, %v143
    %v146 = vmul.f32 %v84, %v144
    %v147 = vadd.f32 %v135, %v145
    %v148 = vadd.f32 %v136, %v146
    %v149 = vmul.f32 %v147, 0.5
    %v150 = vmul.f32 %v148, 0.5
    %v151 = vmul.f32 %v147, 0.044715
    %v152 = vmul.f32 %v148, 0.044715
    %v153 = vmul.f32 %v151, %v147
    %v154 = vmul.f32 %v152, %v148
    %v155 = vmul.f32 %v153, %v147
    %v156 = vmul.f32 %v154, %v148
    %v157 = vadd.f32 %v147, %v155
    %v158 = vadd.f32 %v148, %v156
    %v159 = vmul.f32 %v157, 0.7978846
    %v160 = vmul.f32 %v158, 0.7978846
    %v161 = vtanh.pop %v159
    %v162 = vtanh.pop %v160
    %v163 = vadd.f32 %v161, 1.0
    %v164 = vadd.f32 %v162, 1.0
    %v165 = vmul.f32 %v149, %v163
    %v166 = vmul.f32 %v150, %v164
    %v167 = vstv %s123
    %v168 = vmul.f32 %v165, %v167
    %v169 = vmul.f32 %v166, %v167
    %s170 = ssub.f32 1.0, %s123
    %v171 = vstv %s170
    %v172 = vmul.f32 %v63, %v171
    %v173 = vmul.f32 %v64, %v171
    %v174 = vadd.f32 %v168, %v172
    %v175 = vadd.f32 %v169, %v173
    %v176 = vld [vmem:[%s5] sm:$0x1]
    %v177 = vld [vmem:[%s6] sm:$0x1]
    %v178 = vsel %vm60, 1, 0
    %vm179 = vcmp.eq.s32.totalorder %v178, 1
    %v180 = vsel %vm179, %v174, 0.0
    %v181 = vsel %vm179, %v175, 0.0
    %182 = vadd.xlane.f32.xlu0 %v180
    %v183 = vpop.xlane.xlu0 %182
    %v184 = vsel %vm72, %v181, 0.0
    %185 = vadd.xlane.f32.xlu0 %v184
    %v186 = vpop.xlane.xlu0 %185
    %v187 = vmul.f32 %v183, 0.03125
    %v188 = vmul.f32 %v186, 0.03125
    %v189 = vsub.f32 %v174, %v187
    %v190 = vsub.f32 %v175, %v188
    %v191 = vsel %vm179, %v189, 0.0
    %v192 = vsel %vm179, %v190, 0.0
    %v193 = vmul.f32 %v191, %v191
    %v194 = vmul.f32 %v192, %v192
    %195 = vadd.xlane.f32.xlu0 %v193
    %v196 = vpop.xlane.xlu0 %195
    %v197 = vsel %vm72, %v194, 0.0
    %198 = vadd.xlane.f32.xlu0 %v197
    %v199 = vpop.xlane.xlu0 %198
    %v200 = vmul.f32 %v196, 0.03125
    %v201 = vmul.f32 %v199, 0.03125
    %v202 = vadd.f32 %v200, 1e-05
    %v203 = vadd.f32 %v201, 1e-05
    %v204 = vrsqrt.pop %v202
    %v205 = vmul.f32 %v204, %v202
    %v206 = vmul.f32 %v205, %v204
    %v207 = vmul.f32 0.5, %v206
    %v208 = vsub.f32 1.5, %v207
    %v209 = vmul.f32 %v204, %v208
    %vm210 = vweird.f32 %v202
    %vm211 = vweird.f32 %v204
    %vm212 = vmor %vm210, %vm211
    %v213 = vsel %vm212, %v204, %v209
    %v214 = vrsqrt.pop %v203
    %v215 = vmul.f32 %v214, %v203
    %v216 = vmul.f32 %v215, %v214
    %v217 = vmul.f32 0.5, %v216
    %v218 = vsub.f32 1.5, %v217
    %v219 = vmul.f32 %v214, %v218
    %vm220 = vweird.f32 %v203
    %vm221 = vweird.f32 %v214
    %vm222 = vmor %vm220, %vm221
    %v223 = vsel %vm222, %v214, %v219
    %v224 = vmul.f32 %v191, %v213
    %v225 = vmul.f32 %v192, %v223
    %v227 = vperm.slane %v176, 0
    %v229 = vmul.f32 %v224, %v227
    %v230 = vmul.f32 %v225, %v227
    %v232 = vperm.slane %v177, 0
    %v234 = vadd.f32 %v229, %v232
    %v235 = vadd.f32 %v230, %v232
    %v236 = vld [vmem:[%s7] sm:$0x1]
    %v237 = vld [vmem:[%s8] sm:$0x1]
    %v238 = vsel %vm179, %v234, 0.0
    %v239 = vsel %vm179, %v235, 0.0
    %240 = vadd.xlane.f32.xlu0 %v238
    %v241 = vpop.xlane.xlu0 %240
    %v242 = vsel %vm72, %v239, 0.0
    %243 = vadd.xlane.f32.xlu0 %v242
    %v244 = vpop.xlane.xlu0 %243
    %v245 = vmul.f32 %v241, 0.03125
    %v246 = vmul.f32 %v244, 0.03125
    %v247 = vsub.f32 %v234, %v245
    %v248 = vsub.f32 %v235, %v246
    %v249 = vsel %vm179, %v247, 0.0
    %v250 = vsel %vm179, %v248, 0.0
    %v251 = vmul.f32 %v249, %v249
    %v252 = vmul.f32 %v250, %v250
    %253 = vadd.xlane.f32.xlu0 %v251
    %v254 = vpop.xlane.xlu0 %253
    %v255 = vsel %vm72, %v252, 0.0
    %256 = vadd.xlane.f32.xlu0 %v255
    %v257 = vpop.xlane.xlu0 %256
    %v258 = vmul.f32 %v254, 0.03125
    %v259 = vmul.f32 %v257, 0.03125
    %v260 = vadd.f32 %v258, 1e-05
    %v261 = vadd.f32 %v259, 1e-05
    %v262 = vrsqrt.pop %v260
    %v263 = vmul.f32 %v262, %v260
    %v264 = vmul.f32 %v263, %v262
    %v265 = vmul.f32 0.5, %v264
    %v266 = vsub.f32 1.5, %v265
    %v267 = vmul.f32 %v262, %v266
    %vm268 = vweird.f32 %v260
    %vm269 = vweird.f32 %v262
    %vm270 = vmor %vm268, %vm269
    %v271 = vsel %vm270, %v262, %v267
    %v272 = vrsqrt.pop %v261
    %v273 = vmul.f32 %v272, %v261
    %v274 = vmul.f32 %v273, %v272
    %v275 = vmul.f32 0.5, %v274
    %v276 = vsub.f32 1.5, %v275
    %v277 = vmul.f32 %v272, %v276
    %vm278 = vweird.f32 %v261
    %vm279 = vweird.f32 %v272
    %vm280 = vmor %vm278, %vm279
    %v281 = vsel %vm280, %v272, %v277
    %v282 = vmul.f32 %v249, %v271
    %v283 = vmul.f32 %v250, %v281
    %v285 = vperm.slane %v236, 0
    %v287 = vmul.f32 %v282, %v285
    %v288 = vmul.f32 %v283, %v285
    %v290 = vperm.slane %v237, 0
    %v292 = vadd.f32 %v287, %v290
    %v293 = vadd.f32 %v288, %v290
    %294 = vst [vmem:[#allocation7] sm:$0xff] %v292
    %295 = vst [vmem:[#allocation7 + $0x8] sm:$0xf] %v293
    // Predicated region
    $region46: #{hrgat_forward.39} parent=1 // pred_check
      _
    $region47: #{hrgat_forward.39} parent=1 // pred_check_branch
      %297 = sbr.rel (0) target = $region49
    $region48: #{hrgat_forward.39} parent=1 // pred_region
      %299 = vsyncadd [#allocation3], 0
      %s300 = sshll.u32 [#allocation7], 4
      %s301 = int_to_ptr.vmem [resolvable:$true] %s300
      %s302 = sshll.u32 %s9, 4
      %s303 = int_to_ptr.hbm [resolvable:$true] %s302
      %308 = dma.vmem_to_hbm [thread:$0]  %s301, 256, %s303, [#allocation3], 128, 128, 8
    $region49: #{hrgat_forward.39} parent=1 // pred_fallthru
      _
    // Predicated region
    $region50: #{hrgat_forward.39} parent=1 // pred_check
      _
    $region51: #{hrgat_forward.39} parent=1 // pred_check_branch
      %310 = sbr.rel (0) target = $region53
    $region52: #{hrgat_forward.39} parent=1 // pred_region
      %312 = dma.done [#allocation3], 256
    $region53: #{hrgat_forward.39} parent=1 // pred_fallthru
      _
    %313 = vsyncpa [#allocation3], 1
    %314 = vsyncpa [#allocation4], 1
    %315 = vsyncpa [#allocation6], 1

</llo_original>
